<compile_context>
chip_gen: v6e
topology: v6e:2x2x1
jax: 0.10.0
libtpu: 0.0.40
codegen_flags: <defaults>
</compile_context>

<pallas_src>
import functools
import numpy as np
import jax
import jax.numpy as jnp
from jax.experimental import pallas as pl
from jax.experimental.pallas import tpu as pltpu


# ----------------------------------------------------------------------------
# Pallas kernel: TB windows, shape (TB, N, C), per grid step.
# ----------------------------------------------------------------------------
def _window_attn_kernel(x_ref, wqkv_ref, bqkv_ref, bias_ref, wp_ref, bp_ref, o_ref,
                        *, num_heads):
    TB, N, C = x_ref.shape
    H = num_heads
    hd = C // H
    md = wqkv_ref.dtype          # MXU input dtype (f32 or bf16); accumulation is f32

    # (TB, N, C) -> (TB*N, C): leading-dim merge (layout-safe, no relayout).
    x2d = x_ref[...].reshape(TB * N, C)

    # Fused QKV projection (q columns pre-scaled by the wrapper): one MXU push.
    qkv = jnp.dot(x2d, wqkv_ref[...],
                  preferred_element_type=jnp.float32) + bqkv_ref[...]    # (TB*N, 3C) f32

    # Stack all heads into one head-major leading batch axis.  The narrow column
    # slices are paid once here; everything downstream is a single batched op.
    def split_heads(col0):
        parts = [qkv[:, col0 + h * hd: col0 + (h + 1) * hd].reshape(TB, N, hd)
                 for h in range(H)]
        return jnp.concatenate(parts, axis=0)                # (H*TB, N, hd), head-major

    q_all = split_heads(0).astype(md)
    k_all = split_heads(C).astype(md)
    v_all = split_heads(2 * C).astype(md)

    # Scores for every (head, window) pair in one batched MXU einsum.
    s = jnp.einsum('bqd,bkd->bqk', q_all, k_all,
                   preferred_element_type=jnp.float32)                   # (H*TB, N, N)
    # Relative-position bias: broadcast over windows (leading dims only), back to 3D.
    s = (s.reshape(H, TB, N, N) + bias_ref[...][:, None, :, :]).reshape(H * TB, N, N)

    # One numerically-stable softmax pass; exp and reciprocal both hit the EUP slot.
    m = jnp.max(s, axis=-1, keepdims=True)
    e = jnp.exp(s - m)
    denom = jnp.sum(e, axis=-1, keepdims=True)
    p = e * pl.reciprocal(denom, approx=True)                            # (H*TB, N, N)

    # attn @ V, batched over (head, window).
    ctx = jnp.einsum('bqk,bkd->bqd', p.astype(md), v_all,
                     preferred_element_type=jnp.float32)                 # (H*TB, N, hd)

    # Concatenate heads along lanes -> (TB, N, C), then ONE K=C output projection
    # (replaces H small K=hd matmuls + accumulate chain).
    ctx_c = jnp.concatenate([ctx[h * TB:(h + 1) * TB] for h in range(H)], axis=-1)
    y = jnp.dot(ctx_c.reshape(TB * N, C).astype(md), wp_ref[...],
                preferred_element_type=jnp.float32) + bp_ref[...]        # (TB*N, C) f32

    # NOTE: padded windows (if any) carry bias-only softmax results; the wrapper
    # slices them off, so this is wasted work, not a correctness issue.
    o_ref[...] = y.reshape(TB, N, C).astype(o_ref.dtype)


# ----------------------------------------------------------------------------
# Wrapper
# ----------------------------------------------------------------------------
def window_attention_pallas(x, params, rel_pos_bias, num_heads, *,
                            grid_steps=2, matmul_dtype=jnp.float32):
    """x: (B_, N, C); rel_pos_bias: (num_heads, N, N).  Returns (B_, N, C) f32.

    grid_steps: number of grid iterations over the window batch.  Use a multiple
    of 2 on v7x (two TensorCores share the "parallel" axis); use 1 on v5e/v6e to
    minimize per-step (~0.35 us) pipeline overhead.
    matmul_dtype: MXU input dtype; bfloat16 is valid on v5e/v6e/v7x (accumulation,
    bias adds and softmax remain f32).
    """
    B_, N, C = x.shape
    H = num_heads

    steps = max(1, min(int(grid_steps), B_))
    TB = -(-B_ // steps)                       # windows per grid step
    B_pad = TB * steps
    if B_pad != B_:
        x = jnp.concatenate([x, jnp.zeros((B_pad - B_, N, C), x.dtype)], axis=0)

    xk = x.astype(matmul_dtype)
    wqkv_t = params["wqkv_t"].astype(matmul_dtype)    # (C, 3C), q columns pre-scaled
    wp_t = params["wp_t"].astype(matmul_dtype)        # (C, C)
    bqkv = params["bqkv"].astype(jnp.float32)         # (1, 3C), q part pre-scaled
    bp = params["bp"].astype(jnp.float32)             # (1, C)
    bias = rel_pos_bias.astype(jnp.float32)           # (H, N, N)

    # Per-step VMEM: double-buffered x/out blocks + resident weights + (H,N,N) bias
    # -- well under the scoped-VMEM default on every generation, so TB is chosen
    # for TensorCore balance / step count, not memory.

    flops = 2 * B_pad * N * C * (4 * C + 2 * N)
    transcendentals = B_pad * H * N * (N + 1)
    bytes_accessed = int(xk.size * xk.dtype.itemsize + B_pad * N * C * 4
                         + wqkv_t.size * wqkv_t.dtype.itemsize
                         + wp_t.size * wp_t.dtype.itemsize
                         + bias.size * 4 + bqkv.size * 4 + bp.size * 4)

    kernel = functools.partial(_window_attn_kernel, num_heads=num_heads)

    out = pl.pallas_call(
        kernel,
        out_shape=jax.ShapeDtypeStruct((B_pad, N, C), jnp.float32),
        grid=(steps,),
        in_specs=[
            pl.BlockSpec((TB, N, C), lambda b: (b, 0, 0)),     # x: TB windows / step
            pl.BlockSpec(wqkv_t.shape, lambda b: (0, 0)),      # resident fused QKV weight
            pl.BlockSpec(bqkv.shape, lambda b: (0, 0)),
            pl.BlockSpec(bias.shape, lambda b: (0, 0, 0)),     # resident rel-pos bias
            pl.BlockSpec(wp_t.shape, lambda b: (0, 0)),
            pl.BlockSpec(bp.shape, lambda b: (0, 0)),
        ],
        out_specs=pl.BlockSpec((TB, N, C), lambda b: (b, 0, 0)),
        compiler_params=pltpu.CompilerParams(
            dimension_semantics=("parallel",)),                # windows independent
        cost_estimate=pl.CostEstimate(flops=flops,
                                      transcendentals=transcendentals,
                                      bytes_accessed=bytes_accessed),
    )(xk, wqkv_t, bqkv, bias, wp_t, bp)

    return out[:B_]


# ----------------------------------------------------------------------------
# Module-equivalent setup (deterministic init) + relative position index
# ----------------------------------------------------------------------------
def make_relative_position_index(window_size):
    ws, wh, ww = window_size
    coords = np.stack(np.meshgrid(np.arange(ws), np.arange(wh), np.arange(ww),
                                  indexing="ij"))                       # (3, ws, wh, ww)
    coords_flatten = coords.reshape(3, -1)                              # (3, N)
    rel = coords_flatten[:, :, None] - coords_flatten[:, None, :]       # (3, N, N)
    rel = rel.transpose(1, 2, 0).astype(np.int64)                       # (N, N, 3)
    rel[:, :, 0] += ws - 1
    rel[:, :, 1] += wh - 1
    rel[:, :, 2] += ww - 1
    # NOTE: reproducing the module's (quirky) multipliers exactly:
    rel[:, :, 0] *= 3 * wh - 1
    rel[:, :, 1] *= 2 * wh - 1
    return rel.sum(-1)                                                  # (N, N)


def init_params(key, dim, window_size, num_heads):
    ks = jax.random.split(key, 5)
    table_size = (2 * window_size[0] - 1) * (2 * window_size[1] - 1) * (2 * window_size[2] - 1)
    # trunc_normal_(std=0.02) approximated by a clipped normal (deterministic here).
    table = jnp.clip(0.02 * jax.random.normal(ks[0], (table_size, num_heads)), -0.04, 0.04)
    wqkv = 0.02 * jax.random.normal(ks[1], (3 * dim, dim))   # torch Linear layout: (out, in)
    bqkv = 0.01 * jax.random.normal(ks[2], (3 * dim,))
    wproj = 0.02 * jax.random.normal(ks[3], (dim, dim))
    bproj = 0.01 * jax.random.normal(ks[4], (dim,))
    return dict(table=table, wqkv=wqkv, bqkv=bqkv, wproj=wproj, bproj=bproj)


def prep_kernel_params(raw, dim, scale):
    """Transpose to (in, out), fuse QKV, and fold the q-scale into weight/bias.

    NOTE: on the bf16 path the scale is folded BEFORE the bf16 cast, so q*scale
    rounds slightly differently than the PyTorch reference (expected drift,
    covered by the loose bf16 tolerance)."""
    wqkv_t = raw["wqkv"].T                                   # (C, 3C)
    col_scale = jnp.concatenate([jnp.full((dim,), scale, dtype=jnp.float32),
                                 jnp.ones((2 * dim,), dtype=jnp.float32)])
    return dict(
        wqkv_t=wqkv_t * col_scale[None, :],
        bqkv=(raw["bqkv"] * col_scale).reshape(1, 3 * dim),
        wp_t=raw["wproj"].T,
        bp=raw["bproj"].reshape(1, dim),
    )


# Pure-JAX reference mirroring the PyTorch forward (mask=None, pos_embed=None).
def reference_forward(x, raw, rel_bias, num_heads, scale):
    B_, N, C = x.shape
    hd = C // num_heads
    qkv = x @ raw["wqkv"].T + raw["bqkv"]
    qkv = qkv.reshape(B_, N, 3, num_heads, hd).transpose(2, 0, 3, 1, 4)
    q, k, v = qkv[0] * scale, qkv[1], qkv[2]
    attn = q @ jnp.swapaxes(k, -2, -1) + rel_bias[None]
    attn = jax.nn.softmax(attn, axis=-1)
    out = (attn @ v).transpose(0, 2, 1, 3).reshape(B_, N, C)
    return out @ raw["wproj"].T + raw["bproj"]


if __name__ == "__main__":
    dim = 32
    num_heads = 4
    window_size = (2, 4, 4)                    # N = 32 tokens per window
    N = window_size[0] * window_size[1] * window_size[2]
    B_ = 16                                    # num_windows * batch
    head_dim = dim // num_heads
    scale = head_dim ** (-0.5)

    key = jax.random.PRNGKey(0)
    kx, kp = jax.random.split(key)
    x = jax.random.normal(kx, (B_, N, dim), dtype=jnp.float32)

    raw = init_params(kp, dim, window_size, num_heads)
    rel_idx = make_relative_position_index(window_size)                # (N, N) int
    rel_bias = raw["table"][rel_idx.reshape(-1)].reshape(N, N, num_heads)
    rel_bias = jnp.transpose(rel_bias, (2, 0, 1)).astype(jnp.float32)  # (H, N, N)

    params = prep_kernel_params(raw, dim, scale)
    y_ref = reference_forward(x, raw, rel_bias, num_heads, scale)

    # f32, 2 grid steps (v7x-friendly dual-TC split): tight correctness check.
    y = window_attention_pallas(x, params, rel_bias, num_heads, grid_steps=2)
    y = jax.block_until_ready(y)
    np.testing.assert_allclose(np.asarray(y), np.asarray(y_ref), atol=2e-3, rtol=2e-3)

    # f32, single fat step (v5e/v6e-friendly grid collapse): tight check.
    y1 = window_attention_pallas(x, params, rel_bias, num_heads, grid_steps=1)
    y1 = jax.block_until_ready(y1)
    np.testing.assert_allclose(np.asarray(y1), np.asarray(y_ref), atol=2e-3, rtol=2e-3)

    # bf16 MXU inputs (valid on v5e/v6e/v7x): loose smoke check vs the f32 reference.
    y_bf16 = window_attention_pallas(x, params, rel_bias, num_heads,
                                     grid_steps=2, matmul_dtype=jnp.bfloat16)
    y_bf16 = jax.block_until_ready(y_bf16)
    np.testing.assert_allclose(np.asarray(y_bf16), np.asarray(y_ref), atol=5e-2, rtol=5e-2)

    print("KERNEL_OK")
</pallas_src>

<mosaic_0001>
module attributes {stable_mosaic.version = 11 : i64} {
  func.func @_window_attn_kernel(%arg0: i32, %arg1: memref<8x32x32xf32, #tpu.memory_space<vmem>>, %arg2: memref<32x96xf32, #tpu.memory_space<vmem>>, %arg3: memref<1x96xf32, #tpu.memory_space<vmem>>, %arg4: memref<4x32x32xf32, #tpu.memory_space<vmem>>, %arg5: memref<32x32xf32, #tpu.memory_space<vmem>>, %arg6: memref<1x32xf32, #tpu.memory_space<vmem>>, %arg7: memref<8x32x32xf32, #tpu.memory_space<vmem>>) attributes {dimension_semantics = [#tpu.dimension_semantics<parallel>], iteration_bounds = array<i64: 2>, scalar_prefetch = 0 : i64, scratch_operands = 0 : i64, tpu.core_type = #tpu.core_type<tc>, window_params = [{transform_indices = @transform_0, window_bounds = array<i64: 8, 32, 32>}, {pipeline_mode = #tpu.pipeline_mode<synchronous>, transform_indices = @transform_1, window_bounds = array<i64: 32, 96>}, {pipeline_mode = #tpu.pipeline_mode<synchronous>, transform_indices = @transform_2, window_bounds = array<i64: 1, 96>}, {pipeline_mode = #tpu.pipeline_mode<synchronous>, transform_indices = @transform_3, window_bounds = array<i64: 4, 32, 32>}, {pipeline_mode = #tpu.pipeline_mode<synchronous>, transform_indices = @transform_4, window_bounds = array<i64: 32, 32>}, {pipeline_mode = #tpu.pipeline_mode<synchronous>, transform_indices = @transform_5, window_bounds = array<i64: 1, 32>}, {transform_indices = @transform_6, window_bounds = array<i64: 8, 32, 32>}]} {
    %c0 = arith.constant 0 : index
    %c0_0 = arith.constant 0 : index
    %c0_1 = arith.constant 0 : index
    %0 = vector.load %arg1[%c0, %c0_0, %c0_1] : memref<8x32x32xf32, #tpu.memory_space<vmem>>, vector<8x32x32xf32>
    %1 = vector.shape_cast %0 : vector<8x32x32xf32> to vector<256x32xf32>
    %c0_2 = arith.constant 0 : index
    %c0_3 = arith.constant 0 : index
    %2 = vector.load %arg2[%c0_2, %c0_3] : memref<32x96xf32, #tpu.memory_space<vmem>>, vector<32x96xf32>
    %cst = arith.constant dense<0.000000e+00> : vector<256x96xf32>
    %3 = tpu.matmul %1, %2, %cst {dimension_numbers = #tpu.dot_dimension_numbers<[1], [0], [0], [1], [0, 0, 1, 1], [], []>} : vector<256x32xf32>, vector<32x96xf32>, vector<256x96xf32> -> vector<256x96xf32>
    %c0_4 = arith.constant 0 : index
    %c0_5 = arith.constant 0 : index
    %4 = vector.load %arg3[%c0_4, %c0_5] : memref<1x96xf32, #tpu.memory_space<vmem>>, vector<1x96xf32>
    %5 = vector.broadcast %4 : vector<1x96xf32> to vector<256x96xf32>
    %6 = arith.addf %3, %5 : vector<256x96xf32>
    %7 = vector.extract_strided_slice %6 {offsets = [0, 0], sizes = [256, 8], strides = [1, 1]} : vector<256x96xf32> to vector<256x8xf32>
    %8 = vector.shape_cast %7 : vector<256x8xf32> to vector<8x32x8xf32>
    %9 = vector.extract_strided_slice %6 {offsets = [0, 8], sizes = [256, 8], strides = [1, 1]} : vector<256x96xf32> to vector<256x8xf32>
    %10 = vector.shape_cast %9 : vector<256x8xf32> to vector<8x32x8xf32>
    %11 = vector.extract_strided_slice %6 {offsets = [0, 16], sizes = [256, 8], strides = [1, 1]} : vector<256x96xf32> to vector<256x8xf32>
    %12 = vector.shape_cast %11 : vector<256x8xf32> to vector<8x32x8xf32>
    %13 = vector.extract_strided_slice %6 {offsets = [0, 24], sizes = [256, 8], strides = [1, 1]} : vector<256x96xf32> to vector<256x8xf32>
    %14 = vector.shape_cast %13 : vector<256x8xf32> to vector<8x32x8xf32>
    %15 = tpu.concatenate %8, %10, %12, %14 in 0 : vector<8x32x8xf32>, vector<8x32x8xf32>, vector<8x32x8xf32>, vector<8x32x8xf32> -> vector<32x32x8xf32>
    %16 = vector.extract_strided_slice %6 {offsets = [0, 32], sizes = [256, 8], strides = [1, 1]} : vector<256x96xf32> to vector<256x8xf32>
    %17 = vector.shape_cast %16 : vector<256x8xf32> to vector<8x32x8xf32>
    %18 = vector.extract_strided_slice %6 {offsets = [0, 40], sizes = [256, 8], strides = [1, 1]} : vector<256x96xf32> to vector<256x8xf32>
    %19 = vector.shape_cast %18 : vector<256x8xf32> to vector<8x32x8xf32>
    %20 = vector.extract_strided_slice %6 {offsets = [0, 48], sizes = [256, 8], strides = [1, 1]} : vector<256x96xf32> to vector<256x8xf32>
    %21 = vector.shape_cast %20 : vector<256x8xf32> to vector<8x32x8xf32>
    %22 = vector.extract_strided_slice %6 {offsets = [0, 56], sizes = [256, 8], strides = [1, 1]} : vector<256x96xf32> to vector<256x8xf32>
    %23 = vector.shape_cast %22 : vector<256x8xf32> to vector<8x32x8xf32>
    %24 = tpu.concatenate %17, %19, %21, %23 in 0 : vector<8x32x8xf32>, vector<8x32x8xf32>, vector<8x32x8xf32>, vector<8x32x8xf32> -> vector<32x32x8xf32>
    %25 = vector.extract_strided_slice %6 {offsets = [0, 64], sizes = [256, 8], strides = [1, 1]} : vector<256x96xf32> to vector<256x8xf32>
    %26 = vector.shape_cast %25 : vector<256x8xf32> to vector<8x32x8xf32>
    %27 = vector.extract_strided_slice %6 {offsets = [0, 72], sizes = [256, 8], strides = [1, 1]} : vector<256x96xf32> to vector<256x8xf32>
    %28 = vector.shape_cast %27 : vector<256x8xf32> to vector<8x32x8xf32>
    %29 = vector.extract_strided_slice %6 {offsets = [0, 80], sizes = [256, 8], strides = [1, 1]} : vector<256x96xf32> to vector<256x8xf32>
    %30 = vector.shape_cast %29 : vector<256x8xf32> to vector<8x32x8xf32>
    %31 = vector.extract_strided_slice %6 {offsets = [0, 88], sizes = [256, 8], strides = [1, 1]} : vector<256x96xf32> to vector<256x8xf32>
    %32 = vector.shape_cast %31 : vector<256x8xf32> to vector<8x32x8xf32>
    %33 = tpu.concatenate %26, %28, %30, %32 in 0 : vector<8x32x8xf32>, vector<8x32x8xf32>, vector<8x32x8xf32>, vector<8x32x8xf32> -> vector<32x32x8xf32>
    "tpu.trace_start"() <{level = 10 : i32, message = "bqd,bkd->bqk"}> : () -> ()
    %cst_6 = arith.constant dense<0.000000e+00> : vector<32x32x32xf32>
    %34 = tpu.matmul %15, %24, %cst_6 {dimension_numbers = #tpu.dot_dimension_numbers<[2], [2], [1], [1], [0, 0, 0, 1, 1, 1], [0], [0]>} : vector<32x32x8xf32>, vector<32x32x8xf32>, vector<32x32x32xf32> -> vector<32x32x32xf32>
    "tpu.trace_stop"() : () -> ()
    %35 = vector.shape_cast %34 : vector<32x32x32xf32> to vector<4x8x32x32xf32>
    %c0_7 = arith.constant 0 : index
    %c0_8 = arith.constant 0 : index
    %c0_9 = arith.constant 0 : index
    %36 = vector.load %arg4[%c0_7, %c0_8, %c0_9] : memref<4x32x32xf32, #tpu.memory_space<vmem>>, vector<4x32x32xf32>
    %37 = vector.shape_cast %36 : vector<4x32x32xf32> to vector<4x1x32x32xf32>
    %38 = vector.broadcast %37 : vector<4x1x32x32xf32> to vector<4x8x32x32xf32>
    %39 = arith.addf %35, %38 : vector<4x8x32x32xf32>
    %40 = vector.shape_cast %39 : vector<4x8x32x32xf32> to vector<32x32x32xf32>
    %cst_10 = arith.constant dense<0xFF800000> : vector<32x32xf32>
    %41 = vector.multi_reduction <maximumf>, %40, %cst_10 [2] : vector<32x32x32xf32> to vector<32x32xf32>
    %42 = vector.shape_cast %41 : vector<32x32xf32> to vector<32x32x1xf32>
    %43 = vector.broadcast %42 : vector<32x32x1xf32> to vector<32x32x32xf32>
    %44 = arith.subf %40, %43 : vector<32x32x32xf32>
    %45 = math.exp %44 : vector<32x32x32xf32>
    %cst_11 = arith.constant dense<0.000000e+00> : vector<32x32xf32>
    %46 = vector.multi_reduction <add>, %45, %cst_11 [2] : vector<32x32x32xf32> to vector<32x32xf32>
    %47 = vector.shape_cast %46 : vector<32x32xf32> to vector<32x32x1xf32>
    %48 = tpu.reciprocal %47 {approx = true} : vector<32x32x1xf32> -> vector<32x32x1xf32>
    %49 = vector.broadcast %48 : vector<32x32x1xf32> to vector<32x32x32xf32>
    %50 = arith.mulf %45, %49 : vector<32x32x32xf32>
    "tpu.trace_start"() <{level = 10 : i32, message = "bqk,bkd->bqd"}> : () -> ()
    %cst_12 = arith.constant dense<0.000000e+00> : vector<32x32x8xf32>
    %51 = tpu.matmul %50, %33, %cst_12 {dimension_numbers = #tpu.dot_dimension_numbers<[2], [1], [1], [2], [0, 0, 0, 1, 1, 2], [0], [0]>} : vector<32x32x32xf32>, vector<32x32x8xf32>, vector<32x32x8xf32> -> vector<32x32x8xf32>
    "tpu.trace_stop"() : () -> ()
    %52 = vector.extract_strided_slice %51 {offsets = [0, 0, 0], sizes = [8, 32, 8], strides = [1, 1, 1]} : vector<32x32x8xf32> to vector<8x32x8xf32>
    %53 = vector.extract_strided_slice %51 {offsets = [8, 0, 0], sizes = [8, 32, 8], strides = [1, 1, 1]} : vector<32x32x8xf32> to vector<8x32x8xf32>
    %54 = vector.extract_strided_slice %51 {offsets = [16, 0, 0], sizes = [8, 32, 8], strides = [1, 1, 1]} : vector<32x32x8xf32> to vector<8x32x8xf32>
    %55 = vector.extract_strided_slice %51 {offsets = [24, 0, 0], sizes = [8, 32, 8], strides = [1, 1, 1]} : vector<32x32x8xf32> to vector<8x32x8xf32>
    %56 = tpu.concatenate %52, %53, %54, %55 in 2 : vector<8x32x8xf32>, vector<8x32x8xf32>, vector<8x32x8xf32>, vector<8x32x8xf32> -> vector<8x32x32xf32>
    %57 = vector.shape_cast %56 : vector<8x32x32xf32> to vector<256x32xf32>
    %c0_13 = arith.constant 0 : index
    %c0_14 = arith.constant 0 : index
    %58 = vector.load %arg5[%c0_13, %c0_14] : memref<32x32xf32, #tpu.memory_space<vmem>>, vector<32x32xf32>
    %cst_15 = arith.constant dense<0.000000e+00> : vector<256x32xf32>
    %59 = tpu.matmul %57, %58, %cst_15 {dimension_numbers = #tpu.dot_dimension_numbers<[1], [0], [0], [1], [0, 0, 1, 1], [], []>} : vector<256x32xf32>, vector<32x32xf32>, vector<256x32xf32> -> vector<256x32xf32>
    %c0_16 = arith.constant 0 : index
    %c0_17 = arith.constant 0 : index
    %60 = vector.load %arg6[%c0_16, %c0_17] : memref<1x32xf32, #tpu.memory_space<vmem>>, vector<1x32xf32>
    %61 = vector.broadcast %60 : vector<1x32xf32> to vector<256x32xf32>
    %62 = arith.addf %59, %61 : vector<256x32xf32>
    %63 = vector.shape_cast %62 : vector<256x32xf32> to vector<8x32x32xf32>
    %c0_18 = arith.constant 0 : index
    %c0_19 = arith.constant 0 : index
    %c0_20 = arith.constant 0 : index
    %64 = vector.load %arg7[%c0_18, %c0_19, %c0_20] : memref<8x32x32xf32, #tpu.memory_space<vmem>>, vector<8x32x32xf32>
    tpu.vector_store %arg7[%c0_18, %c0_19, %c0_20], %63 {strides = array<i32>} : memref<8x32x32xf32, #tpu.memory_space<vmem>>, vector<8x32x32xf32>,
    return
  }
  func.func @transform_0(%arg0: i32) -> (i32, i32, i32) {
    %c0_i32 = arith.constant 0 : i32
    %c0_i32_0 = arith.constant 0 : i32
    %c0_i32_1 = arith.constant 0 : i32
    return %arg0, %c0_i32, %c0_i32_0 : i32, i32, i32
  }
  func.func @transform_1(%arg0: i32) -> (i32, i32) {
    %c0_i32 = arith.constant 0 : i32
    %c0_i32_0 = arith.constant 0 : i32
    %c0_i32_1 = arith.constant 0 : i32
    return %c0_i32, %c0_i32_0 : i32, i32
  }
  func.func @transform_2(%arg0: i32) -> (i32, i32) {
    %c0_i32 = arith.constant 0 : i32
    %c0_i32_0 = arith.constant 0 : i32
    %c0_i32_1 = arith.constant 0 : i32
    return %c0_i32, %c0_i32_0 : i32, i32
  }
  func.func @transform_3(%arg0: i32) -> (i32, i32, i32) {
    %c0_i32 = arith.constant 0 : i32
    %c0_i32_0 = arith.constant 0 : i32
    %c0_i32_1 = arith.constant 0 : i32
    %c0_i32_2 = arith.constant 0 : i32
    return %c0_i32, %c0_i32_0, %c0_i32_1 : i32, i32, i32
  }
  func.func @transform_4(%arg0: i32) -> (i32, i32) {
    %c0_i32 = arith.constant 0 : i32
    %c0_i32_0 = arith.constant 0 : i32
    %c0_i32_1 = arith.constant 0 : i32
    return %c0_i32, %c0_i32_0 : i32, i32
  }
  func.func @transform_5(%arg0: i32) -> (i32, i32) {
    %c0_i32 = arith.constant 0 : i32
    %c0_i32_0 = arith.constant 0 : i32
    %c0_i32_1 = arith.constant 0 : i32
    return %c0_i32, %c0_i32_0 : i32, i32
  }
  func.func @transform_6(%arg0: i32) -> (i32, i32, i32) {
    %c0_i32 = arith.constant 0 : i32
    %c0_i32_0 = arith.constant 0 : i32
    %c0_i32_1 = arith.constant 0 : i32
    return %arg0, %c0_i32, %c0_i32_0 : i32, i32, i32
  }
}

</mosaic_0001>

<llo_original>
// kernel: tpu_custom_call.1
$region0: #{tpu_custom_call.1}
  #allocation0 [shape = 'u32[]', space=smem, size = 0x4, offset = 0x4, fixed_abs, tag = 'smem constant byte address 0x4 - core index']
  #allocation1 [shape = 'u32[144,128]{1,0:T(1,128)}', space=vmem, size = 0x12000, scoped, tag = 'internal scratch']
  %s0 = inlined_call_operand.hbm [shape: f32[16,32,32], index: 0, kind: input, shape index: {}]
  %s1 = inlined_call_operand.hbm [shape: f32[32,96], index: 1, kind: input, shape index: {}]
  %s2 = inlined_call_operand.vmem [shape: f32[1,96], index: 2, kind: input, shape index: {}]
  %s3 = inlined_call_operand.hbm [shape: f32[4,32,32], index: 3, kind: input, shape index: {}]
  %s4 = inlined_call_operand.hbm [shape: f32[32,32], index: 4, kind: input, shape index: {}]
  %s5 = inlined_call_operand.vmem [shape: f32[1,32], index: 5, kind: input, shape index: {}]
  %s6 = inlined_call_operand.hbm [shape: f32[16,32,32], index: 6, kind: output, shape index: {}]
  %s7 = sld [smem:[#allocation0]]
  $region73: #{tpu_custom_call.1} parent=0
    _
  %s9 = ssub.s32 1, %s7
  %s10 = scalar_select 0, %s9, %s7
  $region1: #{tpu_custom_call.1} parent=0
    #allocation2 [shape = 'u8[262144]{0}', space=vmem, size = 0x40000, scoped, tag = 'input window, operand 0']
    #allocation3 [shape = 's32[2]{0}', space=sflag, size = 0x8, scoped, tag = 'scoped memory for tpu_custom_call.1']
    #allocation4 [shape = 's32[2]{0}', space=sflag, size = 0x8, scoped, tag = 'scoped memory for tpu_custom_call.1']
    #allocation5 [shape = 'u8[16384]{0}', space=vmem, size = 0x4000, scoped, tag = 'input window, operand 1, single buffered']
    #allocation6 [shape = 's32[1]{0}', space=sflag, size = 0x4, scoped, tag = 'scoped memory for tpu_custom_call.1']
    #allocation7 [shape = 'u8[65536]{0}', space=vmem, size = 0x10000, scoped, tag = 'input window, operand 3, single buffered']
    #allocation8 [shape = 'u8[16384]{0}', space=vmem, size = 0x4000, scoped, tag = 'input window, operand 4, single buffered']
    #allocation9 [shape = 's32[1]{0}', space=sflag, size = 0x4, scoped, tag = 'scoped memory for tpu_custom_call.1']
    #allocation10 [shape = 'u8[262144]{0}', space=vmem, size = 0x40000, scoped, tag = 'output window, operand 0']
    %11 = vsyncpa [#allocation3], 0
    %s12 = scalar_lea.sflag [#allocation3], 1
    %13 = vsyncpa %s12, 0
    %14 = vsyncpa [#allocation6], 0
    %15 = vsyncpa [#allocation9], 0
    %16 = vsyncpa [#allocation4], 0
    %s17 = scalar_lea.sflag [#allocation4], 1
    %18 = vsyncpa %s17, 0
    loop: start=0, step=1, limit=4
    $region2: #{tpu_custom_call.1} parent=1 // loop_pre_header
      _
    $region3: #{tpu_custom_call.1} parent=1 // loop_header
      %s20 = sphi 0, %s24
      %p21 = scmp.ge.s32.totalorder %s20, 4
      %s30 = sphi 0, %s32
      %s33 = sphi 0, %s30
      %s34 = sphi 0, %s33
      %s50 = sphi 0, %s34
      %s54 = sphi 0, %s54
      %s56 = sphi 0, %s54
      %s57 = sphi 0, %s56
      %s71 = sphi 0, %s57
      %s75 = sphi 0, %s75
      %s77 = sphi 0, %s75
      %s78 = sphi 0, %s77
      %s92 = sphi 0, %s78
      %s96 = sphi 0, %s96
      %s98 = sphi 0, %s96
      %s99 = sphi 0, %s98
      %s113 = sphi 0, %s99
      %s117 = sphi 0, %s117
      %s119 = sphi 0, %s117
      %s120 = sphi 0, %s119
      %s134 = sphi 0, %s120
      %s138 = sphi 0, %s138
      %s140 = sphi 0, %s138
      %s141 = sphi 0, %s140
      %s155 = sphi 0, %s141
      %s161 = sphi 0, %s163
      %s164 = sphi 0, %s161
      %s165 = sphi 0, %s164
      %s181 = sphi 0, %s165
    $region4: #{tpu_custom_call.1} parent=1 // loop_header_branch
      %23 = sbr.rel (%p21) target = $region8
    $region5: #{tpu_custom_call.1} parent=1 // loop_body
      %s25 = ssub.s32 %s20, 1
      %s26 = ssub.s32 %s20, 2
      %s27 = sadd.s32 %s20, 1
      %s28 = ssub.s32 %s20, %s27
      %p29 = scmp.eq.s32.totalorder %s28, 0
      %s31 = sadd.s32 %s30, 1
      %s32 = scalar_select %p29, %s30, %s31
      %p35 = pneg %p29
      %p36 = scmp.eq.s32.totalorder %s20, 1
      %p37 = por %p35, %p36
      %p38 = scmp.ne.s32.totalorder %s30, %s33
      %p39 = scmp.eq.s32.totalorder %s20, 0
      %p40 = por %p38, %p39
      %p41 = scmp.ne.s32.totalorder %s30, %s33
      %p42 = scmp.eq.s32.totalorder %s25, 1
      %p43 = por %p41, %p42
      %p44 = scmp.ne.s32.totalorder %s33, %s34
      %p45 = scmp.eq.s32.totalorder %s25, 0
      %p46 = por %p44, %p45
      %p47 = scmp.ne.s32.totalorder %s33, %s34
      %p48 = scmp.eq.s32.totalorder %s26, 1
      %p49 = por %p47, %p48
      %p51 = scmp.ne.s32.totalorder %s34, %s50
      %p52 = scmp.eq.s32.totalorder %s26, 0
      %p53 = por %p51, %p52
      %s55 = sadd.s32 %s54, 1
      %p58 = scmp.eq.s32.totalorder %s20, 1
      %p59 = scmp.ne.s32.totalorder %s54, %s56
      %p60 = scmp.eq.s32.totalorder %s20, 0
      %p61 = por %p59, %p60
      %p62 = scmp.ne.s32.totalorder %s54, %s56
      %p63 = scmp.eq.s32.totalorder %s25, 1
      %p64 = por %p62, %p63
      %p65 = scmp.ne.s32.totalorder %s56, %s57
      %p66 = scmp.eq.s32.totalorder %s25, 0
      %p67 = por %p65, %p66
      %p68 = scmp.ne.s32.totalorder %s56, %s57
      %p69 = scmp.eq.s32.totalorder %s26, 1
      %p70 = por %p68, %p69
      %p72 = scmp.ne.s32.totalorder %s57, %s71
      %p73 = scmp.eq.s32.totalorder %s26, 0
      %p74 = por %p72, %p73
      %s76 = sadd.s32 %s75, 1
      %p79 = scmp.eq.s32.totalorder %s20, 1
      %p80 = scmp.ne.s32.totalorder %s75, %s77
      %p81 = scmp.eq.s32.totalorder %s20, 0
      %p82 = por %p80, %p81
      %p83 = scmp.ne.s32.totalorder %s75, %s77
      %p84 = scmp.eq.s32.totalorder %s25, 1
      %p85 = por %p83, %p84
      %p86 = scmp.ne.s32.totalorder %s77, %s78
      %p87 = scmp.eq.s32.totalorder %s25, 0
      %p88 = por %p86, %p87
      %p89 = scmp.ne.s32.totalorder %s77, %s78
      %p90 = scmp.eq.s32.totalorder %s26, 1
      %p91 = por %p89, %p90
      %p93 = scmp.ne.s32.totalorder %s78, %s92
      %p94 = scmp.eq.s32.totalorder %s26, 0
      %p95 = por %p93, %p94
      %s97 = sadd.s32 %s96, 1
      %p100 = scmp.eq.s32.totalorder %s20, 1
      %p101 = scmp.ne.s32.totalorder %s96, %s98
      %p102 = scmp.eq.s32.totalorder %s20, 0
      %p103 = por %p101, %p102
      %p104 = scmp.ne.s32.totalorder %s96, %s98
      %p105 = scmp.eq.s32.totalorder %s25, 1
      %p106 = por %p104, %p105
      %p107 = scmp.ne.s32.totalorder %s98, %s99
      %p108 = scmp.eq.s32.totalorder %s25, 0
      %p109 = por %p107, %p108
      %p110 = scmp.ne.s32.totalorder %s98, %s99
      %p111 = scmp.eq.s32.totalorder %s26, 1
      %p112 = por %p110, %p111
      %p114 = scmp.ne.s32.totalorder %s99, %s113
      %p115 = scmp.eq.s32.totalorder %s26, 0
      %p116 = por %p114, %p115
      %s118 = sadd.s32 %s117, 1
      %p121 = scmp.eq.s32.totalorder %s20, 1
      %p122 = scmp.ne.s32.totalorder %s117, %s119
      %p123 = scmp.eq.s32.totalorder %s20, 0
      %p124 = por %p122, %p123
      %p125 = scmp.ne.s32.totalorder %s117, %s119
      %p126 = scmp.eq.s32.totalorder %s25, 1
      %p127 = por %p125, %p126
      %p128 = scmp.ne.s32.totalorder %s119, %s120
      %p129 = scmp.eq.s32.totalorder %s25, 0
      %p130 = por %p128, %p129
      %p131 = scmp.ne.s32.totalorder %s119, %s120
      %p132 = scmp.eq.s32.totalorder %s26, 1
      %p133 = por %p131, %p132
      %p135 = scmp.ne.s32.totalorder %s120, %s134
      %p136 = scmp.eq.s32.totalorder %s26, 0
      %p137 = por %p135, %p136
      %s139 = sadd.s32 %s138, 1
      %p142 = scmp.eq.s32.totalorder %s20, 1
      %p143 = scmp.ne.s32.totalorder %s138, %s140
      %p144 = scmp.eq.s32.totalorder %s20, 0
      %p145 = por %p143, %p144
      %p146 = scmp.ne.s32.totalorder %s138, %s140
      %p147 = scmp.eq.s32.totalorder %s25, 1
      %p148 = por %p146, %p147
      %p149 = scmp.ne.s32.totalorder %s140, %s141
      %p150 = scmp.eq.s32.totalorder %s25, 0
      %p151 = por %p149, %p150
      %p152 = scmp.ne.s32.totalorder %s140, %s141
      %p153 = scmp.eq.s32.totalorder %s26, 1
      %p154 = por %p152, %p153
      %p156 = scmp.ne.s32.totalorder %s141, %s155
      %p157 = scmp.eq.s32.totalorder %s26, 0
      %p158 = por %p156, %p157
      %s159 = ssub.s32 %s20, %s27
      %p160 = scmp.eq.s32.totalorder %s159, 0
      %s162 = sadd.s32 %s161, 1
      %s163 = scalar_select %p160, %s161, %s162
      %p166 = pneg %p160
      %p167 = scmp.eq.s32.totalorder %s20, 1
      %p168 = por %p166, %p167
      %p169 = scmp.ne.s32.totalorder %s161, %s164
      %p170 = scmp.eq.s32.totalorder %s20, 0
      %p171 = por %p169, %p170
      %p172 = scmp.ne.s32.totalorder %s161, %s164
      %p173 = scmp.eq.s32.totalorder %s25, 1
      %p174 = por %p172, %p173
      %p175 = scmp.ne.s32.totalorder %s164, %s165
      %p176 = scmp.eq.s32.totalorder %s25, 0
      %p177 = por %p175, %p176
      %p178 = scmp.ne.s32.totalorder %s164, %s165
      %p179 = scmp.eq.s32.totalorder %s26, 1
      %p180 = por %p178, %p179
      %p182 = scmp.ne.s32.totalorder %s165, %s181
      %p183 = scmp.eq.s32.totalorder %s26, 0
      %p184 = por %p182, %p183
      %p185 = scmp.le.s32.totalorder 1, %s20
      %p186 = scmp.lt.s32.totalorder %s20, 3
      %p187 = pnand %p185, %p186
      %p188 = pneg %p187
      // Predicated region
      $region9: #{tpu_custom_call.1} parent=5 // pred_check
        _
      $region10: #{tpu_custom_call.1} parent=5 // pred_check_branch
        %190 = sbr.rel (%p187) target = $region12
      $region11: #{tpu_custom_call.1} parent=5 // pred_region
        %s191 = ssub.s32 %s20, 1
        // Predicated region
        $region13: #{tpu_custom_call.1} parent=11 // pred_check
          %p192 = pneg %p67
        $region14: #{tpu_custom_call.1} parent=11 // pred_check_branch
          %194 = sbr.rel (%p192) target = $region16
        $region15: #{tpu_custom_call.1} parent=11 // pred_region
          %s196 = ssub.s32 512, 512
          %197 = vsyncadd [#allocation6], %s196
          %s198 = sshll.u32 [#allocation5], 4
          %s199 = int_to_ptr.vmem [resolvable:$true] %s198
          %204 = dma.hbm_to_vmem [thread:$0]  %s1, 512, %s199, [#allocation6], 128, 128, 8
        $region16: #{tpu_custom_call.1} parent=11 // pred_fallthru
          _
        // Predicated region
        $region17: #{tpu_custom_call.1} parent=11 // pred_check
          %p205 = pneg %p88
        $region18: #{tpu_custom_call.1} parent=11 // pred_check_branch
          %207 = sbr.rel (%p205) target = $region20
        $region19: #{tpu_custom_call.1} parent=11 // pred_region
          _
        $region20: #{tpu_custom_call.1} parent=11 // pred_fallthru
          _
        // Predicated region
        $region21: #{tpu_custom_call.1} parent=11 // pred_check
          %p208 = pneg %p109
        $region22: #{tpu_custom_call.1} parent=11 // pred_check_branch
          %210 = sbr.rel (%p208) target = $region24
        $region23: #{tpu_custom_call.1} parent=11 // pred_region
          %s212 = ssub.s32 2048, 2048
          %213 = vsyncadd [#allocation6], %s212
          %s214 = sshll.u32 [#allocation7], 4
          %s215 = int_to_ptr.vmem [resolvable:$true] %s214
          %220 = dma.hbm_to_vmem [thread:$0]  %s3, 2048, %s215, [#allocation6], 128, 128, 8
        $region24: #{tpu_custom_call.1} parent=11 // pred_fallthru
          _
        // Predicated region
        $region25: #{tpu_custom_call.1} parent=11 // pred_check
          %p221 = pneg %p130
        $region26: #{tpu_custom_call.1} parent=11 // pred_check_branch
          %223 = sbr.rel (%p221) target = $region28
        $region27: #{tpu_custom_call.1} parent=11 // pred_region
          %s225 = ssub.s32 512, 512
          %226 = vsyncadd [#allocation9], %s225
          %s227 = sshll.u32 [#allocation8], 4
          %s228 = int_to_ptr.vmem [resolvable:$true] %s227
          %233 = dma.hbm_to_vmem [thread:$0]  %s4, 512, %s228, [#allocation9], 128, 128, 8
        $region28: #{tpu_custom_call.1} parent=11 // pred_fallthru
          _
        // Predicated region
        $region29: #{tpu_custom_call.1} parent=11 // pred_check
          %p234 = pneg %p151
        $region30: #{tpu_custom_call.1} parent=11 // pred_check_branch
          %236 = sbr.rel (%p234) target = $region32
        $region31: #{tpu_custom_call.1} parent=11 // pred_region
          _
        $region32: #{tpu_custom_call.1} parent=11 // pred_fallthru
          _
      $region12: #{tpu_custom_call.1} parent=5 // pred_fallthru
        _
      %p237 = scmp.lt.s32.totalorder %s20, 2
      // Predicated region
      $region33: #{tpu_custom_call.1} parent=5 // pred_check
        %p238 = pneg %p237
      $region34: #{tpu_custom_call.1} parent=5 // pred_check_branch
        %240 = sbr.rel (%p238) target = $region36
      $region35: #{tpu_custom_call.1} parent=5 // pred_region
        // Predicated region
        $region37: #{tpu_custom_call.1} parent=35 // pred_check
          %p241 = pneg %p40
        $region38: #{tpu_custom_call.1} parent=35 // pred_check_branch
          %243 = sbr.rel (%p241) target = $region40
        $region39: #{tpu_custom_call.1} parent=35 // pred_region
          %s244 = sand.u32 %s30, 1
          %s245 = scalar_lea.sflag [#allocation3], %s244
          %s246 = sand.u32 %s30, 1
          %s247 = smul.addr %s246, 256
          %s248 = scalar_lea.vmem [#allocation2], %s247
          %s249 = smul.u32 8, %s20
          %s251 = ssub.s32 4096, 4096
          %252 = vsyncadd %s245, %s251
          %s253 = smul.addr %s249, 4
          %s254 = smul.addr %s253, 128
          %s255 = scalar_lea.hbm %s0, %s254
          %s256 = sshll.u32 %s248, 4
          %s257 = int_to_ptr.vmem [resolvable:$true] %s256
          %262 = dma.hbm_to_vmem [thread:$0]  %s255, 4096, %s257, %s245, 128, 128, 8
        $region40: #{tpu_custom_call.1} parent=35 // pred_fallthru
          _
      $region36: #{tpu_custom_call.1} parent=5 // pred_fallthru
        _
      %p263 = scmp.le.s32.totalorder 1, %s20
      %p264 = scmp.lt.s32.totalorder %s20, 3
      %p265 = pnand %p263, %p264
      %p266 = pneg %p265
      // Predicated region
      $region41: #{tpu_custom_call.1} parent=5 // pred_check
        _
      $region42: #{tpu_custom_call.1} parent=5 // pred_check_branch
        %268 = sbr.rel (%p265) target = $region44
      $region43: #{tpu_custom_call.1} parent=5 // pred_region
        %s269 = ssub.s32 %s20, 1
        %s270 = sand.u32 %s33, 1
        %s271 = scalar_lea.sflag [#allocation3], %s270
        %s272 = sand.u32 %s33, 1
        %s273 = smul.addr %s272, 256
        %s274 = scalar_lea.vmem [#allocation2], %s273
        // Predicated region
        $region45: #{tpu_custom_call.1} parent=43 // pred_check
          %p275 = pneg %p46
        $region46: #{tpu_custom_call.1} parent=43 // pred_check_branch
          %277 = sbr.rel (%p275) target = $region48
        $region47: #{tpu_custom_call.1} parent=43 // pred_region
          %278 = dma.done %s271, 4096
        $region48: #{tpu_custom_call.1} parent=43 // pred_fallthru
          _
        // Predicated region
        $region49: #{tpu_custom_call.1} parent=43 // pred_check
          %p279 = pneg %p67
        $region50: #{tpu_custom_call.1} parent=43 // pred_check_branch
          %281 = sbr.rel (%p279) target = $region52
        $region51: #{tpu_custom_call.1} parent=43 // pred_region
          %282 = dma.done [#allocation6], 512
        $region52: #{tpu_custom_call.1} parent=43 // pred_fallthru
          _
        // Predicated region
        $region53: #{tpu_custom_call.1} parent=43 // pred_check
          %p283 = pneg %p109
        $region54: #{tpu_custom_call.1} parent=43 // pred_check_branch
          %285 = sbr.rel (%p283) target = $region56
        $region55: #{tpu_custom_call.1} parent=43 // pred_region
          %286 = dma.done [#allocation6], 2048
        $region56: #{tpu_custom_call.1} parent=43 // pred_fallthru
          _
        // Predicated region
        $region57: #{tpu_custom_call.1} parent=43 // pred_check
          %p287 = pneg %p130
        $region58: #{tpu_custom_call.1} parent=43 // pred_check_branch
          %289 = sbr.rel (%p287) target = $region60
        $region59: #{tpu_custom_call.1} parent=43 // pred_region
          %290 = dma.done [#allocation9], 512
        $region60: #{tpu_custom_call.1} parent=43 // pred_fallthru
          _
        %s291 = sand.u32 %s33, 1
        %s292 = scalar_lea.sflag [#allocation3], %s291
        %s293 = sand.u32 %s33, 1
        %s294 = smul.addr %s293, 256
        %s295 = scalar_lea.vmem [#allocation2], %s294
        %p296 = pneg %p46
        %p297 = pneg %p43
        %p298 = pneg %p67
        %p299 = pneg %p64
        %p300 = pneg %p88
        %p301 = pneg %p85
        %p302 = pneg %p109
        %p303 = pneg %p106
        %p304 = pneg %p130
        %p305 = pneg %p127
        %p306 = pneg %p151
        %p307 = pneg %p148
        %p308 = pneg %p177
        %p309 = pneg %p174
        %s310 = sand.u32 %s164, 1
        %s311 = scalar_lea.sflag [#allocation4], %s310
        %s312 = sand.u32 %s164, 1
        %s313 = smul.addr %s312, 256
        %s314 = scalar_lea.vmem [#allocation10], %s313
        %s315 = smul.u32 8, %s25
        %s316 = smul.u32 8, %s25
        %v317 = vld [vmem:[%s274] sm:$0xff]
        %v318 = vld [vmem:[%s274 + $0x8] sm:$0xff]
        %v319 = vld [vmem:[%s274 + $0x10] sm:$0xff]
        %v320 = vld [vmem:[%s274 + $0x18] sm:$0xff]
        %v321 = vld [vmem:[%s274 + $0x20] sm:$0xff]
        %v322 = vld [vmem:[%s274 + $0x28] sm:$0xff]
        %v323 = vld [vmem:[%s274 + $0x30] sm:$0xff]
        %v324 = vld [vmem:[%s274 + $0x38] sm:$0xff]
        %v325 = vld [vmem:[%s274 + $0x40] sm:$0xff]
        %v326 = vld [vmem:[%s274 + $0x48] sm:$0xff]
        %v327 = vld [vmem:[%s274 + $0x50] sm:$0xff]
        %v328 = vld [vmem:[%s274 + $0x58] sm:$0xff]
        %v329 = vld [vmem:[%s274 + $0x60] sm:$0xff]
        %v330 = vld [vmem:[%s274 + $0x68] sm:$0xff]
        %v331 = vld [vmem:[%s274 + $0x70] sm:$0xff]
        %v332 = vld [vmem:[%s274 + $0x78] sm:$0xff]
        %v333 = vld [vmem:[%s274 + $0x80] sm:$0xff]
        %v334 = vld [vmem:[%s274 + $0x88] sm:$0xff]
        %v335 = vld [vmem:[%s274 + $0x90] sm:$0xff]
        %v336 = vld [vmem:[%s274 + $0x98] sm:$0xff]
        %v337 = vld [vmem:[%s274 + $0xa0] sm:$0xff]
        %v338 = vld [vmem:[%s274 + $0xa8] sm:$0xff]
        %v339 = vld [vmem:[%s274 + $0xb0] sm:$0xff]
        %v340 = vld [vmem:[%s274 + $0xb8] sm:$0xff]
        %v341 = vld [vmem:[%s274 + $0xc0] sm:$0xff]
        %v342 = vld [vmem:[%s274 + $0xc8] sm:$0xff]
        %v343 = vld [vmem:[%s274 + $0xd0] sm:$0xff]
        %v344 = vld [vmem:[%s274 + $0xd8] sm:$0xff]
        %v345 = vld [vmem:[%s274 + $0xe0] sm:$0xff]
        %v346 = vld [vmem:[%s274 + $0xe8] sm:$0xff]
        %v347 = vld [vmem:[%s274 + $0xf0] sm:$0xff]
        %v348 = vld [vmem:[%s274 + $0xf8] sm:$0xff]
        %v349 = vld [vmem:[#allocation5] sm:$0xff]
        %v350 = vld [vmem:[#allocation5 + $0x8] sm:$0xff]
        %v351 = vld [vmem:[#allocation5 + $0x10] sm:$0xff]
        %v352 = vld [vmem:[#allocation5 + $0x18] sm:$0xff]
        %v353 = vld [vmem:[%s2] sm:$0x1]
        %v355 = vlaneseq
        %v356 = vshrl.u32 %v355, 7
        %v357 = vsub.s32 0, %v356
        %v358 = vrot.slane %v353, %v357
        %vm360 = vcmask 261120
        %v362 = vsel %vm360, %v317, 0
        %v365 = vsel %vm360, %v318, 0
        %v368 = vsel %vm360, %v319, 0
        %v371 = vsel %vm360, %v320, 0
        %v374 = vsel %vm360, %v321, 0
        %v377 = vsel %vm360, %v322, 0
        %v380 = vsel %vm360, %v323, 0
        %v383 = vsel %vm360, %v324, 0
        %v386 = vsel %vm360, %v325, 0
        %v389 = vsel %vm360, %v326, 0
        %v392 = vsel %vm360, %v327, 0
        %v395 = vsel %vm360, %v328, 0
        %v398 = vsel %vm360, %v329, 0
        %v401 = vsel %vm360, %v330, 0
        %v404 = vsel %vm360, %v331, 0
        %v407 = vsel %vm360, %v332, 0
        %v410 = vsel %vm360, %v333, 0
        %v413 = vsel %vm360, %v334, 0
        %v416 = vsel %vm360, %v335, 0
        %v419 = vsel %vm360, %v336, 0
        %v422 = vsel %vm360, %v337, 0
        %v425 = vsel %vm360, %v338, 0
        %v428 = vsel %vm360, %v339, 0
        %v431 = vsel %vm360, %v340, 0
        %v434 = vsel %vm360, %v341, 0
        %v437 = vsel %vm360, %v342, 0
        %v440 = vsel %vm360, %v343, 0
        %v443 = vsel %vm360, %v344, 0
        %v446 = vsel %vm360, %v345, 0
        %v449 = vsel %vm360, %v346, 0
        %v452 = vsel %vm360, %v347, 0
        %v455 = vsel %vm360, %v348, 0
        %457 = vmatprep.subr.mxu0 0.0
        %458 = vmatpush1.msra.mxu0 0.0
        %459 = vmatprep.subr.mxu0 0.0
        %460 = vmatpush1.msra.mxu0 0.0
        %461 = vmatprep.subr.mxu0 0.0
        %462 = vmatpush1.msra.mxu0 0.0
        %463 = vmatprep.subr.mxu0 0.0
        %464 = vmatpush1.msra.mxu0 0.0
        %465 = vmatprep.subr.mxu0 0.0
        %466 = vmatpush1.msra.mxu0 0.0
        %467 = vmatprep.subr.mxu0 0.0
        %468 = vmatpush1.msra.mxu0 0.0
        %469 = vmatprep.subr.mxu0 0.0
        %470 = vmatpush1.msra.mxu0 0.0
        %471 = vmatprep.subr.mxu0 0.0
        %472 = vmatpush1.msra.mxu0 0.0
        %473 = vmatprep.subr.mxu0 0.0
        %474 = vmatpush1.msra.mxu0 0.0
        %475 = vmatprep.subr.mxu0 0.0
        %476 = vmatpush1.msra.mxu0 0.0
        %477 = vmatprep.subr.mxu0 0.0
        %478 = vmatpush1.msra.mxu0 0.0
        %479 = vmatprep.subr.mxu0 0.0
        %480 = vmatpush1.msra.mxu0 0.0
        %481 = vmatprep.subr.mxu0 0.0
        %482 = vmatpush1.msra.mxu0 %v352
        %483 = vmatprep.subr.mxu0 0.0
        %484 = vmatpush1.msra.mxu0 %v351
        %485 = vmatprep.subr.mxu0 0.0
        %486 = vmatpush1.msra.mxu0 %v350
        %487 = vmatprep.subr.mxu0 0.0
        %488 = vmatpush1.msra.mxu0 %v349
        %489 = vmatprep.subr.mxu0 0.0
        %490 = vmatpush2.msra.mxu0 0.0
        %491 = vmatprep.subr.mxu0 0.0
        %492 = vmatpush2.msra.mxu0 0.0
        %493 = vmatprep.subr.mxu0 0.0
        %494 = vmatpush2.msra.mxu0 0.0
        %495 = vmatprep.subr.mxu0 0.0
        %496 = vmatpush2.msra.mxu0 0.0
        %497 = vmatprep.subr.mxu0 0.0
        %498 = vmatpush2.msra.mxu0 0.0
        %499 = vmatprep.subr.mxu0 0.0
        %500 = vmatpush2.msra.mxu0 0.0
        %501 = vmatprep.subr.mxu0 0.0
        %502 = vmatpush2.msra.mxu0 0.0
        %503 = vmatprep.subr.mxu0 0.0
        %504 = vmatpush2.msra.mxu0 0.0
        %505 = vmatprep.subr.mxu0 0.0
        %506 = vmatpush2.msra.mxu0 0.0
        %507 = vmatprep.subr.mxu0 0.0
        %508 = vmatpush2.msra.mxu0 0.0
        %509 = vmatprep.subr.mxu0 0.0
        %510 = vmatpush2.msra.mxu0 0.0
        %511 = vmatprep.subr.mxu0 0.0
        %512 = vmatpush2.msra.mxu0 0.0
        %513 = vmatprep.subr.mxu0 0.0
        %514 = vmatpush2.msra.mxu0 0.0
        %515 = vmatprep.subr.mxu0 0.0
        %516 = vmatpush2.msra.mxu0 0.0
        %517 = vmatprep.subr.mxu0 0.0
        %518 = vmatpush2.msra.mxu0 0.0
        %519 = vmatprep.subr.mxu0 0.0
        %520 = vmatpush2.msra.mxu0 0.0
        %521 = vmatprep.mubr.f32.mxu0 0.0
        %522 = vmatmul.mubr.f32.gmra.mxu0 %v362
        %v523 = vpop.f32.mrf.mxu0
        %v524 = vadd.f32 %v358, %v523
        %v525 = vpop.f32.mrf.mxu0
        %526 = vmatprep.mubr.f32.mxu0 0.0
        %527 = vmatmul.mubr.f32.gmra.mxu0 %v365
        %v528 = vpop.f32.mrf.mxu0
        %v529 = vadd.f32 %v358, %v528
        %v530 = vpop.f32.mrf.mxu0
        %531 = vmatprep.mubr.f32.mxu0 0.0
        %532 = vmatmul.mubr.f32.gmra.mxu0 %v368
        %v533 = vpop.f32.mrf.mxu0
        %v534 = vadd.f32 %v358, %v533
        %v535 = vpop.f32.mrf.mxu0
        %536 = vmatprep.mubr.f32.mxu0 0.0
        %537 = vmatmul.mubr.f32.gmra.mxu0 %v371
        %v538 = vpop.f32.mrf.mxu0
        %v539 = vadd.f32 %v358, %v538
        %v540 = vpop.f32.mrf.mxu0
        %541 = vmatprep.mubr.f32.mxu0 0.0
        %542 = vmatmul.mubr.f32.gmra.mxu0 %v374
        %v543 = vpop.f32.mrf.mxu0
        %v544 = vadd.f32 %v358, %v543
        %v545 = vpop.f32.mrf.mxu0
        %546 = vmatprep.mubr.f32.mxu0 0.0
        %547 = vmatmul.mubr.f32.gmra.mxu0 %v377
        %v548 = vpop.f32.mrf.mxu0
        %v549 = vadd.f32 %v358, %v548
        %v550 = vpop.f32.mrf.mxu0
        %551 = vmatprep.mubr.f32.mxu0 0.0
        %552 = vmatmul.mubr.f32.gmra.mxu0 %v380
        %v553 = vpop.f32.mrf.mxu0
        %v554 = vadd.f32 %v358, %v553
        %v555 = vpop.f32.mrf.mxu0
        %556 = vmatprep.mubr.f32.mxu0 0.0
        %557 = vmatmul.mubr.f32.gmra.mxu0 %v383
        %v558 = vpop.f32.mrf.mxu0
        %v559 = vadd.f32 %v358, %v558
        %v560 = vpop.f32.mrf.mxu0
        %561 = vmatprep.mubr.f32.mxu0 0.0
        %562 = vmatmul.mubr.f32.gmra.mxu0 %v386
        %v563 = vpop.f32.mrf.mxu0
        %v564 = vadd.f32 %v358, %v563
        %v565 = vpop.f32.mrf.mxu0
        %566 = vmatprep.mubr.f32.mxu0 0.0
        %567 = vmatmul.mubr.f32.gmra.mxu0 %v389
        %v568 = vpop.f32.mrf.mxu0
        %v569 = vadd.f32 %v358, %v568
        %v570 = vpop.f32.mrf.mxu0
        %571 = vmatprep.mubr.f32.mxu0 0.0
        %572 = vmatmul.mubr.f32.gmra.mxu0 %v392
        %v573 = vpop.f32.mrf.mxu0
        %v574 = vadd.f32 %v358, %v573
        %v575 = vpop.f32.mrf.mxu0
        %576 = vmatprep.mubr.f32.mxu0 0.0
        %577 = vmatmul.mubr.f32.gmra.mxu0 %v395
        %v578 = vpop.f32.mrf.mxu0
        %v579 = vadd.f32 %v358, %v578
        %v580 = vpop.f32.mrf.mxu0
        %581 = vmatprep.mubr.f32.mxu0 0.0
        %582 = vmatmul.mubr.f32.gmra.mxu0 %v398
        %v583 = vpop.f32.mrf.mxu0
        %v584 = vadd.f32 %v358, %v583
        %v585 = vpop.f32.mrf.mxu0
        %586 = vmatprep.mubr.f32.mxu0 0.0
        %587 = vmatmul.mubr.f32.gmra.mxu0 %v401
        %v588 = vpop.f32.mrf.mxu0
        %v589 = vadd.f32 %v358, %v588
        %v590 = vpop.f32.mrf.mxu0
        %591 = vmatprep.mubr.f32.mxu0 0.0
        %592 = vmatmul.mubr.f32.gmra.mxu0 %v404
        %v593 = vpop.f32.mrf.mxu0
        %v594 = vadd.f32 %v358, %v593
        %v595 = vpop.f32.mrf.mxu0
        %596 = vmatprep.mubr.f32.mxu0 0.0
        %597 = vmatmul.mubr.f32.gmra.mxu0 %v407
        %v598 = vpop.f32.mrf.mxu0
        %v599 = vadd.f32 %v358, %v598
        %v600 = vpop.f32.mrf.mxu0
        %601 = vmatprep.mubr.f32.mxu0 0.0
        %602 = vmatmul.mubr.f32.gmra.mxu0 %v410
        %v603 = vpop.f32.mrf.mxu0
        %v604 = vadd.f32 %v358, %v603
        %v605 = vpop.f32.mrf.mxu0
        %606 = vmatprep.mubr.f32.mxu0 0.0
        %607 = vmatmul.mubr.f32.gmra.mxu0 %v413
        %v608 = vpop.f32.mrf.mxu0
        %v609 = vadd.f32 %v358, %v608
        %v610 = vpop.f32.mrf.mxu0
        %611 = vmatprep.mubr.f32.mxu0 0.0
        %612 = vmatmul.mubr.f32.gmra.mxu0 %v416
        %v613 = vpop.f32.mrf.mxu0
        %v614 = vadd.f32 %v358, %v613
        %v615 = vpop.f32.mrf.mxu0
        %616 = vmatprep.mubr.f32.mxu0 0.0
        %617 = vmatmul.mubr.f32.gmra.mxu0 %v419
        %v618 = vpop.f32.mrf.mxu0
        %v619 = vadd.f32 %v358, %v618
        %v620 = vpop.f32.mrf.mxu0
        %621 = vmatprep.mubr.f32.mxu0 0.0
        %622 = vmatmul.mubr.f32.gmra.mxu0 %v422
        %v623 = vpop.f32.mrf.mxu0
        %v624 = vadd.f32 %v358, %v623
        %v625 = vpop.f32.mrf.mxu0
        %626 = vmatprep.mubr.f32.mxu0 0.0
        %627 = vmatmul.mubr.f32.gmra.mxu0 %v425
        %v628 = vpop.f32.mrf.mxu0
        %v629 = vadd.f32 %v358, %v628
        %v630 = vpop.f32.mrf.mxu0
        %631 = vmatprep.mubr.f32.mxu0 0.0
        %632 = vmatmul.mubr.f32.gmra.mxu0 %v428
        %v633 = vpop.f32.mrf.mxu0
        %v634 = vadd.f32 %v358, %v633
        %v635 = vpop.f32.mrf.mxu0
        %636 = vmatprep.mubr.f32.mxu0 0.0
        %637 = vmatmul.mubr.f32.gmra.mxu0 %v431
        %v638 = vpop.f32.mrf.mxu0
        %v639 = vadd.f32 %v358, %v638
        %v640 = vpop.f32.mrf.mxu0
        %641 = vmatprep.mubr.f32.mxu0 0.0
        %642 = vmatmul.mubr.f32.gmra.mxu0 %v434
        %v643 = vpop.f32.mrf.mxu0
        %v644 = vadd.f32 %v358, %v643
        %v645 = vpop.f32.mrf.mxu0
        %646 = vmatprep.mubr.f32.mxu0 0.0
        %647 = vmatmul.mubr.f32.gmra.mxu0 %v437
        %v648 = vpop.f32.mrf.mxu0
        %v649 = vadd.f32 %v358, %v648
        %v650 = vpop.f32.mrf.mxu0
        %651 = vmatprep.mubr.f32.mxu0 0.0
        %652 = vmatmul.mubr.f32.gmra.mxu0 %v440
        %v653 = vpop.f32.mrf.mxu0
        %v654 = vadd.f32 %v358, %v653
        %v655 = vpop.f32.mrf.mxu0
        %656 = vmatprep.mubr.f32.mxu0 0.0
        %657 = vmatmul.mubr.f32.gmra.mxu0 %v443
        %v658 = vpop.f32.mrf.mxu0
        %v659 = vadd.f32 %v358, %v658
        %v660 = vpop.f32.mrf.mxu0
        %661 = vmatprep.mubr.f32.mxu0 0.0
        %662 = vmatmul.mubr.f32.gmra.mxu0 %v446
        %v663 = vpop.f32.mrf.mxu0
        %v664 = vadd.f32 %v358, %v663
        %v665 = vpop.f32.mrf.mxu0
        %666 = vmatprep.mubr.f32.mxu0 0.0
        %667 = vmatmul.mubr.f32.gmra.mxu0 %v449
        %v668 = vpop.f32.mrf.mxu0
        %v669 = vadd.f32 %v358, %v668
        %v670 = vpop.f32.mrf.mxu0
        %671 = vmatprep.mubr.f32.mxu0 0.0
        %672 = vmatmul.mubr.f32.gmra.mxu0 %v452
        %v673 = vpop.f32.mrf.mxu0
        %v674 = vadd.f32 %v358, %v673
        %v675 = vpop.f32.mrf.mxu0
        %676 = vmatprep.mubr.f32.mxu0 0.0
        %677 = vmatmul.mubr.f32.gmra.mxu0 %v455
        %v678 = vpop.f32.mrf.mxu0
        %v679 = vadd.f32 %v358, %v678
        %v680 = vpop.f32.mrf.mxu0
        %681 = vdwg.mxu0
        %714 = vrot.lane.b32.xlu0 %v524, 120
        %v715 = vpop.permute.xlu0 %714
        %716 = vrot.lane.b32.xlu0 %v529, 120
        %v717 = vpop.permute.xlu0 %716
        %718 = vrot.lane.b32.xlu0 %v534, 120
        %v719 = vpop.permute.xlu0 %718
        %720 = vrot.lane.b32.xlu0 %v539, 120
        %v721 = vpop.permute.xlu0 %720
        %722 = vrot.lane.b32.xlu0 %v544, 120
        %v723 = vpop.permute.xlu0 %722
        %724 = vrot.lane.b32.xlu0 %v549, 120
        %v725 = vpop.permute.xlu0 %724
        %726 = vrot.lane.b32.xlu0 %v554, 120
        %v727 = vpop.permute.xlu0 %726
        %728 = vrot.lane.b32.xlu0 %v559, 120
        %v729 = vpop.permute.xlu0 %728
        %730 = vrot.lane.b32.xlu0 %v564, 120
        %v731 = vpop.permute.xlu0 %730
        %732 = vrot.lane.b32.xlu0 %v569, 120
        %v733 = vpop.permute.xlu0 %732
        %734 = vrot.lane.b32.xlu0 %v574, 120
        %v735 = vpop.permute.xlu0 %734
        %736 = vrot.lane.b32.xlu0 %v579, 120
        %v737 = vpop.permute.xlu0 %736
        %738 = vrot.lane.b32.xlu0 %v584, 120
        %v739 = vpop.permute.xlu0 %738
        %740 = vrot.lane.b32.xlu0 %v589, 120
        %v741 = vpop.permute.xlu0 %740
        %742 = vrot.lane.b32.xlu0 %v594, 120
        %v743 = vpop.permute.xlu0 %742
        %744 = vrot.lane.b32.xlu0 %v599, 120
        %v745 = vpop.permute.xlu0 %744
        %746 = vrot.lane.b32.xlu0 %v604, 120
        %v747 = vpop.permute.xlu0 %746
        %748 = vrot.lane.b32.xlu0 %v609, 120
        %v749 = vpop.permute.xlu0 %748
        %750 = vrot.lane.b32.xlu0 %v614, 120
        %v751 = vpop.permute.xlu0 %750
        %752 = vrot.lane.b32.xlu0 %v619, 120
        %v753 = vpop.permute.xlu0 %752
        %754 = vrot.lane.b32.xlu0 %v624, 120
        %v755 = vpop.permute.xlu0 %754
        %756 = vrot.lane.b32.xlu0 %v629, 120
        %v757 = vpop.permute.xlu0 %756
        %758 = vrot.lane.b32.xlu0 %v634, 120
        %v759 = vpop.permute.xlu0 %758
        %760 = vrot.lane.b32.xlu0 %v639, 120
        %v761 = vpop.permute.xlu0 %760
        %762 = vrot.lane.b32.xlu0 %v644, 120
        %v763 = vpop.permute.xlu0 %762
        %764 = vrot.lane.b32.xlu0 %v649, 120
        %v765 = vpop.permute.xlu0 %764
        %766 = vrot.lane.b32.xlu0 %v654, 120
        %v767 = vpop.permute.xlu0 %766
        %768 = vrot.lane.b32.xlu0 %v659, 120
        %v769 = vpop.permute.xlu0 %768
        %770 = vrot.lane.b32.xlu0 %v664, 120
        %v771 = vpop.permute.xlu0 %770
        %772 = vrot.lane.b32.xlu0 %v669, 120
        %v773 = vpop.permute.xlu0 %772
        %774 = vrot.lane.b32.xlu0 %v674, 120
        %v775 = vpop.permute.xlu0 %774
        %776 = vrot.lane.b32.xlu0 %v679, 120
        %v777 = vpop.permute.xlu0 %776
        %778 = vrot.lane.b32.xlu0 %v524, 112
        %v779 = vpop.permute.xlu0 %778
        %780 = vrot.lane.b32.xlu0 %v529, 112
        %v781 = vpop.permute.xlu0 %780
        %782 = vrot.lane.b32.xlu0 %v534, 112
        %v783 = vpop.permute.xlu0 %782
        %784 = vrot.lane.b32.xlu0 %v539, 112
        %v785 = vpop.permute.xlu0 %784
        %786 = vrot.lane.b32.xlu0 %v544, 112
        %v787 = vpop.permute.xlu0 %786
        %788 = vrot.lane.b32.xlu0 %v549, 112
        %v789 = vpop.permute.xlu0 %788
        %790 = vrot.lane.b32.xlu0 %v554, 112
        %v791 = vpop.permute.xlu0 %790
        %792 = vrot.lane.b32.xlu0 %v559, 112
        %v793 = vpop.permute.xlu0 %792
        %794 = vrot.lane.b32.xlu0 %v564, 112
        %v795 = vpop.permute.xlu0 %794
        %796 = vrot.lane.b32.xlu0 %v569, 112
        %v797 = vpop.permute.xlu0 %796
        %798 = vrot.lane.b32.xlu0 %v574, 112
        %v799 = vpop.permute.xlu0 %798
        %800 = vrot.lane.b32.xlu0 %v579, 112
        %v801 = vpop.permute.xlu0 %800
        %802 = vrot.lane.b32.xlu0 %v584, 112
        %v803 = vpop.permute.xlu0 %802
        %804 = vrot.lane.b32.xlu0 %v589, 112
        %v805 = vpop.permute.xlu0 %804
        %806 = vrot.lane.b32.xlu0 %v594, 112
        %v807 = vpop.permute.xlu0 %806
        %808 = vrot.lane.b32.xlu0 %v599, 112
        %v809 = vpop.permute.xlu0 %808
        %810 = vrot.lane.b32.xlu0 %v604, 112
        %v811 = vpop.permute.xlu0 %810
        %812 = vrot.lane.b32.xlu0 %v609, 112
        %v813 = vpop.permute.xlu0 %812
        %814 = vrot.lane.b32.xlu0 %v614, 112
        %v815 = vpop.permute.xlu0 %814
        %816 = vrot.lane.b32.xlu0 %v619, 112
        %v817 = vpop.permute.xlu0 %816
        %818 = vrot.lane.b32.xlu0 %v624, 112
        %v819 = vpop.permute.xlu0 %818
        %820 = vrot.lane.b32.xlu0 %v629, 112
        %v821 = vpop.permute.xlu0 %820
        %822 = vrot.lane.b32.xlu0 %v634, 112
        %v823 = vpop.permute.xlu0 %822
        %824 = vrot.lane.b32.xlu0 %v639, 112
        %v825 = vpop.permute.xlu0 %824
        %826 = vrot.lane.b32.xlu0 %v644, 112
        %v827 = vpop.permute.xlu0 %826
        %828 = vrot.lane.b32.xlu0 %v649, 112
        %v829 = vpop.permute.xlu0 %828
        %830 = vrot.lane.b32.xlu0 %v654, 112
        %v831 = vpop.permute.xlu0 %830
        %832 = vrot.lane.b32.xlu0 %v659, 112
        %v833 = vpop.permute.xlu0 %832
        %834 = vrot.lane.b32.xlu0 %v664, 112
        %v835 = vpop.permute.xlu0 %834
        %836 = vrot.lane.b32.xlu0 %v669, 112
        %v837 = vpop.permute.xlu0 %836
        %838 = vrot.lane.b32.xlu0 %v674, 112
        %v839 = vpop.permute.xlu0 %838
        %840 = vrot.lane.b32.xlu0 %v679, 112
        %v841 = vpop.permute.xlu0 %840
        %842 = vrot.lane.b32.xlu0 %v524, 104
        %v843 = vpop.permute.xlu0 %842
        %844 = vrot.lane.b32.xlu0 %v529, 104
        %v845 = vpop.permute.xlu0 %844
        %846 = vrot.lane.b32.xlu0 %v534, 104
        %v847 = vpop.permute.xlu0 %846
        %848 = vrot.lane.b32.xlu0 %v539, 104
        %v849 = vpop.permute.xlu0 %848
        %850 = vrot.lane.b32.xlu0 %v544, 104
        %v851 = vpop.permute.xlu0 %850
        %852 = vrot.lane.b32.xlu0 %v549, 104
        %v853 = vpop.permute.xlu0 %852
        %854 = vrot.lane.b32.xlu0 %v554, 104
        %v855 = vpop.permute.xlu0 %854
        %856 = vrot.lane.b32.xlu0 %v559, 104
        %v857 = vpop.permute.xlu0 %856
        %858 = vrot.lane.b32.xlu0 %v564, 104
        %v859 = vpop.permute.xlu0 %858
        %860 = vrot.lane.b32.xlu0 %v569, 104
        %v861 = vpop.permute.xlu0 %860
        %862 = vrot.lane.b32.xlu0 %v574, 104
        %v863 = vpop.permute.xlu0 %862
        %864 = vrot.lane.b32.xlu0 %v579, 104
        %v865 = vpop.permute.xlu0 %864
        %866 = vrot.lane.b32.xlu0 %v584, 104
        %v867 = vpop.permute.xlu0 %866
        %868 = vrot.lane.b32.xlu0 %v589, 104
        %v869 = vpop.permute.xlu0 %868
        %870 = vrot.lane.b32.xlu0 %v594, 104
        %v871 = vpop.permute.xlu0 %870
        %872 = vrot.lane.b32.xlu0 %v599, 104
        %v873 = vpop.permute.xlu0 %872
        %874 = vrot.lane.b32.xlu0 %v604, 104
        %v875 = vpop.permute.xlu0 %874
        %876 = vrot.lane.b32.xlu0 %v609, 104
        %v877 = vpop.permute.xlu0 %876
        %878 = vrot.lane.b32.xlu0 %v614, 104
        %v879 = vpop.permute.xlu0 %878
        %880 = vrot.lane.b32.xlu0 %v619, 104
        %v881 = vpop.permute.xlu0 %880
        %882 = vrot.lane.b32.xlu0 %v624, 104
        %v883 = vpop.permute.xlu0 %882
        %884 = vrot.lane.b32.xlu0 %v629, 104
        %v885 = vpop.permute.xlu0 %884
        %886 = vrot.lane.b32.xlu0 %v634, 104
        %v887 = vpop.permute.xlu0 %886
        %888 = vrot.lane.b32.xlu0 %v639, 104
        %v889 = vpop.permute.xlu0 %888
        %890 = vrot.lane.b32.xlu0 %v644, 104
        %v891 = vpop.permute.xlu0 %890
        %892 = vrot.lane.b32.xlu0 %v649, 104
        %v893 = vpop.permute.xlu0 %892
        %894 = vrot.lane.b32.xlu0 %v654, 104
        %v895 = vpop.permute.xlu0 %894
        %896 = vrot.lane.b32.xlu0 %v659, 104
        %v897 = vpop.permute.xlu0 %896
        %898 = vrot.lane.b32.xlu0 %v664, 104
        %v899 = vpop.permute.xlu0 %898
        %900 = vrot.lane.b32.xlu0 %v669, 104
        %v901 = vpop.permute.xlu0 %900
        %902 = vrot.lane.b32.xlu0 %v674, 104
        %v903 = vpop.permute.xlu0 %902
        %904 = vrot.lane.b32.xlu0 %v679, 104
        %v905 = vpop.permute.xlu0 %904
        %906 = vrot.lane.b32.xlu0 %v524, 96
        %v907 = vpop.permute.xlu0 %906
        %908 = vrot.lane.b32.xlu0 %v529, 96
        %v909 = vpop.permute.xlu0 %908
        %910 = vrot.lane.b32.xlu0 %v534, 96
        %v911 = vpop.permute.xlu0 %910
        %912 = vrot.lane.b32.xlu0 %v539, 96
        %v913 = vpop.permute.xlu0 %912
        %vm914 = vcmask 64512
        %v915 = vsel %vm914, %v524, 0
        %v917 = vsel %vm914, %v529, 0
        %v919 = vsel %vm914, %v534, 0
        %v921 = vsel %vm914, %v539, 0
        %v923 = vsel %vm914, %v907, 0
        %v925 = vsel %vm914, %v909, 0
        %v927 = vsel %vm914, %v911, 0
        %v929 = vsel %vm914, %v913, 0
        %931 = vmatprep.subr.mxu0 0.0
        %932 = vmatpush1.xpose.msra.mxu0 0.0
        %933 = vmatprep.subr.mxu0 0.0
        %934 = vmatpush1.xpose.msra.mxu0 0.0
        %935 = vmatprep.subr.mxu0 0.0
        %936 = vmatpush1.xpose.msra.mxu0 0.0
        %937 = vmatprep.subr.mxu0 0.0
        %938 = vmatpush1.xpose.msra.mxu0 0.0
        %939 = vmatprep.subr.mxu0 0.0
        %940 = vmatpush1.xpose.msra.mxu0 0.0
        %941 = vmatprep.subr.mxu0 0.0
        %942 = vmatpush1.xpose.msra.mxu0 0.0
        %943 = vmatprep.subr.mxu0 0.0
        %944 = vmatpush1.xpose.msra.mxu0 0.0
        %945 = vmatprep.subr.mxu0 0.0
        %946 = vmatpush1.xpose.msra.mxu0 0.0
        %947 = vmatprep.subr.mxu0 0.0
        %948 = vmatpush1.xpose.msra.mxu0 0.0
        %949 = vmatprep.subr.mxu0 0.0
        %950 = vmatpush1.xpose.msra.mxu0 0.0
        %951 = vmatprep.subr.mxu0 0.0
        %952 = vmatpush1.xpose.msra.mxu0 0.0
        %953 = vmatprep.subr.mxu0 0.0
        %954 = vmatpush1.xpose.msra.mxu0 0.0
        %955 = vmatprep.subr.mxu0 0.0
        %956 = vmatpush1.xpose.msra.mxu0 %v929
        %957 = vmatprep.subr.mxu0 0.0
        %958 = vmatpush1.xpose.msra.mxu0 %v927
        %959 = vmatprep.subr.mxu0 0.0
        %960 = vmatpush1.xpose.msra.mxu0 %v925
        %961 = vmatprep.subr.mxu0 0.0
        %962 = vmatpush1.xpose.msra.mxu0 %v923
        %963 = vmatprep.subr.mxu0 0.0
        %964 = vmatpush2.xpose.msra.mxu0 0.0
        %965 = vmatprep.subr.mxu0 0.0
        %966 = vmatpush2.xpose.msra.mxu0 0.0
        %967 = vmatprep.subr.mxu0 0.0
        %968 = vmatpush2.xpose.msra.mxu0 0.0
        %969 = vmatprep.subr.mxu0 0.0
        %970 = vmatpush2.xpose.msra.mxu0 0.0
        %971 = vmatprep.subr.mxu0 0.0
        %972 = vmatpush2.xpose.msra.mxu0 0.0
        %973 = vmatprep.subr.mxu0 0.0
        %974 = vmatpush2.xpose.msra.mxu0 0.0
        %975 = vmatprep.subr.mxu0 0.0
        %976 = vmatpush2.xpose.msra.mxu0 0.0
        %977 = vmatprep.subr.mxu0 0.0
        %978 = vmatpush2.xpose.msra.mxu0 0.0
        %979 = vmatprep.subr.mxu0 0.0
        %980 = vmatpush2.xpose.msra.mxu0 0.0
        %981 = vmatprep.subr.mxu0 0.0
        %982 = vmatpush2.xpose.msra.mxu0 0.0
        %983 = vmatprep.subr.mxu0 0.0
        %984 = vmatpush2.xpose.msra.mxu0 0.0
        %985 = vmatprep.subr.mxu0 0.0
        %986 = vmatpush2.xpose.msra.mxu0 0.0
        %987 = vmatprep.subr.mxu0 0.0
        %988 = vmatpush2.xpose.msra.mxu0 0.0
        %989 = vmatprep.subr.mxu0 0.0
        %990 = vmatpush2.xpose.msra.mxu0 0.0
        %991 = vmatprep.subr.mxu0 0.0
        %992 = vmatpush2.xpose.msra.mxu0 0.0
        %993 = vmatprep.subr.mxu0 0.0
        %994 = vmatpush2.xpose.msra.mxu0 0.0
        %995 = vmatprep.mubr.f32.mxu0 0.0
        %996 = vmatmul.mubr.f32.gmra.mxu0 %v915
        %v997 = vpop.f32.mrf.mxu0
        %v998 = vadd.f32 0.0, %v997
        %v999 = vpop.f32.mrf.mxu0
        %1000 = vmatprep.mubr.f32.mxu0 0.0
        %1001 = vmatmul.mubr.f32.gmra.mxu0 %v917
        %v1002 = vpop.f32.mrf.mxu0
        %v1003 = vadd.f32 0.0, %v1002
        %v1004 = vpop.f32.mrf.mxu0
        %1005 = vmatprep.mubr.f32.mxu0 0.0
        %1006 = vmatmul.mubr.f32.gmra.mxu0 %v919
        %v1007 = vpop.f32.mrf.mxu0
        %v1008 = vadd.f32 0.0, %v1007
        %v1009 = vpop.f32.mrf.mxu0
        %1010 = vmatprep.mubr.f32.mxu0 0.0
        %1011 = vmatmul.mubr.f32.gmra.mxu0 %v921
        %v1012 = vpop.f32.mrf.mxu0
        %v1013 = vadd.f32 0.0, %v1012
        %v1014 = vpop.f32.mrf.mxu0
        %1015 = vdwg.mxu0
        %1016 = vrot.lane.b32.xlu0 %v544, 96
        %v1017 = vpop.permute.xlu0 %1016
        %1018 = vrot.lane.b32.xlu0 %v549, 96
        %v1019 = vpop.permute.xlu0 %1018
        %1020 = vrot.lane.b32.xlu0 %v554, 96
        %v1021 = vpop.permute.xlu0 %1020
        %1022 = vrot.lane.b32.xlu0 %v559, 96
        %v1023 = vpop.permute.xlu0 %1022
        %v1024 = vsel %vm914, %v544, 0
        %v1026 = vsel %vm914, %v549, 0
        %v1028 = vsel %vm914, %v554, 0
        %v1030 = vsel %vm914, %v559, 0
        %v1032 = vsel %vm914, %v1017, 0
        %v1034 = vsel %vm914, %v1019, 0
        %v1036 = vsel %vm914, %v1021, 0
        %v1038 = vsel %vm914, %v1023, 0
        %1040 = vmatprep.subr.mxu0 0.0
        %1041 = vmatpush1.xpose.msra.mxu0 0.0
        %1042 = vmatprep.subr.mxu0 0.0
        %1043 = vmatpush1.xpose.msra.mxu0 0.0
        %1044 = vmatprep.subr.mxu0 0.0
        %1045 = vmatpush1.xpose.msra.mxu0 0.0
        %1046 = vmatprep.subr.mxu0 0.0
        %1047 = vmatpush1.xpose.msra.mxu0 0.0
        %1048 = vmatprep.subr.mxu0 0.0
        %1049 = vmatpush1.xpose.msra.mxu0 0.0
        %1050 = vmatprep.subr.mxu0 0.0
        %1051 = vmatpush1.xpose.msra.mxu0 0.0
        %1052 = vmatprep.subr.mxu0 0.0
        %1053 = vmatpush1.xpose.msra.mxu0 0.0
        %1054 = vmatprep.subr.mxu0 0.0
        %1055 = vmatpush1.xpose.msra.mxu0 0.0
        %1056 = vmatprep.subr.mxu0 0.0
        %1057 = vmatpush1.xpose.msra.mxu0 0.0
        %1058 = vmatprep.subr.mxu0 0.0
        %1059 = vmatpush1.xpose.msra.mxu0 0.0
        %1060 = vmatprep.subr.mxu0 0.0
        %1061 = vmatpush1.xpose.msra.mxu0 0.0
        %1062 = vmatprep.subr.mxu0 0.0
        %1063 = vmatpush1.xpose.msra.mxu0 0.0
        %1064 = vmatprep.subr.mxu0 0.0
        %1065 = vmatpush1.xpose.msra.mxu0 %v1038
        %1066 = vmatprep.subr.mxu0 0.0
        %1067 = vmatpush1.xpose.msra.mxu0 %v1036
        %1068 = vmatprep.subr.mxu0 0.0
        %1069 = vmatpush1.xpose.msra.mxu0 %v1034
        %1070 = vmatprep.subr.mxu0 0.0
        %1071 = vmatpush1.xpose.msra.mxu0 %v1032
        %1072 = vmatprep.subr.mxu0 0.0
        %1073 = vmatpush2.xpose.msra.mxu0 0.0
        %1074 = vmatprep.subr.mxu0 0.0
        %1075 = vmatpush2.xpose.msra.mxu0 0.0
        %1076 = vmatprep.subr.mxu0 0.0
        %1077 = vmatpush2.xpose.msra.mxu0 0.0
        %1078 = vmatprep.subr.mxu0 0.0
        %1079 = vmatpush2.xpose.msra.mxu0 0.0
        %1080 = vmatprep.subr.mxu0 0.0
        %1081 = vmatpush2.xpose.msra.mxu0 0.0
        %1082 = vmatprep.subr.mxu0 0.0
        %1083 = vmatpush2.xpose.msra.mxu0 0.0
        %1084 = vmatprep.subr.mxu0 0.0
        %1085 = vmatpush2.xpose.msra.mxu0 0.0
        %1086 = vmatprep.subr.mxu0 0.0
        %1087 = vmatpush2.xpose.msra.mxu0 0.0
        %1088 = vmatprep.subr.mxu0 0.0
        %1089 = vmatpush2.xpose.msra.mxu0 0.0
        %1090 = vmatprep.subr.mxu0 0.0
        %1091 = vmatpush2.xpose.msra.mxu0 0.0
        %1092 = vmatprep.subr.mxu0 0.0
        %1093 = vmatpush2.xpose.msra.mxu0 0.0
        %1094 = vmatprep.subr.mxu0 0.0
        %1095 = vmatpush2.xpose.msra.mxu0 0.0
        %1096 = vmatprep.subr.mxu0 0.0
        %1097 = vmatpush2.xpose.msra.mxu0 0.0
        %1098 = vmatprep.subr.mxu0 0.0
        %1099 = vmatpush2.xpose.msra.mxu0 0.0
        %1100 = vmatprep.subr.mxu0 0.0
        %1101 = vmatpush2.xpose.msra.mxu0 0.0
        %1102 = vmatprep.subr.mxu0 0.0
        %1103 = vmatpush2.xpose.msra.mxu0 0.0
        %1104 = vmatprep.mubr.f32.mxu0 0.0
        %1105 = vmatmul.mubr.f32.gmra.mxu0 %v1024
        %v1106 = vpop.f32.mrf.mxu0
        %v1107 = vadd.f32 0.0, %v1106
        %v1108 = vpop.f32.mrf.mxu0
        %1109 = vmatprep.mubr.f32.mxu0 0.0
        %1110 = vmatmul.mubr.f32.gmra.mxu0 %v1026
        %v1111 = vpop.f32.mrf.mxu0
        %v1112 = vadd.f32 0.0, %v1111
        %v1113 = vpop.f32.mrf.mxu0
        %1114 = vmatprep.mubr.f32.mxu0 0.0
        %1115 = vmatmul.mubr.f32.gmra.mxu0 %v1028
        %v1116 = vpop.f32.mrf.mxu0
        %v1117 = vadd.f32 0.0, %v1116
        %v1118 = vpop.f32.mrf.mxu0
        %1119 = vmatprep.mubr.f32.mxu0 0.0
        %1120 = vmatmul.mubr.f32.gmra.mxu0 %v1030
        %v1121 = vpop.f32.mrf.mxu0
        %v1122 = vadd.f32 0.0, %v1121
        %v1123 = vpop.f32.mrf.mxu0
        %1124 = vdwg.mxu0
        %1125 = vrot.lane.b32.xlu0 %v564, 96
        %v1126 = vpop.permute.xlu0 %1125
        %1127 = vrot.lane.b32.xlu0 %v569, 96
        %v1128 = vpop.permute.xlu0 %1127
        %1129 = vrot.lane.b32.xlu0 %v574, 96
        %v1130 = vpop.permute.xlu0 %1129
        %1131 = vrot.lane.b32.xlu0 %v579, 96
        %v1132 = vpop.permute.xlu0 %1131
        %v1133 = vsel %vm914, %v564, 0
        %v1135 = vsel %vm914, %v569, 0
        %v1137 = vsel %vm914, %v574, 0
        %v1139 = vsel %vm914, %v579, 0
        %v1141 = vsel %vm914, %v1126, 0
        %v1143 = vsel %vm914, %v1128, 0
        %v1145 = vsel %vm914, %v1130, 0
        %v1147 = vsel %vm914, %v1132, 0
        %1149 = vmatprep.subr.mxu0 0.0
        %1150 = vmatpush1.xpose.msra.mxu0 0.0
        %1151 = vmatprep.subr.mxu0 0.0
        %1152 = vmatpush1.xpose.msra.mxu0 0.0
        %1153 = vmatprep.subr.mxu0 0.0
        %1154 = vmatpush1.xpose.msra.mxu0 0.0
        %1155 = vmatprep.subr.mxu0 0.0
        %1156 = vmatpush1.xpose.msra.mxu0 0.0
        %1157 = vmatprep.subr.mxu0 0.0
        %1158 = vmatpush1.xpose.msra.mxu0 0.0
        %1159 = vmatprep.subr.mxu0 0.0
        %1160 = vmatpush1.xpose.msra.mxu0 0.0
        %1161 = vmatprep.subr.mxu0 0.0
        %1162 = vmatpush1.xpose.msra.mxu0 0.0
        %1163 = vmatprep.subr.mxu0 0.0
        %1164 = vmatpush1.xpose.msra.mxu0 0.0
        %1165 = vmatprep.subr.mxu0 0.0
        %1166 = vmatpush1.xpose.msra.mxu0 0.0
        %1167 = vmatprep.subr.mxu0 0.0
        %1168 = vmatpush1.xpose.msra.mxu0 0.0
        %1169 = vmatprep.subr.mxu0 0.0
        %1170 = vmatpush1.xpose.msra.mxu0 0.0
        %1171 = vmatprep.subr.mxu0 0.0
        %1172 = vmatpush1.xpose.msra.mxu0 0.0
        %1173 = vmatprep.subr.mxu0 0.0
        %1174 = vmatpush1.xpose.msra.mxu0 %v1147
        %1175 = vmatprep.subr.mxu0 0.0
        %1176 = vmatpush1.xpose.msra.mxu0 %v1145
        %1177 = vmatprep.subr.mxu0 0.0
        %1178 = vmatpush1.xpose.msra.mxu0 %v1143
        %1179 = vmatprep.subr.mxu0 0.0
        %1180 = vmatpush1.xpose.msra.mxu0 %v1141
        %1181 = vmatprep.subr.mxu0 0.0
        %1182 = vmatpush2.xpose.msra.mxu0 0.0
        %1183 = vmatprep.subr.mxu0 0.0
        %1184 = vmatpush2.xpose.msra.mxu0 0.0
        %1185 = vmatprep.subr.mxu0 0.0
        %1186 = vmatpush2.xpose.msra.mxu0 0.0
        %1187 = vmatprep.subr.mxu0 0.0
        %1188 = vmatpush2.xpose.msra.mxu0 0.0
        %1189 = vmatprep.subr.mxu0 0.0
        %1190 = vmatpush2.xpose.msra.mxu0 0.0
        %1191 = vmatprep.subr.mxu0 0.0
        %1192 = vmatpush2.xpose.msra.mxu0 0.0
        %1193 = vmatprep.subr.mxu0 0.0
        %1194 = vmatpush2.xpose.msra.mxu0 0.0
        %1195 = vmatprep.subr.mxu0 0.0
        %1196 = vmatpush2.xpose.msra.mxu0 0.0
        %1197 = vmatprep.subr.mxu0 0.0
        %1198 = vmatpush2.xpose.msra.mxu0 0.0
        %1199 = vmatprep.subr.mxu0 0.0
        %1200 = vmatpush2.xpose.msra.mxu0 0.0
        %1201 = vmatprep.subr.mxu0 0.0
        %1202 = vmatpush2.xpose.msra.mxu0 0.0
        %1203 = vmatprep.subr.mxu0 0.0
        %1204 = vmatpush2.xpose.msra.mxu0 0.0
        %1205 = vmatprep.subr.mxu0 0.0
        %1206 = vmatpush2.xpose.msra.mxu0 0.0
        %1207 = vmatprep.subr.mxu0 0.0
        %1208 = vmatpush2.xpose.msra.mxu0 0.0
        %1209 = vmatprep.subr.mxu0 0.0
        %1210 = vmatpush2.xpose.msra.mxu0 0.0
        %1211 = vmatprep.subr.mxu0 0.0
        %1212 = vmatpush2.xpose.msra.mxu0 0.0
        %1213 = vmatprep.mubr.f32.mxu0 0.0
        %1214 = vmatmul.mubr.f32.gmra.mxu0 %v1133
        %v1215 = vpop.f32.mrf.mxu0
        %v1216 = vadd.f32 0.0, %v1215
        %v1217 = vpop.f32.mrf.mxu0
        %1218 = vmatprep.mubr.f32.mxu0 0.0
        %1219 = vmatmul.mubr.f32.gmra.mxu0 %v1135
        %v1220 = vpop.f32.mrf.mxu0
        %v1221 = vadd.f32 0.0, %v1220
        %v1222 = vpop.f32.mrf.mxu0
        %1223 = vmatprep.mubr.f32.mxu0 0.0
        %1224 = vmatmul.mubr.f32.gmra.mxu0 %v1137
        %v1225 = vpop.f32.mrf.mxu0
        %v1226 = vadd.f32 0.0, %v1225
        %v1227 = vpop.f32.mrf.mxu0
        %1228 = vmatprep.mubr.f32.mxu0 0.0
        %1229 = vmatmul.mubr.f32.gmra.mxu0 %v1139
        %v1230 = vpop.f32.mrf.mxu0
        %v1231 = vadd.f32 0.0, %v1230
        %v1232 = vpop.f32.mrf.mxu0
        %1233 = vdwg.mxu0
        %1234 = vrot.lane.b32.xlu0 %v584, 96
        %v1235 = vpop.permute.xlu0 %1234
        %1236 = vrot.lane.b32.xlu0 %v589, 96
        %v1237 = vpop.permute.xlu0 %1236
        %1238 = vrot.lane.b32.xlu0 %v594, 96
        %v1239 = vpop.permute.xlu0 %1238
        %1240 = vrot.lane.b32.xlu0 %v599, 96
        %v1241 = vpop.permute.xlu0 %1240
        %v1242 = vsel %vm914, %v584, 0
        %v1244 = vsel %vm914, %v589, 0
        %v1246 = vsel %vm914, %v594, 0
        %v1248 = vsel %vm914, %v599, 0
        %v1250 = vsel %vm914, %v1235, 0
        %v1252 = vsel %vm914, %v1237, 0
        %v1254 = vsel %vm914, %v1239, 0
        %v1256 = vsel %vm914, %v1241, 0
        %1258 = vmatprep.subr.mxu0 0.0
        %1259 = vmatpush1.xpose.msra.mxu0 0.0
        %1260 = vmatprep.subr.mxu0 0.0
        %1261 = vmatpush1.xpose.msra.mxu0 0.0
        %1262 = vmatprep.subr.mxu0 0.0
        %1263 = vmatpush1.xpose.msra.mxu0 0.0
        %1264 = vmatprep.subr.mxu0 0.0
        %1265 = vmatpush1.xpose.msra.mxu0 0.0
        %1266 = vmatprep.subr.mxu0 0.0
        %1267 = vmatpush1.xpose.msra.mxu0 0.0
        %1268 = vmatprep.subr.mxu0 0.0
        %1269 = vmatpush1.xpose.msra.mxu0 0.0
        %1270 = vmatprep.subr.mxu0 0.0
        %1271 = vmatpush1.xpose.msra.mxu0 0.0
        %1272 = vmatprep.subr.mxu0 0.0
        %1273 = vmatpush1.xpose.msra.mxu0 0.0
        %1274 = vmatprep.subr.mxu0 0.0
        %1275 = vmatpush1.xpose.msra.mxu0 0.0
        %1276 = vmatprep.subr.mxu0 0.0
        %1277 = vmatpush1.xpose.msra.mxu0 0.0
        %1278 = vmatprep.subr.mxu0 0.0
        %1279 = vmatpush1.xpose.msra.mxu0 0.0
        %1280 = vmatprep.subr.mxu0 0.0
        %1281 = vmatpush1.xpose.msra.mxu0 0.0
        %1282 = vmatprep.subr.mxu0 0.0
        %1283 = vmatpush1.xpose.msra.mxu0 %v1256
        %1284 = vmatprep.subr.mxu0 0.0
        %1285 = vmatpush1.xpose.msra.mxu0 %v1254
        %1286 = vmatprep.subr.mxu0 0.0
        %1287 = vmatpush1.xpose.msra.mxu0 %v1252
        %1288 = vmatprep.subr.mxu0 0.0
        %1289 = vmatpush1.xpose.msra.mxu0 %v1250
        %1290 = vmatprep.subr.mxu0 0.0
        %1291 = vmatpush2.xpose.msra.mxu0 0.0
        %1292 = vmatprep.subr.mxu0 0.0
        %1293 = vmatpush2.xpose.msra.mxu0 0.0
        %1294 = vmatprep.subr.mxu0 0.0
        %1295 = vmatpush2.xpose.msra.mxu0 0.0
        %1296 = vmatprep.subr.mxu0 0.0
        %1297 = vmatpush2.xpose.msra.mxu0 0.0
        %1298 = vmatprep.subr.mxu0 0.0
        %1299 = vmatpush2.xpose.msra.mxu0 0.0
        %1300 = vmatprep.subr.mxu0 0.0
        %1301 = vmatpush2.xpose.msra.mxu0 0.0
        %1302 = vmatprep.subr.mxu0 0.0
        %1303 = vmatpush2.xpose.msra.mxu0 0.0
        %1304 = vmatprep.subr.mxu0 0.0
        %1305 = vmatpush2.xpose.msra.mxu0 0.0
        %1306 = vmatprep.subr.mxu0 0.0
        %1307 = vmatpush2.xpose.msra.mxu0 0.0
        %1308 = vmatprep.subr.mxu0 0.0
        %1309 = vmatpush2.xpose.msra.mxu0 0.0
        %1310 = vmatprep.subr.mxu0 0.0
        %1311 = vmatpush2.xpose.msra.mxu0 0.0
        %1312 = vmatprep.subr.mxu0 0.0
        %1313 = vmatpush2.xpose.msra.mxu0 0.0
        %1314 = vmatprep.subr.mxu0 0.0
        %1315 = vmatpush2.xpose.msra.mxu0 0.0
        %1316 = vmatprep.subr.mxu0 0.0
        %1317 = vmatpush2.xpose.msra.mxu0 0.0
        %1318 = vmatprep.subr.mxu0 0.0
        %1319 = vmatpush2.xpose.msra.mxu0 0.0
        %1320 = vmatprep.subr.mxu0 0.0
        %1321 = vmatpush2.xpose.msra.mxu0 0.0
        %1322 = vmatprep.mubr.f32.mxu0 0.0
        %1323 = vmatmul.mubr.f32.gmra.mxu0 %v1242
        %v1324 = vpop.f32.mrf.mxu0
        %v1325 = vadd.f32 0.0, %v1324
        %v1326 = vpop.f32.mrf.mxu0
        %1327 = vmatprep.mubr.f32.mxu0 0.0
        %1328 = vmatmul.mubr.f32.gmra.mxu0 %v1244
        %v1329 = vpop.f32.mrf.mxu0
        %v1330 = vadd.f32 0.0, %v1329
        %v1331 = vpop.f32.mrf.mxu0
        %1332 = vmatprep.mubr.f32.mxu0 0.0
        %1333 = vmatmul.mubr.f32.gmra.mxu0 %v1246
        %v1334 = vpop.f32.mrf.mxu0
        %v1335 = vadd.f32 0.0, %v1334
        %v1336 = vpop.f32.mrf.mxu0
        %1337 = vmatprep.mubr.f32.mxu0 0.0
        %1338 = vmatmul.mubr.f32.gmra.mxu0 %v1248
        %v1339 = vpop.f32.mrf.mxu0
        %v1340 = vadd.f32 0.0, %v1339
        %v1341 = vpop.f32.mrf.mxu0
        %1342 = vdwg.mxu0
        %1343 = vrot.lane.b32.xlu0 %v604, 96
        %v1344 = vpop.permute.xlu0 %1343
        %1345 = vrot.lane.b32.xlu0 %v609, 96
        %v1346 = vpop.permute.xlu0 %1345
        %1347 = vrot.lane.b32.xlu0 %v614, 96
        %v1348 = vpop.permute.xlu0 %1347
        %1349 = vrot.lane.b32.xlu0 %v619, 96
        %v1350 = vpop.permute.xlu0 %1349
        %v1351 = vsel %vm914, %v604, 0
        %v1353 = vsel %vm914, %v609, 0
        %v1355 = vsel %vm914, %v614, 0
        %v1357 = vsel %vm914, %v619, 0
        %v1359 = vsel %vm914, %v1344, 0
        %v1361 = vsel %vm914, %v1346, 0
        %v1363 = vsel %vm914, %v1348, 0
        %v1365 = vsel %vm914, %v1350, 0
        %1367 = vmatprep.subr.mxu0 0.0
        %1368 = vmatpush1.xpose.msra.mxu0 0.0
        %1369 = vmatprep.subr.mxu0 0.0
        %1370 = vmatpush1.xpose.msra.mxu0 0.0
        %1371 = vmatprep.subr.mxu0 0.0
        %1372 = vmatpush1.xpose.msra.mxu0 0.0
        %1373 = vmatprep.subr.mxu0 0.0
        %1374 = vmatpush1.xpose.msra.mxu0 0.0
        %1375 = vmatprep.subr.mxu0 0.0
        %1376 = vmatpush1.xpose.msra.mxu0 0.0
        %1377 = vmatprep.subr.mxu0 0.0
        %1378 = vmatpush1.xpose.msra.mxu0 0.0
        %1379 = vmatprep.subr.mxu0 0.0
        %1380 = vmatpush1.xpose.msra.mxu0 0.0
        %1381 = vmatprep.subr.mxu0 0.0
        %1382 = vmatpush1.xpose.msra.mxu0 0.0
        %1383 = vmatprep.subr.mxu0 0.0
        %1384 = vmatpush1.xpose.msra.mxu0 0.0
        %1385 = vmatprep.subr.mxu0 0.0
        %1386 = vmatpush1.xpose.msra.mxu0 0.0
        %1387 = vmatprep.subr.mxu0 0.0
        %1388 = vmatpush1.xpose.msra.mxu0 0.0
        %1389 = vmatprep.subr.mxu0 0.0
        %1390 = vmatpush1.xpose.msra.mxu0 0.0
        %1391 = vmatprep.subr.mxu0 0.0
        %1392 = vmatpush1.xpose.msra.mxu0 %v1365
        %1393 = vmatprep.subr.mxu0 0.0
        %1394 = vmatpush1.xpose.msra.mxu0 %v1363
        %1395 = vmatprep.subr.mxu0 0.0
        %1396 = vmatpush1.xpose.msra.mxu0 %v1361
        %1397 = vmatprep.subr.mxu0 0.0
        %1398 = vmatpush1.xpose.msra.mxu0 %v1359
        %1399 = vmatprep.subr.mxu0 0.0
        %1400 = vmatpush2.xpose.msra.mxu0 0.0
        %1401 = vmatprep.subr.mxu0 0.0
        %1402 = vmatpush2.xpose.msra.mxu0 0.0
        %1403 = vmatprep.subr.mxu0 0.0
        %1404 = vmatpush2.xpose.msra.mxu0 0.0
        %1405 = vmatprep.subr.mxu0 0.0
        %1406 = vmatpush2.xpose.msra.mxu0 0.0
        %1407 = vmatprep.subr.mxu0 0.0
        %1408 = vmatpush2.xpose.msra.mxu0 0.0
        %1409 = vmatprep.subr.mxu0 0.0
        %1410 = vmatpush2.xpose.msra.mxu0 0.0
        %1411 = vmatprep.subr.mxu0 0.0
        %1412 = vmatpush2.xpose.msra.mxu0 0.0
        %1413 = vmatprep.subr.mxu0 0.0
        %1414 = vmatpush2.xpose.msra.mxu0 0.0
        %1415 = vmatprep.subr.mxu0 0.0
        %1416 = vmatpush2.xpose.msra.mxu0 0.0
        %1417 = vmatprep.subr.mxu0 0.0
        %1418 = vmatpush2.xpose.msra.mxu0 0.0
        %1419 = vmatprep.subr.mxu0 0.0
        %1420 = vmatpush2.xpose.msra.mxu0 0.0
        %1421 = vmatprep.subr.mxu0 0.0
        %1422 = vmatpush2.xpose.msra.mxu0 0.0
        %1423 = vmatprep.subr.mxu0 0.0
        %1424 = vmatpush2.xpose.msra.mxu0 0.0
        %1425 = vmatprep.subr.mxu0 0.0
        %1426 = vmatpush2.xpose.msra.mxu0 0.0
        %1427 = vmatprep.subr.mxu0 0.0
        %1428 = vmatpush2.xpose.msra.mxu0 0.0
        %1429 = vmatprep.subr.mxu0 0.0
        %1430 = vmatpush2.xpose.msra.mxu0 0.0
        %1431 = vmatprep.mubr.f32.mxu0 0.0
        %1432 = vmatmul.mubr.f32.gmra.mxu0 %v1351
        %v1433 = vpop.f32.mrf.mxu0
        %v1434 = vadd.f32 0.0, %v1433
        %v1435 = vpop.f32.mrf.mxu0
        %1436 = vmatprep.mubr.f32.mxu0 0.0
        %1437 = vmatmul.mubr.f32.gmra.mxu0 %v1353
        %v1438 = vpop.f32.mrf.mxu0
        %v1439 = vadd.f32 0.0, %v1438
        %v1440 = vpop.f32.mrf.mxu0
        %1441 = vmatprep.mubr.f32.mxu0 0.0
        %1442 = vmatmul.mubr.f32.gmra.mxu0 %v1355
        %v1443 = vpop.f32.mrf.mxu0
        %v1444 = vadd.f32 0.0, %v1443
        %v1445 = vpop.f32.mrf.mxu0
        %1446 = vmatprep.mubr.f32.mxu0 0.0
        %1447 = vmatmul.mubr.f32.gmra.mxu0 %v1357
        %v1448 = vpop.f32.mrf.mxu0
        %v1449 = vadd.f32 0.0, %v1448
        %v1450 = vpop.f32.mrf.mxu0
        %1451 = vdwg.mxu0
        %1452 = vrot.lane.b32.xlu0 %v624, 96
        %v1453 = vpop.permute.xlu0 %1452
        %1454 = vrot.lane.b32.xlu0 %v629, 96
        %v1455 = vpop.permute.xlu0 %1454
        %1456 = vrot.lane.b32.xlu0 %v634, 96
        %v1457 = vpop.permute.xlu0 %1456
        %1458 = vrot.lane.b32.xlu0 %v639, 96
        %v1459 = vpop.permute.xlu0 %1458
        %v1460 = vsel %vm914, %v624, 0
        %v1462 = vsel %vm914, %v629, 0
        %v1464 = vsel %vm914, %v634, 0
        %v1466 = vsel %vm914, %v639, 0
        %v1468 = vsel %vm914, %v1453, 0
        %v1470 = vsel %vm914, %v1455, 0
        %v1472 = vsel %vm914, %v1457, 0
        %v1474 = vsel %vm914, %v1459, 0
        %1476 = vmatprep.subr.mxu0 0.0
        %1477 = vmatpush1.xpose.msra.mxu0 0.0
        %1478 = vmatprep.subr.mxu0 0.0
        %1479 = vmatpush1.xpose.msra.mxu0 0.0
        %1480 = vmatprep.subr.mxu0 0.0
        %1481 = vmatpush1.xpose.msra.mxu0 0.0
        %1482 = vmatprep.subr.mxu0 0.0
        %1483 = vmatpush1.xpose.msra.mxu0 0.0
        %1484 = vmatprep.subr.mxu0 0.0
        %1485 = vmatpush1.xpose.msra.mxu0 0.0
        %1486 = vmatprep.subr.mxu0 0.0
        %1487 = vmatpush1.xpose.msra.mxu0 0.0
        %1488 = vmatprep.subr.mxu0 0.0
        %1489 = vmatpush1.xpose.msra.mxu0 0.0
        %1490 = vmatprep.subr.mxu0 0.0
        %1491 = vmatpush1.xpose.msra.mxu0 0.0
        %1492 = vmatprep.subr.mxu0 0.0
        %1493 = vmatpush1.xpose.msra.mxu0 0.0
        %1494 = vmatprep.subr.mxu0 0.0
        %1495 = vmatpush1.xpose.msra.mxu0 0.0
        %1496 = vmatprep.subr.mxu0 0.0
        %1497 = vmatpush1.xpose.msra.mxu0 0.0
        %1498 = vmatprep.subr.mxu0 0.0
        %1499 = vmatpush1.xpose.msra.mxu0 0.0
        %1500 = vmatprep.subr.mxu0 0.0
        %1501 = vmatpush1.xpose.msra.mxu0 %v1474
        %1502 = vmatprep.subr.mxu0 0.0
        %1503 = vmatpush1.xpose.msra.mxu0 %v1472
        %1504 = vmatprep.subr.mxu0 0.0
        %1505 = vmatpush1.xpose.msra.mxu0 %v1470
        %1506 = vmatprep.subr.mxu0 0.0
        %1507 = vmatpush1.xpose.msra.mxu0 %v1468
        %1508 = vmatprep.subr.mxu0 0.0
        %1509 = vmatpush2.xpose.msra.mxu0 0.0
        %1510 = vmatprep.subr.mxu0 0.0
        %1511 = vmatpush2.xpose.msra.mxu0 0.0
        %1512 = vmatprep.subr.mxu0 0.0
        %1513 = vmatpush2.xpose.msra.mxu0 0.0
        %1514 = vmatprep.subr.mxu0 0.0
        %1515 = vmatpush2.xpose.msra.mxu0 0.0
        %1516 = vmatprep.subr.mxu0 0.0
        %1517 = vmatpush2.xpose.msra.mxu0 0.0
        %1518 = vmatprep.subr.mxu0 0.0
        %1519 = vmatpush2.xpose.msra.mxu0 0.0
        %1520 = vmatprep.subr.mxu0 0.0
        %1521 = vmatpush2.xpose.msra.mxu0 0.0
        %1522 = vmatprep.subr.mxu0 0.0
        %1523 = vmatpush2.xpose.msra.mxu0 0.0
        %1524 = vmatprep.subr.mxu0 0.0
        %1525 = vmatpush2.xpose.msra.mxu0 0.0
        %1526 = vmatprep.subr.mxu0 0.0
        %1527 = vmatpush2.xpose.msra.mxu0 0.0
        %1528 = vmatprep.subr.mxu0 0.0
        %1529 = vmatpush2.xpose.msra.mxu0 0.0
        %1530 = vmatprep.subr.mxu0 0.0
        %1531 = vmatpush2.xpose.msra.mxu0 0.0
        %1532 = vmatprep.subr.mxu0 0.0
        %1533 = vmatpush2.xpose.msra.mxu0 0.0
        %1534 = vmatprep.subr.mxu0 0.0
        %1535 = vmatpush2.xpose.msra.mxu0 0.0
        %1536 = vmatprep.subr.mxu0 0.0
        %1537 = vmatpush2.xpose.msra.mxu0 0.0
        %1538 = vmatprep.subr.mxu0 0.0
        %1539 = vmatpush2.xpose.msra.mxu0 0.0
        %1540 = vmatprep.mubr.f32.mxu0 0.0
        %1541 = vmatmul.mubr.f32.gmra.mxu0 %v1460
        %v1542 = vpop.f32.mrf.mxu0
        %v1543 = vadd.f32 0.0, %v1542
        %v1544 = vpop.f32.mrf.mxu0
        %1545 = vmatprep.mubr.f32.mxu0 0.0
        %1546 = vmatmul.mubr.f32.gmra.mxu0 %v1462
        %v1547 = vpop.f32.mrf.mxu0
        %v1548 = vadd.f32 0.0, %v1547
        %v1549 = vpop.f32.mrf.mxu0
        %1550 = vmatprep.mubr.f32.mxu0 0.0
        %1551 = vmatmul.mubr.f32.gmra.mxu0 %v1464
        %v1552 = vpop.f32.mrf.mxu0
        %v1553 = vadd.f32 0.0, %v1552
        %v1554 = vpop.f32.mrf.mxu0
        %1555 = vmatprep.mubr.f32.mxu0 0.0
        %1556 = vmatmul.mubr.f32.gmra.mxu0 %v1466
        %v1557 = vpop.f32.mrf.mxu0
        %v1558 = vadd.f32 0.0, %v1557
        %v1559 = vpop.f32.mrf.mxu0
        %1560 = vdwg.mxu0
        %1561 = vrot.lane.b32.xlu0 %v644, 96
        %v1562 = vpop.permute.xlu0 %1561
        %1563 = vrot.lane.b32.xlu0 %v649, 96
        %v1564 = vpop.permute.xlu0 %1563
        %1565 = vrot.lane.b32.xlu0 %v654, 96
        %v1566 = vpop.permute.xlu0 %1565
        %1567 = vrot.lane.b32.xlu0 %v659, 96
        %v1568 = vpop.permute.xlu0 %1567
        %v1569 = vsel %vm914, %v644, 0
        %v1571 = vsel %vm914, %v649, 0
        %v1573 = vsel %vm914, %v654, 0
        %v1575 = vsel %vm914, %v659, 0
        %v1577 = vsel %vm914, %v1562, 0
        %v1579 = vsel %vm914, %v1564, 0
        %v1581 = vsel %vm914, %v1566, 0
        %v1583 = vsel %vm914, %v1568, 0
        %1585 = vmatprep.subr.mxu0 0.0
        %1586 = vmatpush1.xpose.msra.mxu0 0.0
        %1587 = vmatprep.subr.mxu0 0.0
        %1588 = vmatpush1.xpose.msra.mxu0 0.0
        %1589 = vmatprep.subr.mxu0 0.0
        %1590 = vmatpush1.xpose.msra.mxu0 0.0
        %1591 = vmatprep.subr.mxu0 0.0
        %1592 = vmatpush1.xpose.msra.mxu0 0.0
        %1593 = vmatprep.subr.mxu0 0.0
        %1594 = vmatpush1.xpose.msra.mxu0 0.0
        %1595 = vmatprep.subr.mxu0 0.0
        %1596 = vmatpush1.xpose.msra.mxu0 0.0
        %1597 = vmatprep.subr.mxu0 0.0
        %1598 = vmatpush1.xpose.msra.mxu0 0.0
        %1599 = vmatprep.subr.mxu0 0.0
        %1600 = vmatpush1.xpose.msra.mxu0 0.0
        %1601 = vmatprep.subr.mxu0 0.0
        %1602 = vmatpush1.xpose.msra.mxu0 0.0
        %1603 = vmatprep.subr.mxu0 0.0
        %1604 = vmatpush1.xpose.msra.mxu0 0.0
        %1605 = vmatprep.subr.mxu0 0.0
        %1606 = vmatpush1.xpose.msra.mxu0 0.0
        %1607 = vmatprep.subr.mxu0 0.0
        %1608 = vmatpush1.xpose.msra.mxu0 0.0
        %1609 = vmatprep.subr.mxu0 0.0
        %1610 = vmatpush1.xpose.msra.mxu0 %v1583
        %1611 = vmatprep.subr.mxu0 0.0
        %1612 = vmatpush1.xpose.msra.mxu0 %v1581
        %1613 = vmatprep.subr.mxu0 0.0
        %1614 = vmatpush1.xpose.msra.mxu0 %v1579
        %1615 = vmatprep.subr.mxu0 0.0
        %1616 = vmatpush1.xpose.msra.mxu0 %v1577
        %1617 = vmatprep.subr.mxu0 0.0
        %1618 = vmatpush2.xpose.msra.mxu0 0.0
        %1619 = vmatprep.subr.mxu0 0.0
        %1620 = vmatpush2.xpose.msra.mxu0 0.0
        %1621 = vmatprep.subr.mxu0 0.0
        %1622 = vmatpush2.xpose.msra.mxu0 0.0
        %1623 = vmatprep.subr.mxu0 0.0
        %1624 = vmatpush2.xpose.msra.mxu0 0.0
        %1625 = vmatprep.subr.mxu0 0.0
        %1626 = vmatpush2.xpose.msra.mxu0 0.0
        %1627 = vmatprep.subr.mxu0 0.0
        %1628 = vmatpush2.xpose.msra.mxu0 0.0
        %1629 = vmatprep.subr.mxu0 0.0
        %1630 = vmatpush2.xpose.msra.mxu0 0.0
        %1631 = vmatprep.subr.mxu0 0.0
        %1632 = vmatpush2.xpose.msra.mxu0 0.0
        %1633 = vmatprep.subr.mxu0 0.0
        %1634 = vmatpush2.xpose.msra.mxu0 0.0
        %1635 = vmatprep.subr.mxu0 0.0
        %1636 = vmatpush2.xpose.msra.mxu0 0.0
        %1637 = vmatprep.subr.mxu0 0.0
        %1638 = vmatpush2.xpose.msra.mxu0 0.0
        %1639 = vmatprep.subr.mxu0 0.0
        %1640 = vmatpush2.xpose.msra.mxu0 0.0
        %1641 = vmatprep.subr.mxu0 0.0
        %1642 = vmatpush2.xpose.msra.mxu0 0.0
        %1643 = vmatprep.subr.mxu0 0.0
        %1644 = vmatpush2.xpose.msra.mxu0 0.0
        %1645 = vmatprep.subr.mxu0 0.0
        %1646 = vmatpush2.xpose.msra.mxu0 0.0
        %1647 = vmatprep.subr.mxu0 0.0
        %1648 = vmatpush2.xpose.msra.mxu0 0.0
        %1649 = vmatprep.mubr.f32.mxu0 0.0
        %1650 = vmatmul.mubr.f32.gmra.mxu0 %v1569
        %v1651 = vpop.f32.mrf.mxu0
        %v1652 = vadd.f32 0.0, %v1651
        %v1653 = vpop.f32.mrf.mxu0
        %1654 = vmatprep.mubr.f32.mxu0 0.0
        %1655 = vmatmul.mubr.f32.gmra.mxu0 %v1571
        %v1656 = vpop.f32.mrf.mxu0
        %v1657 = vadd.f32 0.0, %v1656
        %v1658 = vpop.f32.mrf.mxu0
        %1659 = vmatprep.mubr.f32.mxu0 0.0
        %1660 = vmatmul.mubr.f32.gmra.mxu0 %v1573
        %v1661 = vpop.f32.mrf.mxu0
        %v1662 = vadd.f32 0.0, %v1661
        %v1663 = vpop.f32.mrf.mxu0
        %1664 = vmatprep.mubr.f32.mxu0 0.0
        %1665 = vmatmul.mubr.f32.gmra.mxu0 %v1575
        %v1666 = vpop.f32.mrf.mxu0
        %v1667 = vadd.f32 0.0, %v1666
        %v1668 = vpop.f32.mrf.mxu0
        %1669 = vdwg.mxu0
        %1670 = vrot.lane.b32.xlu0 %v664, 96
        %v1671 = vpop.permute.xlu0 %1670
        %1672 = vrot.lane.b32.xlu0 %v669, 96
        %v1673 = vpop.permute.xlu0 %1672
        %1674 = vrot.lane.b32.xlu0 %v674, 96
        %v1675 = vpop.permute.xlu0 %1674
        %1676 = vrot.lane.b32.xlu0 %v679, 96
        %v1677 = vpop.permute.xlu0 %1676
        %v1678 = vsel %vm914, %v664, 0
        %v1680 = vsel %vm914, %v669, 0
        %v1682 = vsel %vm914, %v674, 0
        %v1684 = vsel %vm914, %v679, 0
        %v1686 = vsel %vm914, %v1671, 0
        %v1688 = vsel %vm914, %v1673, 0
        %v1690 = vsel %vm914, %v1675, 0
        %v1692 = vsel %vm914, %v1677, 0
        %1694 = vmatprep.subr.mxu0 0.0
        %1695 = vmatpush1.xpose.msra.mxu0 0.0
        %1696 = vmatprep.subr.mxu0 0.0
        %1697 = vmatpush1.xpose.msra.mxu0 0.0
        %1698 = vmatprep.subr.mxu0 0.0
        %1699 = vmatpush1.xpose.msra.mxu0 0.0
        %1700 = vmatprep.subr.mxu0 0.0
        %1701 = vmatpush1.xpose.msra.mxu0 0.0
        %1702 = vmatprep.subr.mxu0 0.0
        %1703 = vmatpush1.xpose.msra.mxu0 0.0
        %1704 = vmatprep.subr.mxu0 0.0
        %1705 = vmatpush1.xpose.msra.mxu0 0.0
        %1706 = vmatprep.subr.mxu0 0.0
        %1707 = vmatpush1.xpose.msra.mxu0 0.0
        %1708 = vmatprep.subr.mxu0 0.0
        %1709 = vmatpush1.xpose.msra.mxu0 0.0
        %1710 = vmatprep.subr.mxu0 0.0
        %1711 = vmatpush1.xpose.msra.mxu0 0.0
        %1712 = vmatprep.subr.mxu0 0.0
        %1713 = vmatpush1.xpose.msra.mxu0 0.0
        %1714 = vmatprep.subr.mxu0 0.0
        %1715 = vmatpush1.xpose.msra.mxu0 0.0
        %1716 = vmatprep.subr.mxu0 0.0
        %1717 = vmatpush1.xpose.msra.mxu0 0.0
        %1718 = vmatprep.subr.mxu0 0.0
        %1719 = vmatpush1.xpose.msra.mxu0 %v1692
        %1720 = vmatprep.subr.mxu0 0.0
        %1721 = vmatpush1.xpose.msra.mxu0 %v1690
        %1722 = vmatprep.subr.mxu0 0.0
        %1723 = vmatpush1.xpose.msra.mxu0 %v1688
        %1724 = vmatprep.subr.mxu0 0.0
        %1725 = vmatpush1.xpose.msra.mxu0 %v1686
        %1726 = vmatprep.subr.mxu0 0.0
        %1727 = vmatpush2.xpose.msra.mxu0 0.0
        %1728 = vmatprep.subr.mxu0 0.0
        %1729 = vmatpush2.xpose.msra.mxu0 0.0
        %1730 = vmatprep.subr.mxu0 0.0
        %1731 = vmatpush2.xpose.msra.mxu0 0.0
        %1732 = vmatprep.subr.mxu0 0.0
        %1733 = vmatpush2.xpose.msra.mxu0 0.0
        %1734 = vmatprep.subr.mxu0 0.0
        %1735 = vmatpush2.xpose.msra.mxu0 0.0
        %1736 = vmatprep.subr.mxu0 0.0
        %1737 = vmatpush2.xpose.msra.mxu0 0.0
        %1738 = vmatprep.subr.mxu0 0.0
        %1739 = vmatpush2.xpose.msra.mxu0 0.0
        %1740 = vmatprep.subr.mxu0 0.0
        %1741 = vmatpush2.xpose.msra.mxu0 0.0
        %1742 = vmatprep.subr.mxu0 0.0
        %1743 = vmatpush2.xpose.msra.mxu0 0.0
        %1744 = vmatprep.subr.mxu0 0.0
        %1745 = vmatpush2.xpose.msra.mxu0 0.0
        %1746 = vmatprep.subr.mxu0 0.0
        %1747 = vmatpush2.xpose.msra.mxu0 0.0
        %1748 = vmatprep.subr.mxu0 0.0
        %1749 = vmatpush2.xpose.msra.mxu0 0.0
        %1750 = vmatprep.subr.mxu0 0.0
        %1751 = vmatpush2.xpose.msra.mxu0 0.0
        %1752 = vmatprep.subr.mxu0 0.0
        %1753 = vmatpush2.xpose.msra.mxu0 0.0
        %1754 = vmatprep.subr.mxu0 0.0
        %1755 = vmatpush2.xpose.msra.mxu0 0.0
        %1756 = vmatprep.subr.mxu0 0.0
        %1757 = vmatpush2.xpose.msra.mxu0 0.0
        %1758 = vmatprep.mubr.f32.mxu0 0.0
        %1759 = vmatmul.mubr.f32.gmra.mxu0 %v1678
        %v1760 = vpop.f32.mrf.mxu0
        %v1761 = vadd.f32 0.0, %v1760
        %v1762 = vpop.f32.mrf.mxu0
        %1763 = vmatprep.mubr.f32.mxu0 0.0
        %1764 = vmatmul.mubr.f32.gmra.mxu0 %v1680
        %v1765 = vpop.f32.mrf.mxu0
        %v1766 = vadd.f32 0.0, %v1765
        %v1767 = vpop.f32.mrf.mxu0
        %1768 = vmatprep.mubr.f32.mxu0 0.0
        %1769 = vmatmul.mubr.f32.gmra.mxu0 %v1682
        %v1770 = vpop.f32.mrf.mxu0
        %v1771 = vadd.f32 0.0, %v1770
        %v1772 = vpop.f32.mrf.mxu0
        %1773 = vmatprep.mubr.f32.mxu0 0.0
        %1774 = vmatmul.mubr.f32.gmra.mxu0 %v1684
        %v1775 = vpop.f32.mrf.mxu0
        %v1776 = vadd.f32 0.0, %v1775
        %v1777 = vpop.f32.mrf.mxu0
        %1778 = vdwg.mxu0
        %1779 = vrot.lane.b32.xlu0 %v715, 96
        %v1780 = vpop.permute.xlu0 %1779
        %1781 = vrot.lane.b32.xlu0 %v717, 96
        %v1782 = vpop.permute.xlu0 %1781
        %1783 = vrot.lane.b32.xlu0 %v719, 96
        %v1784 = vpop.permute.xlu0 %1783
        %1785 = vrot.lane.b32.xlu0 %v721, 96
        %v1786 = vpop.permute.xlu0 %1785
        %v1787 = vsel %vm914, %v715, 0
        %v1789 = vsel %vm914, %v717, 0
        %v1791 = vsel %vm914, %v719, 0
        %v1793 = vsel %vm914, %v721, 0
        %v1795 = vsel %vm914, %v1780, 0
        %v1797 = vsel %vm914, %v1782, 0
        %v1799 = vsel %vm914, %v1784, 0
        %v1801 = vsel %vm914, %v1786, 0
        %1803 = vmatprep.subr.mxu0 0.0
        %1804 = vmatpush1.xpose.msra.mxu0 0.0
        %1805 = vmatprep.subr.mxu0 0.0
        %1806 = vmatpush1.xpose.msra.mxu0 0.0
        %1807 = vmatprep.subr.mxu0 0.0
        %1808 = vmatpush1.xpose.msra.mxu0 0.0
        %1809 = vmatprep.subr.mxu0 0.0
        %1810 = vmatpush1.xpose.msra.mxu0 0.0
        %1811 = vmatprep.subr.mxu0 0.0
        %1812 = vmatpush1.xpose.msra.mxu0 0.0
        %1813 = vmatprep.subr.mxu0 0.0
        %1814 = vmatpush1.xpose.msra.mxu0 0.0
        %1815 = vmatprep.subr.mxu0 0.0
        %1816 = vmatpush1.xpose.msra.mxu0 0.0
        %1817 = vmatprep.subr.mxu0 0.0
        %1818 = vmatpush1.xpose.msra.mxu0 0.0
        %1819 = vmatprep.subr.mxu0 0.0
        %1820 = vmatpush1.xpose.msra.mxu0 0.0
        %1821 = vmatprep.subr.mxu0 0.0
        %1822 = vmatpush1.xpose.msra.mxu0 0.0
        %1823 = vmatprep.subr.mxu0 0.0
        %1824 = vmatpush1.xpose.msra.mxu0 0.0
        %1825 = vmatprep.subr.mxu0 0.0
        %1826 = vmatpush1.xpose.msra.mxu0 0.0
        %1827 = vmatprep.subr.mxu0 0.0
        %1828 = vmatpush1.xpose.msra.mxu0 %v1801
        %1829 = vmatprep.subr.mxu0 0.0
        %1830 = vmatpush1.xpose.msra.mxu0 %v1799
        %1831 = vmatprep.subr.mxu0 0.0
        %1832 = vmatpush1.xpose.msra.mxu0 %v1797
        %1833 = vmatprep.subr.mxu0 0.0
        %1834 = vmatpush1.xpose.msra.mxu0 %v1795
        %1835 = vmatprep.subr.mxu0 0.0
        %1836 = vmatpush2.xpose.msra.mxu0 0.0
        %1837 = vmatprep.subr.mxu0 0.0
        %1838 = vmatpush2.xpose.msra.mxu0 0.0
        %1839 = vmatprep.subr.mxu0 0.0
        %1840 = vmatpush2.xpose.msra.mxu0 0.0
        %1841 = vmatprep.subr.mxu0 0.0
        %1842 = vmatpush2.xpose.msra.mxu0 0.0
        %1843 = vmatprep.subr.mxu0 0.0
        %1844 = vmatpush2.xpose.msra.mxu0 0.0
        %1845 = vmatprep.subr.mxu0 0.0
        %1846 = vmatpush2.xpose.msra.mxu0 0.0
        %1847 = vmatprep.subr.mxu0 0.0
        %1848 = vmatpush2.xpose.msra.mxu0 0.0
        %1849 = vmatprep.subr.mxu0 0.0
        %1850 = vmatpush2.xpose.msra.mxu0 0.0
        %1851 = vmatprep.subr.mxu0 0.0
        %1852 = vmatpush2.xpose.msra.mxu0 0.0
        %1853 = vmatprep.subr.mxu0 0.0
        %1854 = vmatpush2.xpose.msra.mxu0 0.0
        %1855 = vmatprep.subr.mxu0 0.0
        %1856 = vmatpush2.xpose.msra.mxu0 0.0
        %1857 = vmatprep.subr.mxu0 0.0
        %1858 = vmatpush2.xpose.msra.mxu0 0.0
        %1859 = vmatprep.subr.mxu0 0.0
        %1860 = vmatpush2.xpose.msra.mxu0 0.0
        %1861 = vmatprep.subr.mxu0 0.0
        %1862 = vmatpush2.xpose.msra.mxu0 0.0
        %1863 = vmatprep.subr.mxu0 0.0
        %1864 = vmatpush2.xpose.msra.mxu0 0.0
        %1865 = vmatprep.subr.mxu0 0.0
        %1866 = vmatpush2.xpose.msra.mxu0 0.0
        %1867 = vmatprep.mubr.f32.mxu0 0.0
        %1868 = vmatmul.mubr.f32.gmra.mxu0 %v1787
        %v1869 = vpop.f32.mrf.mxu0
        %v1870 = vadd.f32 0.0, %v1869
        %v1871 = vpop.f32.mrf.mxu0
        %1872 = vmatprep.mubr.f32.mxu0 0.0
        %1873 = vmatmul.mubr.f32.gmra.mxu0 %v1789
        %v1874 = vpop.f32.mrf.mxu0
        %v1875 = vadd.f32 0.0, %v1874
        %v1876 = vpop.f32.mrf.mxu0
        %1877 = vmatprep.mubr.f32.mxu0 0.0
        %1878 = vmatmul.mubr.f32.gmra.mxu0 %v1791
        %v1879 = vpop.f32.mrf.mxu0
        %v1880 = vadd.f32 0.0, %v1879
        %v1881 = vpop.f32.mrf.mxu0
        %1882 = vmatprep.mubr.f32.mxu0 0.0
        %1883 = vmatmul.mubr.f32.gmra.mxu0 %v1793
        %v1884 = vpop.f32.mrf.mxu0
        %v1885 = vadd.f32 0.0, %v1884
        %v1886 = vpop.f32.mrf.mxu0
        %1887 = vdwg.mxu0
        %1888 = vrot.lane.b32.xlu0 %v723, 96
        %v1889 = vpop.permute.xlu0 %1888
        %1890 = vrot.lane.b32.xlu0 %v725, 96
        %v1891 = vpop.permute.xlu0 %1890
        %1892 = vrot.lane.b32.xlu0 %v727, 96
        %v1893 = vpop.permute.xlu0 %1892
        %1894 = vrot.lane.b32.xlu0 %v729, 96
        %v1895 = vpop.permute.xlu0 %1894
        %v1896 = vsel %vm914, %v723, 0
        %v1898 = vsel %vm914, %v725, 0
        %v1900 = vsel %vm914, %v727, 0
        %v1902 = vsel %vm914, %v729, 0
        %v1904 = vsel %vm914, %v1889, 0
        %v1906 = vsel %vm914, %v1891, 0
        %v1908 = vsel %vm914, %v1893, 0
        %v1910 = vsel %vm914, %v1895, 0
        %1912 = vmatprep.subr.mxu0 0.0
        %1913 = vmatpush1.xpose.msra.mxu0 0.0
        %1914 = vmatprep.subr.mxu0 0.0
        %1915 = vmatpush1.xpose.msra.mxu0 0.0
        %1916 = vmatprep.subr.mxu0 0.0
        %1917 = vmatpush1.xpose.msra.mxu0 0.0
        %1918 = vmatprep.subr.mxu0 0.0
        %1919 = vmatpush1.xpose.msra.mxu0 0.0
        %1920 = vmatprep.subr.mxu0 0.0
        %1921 = vmatpush1.xpose.msra.mxu0 0.0
        %1922 = vmatprep.subr.mxu0 0.0
        %1923 = vmatpush1.xpose.msra.mxu0 0.0
        %1924 = vmatprep.subr.mxu0 0.0
        %1925 = vmatpush1.xpose.msra.mxu0 0.0
        %1926 = vmatprep.subr.mxu0 0.0
        %1927 = vmatpush1.xpose.msra.mxu0 0.0
        %1928 = vmatprep.subr.mxu0 0.0
        %1929 = vmatpush1.xpose.msra.mxu0 0.0
        %1930 = vmatprep.subr.mxu0 0.0
        %1931 = vmatpush1.xpose.msra.mxu0 0.0
        %1932 = vmatprep.subr.mxu0 0.0
        %1933 = vmatpush1.xpose.msra.mxu0 0.0
        %1934 = vmatprep.subr.mxu0 0.0
        %1935 = vmatpush1.xpose.msra.mxu0 0.0
        %1936 = vmatprep.subr.mxu0 0.0
        %1937 = vmatpush1.xpose.msra.mxu0 %v1910
        %1938 = vmatprep.subr.mxu0 0.0
        %1939 = vmatpush1.xpose.msra.mxu0 %v1908
        %1940 = vmatprep.subr.mxu0 0.0
        %1941 = vmatpush1.xpose.msra.mxu0 %v1906
        %1942 = vmatprep.subr.mxu0 0.0
        %1943 = vmatpush1.xpose.msra.mxu0 %v1904
        %1944 = vmatprep.subr.mxu0 0.0
        %1945 = vmatpush2.xpose.msra.mxu0 0.0
        %1946 = vmatprep.subr.mxu0 0.0
        %1947 = vmatpush2.xpose.msra.mxu0 0.0
        %1948 = vmatprep.subr.mxu0 0.0
        %1949 = vmatpush2.xpose.msra.mxu0 0.0
        %1950 = vmatprep.subr.mxu0 0.0
        %1951 = vmatpush2.xpose.msra.mxu0 0.0
        %1952 = vmatprep.subr.mxu0 0.0
        %1953 = vmatpush2.xpose.msra.mxu0 0.0
        %1954 = vmatprep.subr.mxu0 0.0
        %1955 = vmatpush2.xpose.msra.mxu0 0.0
        %1956 = vmatprep.subr.mxu0 0.0
        %1957 = vmatpush2.xpose.msra.mxu0 0.0
        %1958 = vmatprep.subr.mxu0 0.0
        %1959 = vmatpush2.xpose.msra.mxu0 0.0
        %1960 = vmatprep.subr.mxu0 0.0
        %1961 = vmatpush2.xpose.msra.mxu0 0.0
        %1962 = vmatprep.subr.mxu0 0.0
        %1963 = vmatpush2.xpose.msra.mxu0 0.0
        %1964 = vmatprep.subr.mxu0 0.0
        %1965 = vmatpush2.xpose.msra.mxu0 0.0
        %1966 = vmatprep.subr.mxu0 0.0
        %1967 = vmatpush2.xpose.msra.mxu0 0.0
        %1968 = vmatprep.subr.mxu0 0.0
        %1969 = vmatpush2.xpose.msra.mxu0 0.0
        %1970 = vmatprep.subr.mxu0 0.0
        %1971 = vmatpush2.xpose.msra.mxu0 0.0
        %1972 = vmatprep.subr.mxu0 0.0
        %1973 = vmatpush2.xpose.msra.mxu0 0.0
        %1974 = vmatprep.subr.mxu0 0.0
        %1975 = vmatpush2.xpose.msra.mxu0 0.0
        %1976 = vmatprep.mubr.f32.mxu0 0.0
        %1977 = vmatmul.mubr.f32.gmra.mxu0 %v1896
        %v1978 = vpop.f32.mrf.mxu0
        %v1979 = vadd.f32 0.0, %v1978
        %v1980 = vpop.f32.mrf.mxu0
        %1981 = vmatprep.mubr.f32.mxu0 0.0
        %1982 = vmatmul.mubr.f32.gmra.mxu0 %v1898
        %v1983 = vpop.f32.mrf.mxu0
        %v1984 = vadd.f32 0.0, %v1983
        %v1985 = vpop.f32.mrf.mxu0
        %1986 = vmatprep.mubr.f32.mxu0 0.0
        %1987 = vmatmul.mubr.f32.gmra.mxu0 %v1900
        %v1988 = vpop.f32.mrf.mxu0
        %v1989 = vadd.f32 0.0, %v1988
        %v1990 = vpop.f32.mrf.mxu0
        %1991 = vmatprep.mubr.f32.mxu0 0.0
        %1992 = vmatmul.mubr.f32.gmra.mxu0 %v1902
        %v1993 = vpop.f32.mrf.mxu0
        %v1994 = vadd.f32 0.0, %v1993
        %v1995 = vpop.f32.mrf.mxu0
        %1996 = vdwg.mxu0
        %1997 = vrot.lane.b32.xlu0 %v731, 96
        %v1998 = vpop.permute.xlu0 %1997
        %1999 = vrot.lane.b32.xlu0 %v733, 96
        %v2000 = vpop.permute.xlu0 %1999
        %2001 = vrot.lane.b32.xlu0 %v735, 96
        %v2002 = vpop.permute.xlu0 %2001
        %2003 = vrot.lane.b32.xlu0 %v737, 96
        %v2004 = vpop.permute.xlu0 %2003
        %v2005 = vsel %vm914, %v731, 0
        %v2007 = vsel %vm914, %v733, 0
        %v2009 = vsel %vm914, %v735, 0
        %v2011 = vsel %vm914, %v737, 0
        %v2013 = vsel %vm914, %v1998, 0
        %v2015 = vsel %vm914, %v2000, 0
        %v2017 = vsel %vm914, %v2002, 0
        %v2019 = vsel %vm914, %v2004, 0
        %2021 = vmatprep.subr.mxu0 0.0
        %2022 = vmatpush1.xpose.msra.mxu0 0.0
        %2023 = vmatprep.subr.mxu0 0.0
        %2024 = vmatpush1.xpose.msra.mxu0 0.0
        %2025 = vmatprep.subr.mxu0 0.0
        %2026 = vmatpush1.xpose.msra.mxu0 0.0
        %2027 = vmatprep.subr.mxu0 0.0
        %2028 = vmatpush1.xpose.msra.mxu0 0.0
        %2029 = vmatprep.subr.mxu0 0.0
        %2030 = vmatpush1.xpose.msra.mxu0 0.0
        %2031 = vmatprep.subr.mxu0 0.0
        %2032 = vmatpush1.xpose.msra.mxu0 0.0
        %2033 = vmatprep.subr.mxu0 0.0
        %2034 = vmatpush1.xpose.msra.mxu0 0.0
        %2035 = vmatprep.subr.mxu0 0.0
        %2036 = vmatpush1.xpose.msra.mxu0 0.0
        %2037 = vmatprep.subr.mxu0 0.0
        %2038 = vmatpush1.xpose.msra.mxu0 0.0
        %2039 = vmatprep.subr.mxu0 0.0
        %2040 = vmatpush1.xpose.msra.mxu0 0.0
        %2041 = vmatprep.subr.mxu0 0.0
        %2042 = vmatpush1.xpose.msra.mxu0 0.0
        %2043 = vmatprep.subr.mxu0 0.0
        %2044 = vmatpush1.xpose.msra.mxu0 0.0
        %2045 = vmatprep.subr.mxu0 0.0
        %2046 = vmatpush1.xpose.msra.mxu0 %v2019
        %2047 = vmatprep.subr.mxu0 0.0
        %2048 = vmatpush1.xpose.msra.mxu0 %v2017
        %2049 = vmatprep.subr.mxu0 0.0
        %2050 = vmatpush1.xpose.msra.mxu0 %v2015
        %2051 = vmatprep.subr.mxu0 0.0
        %2052 = vmatpush1.xpose.msra.mxu0 %v2013
        %2053 = vmatprep.subr.mxu0 0.0
        %2054 = vmatpush2.xpose.msra.mxu0 0.0
        %2055 = vmatprep.subr.mxu0 0.0
        %2056 = vmatpush2.xpose.msra.mxu0 0.0
        %2057 = vmatprep.subr.mxu0 0.0
        %2058 = vmatpush2.xpose.msra.mxu0 0.0
        %2059 = vmatprep.subr.mxu0 0.0
        %2060 = vmatpush2.xpose.msra.mxu0 0.0
        %2061 = vmatprep.subr.mxu0 0.0
        %2062 = vmatpush2.xpose.msra.mxu0 0.0
        %2063 = vmatprep.subr.mxu0 0.0
        %2064 = vmatpush2.xpose.msra.mxu0 0.0
        %2065 = vmatprep.subr.mxu0 0.0
        %2066 = vmatpush2.xpose.msra.mxu0 0.0
        %2067 = vmatprep.subr.mxu0 0.0
        %2068 = vmatpush2.xpose.msra.mxu0 0.0
        %2069 = vmatprep.subr.mxu0 0.0
        %2070 = vmatpush2.xpose.msra.mxu0 0.0
        %2071 = vmatprep.subr.mxu0 0.0
        %2072 = vmatpush2.xpose.msra.mxu0 0.0
        %2073 = vmatprep.subr.mxu0 0.0
        %2074 = vmatpush2.xpose.msra.mxu0 0.0
        %2075 = vmatprep.subr.mxu0 0.0
        %2076 = vmatpush2.xpose.msra.mxu0 0.0
        %2077 = vmatprep.subr.mxu0 0.0
        %2078 = vmatpush2.xpose.msra.mxu0 0.0
        %2079 = vmatprep.subr.mxu0 0.0
        %2080 = vmatpush2.xpose.msra.mxu0 0.0
        %2081 = vmatprep.subr.mxu0 0.0
        %2082 = vmatpush2.xpose.msra.mxu0 0.0
        %2083 = vmatprep.subr.mxu0 0.0
        %2084 = vmatpush2.xpose.msra.mxu0 0.0
        %2085 = vmatprep.mubr.f32.mxu0 0.0
        %2086 = vmatmul.mubr.f32.gmra.mxu0 %v2005
        %v2087 = vpop.f32.mrf.mxu0
        %v2088 = vadd.f32 0.0, %v2087
        %v2089 = vpop.f32.mrf.mxu0
        %2090 = vmatprep.mubr.f32.mxu0 0.0
        %2091 = vmatmul.mubr.f32.gmra.mxu0 %v2007
        %v2092 = vpop.f32.mrf.mxu0
        %v2093 = vadd.f32 0.0, %v2092
        %v2094 = vpop.f32.mrf.mxu0
        %2095 = vmatprep.mubr.f32.mxu0 0.0
        %2096 = vmatmul.mubr.f32.gmra.mxu0 %v2009
        %v2097 = vpop.f32.mrf.mxu0
        %v2098 = vadd.f32 0.0, %v2097
        %v2099 = vpop.f32.mrf.mxu0
        %2100 = vmatprep.mubr.f32.mxu0 0.0
        %2101 = vmatmul.mubr.f32.gmra.mxu0 %v2011
        %v2102 = vpop.f32.mrf.mxu0
        %v2103 = vadd.f32 0.0, %v2102
        %v2104 = vpop.f32.mrf.mxu0
        %2105 = vdwg.mxu0
        %2106 = vrot.lane.b32.xlu0 %v739, 96
        %v2107 = vpop.permute.xlu0 %2106
        %2108 = vrot.lane.b32.xlu0 %v741, 96
        %v2109 = vpop.permute.xlu0 %2108
        %2110 = vrot.lane.b32.xlu0 %v743, 96
        %v2111 = vpop.permute.xlu0 %2110
        %2112 = vrot.lane.b32.xlu0 %v745, 96
        %v2113 = vpop.permute.xlu0 %2112
        %v2114 = vsel %vm914, %v739, 0
        %v2116 = vsel %vm914, %v741, 0
        %v2118 = vsel %vm914, %v743, 0
        %v2120 = vsel %vm914, %v745, 0
        %v2122 = vsel %vm914, %v2107, 0
        %v2124 = vsel %vm914, %v2109, 0
        %v2126 = vsel %vm914, %v2111, 0
        %v2128 = vsel %vm914, %v2113, 0
        %2130 = vmatprep.subr.mxu0 0.0
        %2131 = vmatpush1.xpose.msra.mxu0 0.0
        %2132 = vmatprep.subr.mxu0 0.0
        %2133 = vmatpush1.xpose.msra.mxu0 0.0
        %2134 = vmatprep.subr.mxu0 0.0
        %2135 = vmatpush1.xpose.msra.mxu0 0.0
        %2136 = vmatprep.subr.mxu0 0.0
        %2137 = vmatpush1.xpose.msra.mxu0 0.0
        %2138 = vmatprep.subr.mxu0 0.0
        %2139 = vmatpush1.xpose.msra.mxu0 0.0
        %2140 = vmatprep.subr.mxu0 0.0
        %2141 = vmatpush1.xpose.msra.mxu0 0.0
        %2142 = vmatprep.subr.mxu0 0.0
        %2143 = vmatpush1.xpose.msra.mxu0 0.0
        %2144 = vmatprep.subr.mxu0 0.0
        %2145 = vmatpush1.xpose.msra.mxu0 0.0
        %2146 = vmatprep.subr.mxu0 0.0
        %2147 = vmatpush1.xpose.msra.mxu0 0.0
        %2148 = vmatprep.subr.mxu0 0.0
        %2149 = vmatpush1.xpose.msra.mxu0 0.0
        %2150 = vmatprep.subr.mxu0 0.0
        %2151 = vmatpush1.xpose.msra.mxu0 0.0
        %2152 = vmatprep.subr.mxu0 0.0
        %2153 = vmatpush1.xpose.msra.mxu0 0.0
        %2154 = vmatprep.subr.mxu0 0.0
        %2155 = vmatpush1.xpose.msra.mxu0 %v2128
        %2156 = vmatprep.subr.mxu0 0.0
        %2157 = vmatpush1.xpose.msra.mxu0 %v2126
        %2158 = vmatprep.subr.mxu0 0.0
        %2159 = vmatpush1.xpose.msra.mxu0 %v2124
        %2160 = vmatprep.subr.mxu0 0.0
        %2161 = vmatpush1.xpose.msra.mxu0 %v2122
        %2162 = vmatprep.subr.mxu0 0.0
        %2163 = vmatpush2.xpose.msra.mxu0 0.0
        %2164 = vmatprep.subr.mxu0 0.0
        %2165 = vmatpush2.xpose.msra.mxu0 0.0
        %2166 = vmatprep.subr.mxu0 0.0
        %2167 = vmatpush2.xpose.msra.mxu0 0.0
        %2168 = vmatprep.subr.mxu0 0.0
        %2169 = vmatpush2.xpose.msra.mxu0 0.0
        %2170 = vmatprep.subr.mxu0 0.0
        %2171 = vmatpush2.xpose.msra.mxu0 0.0
        %2172 = vmatprep.subr.mxu0 0.0
        %2173 = vmatpush2.xpose.msra.mxu0 0.0
        %2174 = vmatprep.subr.mxu0 0.0
        %2175 = vmatpush2.xpose.msra.mxu0 0.0
        %2176 = vmatprep.subr.mxu0 0.0
        %2177 = vmatpush2.xpose.msra.mxu0 0.0
        %2178 = vmatprep.subr.mxu0 0.0
        %2179 = vmatpush2.xpose.msra.mxu0 0.0
        %2180 = vmatprep.subr.mxu0 0.0
        %2181 = vmatpush2.xpose.msra.mxu0 0.0
        %2182 = vmatprep.subr.mxu0 0.0
        %2183 = vmatpush2.xpose.msra.mxu0 0.0
        %2184 = vmatprep.subr.mxu0 0.0
        %2185 = vmatpush2.xpose.msra.mxu0 0.0
        %2186 = vmatprep.subr.mxu0 0.0
        %2187 = vmatpush2.xpose.msra.mxu0 0.0
        %2188 = vmatprep.subr.mxu0 0.0
        %2189 = vmatpush2.xpose.msra.mxu0 0.0
        %2190 = vmatprep.subr.mxu0 0.0
        %2191 = vmatpush2.xpose.msra.mxu0 0.0
        %2192 = vmatprep.subr.mxu0 0.0
        %2193 = vmatpush2.xpose.msra.mxu0 0.0
        %2194 = vmatprep.mubr.f32.mxu0 0.0
        %2195 = vmatmul.mubr.f32.gmra.mxu0 %v2114
        %v2196 = vpop.f32.mrf.mxu0
        %v2197 = vadd.f32 0.0, %v2196
        %v2198 = vpop.f32.mrf.mxu0
        %2199 = vmatprep.mubr.f32.mxu0 0.0
        %2200 = vmatmul.mubr.f32.gmra.mxu0 %v2116
        %v2201 = vpop.f32.mrf.mxu0
        %v2202 = vadd.f32 0.0, %v2201
        %v2203 = vpop.f32.mrf.mxu0
        %2204 = vmatprep.mubr.f32.mxu0 0.0
        %2205 = vmatmul.mubr.f32.gmra.mxu0 %v2118
        %v2206 = vpop.f32.mrf.mxu0
        %v2207 = vadd.f32 0.0, %v2206
        %v2208 = vpop.f32.mrf.mxu0
        %2209 = vmatprep.mubr.f32.mxu0 0.0
        %2210 = vmatmul.mubr.f32.gmra.mxu0 %v2120
        %v2211 = vpop.f32.mrf.mxu0
        %v2212 = vadd.f32 0.0, %v2211
        %v2213 = vpop.f32.mrf.mxu0
        %2214 = vdwg.mxu0
        %2215 = vrot.lane.b32.xlu0 %v747, 96
        %v2216 = vpop.permute.xlu0 %2215
        %2217 = vrot.lane.b32.xlu0 %v749, 96
        %v2218 = vpop.permute.xlu0 %2217
        %2219 = vrot.lane.b32.xlu0 %v751, 96
        %v2220 = vpop.permute.xlu0 %2219
        %2221 = vrot.lane.b32.xlu0 %v753, 96
        %v2222 = vpop.permute.xlu0 %2221
        %v2223 = vsel %vm914, %v747, 0
        %v2225 = vsel %vm914, %v749, 0
        %v2227 = vsel %vm914, %v751, 0
        %v2229 = vsel %vm914, %v753, 0
        %v2231 = vsel %vm914, %v2216, 0
        %v2233 = vsel %vm914, %v2218, 0
        %v2235 = vsel %vm914, %v2220, 0
        %v2237 = vsel %vm914, %v2222, 0
        %2239 = vmatprep.subr.mxu0 0.0
        %2240 = vmatpush1.xpose.msra.mxu0 0.0
        %2241 = vmatprep.subr.mxu0 0.0
        %2242 = vmatpush1.xpose.msra.mxu0 0.0
        %2243 = vmatprep.subr.mxu0 0.0
        %2244 = vmatpush1.xpose.msra.mxu0 0.0
        %2245 = vmatprep.subr.mxu0 0.0
        %2246 = vmatpush1.xpose.msra.mxu0 0.0
        %2247 = vmatprep.subr.mxu0 0.0
        %2248 = vmatpush1.xpose.msra.mxu0 0.0
        %2249 = vmatprep.subr.mxu0 0.0
        %2250 = vmatpush1.xpose.msra.mxu0 0.0
        %2251 = vmatprep.subr.mxu0 0.0
        %2252 = vmatpush1.xpose.msra.mxu0 0.0
        %2253 = vmatprep.subr.mxu0 0.0
        %2254 = vmatpush1.xpose.msra.mxu0 0.0
        %2255 = vmatprep.subr.mxu0 0.0
        %2256 = vmatpush1.xpose.msra.mxu0 0.0
        %2257 = vmatprep.subr.mxu0 0.0
        %2258 = vmatpush1.xpose.msra.mxu0 0.0
        %2259 = vmatprep.subr.mxu0 0.0
        %2260 = vmatpush1.xpose.msra.mxu0 0.0
        %2261 = vmatprep.subr.mxu0 0.0
        %2262 = vmatpush1.xpose.msra.mxu0 0.0
        %2263 = vmatprep.subr.mxu0 0.0
        %2264 = vmatpush1.xpose.msra.mxu0 %v2237
        %2265 = vmatprep.subr.mxu0 0.0
        %2266 = vmatpush1.xpose.msra.mxu0 %v2235
        %2267 = vmatprep.subr.mxu0 0.0
        %2268 = vmatpush1.xpose.msra.mxu0 %v2233
        %2269 = vmatprep.subr.mxu0 0.0
        %2270 = vmatpush1.xpose.msra.mxu0 %v2231
        %2271 = vmatprep.subr.mxu0 0.0
        %2272 = vmatpush2.xpose.msra.mxu0 0.0
        %2273 = vmatprep.subr.mxu0 0.0
        %2274 = vmatpush2.xpose.msra.mxu0 0.0
        %2275 = vmatprep.subr.mxu0 0.0
        %2276 = vmatpush2.xpose.msra.mxu0 0.0
        %2277 = vmatprep.subr.mxu0 0.0
        %2278 = vmatpush2.xpose.msra.mxu0 0.0
        %2279 = vmatprep.subr.mxu0 0.0
        %2280 = vmatpush2.xpose.msra.mxu0 0.0
        %2281 = vmatprep.subr.mxu0 0.0
        %2282 = vmatpush2.xpose.msra.mxu0 0.0
        %2283 = vmatprep.subr.mxu0 0.0
        %2284 = vmatpush2.xpose.msra.mxu0 0.0
        %2285 = vmatprep.subr.mxu0 0.0
        %2286 = vmatpush2.xpose.msra.mxu0 0.0
        %2287 = vmatprep.subr.mxu0 0.0
        %2288 = vmatpush2.xpose.msra.mxu0 0.0
        %2289 = vmatprep.subr.mxu0 0.0
        %2290 = vmatpush2.xpose.msra.mxu0 0.0
        %2291 = vmatprep.subr.mxu0 0.0
        %2292 = vmatpush2.xpose.msra.mxu0 0.0
        %2293 = vmatprep.subr.mxu0 0.0
        %2294 = vmatpush2.xpose.msra.mxu0 0.0
        %2295 = vmatprep.subr.mxu0 0.0
        %2296 = vmatpush2.xpose.msra.mxu0 0.0
        %2297 = vmatprep.subr.mxu0 0.0
        %2298 = vmatpush2.xpose.msra.mxu0 0.0
        %2299 = vmatprep.subr.mxu0 0.0
        %2300 = vmatpush2.xpose.msra.mxu0 0.0
        %2301 = vmatprep.subr.mxu0 0.0
        %2302 = vmatpush2.xpose.msra.mxu0 0.0
        %2303 = vmatprep.mubr.f32.mxu0 0.0
        %2304 = vmatmul.mubr.f32.gmra.mxu0 %v2223
        %v2305 = vpop.f32.mrf.mxu0
        %v2306 = vadd.f32 0.0, %v2305
        %v2307 = vpop.f32.mrf.mxu0
        %2308 = vmatprep.mubr.f32.mxu0 0.0
        %2309 = vmatmul.mubr.f32.gmra.mxu0 %v2225
        %v2310 = vpop.f32.mrf.mxu0
        %v2311 = vadd.f32 0.0, %v2310
        %v2312 = vpop.f32.mrf.mxu0
        %2313 = vmatprep.mubr.f32.mxu0 0.0
        %2314 = vmatmul.mubr.f32.gmra.mxu0 %v2227
        %v2315 = vpop.f32.mrf.mxu0
        %v2316 = vadd.f32 0.0, %v2315
        %v2317 = vpop.f32.mrf.mxu0
        %2318 = vmatprep.mubr.f32.mxu0 0.0
        %2319 = vmatmul.mubr.f32.gmra.mxu0 %v2229
        %v2320 = vpop.f32.mrf.mxu0
        %v2321 = vadd.f32 0.0, %v2320
        %v2322 = vpop.f32.mrf.mxu0
        %2323 = vdwg.mxu0
        %2324 = vrot.lane.b32.xlu0 %v755, 96
        %v2325 = vpop.permute.xlu0 %2324
        %2326 = vrot.lane.b32.xlu0 %v757, 96
        %v2327 = vpop.permute.xlu0 %2326
        %2328 = vrot.lane.b32.xlu0 %v759, 96
        %v2329 = vpop.permute.xlu0 %2328
        %2330 = vrot.lane.b32.xlu0 %v761, 96
        %v2331 = vpop.permute.xlu0 %2330
        %v2332 = vsel %vm914, %v755, 0
        %v2334 = vsel %vm914, %v757, 0
        %v2336 = vsel %vm914, %v759, 0
        %v2338 = vsel %vm914, %v761, 0
        %v2340 = vsel %vm914, %v2325, 0
        %v2342 = vsel %vm914, %v2327, 0
        %v2344 = vsel %vm914, %v2329, 0
        %v2346 = vsel %vm914, %v2331, 0
        %2348 = vmatprep.subr.mxu0 0.0
        %2349 = vmatpush1.xpose.msra.mxu0 0.0
        %2350 = vmatprep.subr.mxu0 0.0
        %2351 = vmatpush1.xpose.msra.mxu0 0.0
        %2352 = vmatprep.subr.mxu0 0.0
        %2353 = vmatpush1.xpose.msra.mxu0 0.0
        %2354 = vmatprep.subr.mxu0 0.0
        %2355 = vmatpush1.xpose.msra.mxu0 0.0
        %2356 = vmatprep.subr.mxu0 0.0
        %2357 = vmatpush1.xpose.msra.mxu0 0.0
        %2358 = vmatprep.subr.mxu0 0.0
        %2359 = vmatpush1.xpose.msra.mxu0 0.0
        %2360 = vmatprep.subr.mxu0 0.0
        %2361 = vmatpush1.xpose.msra.mxu0 0.0
        %2362 = vmatprep.subr.mxu0 0.0
        %2363 = vmatpush1.xpose.msra.mxu0 0.0
        %2364 = vmatprep.subr.mxu0 0.0
        %2365 = vmatpush1.xpose.msra.mxu0 0.0
        %2366 = vmatprep.subr.mxu0 0.0
        %2367 = vmatpush1.xpose.msra.mxu0 0.0
        %2368 = vmatprep.subr.mxu0 0.0
        %2369 = vmatpush1.xpose.msra.mxu0 0.0
        %2370 = vmatprep.subr.mxu0 0.0
        %2371 = vmatpush1.xpose.msra.mxu0 0.0
        %2372 = vmatprep.subr.mxu0 0.0
        %2373 = vmatpush1.xpose.msra.mxu0 %v2346
        %2374 = vmatprep.subr.mxu0 0.0
        %2375 = vmatpush1.xpose.msra.mxu0 %v2344
        %2376 = vmatprep.subr.mxu0 0.0
        %2377 = vmatpush1.xpose.msra.mxu0 %v2342
        %2378 = vmatprep.subr.mxu0 0.0
        %2379 = vmatpush1.xpose.msra.mxu0 %v2340
        %2380 = vmatprep.subr.mxu0 0.0
        %2381 = vmatpush2.xpose.msra.mxu0 0.0
        %2382 = vmatprep.subr.mxu0 0.0
        %2383 = vmatpush2.xpose.msra.mxu0 0.0
        %2384 = vmatprep.subr.mxu0 0.0
        %2385 = vmatpush2.xpose.msra.mxu0 0.0
        %2386 = vmatprep.subr.mxu0 0.0
        %2387 = vmatpush2.xpose.msra.mxu0 0.0
        %2388 = vmatprep.subr.mxu0 0.0
        %2389 = vmatpush2.xpose.msra.mxu0 0.0
        %2390 = vmatprep.subr.mxu0 0.0
        %2391 = vmatpush2.xpose.msra.mxu0 0.0
        %2392 = vmatprep.subr.mxu0 0.0
        %2393 = vmatpush2.xpose.msra.mxu0 0.0
        %2394 = vmatprep.subr.mxu0 0.0
        %2395 = vmatpush2.xpose.msra.mxu0 0.0
        %2396 = vmatprep.subr.mxu0 0.0
        %2397 = vmatpush2.xpose.msra.mxu0 0.0
        %2398 = vmatprep.subr.mxu0 0.0
        %2399 = vmatpush2.xpose.msra.mxu0 0.0
        %2400 = vmatprep.subr.mxu0 0.0
        %2401 = vmatpush2.xpose.msra.mxu0 0.0
        %2402 = vmatprep.subr.mxu0 0.0
        %2403 = vmatpush2.xpose.msra.mxu0 0.0
        %2404 = vmatprep.subr.mxu0 0.0
        %2405 = vmatpush2.xpose.msra.mxu0 0.0
        %2406 = vmatprep.subr.mxu0 0.0
        %2407 = vmatpush2.xpose.msra.mxu0 0.0
        %2408 = vmatprep.subr.mxu0 0.0
        %2409 = vmatpush2.xpose.msra.mxu0 0.0
        %2410 = vmatprep.subr.mxu0 0.0
        %2411 = vmatpush2.xpose.msra.mxu0 0.0
        %2412 = vmatprep.mubr.f32.mxu0 0.0
        %2413 = vmatmul.mubr.f32.gmra.mxu0 %v2332
        %v2414 = vpop.f32.mrf.mxu0
        %v2415 = vadd.f32 0.0, %v2414
        %v2416 = vpop.f32.mrf.mxu0
        %2417 = vmatprep.mubr.f32.mxu0 0.0
        %2418 = vmatmul.mubr.f32.gmra.mxu0 %v2334
        %v2419 = vpop.f32.mrf.mxu0
        %v2420 = vadd.f32 0.0, %v2419
        %v2421 = vpop.f32.mrf.mxu0
        %2422 = vmatprep.mubr.f32.mxu0 0.0
        %2423 = vmatmul.mubr.f32.gmra.mxu0 %v2336
        %v2424 = vpop.f32.mrf.mxu0
        %v2425 = vadd.f32 0.0, %v2424
        %v2426 = vpop.f32.mrf.mxu0
        %2427 = vmatprep.mubr.f32.mxu0 0.0
        %2428 = vmatmul.mubr.f32.gmra.mxu0 %v2338
        %v2429 = vpop.f32.mrf.mxu0
        %v2430 = vadd.f32 0.0, %v2429
        %v2431 = vpop.f32.mrf.mxu0
        %2432 = vdwg.mxu0
        %2433 = vrot.lane.b32.xlu0 %v763, 96
        %v2434 = vpop.permute.xlu0 %2433
        %2435 = vrot.lane.b32.xlu0 %v765, 96
        %v2436 = vpop.permute.xlu0 %2435
        %2437 = vrot.lane.b32.xlu0 %v767, 96
        %v2438 = vpop.permute.xlu0 %2437
        %2439 = vrot.lane.b32.xlu0 %v769, 96
        %v2440 = vpop.permute.xlu0 %2439
        %v2441 = vsel %vm914, %v763, 0
        %v2443 = vsel %vm914, %v765, 0
        %v2445 = vsel %vm914, %v767, 0
        %v2447 = vsel %vm914, %v769, 0
        %v2449 = vsel %vm914, %v2434, 0
        %v2451 = vsel %vm914, %v2436, 0
        %v2453 = vsel %vm914, %v2438, 0
        %v2455 = vsel %vm914, %v2440, 0
        %2457 = vmatprep.subr.mxu0 0.0
        %2458 = vmatpush1.xpose.msra.mxu0 0.0
        %2459 = vmatprep.subr.mxu0 0.0
        %2460 = vmatpush1.xpose.msra.mxu0 0.0
        %2461 = vmatprep.subr.mxu0 0.0
        %2462 = vmatpush1.xpose.msra.mxu0 0.0
        %2463 = vmatprep.subr.mxu0 0.0
        %2464 = vmatpush1.xpose.msra.mxu0 0.0
        %2465 = vmatprep.subr.mxu0 0.0
        %2466 = vmatpush1.xpose.msra.mxu0 0.0
        %2467 = vmatprep.subr.mxu0 0.0
        %2468 = vmatpush1.xpose.msra.mxu0 0.0
        %2469 = vmatprep.subr.mxu0 0.0
        %2470 = vmatpush1.xpose.msra.mxu0 0.0
        %2471 = vmatprep.subr.mxu0 0.0
        %2472 = vmatpush1.xpose.msra.mxu0 0.0
        %2473 = vmatprep.subr.mxu0 0.0
        %2474 = vmatpush1.xpose.msra.mxu0 0.0
        %2475 = vmatprep.subr.mxu0 0.0
        %2476 = vmatpush1.xpose.msra.mxu0 0.0
        %2477 = vmatprep.subr.mxu0 0.0
        %2478 = vmatpush1.xpose.msra.mxu0 0.0
        %2479 = vmatprep.subr.mxu0 0.0
        %2480 = vmatpush1.xpose.msra.mxu0 0.0
        %2481 = vmatprep.subr.mxu0 0.0
        %2482 = vmatpush1.xpose.msra.mxu0 %v2455
        %2483 = vmatprep.subr.mxu0 0.0
        %2484 = vmatpush1.xpose.msra.mxu0 %v2453
        %2485 = vmatprep.subr.mxu0 0.0
        %2486 = vmatpush1.xpose.msra.mxu0 %v2451
        %2487 = vmatprep.subr.mxu0 0.0
        %2488 = vmatpush1.xpose.msra.mxu0 %v2449
        %2489 = vmatprep.subr.mxu0 0.0
        %2490 = vmatpush2.xpose.msra.mxu0 0.0
        %2491 = vmatprep.subr.mxu0 0.0
        %2492 = vmatpush2.xpose.msra.mxu0 0.0
        %2493 = vmatprep.subr.mxu0 0.0
        %2494 = vmatpush2.xpose.msra.mxu0 0.0
        %2495 = vmatprep.subr.mxu0 0.0
        %2496 = vmatpush2.xpose.msra.mxu0 0.0
        %2497 = vmatprep.subr.mxu0 0.0
        %2498 = vmatpush2.xpose.msra.mxu0 0.0
        %2499 = vmatprep.subr.mxu0 0.0
        %2500 = vmatpush2.xpose.msra.mxu0 0.0
        %2501 = vmatprep.subr.mxu0 0.0
        %2502 = vmatpush2.xpose.msra.mxu0 0.0
        %2503 = vmatprep.subr.mxu0 0.0
        %2504 = vmatpush2.xpose.msra.mxu0 0.0
        %2505 = vmatprep.subr.mxu0 0.0
        %2506 = vmatpush2.xpose.msra.mxu0 0.0
        %2507 = vmatprep.subr.mxu0 0.0
        %2508 = vmatpush2.xpose.msra.mxu0 0.0
        %2509 = vmatprep.subr.mxu0 0.0
        %2510 = vmatpush2.xpose.msra.mxu0 0.0
        %2511 = vmatprep.subr.mxu0 0.0
        %2512 = vmatpush2.xpose.msra.mxu0 0.0
        %2513 = vmatprep.subr.mxu0 0.0
        %2514 = vmatpush2.xpose.msra.mxu0 0.0
        %2515 = vmatprep.subr.mxu0 0.0
        %2516 = vmatpush2.xpose.msra.mxu0 0.0
        %2517 = vmatprep.subr.mxu0 0.0
        %2518 = vmatpush2.xpose.msra.mxu0 0.0
        %2519 = vmatprep.subr.mxu0 0.0
        %2520 = vmatpush2.xpose.msra.mxu0 0.0
        %2521 = vmatprep.mubr.f32.mxu0 0.0
        %2522 = vmatmul.mubr.f32.gmra.mxu0 %v2441
        %v2523 = vpop.f32.mrf.mxu0
        %v2524 = vadd.f32 0.0, %v2523
        %v2525 = vpop.f32.mrf.mxu0
        %2526 = vmatprep.mubr.f32.mxu0 0.0
        %2527 = vmatmul.mubr.f32.gmra.mxu0 %v2443
        %v2528 = vpop.f32.mrf.mxu0
        %v2529 = vadd.f32 0.0, %v2528
        %v2530 = vpop.f32.mrf.mxu0
        %2531 = vmatprep.mubr.f32.mxu0 0.0
        %2532 = vmatmul.mubr.f32.gmra.mxu0 %v2445
        %v2533 = vpop.f32.mrf.mxu0
        %v2534 = vadd.f32 0.0, %v2533
        %v2535 = vpop.f32.mrf.mxu0
        %2536 = vmatprep.mubr.f32.mxu0 0.0
        %2537 = vmatmul.mubr.f32.gmra.mxu0 %v2447
        %v2538 = vpop.f32.mrf.mxu0
        %v2539 = vadd.f32 0.0, %v2538
        %v2540 = vpop.f32.mrf.mxu0
        %2541 = vdwg.mxu0
        %2542 = vrot.lane.b32.xlu0 %v771, 96
        %v2543 = vpop.permute.xlu0 %2542
        %2544 = vrot.lane.b32.xlu0 %v773, 96
        %v2545 = vpop.permute.xlu0 %2544
        %2546 = vrot.lane.b32.xlu0 %v775, 96
        %v2547 = vpop.permute.xlu0 %2546
        %2548 = vrot.lane.b32.xlu0 %v777, 96
        %v2549 = vpop.permute.xlu0 %2548
        %v2550 = vsel %vm914, %v771, 0
        %v2552 = vsel %vm914, %v773, 0
        %v2554 = vsel %vm914, %v775, 0
        %v2556 = vsel %vm914, %v777, 0
        %v2558 = vsel %vm914, %v2543, 0
        %v2560 = vsel %vm914, %v2545, 0
        %v2562 = vsel %vm914, %v2547, 0
        %v2564 = vsel %vm914, %v2549, 0
        %2566 = vmatprep.subr.mxu0 0.0
        %2567 = vmatpush1.xpose.msra.mxu0 0.0
        %2568 = vmatprep.subr.mxu0 0.0
        %2569 = vmatpush1.xpose.msra.mxu0 0.0
        %2570 = vmatprep.subr.mxu0 0.0
        %2571 = vmatpush1.xpose.msra.mxu0 0.0
        %2572 = vmatprep.subr.mxu0 0.0
        %2573 = vmatpush1.xpose.msra.mxu0 0.0
        %2574 = vmatprep.subr.mxu0 0.0
        %2575 = vmatpush1.xpose.msra.mxu0 0.0
        %2576 = vmatprep.subr.mxu0 0.0
        %2577 = vmatpush1.xpose.msra.mxu0 0.0
        %2578 = vmatprep.subr.mxu0 0.0
        %2579 = vmatpush1.xpose.msra.mxu0 0.0
        %2580 = vmatprep.subr.mxu0 0.0
        %2581 = vmatpush1.xpose.msra.mxu0 0.0
        %2582 = vmatprep.subr.mxu0 0.0
        %2583 = vmatpush1.xpose.msra.mxu0 0.0
        %2584 = vmatprep.subr.mxu0 0.0
        %2585 = vmatpush1.xpose.msra.mxu0 0.0
        %2586 = vmatprep.subr.mxu0 0.0
        %2587 = vmatpush1.xpose.msra.mxu0 0.0
        %2588 = vmatprep.subr.mxu0 0.0
        %2589 = vmatpush1.xpose.msra.mxu0 0.0
        %2590 = vmatprep.subr.mxu0 0.0
        %2591 = vmatpush1.xpose.msra.mxu0 %v2564
        %2592 = vmatprep.subr.mxu0 0.0
        %2593 = vmatpush1.xpose.msra.mxu0 %v2562
        %2594 = vmatprep.subr.mxu0 0.0
        %2595 = vmatpush1.xpose.msra.mxu0 %v2560
        %2596 = vmatprep.subr.mxu0 0.0
        %2597 = vmatpush1.xpose.msra.mxu0 %v2558
        %2598 = vmatprep.subr.mxu0 0.0
        %2599 = vmatpush2.xpose.msra.mxu0 0.0
        %2600 = vmatprep.subr.mxu0 0.0
        %2601 = vmatpush2.xpose.msra.mxu0 0.0
        %2602 = vmatprep.subr.mxu0 0.0
        %2603 = vmatpush2.xpose.msra.mxu0 0.0
        %2604 = vmatprep.subr.mxu0 0.0
        %2605 = vmatpush2.xpose.msra.mxu0 0.0
        %2606 = vmatprep.subr.mxu0 0.0
        %2607 = vmatpush2.xpose.msra.mxu0 0.0
        %2608 = vmatprep.subr.mxu0 0.0
        %2609 = vmatpush2.xpose.msra.mxu0 0.0
        %2610 = vmatprep.subr.mxu0 0.0
        %2611 = vmatpush2.xpose.msra.mxu0 0.0
        %2612 = vmatprep.subr.mxu0 0.0
        %2613 = vmatpush2.xpose.msra.mxu0 0.0
        %2614 = vmatprep.subr.mxu0 0.0
        %2615 = vmatpush2.xpose.msra.mxu0 0.0
        %2616 = vmatprep.subr.mxu0 0.0
        %2617 = vmatpush2.xpose.msra.mxu0 0.0
        %2618 = vmatprep.subr.mxu0 0.0
        %2619 = vmatpush2.xpose.msra.mxu0 0.0
        %2620 = vmatprep.subr.mxu0 0.0
        %2621 = vmatpush2.xpose.msra.mxu0 0.0
        %2622 = vmatprep.subr.mxu0 0.0
        %2623 = vmatpush2.xpose.msra.mxu0 0.0
        %2624 = vmatprep.subr.mxu0 0.0
        %2625 = vmatpush2.xpose.msra.mxu0 0.0
        %2626 = vmatprep.subr.mxu0 0.0
        %2627 = vmatpush2.xpose.msra.mxu0 0.0
        %2628 = vmatprep.subr.mxu0 0.0
        %2629 = vmatpush2.xpose.msra.mxu0 0.0
        %2630 = vmatprep.mubr.f32.mxu0 0.0
        %2631 = vmatmul.mubr.f32.gmra.mxu0 %v2550
        %v2632 = vpop.f32.mrf.mxu0
        %v2633 = vadd.f32 0.0, %v2632
        %v2634 = vpop.f32.mrf.mxu0
        %2635 = vmatprep.mubr.f32.mxu0 0.0
        %2636 = vmatmul.mubr.f32.gmra.mxu0 %v2552
        %v2637 = vpop.f32.mrf.mxu0
        %v2638 = vadd.f32 0.0, %v2637
        %v2639 = vpop.f32.mrf.mxu0
        %2640 = vmatprep.mubr.f32.mxu0 0.0
        %2641 = vmatmul.mubr.f32.gmra.mxu0 %v2554
        %v2642 = vpop.f32.mrf.mxu0
        %v2643 = vadd.f32 0.0, %v2642
        %v2644 = vpop.f32.mrf.mxu0
        %2645 = vmatprep.mubr.f32.mxu0 0.0
        %2646 = vmatmul.mubr.f32.gmra.mxu0 %v2556
        %v2647 = vpop.f32.mrf.mxu0
        %v2648 = vadd.f32 0.0, %v2647
        %v2649 = vpop.f32.mrf.mxu0
        %2650 = vdwg.mxu0
        %2651 = vrot.lane.b32.xlu0 %v779, 96
        %v2652 = vpop.permute.xlu0 %2651
        %2653 = vrot.lane.b32.xlu0 %v781, 96
        %v2654 = vpop.permute.xlu0 %2653
        %2655 = vrot.lane.b32.xlu0 %v783, 96
        %v2656 = vpop.permute.xlu0 %2655
        %2657 = vrot.lane.b32.xlu0 %v785, 96
        %v2658 = vpop.permute.xlu0 %2657
        %v2659 = vsel %vm914, %v779, 0
        %v2661 = vsel %vm914, %v781, 0
        %v2663 = vsel %vm914, %v783, 0
        %v2665 = vsel %vm914, %v785, 0
        %v2667 = vsel %vm914, %v2652, 0
        %v2669 = vsel %vm914, %v2654, 0
        %v2671 = vsel %vm914, %v2656, 0
        %v2673 = vsel %vm914, %v2658, 0
        %2675 = vmatprep.subr.mxu0 0.0
        %2676 = vmatpush1.xpose.msra.mxu0 0.0
        %2677 = vmatprep.subr.mxu0 0.0
        %2678 = vmatpush1.xpose.msra.mxu0 0.0
        %2679 = vmatprep.subr.mxu0 0.0
        %2680 = vmatpush1.xpose.msra.mxu0 0.0
        %2681 = vmatprep.subr.mxu0 0.0
        %2682 = vmatpush1.xpose.msra.mxu0 0.0
        %2683 = vmatprep.subr.mxu0 0.0
        %2684 = vmatpush1.xpose.msra.mxu0 0.0
        %2685 = vmatprep.subr.mxu0 0.0
        %2686 = vmatpush1.xpose.msra.mxu0 0.0
        %2687 = vmatprep.subr.mxu0 0.0
        %2688 = vmatpush1.xpose.msra.mxu0 0.0
        %2689 = vmatprep.subr.mxu0 0.0
        %2690 = vmatpush1.xpose.msra.mxu0 0.0
        %2691 = vmatprep.subr.mxu0 0.0
        %2692 = vmatpush1.xpose.msra.mxu0 0.0
        %2693 = vmatprep.subr.mxu0 0.0
        %2694 = vmatpush1.xpose.msra.mxu0 0.0
        %2695 = vmatprep.subr.mxu0 0.0
        %2696 = vmatpush1.xpose.msra.mxu0 0.0
        %2697 = vmatprep.subr.mxu0 0.0
        %2698 = vmatpush1.xpose.msra.mxu0 0.0
        %2699 = vmatprep.subr.mxu0 0.0
        %2700 = vmatpush1.xpose.msra.mxu0 %v2673
        %2701 = vmatprep.subr.mxu0 0.0
        %2702 = vmatpush1.xpose.msra.mxu0 %v2671
        %2703 = vmatprep.subr.mxu0 0.0
        %2704 = vmatpush1.xpose.msra.mxu0 %v2669
        %2705 = vmatprep.subr.mxu0 0.0
        %2706 = vmatpush1.xpose.msra.mxu0 %v2667
        %2707 = vmatprep.subr.mxu0 0.0
        %2708 = vmatpush2.xpose.msra.mxu0 0.0
        %2709 = vmatprep.subr.mxu0 0.0
        %2710 = vmatpush2.xpose.msra.mxu0 0.0
        %2711 = vmatprep.subr.mxu0 0.0
        %2712 = vmatpush2.xpose.msra.mxu0 0.0
        %2713 = vmatprep.subr.mxu0 0.0
        %2714 = vmatpush2.xpose.msra.mxu0 0.0
        %2715 = vmatprep.subr.mxu0 0.0
        %2716 = vmatpush2.xpose.msra.mxu0 0.0
        %2717 = vmatprep.subr.mxu0 0.0
        %2718 = vmatpush2.xpose.msra.mxu0 0.0
        %2719 = vmatprep.subr.mxu0 0.0
        %2720 = vmatpush2.xpose.msra.mxu0 0.0
        %2721 = vmatprep.subr.mxu0 0.0
        %2722 = vmatpush2.xpose.msra.mxu0 0.0
        %2723 = vmatprep.subr.mxu0 0.0
        %2724 = vmatpush2.xpose.msra.mxu0 0.0
        %2725 = vmatprep.subr.mxu0 0.0
        %2726 = vmatpush2.xpose.msra.mxu0 0.0
        %2727 = vmatprep.subr.mxu0 0.0
        %2728 = vmatpush2.xpose.msra.mxu0 0.0
        %2729 = vmatprep.subr.mxu0 0.0
        %2730 = vmatpush2.xpose.msra.mxu0 0.0
        %2731 = vmatprep.subr.mxu0 0.0
        %2732 = vmatpush2.xpose.msra.mxu0 0.0
        %2733 = vmatprep.subr.mxu0 0.0
        %2734 = vmatpush2.xpose.msra.mxu0 0.0
        %2735 = vmatprep.subr.mxu0 0.0
        %2736 = vmatpush2.xpose.msra.mxu0 0.0
        %2737 = vmatprep.subr.mxu0 0.0
        %2738 = vmatpush2.xpose.msra.mxu0 0.0
        %2739 = vmatprep.mubr.f32.mxu0 0.0
        %2740 = vmatmul.mubr.f32.gmra.mxu0 %v2659
        %v2741 = vpop.f32.mrf.mxu0
        %v2742 = vadd.f32 0.0, %v2741
        %v2743 = vpop.f32.mrf.mxu0
        %2744 = vmatprep.mubr.f32.mxu0 0.0
        %2745 = vmatmul.mubr.f32.gmra.mxu0 %v2661
        %v2746 = vpop.f32.mrf.mxu0
        %v2747 = vadd.f32 0.0, %v2746
        %v2748 = vpop.f32.mrf.mxu0
        %2749 = vmatprep.mubr.f32.mxu0 0.0
        %2750 = vmatmul.mubr.f32.gmra.mxu0 %v2663
        %v2751 = vpop.f32.mrf.mxu0
        %v2752 = vadd.f32 0.0, %v2751
        %v2753 = vpop.f32.mrf.mxu0
        %2754 = vmatprep.mubr.f32.mxu0 0.0
        %2755 = vmatmul.mubr.f32.gmra.mxu0 %v2665
        %v2756 = vpop.f32.mrf.mxu0
        %v2757 = vadd.f32 0.0, %v2756
        %v2758 = vpop.f32.mrf.mxu0
        %2759 = vdwg.mxu0
        %2760 = vrot.lane.b32.xlu0 %v787, 96
        %v2761 = vpop.permute.xlu0 %2760
        %2762 = vrot.lane.b32.xlu0 %v789, 96
        %v2763 = vpop.permute.xlu0 %2762
        %2764 = vrot.lane.b32.xlu0 %v791, 96
        %v2765 = vpop.permute.xlu0 %2764
        %2766 = vrot.lane.b32.xlu0 %v793, 96
        %v2767 = vpop.permute.xlu0 %2766
        %v2768 = vsel %vm914, %v787, 0
        %v2770 = vsel %vm914, %v789, 0
        %v2772 = vsel %vm914, %v791, 0
        %v2774 = vsel %vm914, %v793, 0
        %v2776 = vsel %vm914, %v2761, 0
        %v2778 = vsel %vm914, %v2763, 0
        %v2780 = vsel %vm914, %v2765, 0
        %v2782 = vsel %vm914, %v2767, 0
        %2784 = vmatprep.subr.mxu0 0.0
        %2785 = vmatpush1.xpose.msra.mxu0 0.0
        %2786 = vmatprep.subr.mxu0 0.0
        %2787 = vmatpush1.xpose.msra.mxu0 0.0
        %2788 = vmatprep.subr.mxu0 0.0
        %2789 = vmatpush1.xpose.msra.mxu0 0.0
        %2790 = vmatprep.subr.mxu0 0.0
        %2791 = vmatpush1.xpose.msra.mxu0 0.0
        %2792 = vmatprep.subr.mxu0 0.0
        %2793 = vmatpush1.xpose.msra.mxu0 0.0
        %2794 = vmatprep.subr.mxu0 0.0
        %2795 = vmatpush1.xpose.msra.mxu0 0.0
        %2796 = vmatprep.subr.mxu0 0.0
        %2797 = vmatpush1.xpose.msra.mxu0 0.0
        %2798 = vmatprep.subr.mxu0 0.0
        %2799 = vmatpush1.xpose.msra.mxu0 0.0
        %2800 = vmatprep.subr.mxu0 0.0
        %2801 = vmatpush1.xpose.msra.mxu0 0.0
        %2802 = vmatprep.subr.mxu0 0.0
        %2803 = vmatpush1.xpose.msra.mxu0 0.0
        %2804 = vmatprep.subr.mxu0 0.0
        %2805 = vmatpush1.xpose.msra.mxu0 0.0
        %2806 = vmatprep.subr.mxu0 0.0
        %2807 = vmatpush1.xpose.msra.mxu0 0.0
        %2808 = vmatprep.subr.mxu0 0.0
        %2809 = vmatpush1.xpose.msra.mxu0 %v2782
        %2810 = vmatprep.subr.mxu0 0.0
        %2811 = vmatpush1.xpose.msra.mxu0 %v2780
        %2812 = vmatprep.subr.mxu0 0.0
        %2813 = vmatpush1.xpose.msra.mxu0 %v2778
        %2814 = vmatprep.subr.mxu0 0.0
        %2815 = vmatpush1.xpose.msra.mxu0 %v2776
        %2816 = vmatprep.subr.mxu0 0.0
        %2817 = vmatpush2.xpose.msra.mxu0 0.0
        %2818 = vmatprep.subr.mxu0 0.0
        %2819 = vmatpush2.xpose.msra.mxu0 0.0
        %2820 = vmatprep.subr.mxu0 0.0
        %2821 = vmatpush2.xpose.msra.mxu0 0.0
        %2822 = vmatprep.subr.mxu0 0.0
        %2823 = vmatpush2.xpose.msra.mxu0 0.0
        %2824 = vmatprep.subr.mxu0 0.0
        %2825 = vmatpush2.xpose.msra.mxu0 0.0
        %2826 = vmatprep.subr.mxu0 0.0
        %2827 = vmatpush2.xpose.msra.mxu0 0.0
        %2828 = vmatprep.subr.mxu0 0.0
        %2829 = vmatpush2.xpose.msra.mxu0 0.0
        %2830 = vmatprep.subr.mxu0 0.0
        %2831 = vmatpush2.xpose.msra.mxu0 0.0
        %2832 = vmatprep.subr.mxu0 0.0
        %2833 = vmatpush2.xpose.msra.mxu0 0.0
        %2834 = vmatprep.subr.mxu0 0.0
        %2835 = vmatpush2.xpose.msra.mxu0 0.0
        %2836 = vmatprep.subr.mxu0 0.0
        %2837 = vmatpush2.xpose.msra.mxu0 0.0
        %2838 = vmatprep.subr.mxu0 0.0
        %2839 = vmatpush2.xpose.msra.mxu0 0.0
        %2840 = vmatprep.subr.mxu0 0.0
        %2841 = vmatpush2.xpose.msra.mxu0 0.0
        %2842 = vmatprep.subr.mxu0 0.0
        %2843 = vmatpush2.xpose.msra.mxu0 0.0
        %2844 = vmatprep.subr.mxu0 0.0
        %2845 = vmatpush2.xpose.msra.mxu0 0.0
        %2846 = vmatprep.subr.mxu0 0.0
        %2847 = vmatpush2.xpose.msra.mxu0 0.0
        %2848 = vmatprep.mubr.f32.mxu0 0.0
        %2849 = vmatmul.mubr.f32.gmra.mxu0 %v2768
        %v2850 = vpop.f32.mrf.mxu0
        %v2851 = vadd.f32 0.0, %v2850
        %v2852 = vpop.f32.mrf.mxu0
        %2853 = vmatprep.mubr.f32.mxu0 0.0
        %2854 = vmatmul.mubr.f32.gmra.mxu0 %v2770
        %v2855 = vpop.f32.mrf.mxu0
        %v2856 = vadd.f32 0.0, %v2855
        %v2857 = vpop.f32.mrf.mxu0
        %2858 = vmatprep.mubr.f32.mxu0 0.0
        %2859 = vmatmul.mubr.f32.gmra.mxu0 %v2772
        %v2860 = vpop.f32.mrf.mxu0
        %v2861 = vadd.f32 0.0, %v2860
        %v2862 = vpop.f32.mrf.mxu0
        %2863 = vmatprep.mubr.f32.mxu0 0.0
        %2864 = vmatmul.mubr.f32.gmra.mxu0 %v2774
        %v2865 = vpop.f32.mrf.mxu0
        %v2866 = vadd.f32 0.0, %v2865
        %v2867 = vpop.f32.mrf.mxu0
        %2868 = vdwg.mxu0
        %2869 = vrot.lane.b32.xlu0 %v795, 96
        %v2870 = vpop.permute.xlu0 %2869
        %2871 = vrot.lane.b32.xlu0 %v797, 96
        %v2872 = vpop.permute.xlu0 %2871
        %2873 = vrot.lane.b32.xlu0 %v799, 96
        %v2874 = vpop.permute.xlu0 %2873
        %2875 = vrot.lane.b32.xlu0 %v801, 96
        %v2876 = vpop.permute.xlu0 %2875
        %v2877 = vsel %vm914, %v795, 0
        %v2879 = vsel %vm914, %v797, 0
        %v2881 = vsel %vm914, %v799, 0
        %v2883 = vsel %vm914, %v801, 0
        %v2885 = vsel %vm914, %v2870, 0
        %v2887 = vsel %vm914, %v2872, 0
        %v2889 = vsel %vm914, %v2874, 0
        %v2891 = vsel %vm914, %v2876, 0
        %2893 = vmatprep.subr.mxu0 0.0
        %2894 = vmatpush1.xpose.msra.mxu0 0.0
        %2895 = vmatprep.subr.mxu0 0.0
        %2896 = vmatpush1.xpose.msra.mxu0 0.0
        %2897 = vmatprep.subr.mxu0 0.0
        %2898 = vmatpush1.xpose.msra.mxu0 0.0
        %2899 = vmatprep.subr.mxu0 0.0
        %2900 = vmatpush1.xpose.msra.mxu0 0.0
        %2901 = vmatprep.subr.mxu0 0.0
        %2902 = vmatpush1.xpose.msra.mxu0 0.0
        %2903 = vmatprep.subr.mxu0 0.0
        %2904 = vmatpush1.xpose.msra.mxu0 0.0
        %2905 = vmatprep.subr.mxu0 0.0
        %2906 = vmatpush1.xpose.msra.mxu0 0.0
        %2907 = vmatprep.subr.mxu0 0.0
        %2908 = vmatpush1.xpose.msra.mxu0 0.0
        %2909 = vmatprep.subr.mxu0 0.0
        %2910 = vmatpush1.xpose.msra.mxu0 0.0
        %2911 = vmatprep.subr.mxu0 0.0
        %2912 = vmatpush1.xpose.msra.mxu0 0.0
        %2913 = vmatprep.subr.mxu0 0.0
        %2914 = vmatpush1.xpose.msra.mxu0 0.0
        %2915 = vmatprep.subr.mxu0 0.0
        %2916 = vmatpush1.xpose.msra.mxu0 0.0
        %2917 = vmatprep.subr.mxu0 0.0
        %2918 = vmatpush1.xpose.msra.mxu0 %v2891
        %2919 = vmatprep.subr.mxu0 0.0
        %2920 = vmatpush1.xpose.msra.mxu0 %v2889
        %2921 = vmatprep.subr.mxu0 0.0
        %2922 = vmatpush1.xpose.msra.mxu0 %v2887
        %2923 = vmatprep.subr.mxu0 0.0
        %2924 = vmatpush1.xpose.msra.mxu0 %v2885
        %2925 = vmatprep.subr.mxu0 0.0
        %2926 = vmatpush2.xpose.msra.mxu0 0.0
        %2927 = vmatprep.subr.mxu0 0.0
        %2928 = vmatpush2.xpose.msra.mxu0 0.0
        %2929 = vmatprep.subr.mxu0 0.0
        %2930 = vmatpush2.xpose.msra.mxu0 0.0
        %2931 = vmatprep.subr.mxu0 0.0
        %2932 = vmatpush2.xpose.msra.mxu0 0.0
        %2933 = vmatprep.subr.mxu0 0.0
        %2934 = vmatpush2.xpose.msra.mxu0 0.0
        %2935 = vmatprep.subr.mxu0 0.0
        %2936 = vmatpush2.xpose.msra.mxu0 0.0
        %2937 = vmatprep.subr.mxu0 0.0
        %2938 = vmatpush2.xpose.msra.mxu0 0.0
        %2939 = vmatprep.subr.mxu0 0.0
        %2940 = vmatpush2.xpose.msra.mxu0 0.0
        %2941 = vmatprep.subr.mxu0 0.0
        %2942 = vmatpush2.xpose.msra.mxu0 0.0
        %2943 = vmatprep.subr.mxu0 0.0
        %2944 = vmatpush2.xpose.msra.mxu0 0.0
        %2945 = vmatprep.subr.mxu0 0.0
        %2946 = vmatpush2.xpose.msra.mxu0 0.0
        %2947 = vmatprep.subr.mxu0 0.0
        %2948 = vmatpush2.xpose.msra.mxu0 0.0
        %2949 = vmatprep.subr.mxu0 0.0
        %2950 = vmatpush2.xpose.msra.mxu0 0.0
        %2951 = vmatprep.subr.mxu0 0.0
        %2952 = vmatpush2.xpose.msra.mxu0 0.0
        %2953 = vmatprep.subr.mxu0 0.0
        %2954 = vmatpush2.xpose.msra.mxu0 0.0
        %2955 = vmatprep.subr.mxu0 0.0
        %2956 = vmatpush2.xpose.msra.mxu0 0.0
        %2957 = vmatprep.mubr.f32.mxu0 0.0
        %2958 = vmatmul.mubr.f32.gmra.mxu0 %v2877
        %v2959 = vpop.f32.mrf.mxu0
        %v2960 = vadd.f32 0.0, %v2959
        %v2961 = vpop.f32.mrf.mxu0
        %2962 = vmatprep.mubr.f32.mxu0 0.0
        %2963 = vmatmul.mubr.f32.gmra.mxu0 %v2879
        %v2964 = vpop.f32.mrf.mxu0
        %v2965 = vadd.f32 0.0, %v2964
        %v2966 = vpop.f32.mrf.mxu0
        %2967 = vmatprep.mubr.f32.mxu0 0.0
        %2968 = vmatmul.mubr.f32.gmra.mxu0 %v2881
        %v2969 = vpop.f32.mrf.mxu0
        %v2970 = vadd.f32 0.0, %v2969
        %v2971 = vpop.f32.mrf.mxu0
        %2972 = vmatprep.mubr.f32.mxu0 0.0
        %2973 = vmatmul.mubr.f32.gmra.mxu0 %v2883
        %v2974 = vpop.f32.mrf.mxu0
        %v2975 = vadd.f32 0.0, %v2974
        %v2976 = vpop.f32.mrf.mxu0
        %2977 = vdwg.mxu0
        %2978 = vrot.lane.b32.xlu0 %v803, 96
        %v2979 = vpop.permute.xlu0 %2978
        %2980 = vrot.lane.b32.xlu0 %v805, 96
        %v2981 = vpop.permute.xlu0 %2980
        %2982 = vrot.lane.b32.xlu0 %v807, 96
        %v2983 = vpop.permute.xlu0 %2982
        %2984 = vrot.lane.b32.xlu0 %v809, 96
        %v2985 = vpop.permute.xlu0 %2984
        %v2986 = vsel %vm914, %v803, 0
        %v2988 = vsel %vm914, %v805, 0
        %v2990 = vsel %vm914, %v807, 0
        %v2992 = vsel %vm914, %v809, 0
        %v2994 = vsel %vm914, %v2979, 0
        %v2996 = vsel %vm914, %v2981, 0
        %v2998 = vsel %vm914, %v2983, 0
        %v3000 = vsel %vm914, %v2985, 0
        %3002 = vmatprep.subr.mxu0 0.0
        %3003 = vmatpush1.xpose.msra.mxu0 0.0
        %3004 = vmatprep.subr.mxu0 0.0
        %3005 = vmatpush1.xpose.msra.mxu0 0.0
        %3006 = vmatprep.subr.mxu0 0.0
        %3007 = vmatpush1.xpose.msra.mxu0 0.0
        %3008 = vmatprep.subr.mxu0 0.0
        %3009 = vmatpush1.xpose.msra.mxu0 0.0
        %3010 = vmatprep.subr.mxu0 0.0
        %3011 = vmatpush1.xpose.msra.mxu0 0.0
        %3012 = vmatprep.subr.mxu0 0.0
        %3013 = vmatpush1.xpose.msra.mxu0 0.0
        %3014 = vmatprep.subr.mxu0 0.0
        %3015 = vmatpush1.xpose.msra.mxu0 0.0
        %3016 = vmatprep.subr.mxu0 0.0
        %3017 = vmatpush1.xpose.msra.mxu0 0.0
        %3018 = vmatprep.subr.mxu0 0.0
        %3019 = vmatpush1.xpose.msra.mxu0 0.0
        %3020 = vmatprep.subr.mxu0 0.0
        %3021 = vmatpush1.xpose.msra.mxu0 0.0
        %3022 = vmatprep.subr.mxu0 0.0
        %3023 = vmatpush1.xpose.msra.mxu0 0.0
        %3024 = vmatprep.subr.mxu0 0.0
        %3025 = vmatpush1.xpose.msra.mxu0 0.0
        %3026 = vmatprep.subr.mxu0 0.0
        %3027 = vmatpush1.xpose.msra.mxu0 %v3000
        %3028 = vmatprep.subr.mxu0 0.0
        %3029 = vmatpush1.xpose.msra.mxu0 %v2998
        %3030 = vmatprep.subr.mxu0 0.0
        %3031 = vmatpush1.xpose.msra.mxu0 %v2996
        %3032 = vmatprep.subr.mxu0 0.0
        %3033 = vmatpush1.xpose.msra.mxu0 %v2994
        %3034 = vmatprep.subr.mxu0 0.0
        %3035 = vmatpush2.xpose.msra.mxu0 0.0
        %3036 = vmatprep.subr.mxu0 0.0
        %3037 = vmatpush2.xpose.msra.mxu0 0.0
        %3038 = vmatprep.subr.mxu0 0.0
        %3039 = vmatpush2.xpose.msra.mxu0 0.0
        %3040 = vmatprep.subr.mxu0 0.0
        %3041 = vmatpush2.xpose.msra.mxu0 0.0
        %3042 = vmatprep.subr.mxu0 0.0
        %3043 = vmatpush2.xpose.msra.mxu0 0.0
        %3044 = vmatprep.subr.mxu0 0.0
        %3045 = vmatpush2.xpose.msra.mxu0 0.0
        %3046 = vmatprep.subr.mxu0 0.0
        %3047 = vmatpush2.xpose.msra.mxu0 0.0
        %3048 = vmatprep.subr.mxu0 0.0
        %3049 = vmatpush2.xpose.msra.mxu0 0.0
        %3050 = vmatprep.subr.mxu0 0.0
        %3051 = vmatpush2.xpose.msra.mxu0 0.0
        %3052 = vmatprep.subr.mxu0 0.0
        %3053 = vmatpush2.xpose.msra.mxu0 0.0
        %3054 = vmatprep.subr.mxu0 0.0
        %3055 = vmatpush2.xpose.msra.mxu0 0.0
        %3056 = vmatprep.subr.mxu0 0.0
        %3057 = vmatpush2.xpose.msra.mxu0 0.0
        %3058 = vmatprep.subr.mxu0 0.0
        %3059 = vmatpush2.xpose.msra.mxu0 0.0
        %3060 = vmatprep.subr.mxu0 0.0
        %3061 = vmatpush2.xpose.msra.mxu0 0.0
        %3062 = vmatprep.subr.mxu0 0.0
        %3063 = vmatpush2.xpose.msra.mxu0 0.0
        %3064 = vmatprep.subr.mxu0 0.0
        %3065 = vmatpush2.xpose.msra.mxu0 0.0
        %3066 = vmatprep.mubr.f32.mxu0 0.0
        %3067 = vmatmul.mubr.f32.gmra.mxu0 %v2986
        %v3068 = vpop.f32.mrf.mxu0
        %v3069 = vadd.f32 0.0, %v3068
        %v3070 = vpop.f32.mrf.mxu0
        %3071 = vmatprep.mubr.f32.mxu0 0.0
        %3072 = vmatmul.mubr.f32.gmra.mxu0 %v2988
        %v3073 = vpop.f32.mrf.mxu0
        %v3074 = vadd.f32 0.0, %v3073
        %v3075 = vpop.f32.mrf.mxu0
        %3076 = vmatprep.mubr.f32.mxu0 0.0
        %3077 = vmatmul.mubr.f32.gmra.mxu0 %v2990
        %v3078 = vpop.f32.mrf.mxu0
        %v3079 = vadd.f32 0.0, %v3078
        %v3080 = vpop.f32.mrf.mxu0
        %3081 = vmatprep.mubr.f32.mxu0 0.0
        %3082 = vmatmul.mubr.f32.gmra.mxu0 %v2992
        %v3083 = vpop.f32.mrf.mxu0
        %v3084 = vadd.f32 0.0, %v3083
        %v3085 = vpop.f32.mrf.mxu0
        %3086 = vdwg.mxu0
        %3087 = vrot.lane.b32.xlu0 %v811, 96
        %v3088 = vpop.permute.xlu0 %3087
        %3089 = vrot.lane.b32.xlu0 %v813, 96
        %v3090 = vpop.permute.xlu0 %3089
        %3091 = vrot.lane.b32.xlu0 %v815, 96
        %v3092 = vpop.permute.xlu0 %3091
        %3093 = vrot.lane.b32.xlu0 %v817, 96
        %v3094 = vpop.permute.xlu0 %3093
        %v3095 = vsel %vm914, %v811, 0
        %v3097 = vsel %vm914, %v813, 0
        %v3099 = vsel %vm914, %v815, 0
        %v3101 = vsel %vm914, %v817, 0
        %v3103 = vsel %vm914, %v3088, 0
        %v3105 = vsel %vm914, %v3090, 0
        %v3107 = vsel %vm914, %v3092, 0
        %v3109 = vsel %vm914, %v3094, 0
        %3111 = vmatprep.subr.mxu0 0.0
        %3112 = vmatpush1.xpose.msra.mxu0 0.0
        %3113 = vmatprep.subr.mxu0 0.0
        %3114 = vmatpush1.xpose.msra.mxu0 0.0
        %3115 = vmatprep.subr.mxu0 0.0
        %3116 = vmatpush1.xpose.msra.mxu0 0.0
        %3117 = vmatprep.subr.mxu0 0.0
        %3118 = vmatpush1.xpose.msra.mxu0 0.0
        %3119 = vmatprep.subr.mxu0 0.0
        %3120 = vmatpush1.xpose.msra.mxu0 0.0
        %3121 = vmatprep.subr.mxu0 0.0
        %3122 = vmatpush1.xpose.msra.mxu0 0.0
        %3123 = vmatprep.subr.mxu0 0.0
        %3124 = vmatpush1.xpose.msra.mxu0 0.0
        %3125 = vmatprep.subr.mxu0 0.0
        %3126 = vmatpush1.xpose.msra.mxu0 0.0
        %3127 = vmatprep.subr.mxu0 0.0
        %3128 = vmatpush1.xpose.msra.mxu0 0.0
        %3129 = vmatprep.subr.mxu0 0.0
        %3130 = vmatpush1.xpose.msra.mxu0 0.0
        %3131 = vmatprep.subr.mxu0 0.0
        %3132 = vmatpush1.xpose.msra.mxu0 0.0
        %3133 = vmatprep.subr.mxu0 0.0
        %3134 = vmatpush1.xpose.msra.mxu0 0.0
        %3135 = vmatprep.subr.mxu0 0.0
        %3136 = vmatpush1.xpose.msra.mxu0 %v3109
        %3137 = vmatprep.subr.mxu0 0.0
        %3138 = vmatpush1.xpose.msra.mxu0 %v3107
        %3139 = vmatprep.subr.mxu0 0.0
        %3140 = vmatpush1.xpose.msra.mxu0 %v3105
        %3141 = vmatprep.subr.mxu0 0.0
        %3142 = vmatpush1.xpose.msra.mxu0 %v3103
        %3143 = vmatprep.subr.mxu0 0.0
        %3144 = vmatpush2.xpose.msra.mxu0 0.0
        %3145 = vmatprep.subr.mxu0 0.0
        %3146 = vmatpush2.xpose.msra.mxu0 0.0
        %3147 = vmatprep.subr.mxu0 0.0
        %3148 = vmatpush2.xpose.msra.mxu0 0.0
        %3149 = vmatprep.subr.mxu0 0.0
        %3150 = vmatpush2.xpose.msra.mxu0 0.0
        %3151 = vmatprep.subr.mxu0 0.0
        %3152 = vmatpush2.xpose.msra.mxu0 0.0
        %3153 = vmatprep.subr.mxu0 0.0
        %3154 = vmatpush2.xpose.msra.mxu0 0.0
        %3155 = vmatprep.subr.mxu0 0.0
        %3156 = vmatpush2.xpose.msra.mxu0 0.0
        %3157 = vmatprep.subr.mxu0 0.0
        %3158 = vmatpush2.xpose.msra.mxu0 0.0
        %3159 = vmatprep.subr.mxu0 0.0
        %3160 = vmatpush2.xpose.msra.mxu0 0.0
        %3161 = vmatprep.subr.mxu0 0.0
        %3162 = vmatpush2.xpose.msra.mxu0 0.0
        %3163 = vmatprep.subr.mxu0 0.0
        %3164 = vmatpush2.xpose.msra.mxu0 0.0
        %3165 = vmatprep.subr.mxu0 0.0
        %3166 = vmatpush2.xpose.msra.mxu0 0.0
        %3167 = vmatprep.subr.mxu0 0.0
        %3168 = vmatpush2.xpose.msra.mxu0 0.0
        %3169 = vmatprep.subr.mxu0 0.0
        %3170 = vmatpush2.xpose.msra.mxu0 0.0
        %3171 = vmatprep.subr.mxu0 0.0
        %3172 = vmatpush2.xpose.msra.mxu0 0.0
        %3173 = vmatprep.subr.mxu0 0.0
        %3174 = vmatpush2.xpose.msra.mxu0 0.0
        %3175 = vmatprep.mubr.f32.mxu0 0.0
        %3176 = vmatmul.mubr.f32.gmra.mxu0 %v3095
        %v3177 = vpop.f32.mrf.mxu0
        %v3178 = vadd.f32 0.0, %v3177
        %v3179 = vpop.f32.mrf.mxu0
        %3180 = vmatprep.mubr.f32.mxu0 0.0
        %3181 = vmatmul.mubr.f32.gmra.mxu0 %v3097
        %v3182 = vpop.f32.mrf.mxu0
        %v3183 = vadd.f32 0.0, %v3182
        %v3184 = vpop.f32.mrf.mxu0
        %3185 = vmatprep.mubr.f32.mxu0 0.0
        %3186 = vmatmul.mubr.f32.gmra.mxu0 %v3099
        %v3187 = vpop.f32.mrf.mxu0
        %v3188 = vadd.f32 0.0, %v3187
        %v3189 = vpop.f32.mrf.mxu0
        %3190 = vmatprep.mubr.f32.mxu0 0.0
        %3191 = vmatmul.mubr.f32.gmra.mxu0 %v3101
        %v3192 = vpop.f32.mrf.mxu0
        %v3193 = vadd.f32 0.0, %v3192
        %v3194 = vpop.f32.mrf.mxu0
        %3195 = vdwg.mxu0
        %3196 = vrot.lane.b32.xlu0 %v819, 96
        %v3197 = vpop.permute.xlu0 %3196
        %3198 = vrot.lane.b32.xlu0 %v821, 96
        %v3199 = vpop.permute.xlu0 %3198
        %3200 = vrot.lane.b32.xlu0 %v823, 96
        %v3201 = vpop.permute.xlu0 %3200
        %3202 = vrot.lane.b32.xlu0 %v825, 96
        %v3203 = vpop.permute.xlu0 %3202
        %v3204 = vsel %vm914, %v819, 0
        %v3206 = vsel %vm914, %v821, 0
        %v3208 = vsel %vm914, %v823, 0
        %v3210 = vsel %vm914, %v825, 0
        %v3212 = vsel %vm914, %v3197, 0
        %v3214 = vsel %vm914, %v3199, 0
        %v3216 = vsel %vm914, %v3201, 0
        %v3218 = vsel %vm914, %v3203, 0
        %3220 = vmatprep.subr.mxu0 0.0
        %3221 = vmatpush1.xpose.msra.mxu0 0.0
        %3222 = vmatprep.subr.mxu0 0.0
        %3223 = vmatpush1.xpose.msra.mxu0 0.0
        %3224 = vmatprep.subr.mxu0 0.0
        %3225 = vmatpush1.xpose.msra.mxu0 0.0
        %3226 = vmatprep.subr.mxu0 0.0
        %3227 = vmatpush1.xpose.msra.mxu0 0.0
        %3228 = vmatprep.subr.mxu0 0.0
        %3229 = vmatpush1.xpose.msra.mxu0 0.0
        %3230 = vmatprep.subr.mxu0 0.0
        %3231 = vmatpush1.xpose.msra.mxu0 0.0
        %3232 = vmatprep.subr.mxu0 0.0
        %3233 = vmatpush1.xpose.msra.mxu0 0.0
        %3234 = vmatprep.subr.mxu0 0.0
        %3235 = vmatpush1.xpose.msra.mxu0 0.0
        %3236 = vmatprep.subr.mxu0 0.0
        %3237 = vmatpush1.xpose.msra.mxu0 0.0
        %3238 = vmatprep.subr.mxu0 0.0
        %3239 = vmatpush1.xpose.msra.mxu0 0.0
        %3240 = vmatprep.subr.mxu0 0.0
        %3241 = vmatpush1.xpose.msra.mxu0 0.0
        %3242 = vmatprep.subr.mxu0 0.0
        %3243 = vmatpush1.xpose.msra.mxu0 0.0
        %3244 = vmatprep.subr.mxu0 0.0
        %3245 = vmatpush1.xpose.msra.mxu0 %v3218
        %3246 = vmatprep.subr.mxu0 0.0
        %3247 = vmatpush1.xpose.msra.mxu0 %v3216
        %3248 = vmatprep.subr.mxu0 0.0
        %3249 = vmatpush1.xpose.msra.mxu0 %v3214
        %3250 = vmatprep.subr.mxu0 0.0
        %3251 = vmatpush1.xpose.msra.mxu0 %v3212
        %3252 = vmatprep.subr.mxu0 0.0
        %3253 = vmatpush2.xpose.msra.mxu0 0.0
        %3254 = vmatprep.subr.mxu0 0.0
        %3255 = vmatpush2.xpose.msra.mxu0 0.0
        %3256 = vmatprep.subr.mxu0 0.0
        %3257 = vmatpush2.xpose.msra.mxu0 0.0
        %3258 = vmatprep.subr.mxu0 0.0
        %3259 = vmatpush2.xpose.msra.mxu0 0.0
        %3260 = vmatprep.subr.mxu0 0.0
        %3261 = vmatpush2.xpose.msra.mxu0 0.0
        %3262 = vmatprep.subr.mxu0 0.0
        %3263 = vmatpush2.xpose.msra.mxu0 0.0
        %3264 = vmatprep.subr.mxu0 0.0
        %3265 = vmatpush2.xpose.msra.mxu0 0.0
        %3266 = vmatprep.subr.mxu0 0.0
        %3267 = vmatpush2.xpose.msra.mxu0 0.0
        %3268 = vmatprep.subr.mxu0 0.0
        %3269 = vmatpush2.xpose.msra.mxu0 0.0
        %3270 = vmatprep.subr.mxu0 0.0
        %3271 = vmatpush2.xpose.msra.mxu0 0.0
        %3272 = vmatprep.subr.mxu0 0.0
        %3273 = vmatpush2.xpose.msra.mxu0 0.0
        %3274 = vmatprep.subr.mxu0 0.0
        %3275 = vmatpush2.xpose.msra.mxu0 0.0
        %3276 = vmatprep.subr.mxu0 0.0
        %3277 = vmatpush2.xpose.msra.mxu0 0.0
        %3278 = vmatprep.subr.mxu0 0.0
        %3279 = vmatpush2.xpose.msra.mxu0 0.0
        %3280 = vmatprep.subr.mxu0 0.0
        %3281 = vmatpush2.xpose.msra.mxu0 0.0
        %3282 = vmatprep.subr.mxu0 0.0
        %3283 = vmatpush2.xpose.msra.mxu0 0.0
        %3284 = vmatprep.mubr.f32.mxu0 0.0
        %3285 = vmatmul.mubr.f32.gmra.mxu0 %v3204
        %v3286 = vpop.f32.mrf.mxu0
        %v3287 = vadd.f32 0.0, %v3286
        %v3288 = vpop.f32.mrf.mxu0
        %3289 = vmatprep.mubr.f32.mxu0 0.0
        %3290 = vmatmul.mubr.f32.gmra.mxu0 %v3206
        %v3291 = vpop.f32.mrf.mxu0
        %v3292 = vadd.f32 0.0, %v3291
        %v3293 = vpop.f32.mrf.mxu0
        %3294 = vmatprep.mubr.f32.mxu0 0.0
        %3295 = vmatmul.mubr.f32.gmra.mxu0 %v3208
        %v3296 = vpop.f32.mrf.mxu0
        %v3297 = vadd.f32 0.0, %v3296
        %v3298 = vpop.f32.mrf.mxu0
        %3299 = vmatprep.mubr.f32.mxu0 0.0
        %3300 = vmatmul.mubr.f32.gmra.mxu0 %v3210
        %v3301 = vpop.f32.mrf.mxu0
        %v3302 = vadd.f32 0.0, %v3301
        %v3303 = vpop.f32.mrf.mxu0
        %3304 = vdwg.mxu0
        %3305 = vrot.lane.b32.xlu0 %v827, 96
        %v3306 = vpop.permute.xlu0 %3305
        %3307 = vrot.lane.b32.xlu0 %v829, 96
        %v3308 = vpop.permute.xlu0 %3307
        %3309 = vrot.lane.b32.xlu0 %v831, 96
        %v3310 = vpop.permute.xlu0 %3309
        %3311 = vrot.lane.b32.xlu0 %v833, 96
        %v3312 = vpop.permute.xlu0 %3311
        %v3313 = vsel %vm914, %v827, 0
        %v3315 = vsel %vm914, %v829, 0
        %v3317 = vsel %vm914, %v831, 0
        %v3319 = vsel %vm914, %v833, 0
        %v3321 = vsel %vm914, %v3306, 0
        %v3323 = vsel %vm914, %v3308, 0
        %v3325 = vsel %vm914, %v3310, 0
        %v3327 = vsel %vm914, %v3312, 0
        %3329 = vmatprep.subr.mxu0 0.0
        %3330 = vmatpush1.xpose.msra.mxu0 0.0
        %3331 = vmatprep.subr.mxu0 0.0
        %3332 = vmatpush1.xpose.msra.mxu0 0.0
        %3333 = vmatprep.subr.mxu0 0.0
        %3334 = vmatpush1.xpose.msra.mxu0 0.0
        %3335 = vmatprep.subr.mxu0 0.0
        %3336 = vmatpush1.xpose.msra.mxu0 0.0
        %3337 = vmatprep.subr.mxu0 0.0
        %3338 = vmatpush1.xpose.msra.mxu0 0.0
        %3339 = vmatprep.subr.mxu0 0.0
        %3340 = vmatpush1.xpose.msra.mxu0 0.0
        %3341 = vmatprep.subr.mxu0 0.0
        %3342 = vmatpush1.xpose.msra.mxu0 0.0
        %3343 = vmatprep.subr.mxu0 0.0
        %3344 = vmatpush1.xpose.msra.mxu0 0.0
        %3345 = vmatprep.subr.mxu0 0.0
        %3346 = vmatpush1.xpose.msra.mxu0 0.0
        %3347 = vmatprep.subr.mxu0 0.0
        %3348 = vmatpush1.xpose.msra.mxu0 0.0
        %3349 = vmatprep.subr.mxu0 0.0
        %3350 = vmatpush1.xpose.msra.mxu0 0.0
        %3351 = vmatprep.subr.mxu0 0.0
        %3352 = vmatpush1.xpose.msra.mxu0 0.0
        %3353 = vmatprep.subr.mxu0 0.0
        %3354 = vmatpush1.xpose.msra.mxu0 %v3327
        %3355 = vmatprep.subr.mxu0 0.0
        %3356 = vmatpush1.xpose.msra.mxu0 %v3325
        %3357 = vmatprep.subr.mxu0 0.0
        %3358 = vmatpush1.xpose.msra.mxu0 %v3323
        %3359 = vmatprep.subr.mxu0 0.0
        %3360 = vmatpush1.xpose.msra.mxu0 %v3321
        %3361 = vmatprep.subr.mxu0 0.0
        %3362 = vmatpush2.xpose.msra.mxu0 0.0
        %3363 = vmatprep.subr.mxu0 0.0
        %3364 = vmatpush2.xpose.msra.mxu0 0.0
        %3365 = vmatprep.subr.mxu0 0.0
        %3366 = vmatpush2.xpose.msra.mxu0 0.0
        %3367 = vmatprep.subr.mxu0 0.0
        %3368 = vmatpush2.xpose.msra.mxu0 0.0
        %3369 = vmatprep.subr.mxu0 0.0
        %3370 = vmatpush2.xpose.msra.mxu0 0.0
        %3371 = vmatprep.subr.mxu0 0.0
        %3372 = vmatpush2.xpose.msra.mxu0 0.0
        %3373 = vmatprep.subr.mxu0 0.0
        %3374 = vmatpush2.xpose.msra.mxu0 0.0
        %3375 = vmatprep.subr.mxu0 0.0
        %3376 = vmatpush2.xpose.msra.mxu0 0.0
        %3377 = vmatprep.subr.mxu0 0.0
        %3378 = vmatpush2.xpose.msra.mxu0 0.0
        %3379 = vmatprep.subr.mxu0 0.0
        %3380 = vmatpush2.xpose.msra.mxu0 0.0
        %3381 = vmatprep.subr.mxu0 0.0
        %3382 = vmatpush2.xpose.msra.mxu0 0.0
        %3383 = vmatprep.subr.mxu0 0.0
        %3384 = vmatpush2.xpose.msra.mxu0 0.0
        %3385 = vmatprep.subr.mxu0 0.0
        %3386 = vmatpush2.xpose.msra.mxu0 0.0
        %3387 = vmatprep.subr.mxu0 0.0
        %3388 = vmatpush2.xpose.msra.mxu0 0.0
        %3389 = vmatprep.subr.mxu0 0.0
        %3390 = vmatpush2.xpose.msra.mxu0 0.0
        %3391 = vmatprep.subr.mxu0 0.0
        %3392 = vmatpush2.xpose.msra.mxu0 0.0
        %3393 = vmatprep.mubr.f32.mxu0 0.0
        %3394 = vmatmul.mubr.f32.gmra.mxu0 %v3313
        %v3395 = vpop.f32.mrf.mxu0
        %v3396 = vadd.f32 0.0, %v3395
        %v3397 = vpop.f32.mrf.mxu0
        %3398 = vmatprep.mubr.f32.mxu0 0.0
        %3399 = vmatmul.mubr.f32.gmra.mxu0 %v3315
        %v3400 = vpop.f32.mrf.mxu0
        %v3401 = vadd.f32 0.0, %v3400
        %v3402 = vpop.f32.mrf.mxu0
        %3403 = vmatprep.mubr.f32.mxu0 0.0
        %3404 = vmatmul.mubr.f32.gmra.mxu0 %v3317
        %v3405 = vpop.f32.mrf.mxu0
        %v3406 = vadd.f32 0.0, %v3405
        %v3407 = vpop.f32.mrf.mxu0
        %3408 = vmatprep.mubr.f32.mxu0 0.0
        %3409 = vmatmul.mubr.f32.gmra.mxu0 %v3319
        %v3410 = vpop.f32.mrf.mxu0
        %v3411 = vadd.f32 0.0, %v3410
        %v3412 = vpop.f32.mrf.mxu0
        %3413 = vdwg.mxu0
        %3414 = vrot.lane.b32.xlu0 %v835, 96
        %v3415 = vpop.permute.xlu0 %3414
        %3416 = vrot.lane.b32.xlu0 %v837, 96
        %v3417 = vpop.permute.xlu0 %3416
        %3418 = vrot.lane.b32.xlu0 %v839, 96
        %v3419 = vpop.permute.xlu0 %3418
        %3420 = vrot.lane.b32.xlu0 %v841, 96
        %v3421 = vpop.permute.xlu0 %3420
        %v3422 = vsel %vm914, %v835, 0
        %v3424 = vsel %vm914, %v837, 0
        %v3426 = vsel %vm914, %v839, 0
        %v3428 = vsel %vm914, %v841, 0
        %v3430 = vsel %vm914, %v3415, 0
        %v3432 = vsel %vm914, %v3417, 0
        %v3434 = vsel %vm914, %v3419, 0
        %v3436 = vsel %vm914, %v3421, 0
        %3438 = vmatprep.subr.mxu0 0.0
        %3439 = vmatpush1.xpose.msra.mxu0 0.0
        %3440 = vmatprep.subr.mxu0 0.0
        %3441 = vmatpush1.xpose.msra.mxu0 0.0
        %3442 = vmatprep.subr.mxu0 0.0
        %3443 = vmatpush1.xpose.msra.mxu0 0.0
        %3444 = vmatprep.subr.mxu0 0.0
        %3445 = vmatpush1.xpose.msra.mxu0 0.0
        %3446 = vmatprep.subr.mxu0 0.0
        %3447 = vmatpush1.xpose.msra.mxu0 0.0
        %3448 = vmatprep.subr.mxu0 0.0
        %3449 = vmatpush1.xpose.msra.mxu0 0.0
        %3450 = vmatprep.subr.mxu0 0.0
        %3451 = vmatpush1.xpose.msra.mxu0 0.0
        %3452 = vmatprep.subr.mxu0 0.0
        %3453 = vmatpush1.xpose.msra.mxu0 0.0
        %3454 = vmatprep.subr.mxu0 0.0
        %3455 = vmatpush1.xpose.msra.mxu0 0.0
        %3456 = vmatprep.subr.mxu0 0.0
        %3457 = vmatpush1.xpose.msra.mxu0 0.0
        %3458 = vmatprep.subr.mxu0 0.0
        %3459 = vmatpush1.xpose.msra.mxu0 0.0
        %3460 = vmatprep.subr.mxu0 0.0
        %3461 = vmatpush1.xpose.msra.mxu0 0.0
        %3462 = vmatprep.subr.mxu0 0.0
        %3463 = vmatpush1.xpose.msra.mxu0 %v3436
        %3464 = vmatprep.subr.mxu0 0.0
        %3465 = vmatpush1.xpose.msra.mxu0 %v3434
        %3466 = vmatprep.subr.mxu0 0.0
        %3467 = vmatpush1.xpose.msra.mxu0 %v3432
        %3468 = vmatprep.subr.mxu0 0.0
        %3469 = vmatpush1.xpose.msra.mxu0 %v3430
        %3470 = vmatprep.subr.mxu0 0.0
        %3471 = vmatpush2.xpose.msra.mxu0 0.0
        %3472 = vmatprep.subr.mxu0 0.0
        %3473 = vmatpush2.xpose.msra.mxu0 0.0
        %3474 = vmatprep.subr.mxu0 0.0
        %3475 = vmatpush2.xpose.msra.mxu0 0.0
        %3476 = vmatprep.subr.mxu0 0.0
        %3477 = vmatpush2.xpose.msra.mxu0 0.0
        %3478 = vmatprep.subr.mxu0 0.0
        %3479 = vmatpush2.xpose.msra.mxu0 0.0
        %3480 = vmatprep.subr.mxu0 0.0
        %3481 = vmatpush2.xpose.msra.mxu0 0.0
        %3482 = vmatprep.subr.mxu0 0.0
        %3483 = vmatpush2.xpose.msra.mxu0 0.0
        %3484 = vmatprep.subr.mxu0 0.0
        %3485 = vmatpush2.xpose.msra.mxu0 0.0
        %3486 = vmatprep.subr.mxu0 0.0
        %3487 = vmatpush2.xpose.msra.mxu0 0.0
        %3488 = vmatprep.subr.mxu0 0.0
        %3489 = vmatpush2.xpose.msra.mxu0 0.0
        %3490 = vmatprep.subr.mxu0 0.0
        %3491 = vmatpush2.xpose.msra.mxu0 0.0
        %3492 = vmatprep.subr.mxu0 0.0
        %3493 = vmatpush2.xpose.msra.mxu0 0.0
        %3494 = vmatprep.subr.mxu0 0.0
        %3495 = vmatpush2.xpose.msra.mxu0 0.0
        %3496 = vmatprep.subr.mxu0 0.0
        %3497 = vmatpush2.xpose.msra.mxu0 0.0
        %3498 = vmatprep.subr.mxu0 0.0
        %3499 = vmatpush2.xpose.msra.mxu0 0.0
        %3500 = vmatprep.subr.mxu0 0.0
        %3501 = vmatpush2.xpose.msra.mxu0 0.0
        %3502 = vmatprep.mubr.f32.mxu0 0.0
        %3503 = vmatmul.mubr.f32.gmra.mxu0 %v3422
        %v3504 = vpop.f32.mrf.mxu0
        %v3505 = vadd.f32 0.0, %v3504
        %v3506 = vpop.f32.mrf.mxu0
        %3507 = vmatprep.mubr.f32.mxu0 0.0
        %3508 = vmatmul.mubr.f32.gmra.mxu0 %v3424
        %v3509 = vpop.f32.mrf.mxu0
        %v3510 = vadd.f32 0.0, %v3509
        %v3511 = vpop.f32.mrf.mxu0
        %3512 = vmatprep.mubr.f32.mxu0 0.0
        %3513 = vmatmul.mubr.f32.gmra.mxu0 %v3426
        %v3514 = vpop.f32.mrf.mxu0
        %v3515 = vadd.f32 0.0, %v3514
        %v3516 = vpop.f32.mrf.mxu0
        %3517 = vmatprep.mubr.f32.mxu0 0.0
        %3518 = vmatmul.mubr.f32.gmra.mxu0 %v3428
        %v3519 = vpop.f32.mrf.mxu0
        %v3520 = vadd.f32 0.0, %v3519
        %v3521 = vpop.f32.mrf.mxu0
        %3522 = vdwg.mxu0
        %3523 = vrot.lane.b32.xlu0 %v843, 96
        %v3524 = vpop.permute.xlu0 %3523
        %3525 = vrot.lane.b32.xlu0 %v845, 96
        %v3526 = vpop.permute.xlu0 %3525
        %3527 = vrot.lane.b32.xlu0 %v847, 96
        %v3528 = vpop.permute.xlu0 %3527
        %3529 = vrot.lane.b32.xlu0 %v849, 96
        %v3530 = vpop.permute.xlu0 %3529
        %v3531 = vsel %vm914, %v843, 0
        %v3533 = vsel %vm914, %v845, 0
        %v3535 = vsel %vm914, %v847, 0
        %v3537 = vsel %vm914, %v849, 0
        %v3539 = vsel %vm914, %v3524, 0
        %v3541 = vsel %vm914, %v3526, 0
        %v3543 = vsel %vm914, %v3528, 0
        %v3545 = vsel %vm914, %v3530, 0
        %3547 = vmatprep.subr.mxu0 0.0
        %3548 = vmatpush1.xpose.msra.mxu0 0.0
        %3549 = vmatprep.subr.mxu0 0.0
        %3550 = vmatpush1.xpose.msra.mxu0 0.0
        %3551 = vmatprep.subr.mxu0 0.0
        %3552 = vmatpush1.xpose.msra.mxu0 0.0
        %3553 = vmatprep.subr.mxu0 0.0
        %3554 = vmatpush1.xpose.msra.mxu0 0.0
        %3555 = vmatprep.subr.mxu0 0.0
        %3556 = vmatpush1.xpose.msra.mxu0 0.0
        %3557 = vmatprep.subr.mxu0 0.0
        %3558 = vmatpush1.xpose.msra.mxu0 0.0
        %3559 = vmatprep.subr.mxu0 0.0
        %3560 = vmatpush1.xpose.msra.mxu0 0.0
        %3561 = vmatprep.subr.mxu0 0.0
        %3562 = vmatpush1.xpose.msra.mxu0 0.0
        %3563 = vmatprep.subr.mxu0 0.0
        %3564 = vmatpush1.xpose.msra.mxu0 0.0
        %3565 = vmatprep.subr.mxu0 0.0
        %3566 = vmatpush1.xpose.msra.mxu0 0.0
        %3567 = vmatprep.subr.mxu0 0.0
        %3568 = vmatpush1.xpose.msra.mxu0 0.0
        %3569 = vmatprep.subr.mxu0 0.0
        %3570 = vmatpush1.xpose.msra.mxu0 0.0
        %3571 = vmatprep.subr.mxu0 0.0
        %3572 = vmatpush1.xpose.msra.mxu0 %v3545
        %3573 = vmatprep.subr.mxu0 0.0
        %3574 = vmatpush1.xpose.msra.mxu0 %v3543
        %3575 = vmatprep.subr.mxu0 0.0
        %3576 = vmatpush1.xpose.msra.mxu0 %v3541
        %3577 = vmatprep.subr.mxu0 0.0
        %3578 = vmatpush1.xpose.msra.mxu0 %v3539
        %3579 = vmatprep.subr.mxu0 0.0
        %3580 = vmatpush2.xpose.msra.mxu0 0.0
        %3581 = vmatprep.subr.mxu0 0.0
        %3582 = vmatpush2.xpose.msra.mxu0 0.0
        %3583 = vmatprep.subr.mxu0 0.0
        %3584 = vmatpush2.xpose.msra.mxu0 0.0
        %3585 = vmatprep.subr.mxu0 0.0
        %3586 = vmatpush2.xpose.msra.mxu0 0.0
        %3587 = vmatprep.subr.mxu0 0.0
        %3588 = vmatpush2.xpose.msra.mxu0 0.0
        %3589 = vmatprep.subr.mxu0 0.0
        %3590 = vmatpush2.xpose.msra.mxu0 0.0
        %3591 = vmatprep.subr.mxu0 0.0
        %3592 = vmatpush2.xpose.msra.mxu0 0.0
        %3593 = vmatprep.subr.mxu0 0.0
        %3594 = vmatpush2.xpose.msra.mxu0 0.0
        %3595 = vmatprep.subr.mxu0 0.0
        %3596 = vmatpush2.xpose.msra.mxu0 0.0
        %3597 = vmatprep.subr.mxu0 0.0
        %3598 = vmatpush2.xpose.msra.mxu0 0.0
        %3599 = vmatprep.subr.mxu0 0.0
        %3600 = vmatpush2.xpose.msra.mxu0 0.0
        %3601 = vmatprep.subr.mxu0 0.0
        %3602 = vmatpush2.xpose.msra.mxu0 0.0
        %3603 = vmatprep.subr.mxu0 0.0
        %3604 = vmatpush2.xpose.msra.mxu0 0.0
        %3605 = vmatprep.subr.mxu0 0.0
        %3606 = vmatpush2.xpose.msra.mxu0 0.0
        %3607 = vmatprep.subr.mxu0 0.0
        %3608 = vmatpush2.xpose.msra.mxu0 0.0
        %3609 = vmatprep.subr.mxu0 0.0
        %3610 = vmatpush2.xpose.msra.mxu0 0.0
        %3611 = vmatprep.mubr.f32.mxu0 0.0
        %3612 = vmatmul.mubr.f32.gmra.mxu0 %v3531
        %v3613 = vpop.f32.mrf.mxu0
        %v3614 = vadd.f32 0.0, %v3613
        %v3615 = vpop.f32.mrf.mxu0
        %3616 = vmatprep.mubr.f32.mxu0 0.0
        %3617 = vmatmul.mubr.f32.gmra.mxu0 %v3533
        %v3618 = vpop.f32.mrf.mxu0
        %v3619 = vadd.f32 0.0, %v3618
        %v3620 = vpop.f32.mrf.mxu0
        %3621 = vmatprep.mubr.f32.mxu0 0.0
        %3622 = vmatmul.mubr.f32.gmra.mxu0 %v3535
        %v3623 = vpop.f32.mrf.mxu0
        %v3624 = vadd.f32 0.0, %v3623
        %v3625 = vpop.f32.mrf.mxu0
        %3626 = vmatprep.mubr.f32.mxu0 0.0
        %3627 = vmatmul.mubr.f32.gmra.mxu0 %v3537
        %v3628 = vpop.f32.mrf.mxu0
        %v3629 = vadd.f32 0.0, %v3628
        %v3630 = vpop.f32.mrf.mxu0
        %3631 = vdwg.mxu0
        %3632 = vrot.lane.b32.xlu0 %v851, 96
        %v3633 = vpop.permute.xlu0 %3632
        %3634 = vrot.lane.b32.xlu0 %v853, 96
        %v3635 = vpop.permute.xlu0 %3634
        %3636 = vrot.lane.b32.xlu0 %v855, 96
        %v3637 = vpop.permute.xlu0 %3636
        %3638 = vrot.lane.b32.xlu0 %v857, 96
        %v3639 = vpop.permute.xlu0 %3638
        %v3640 = vsel %vm914, %v851, 0
        %v3642 = vsel %vm914, %v853, 0
        %v3644 = vsel %vm914, %v855, 0
        %v3646 = vsel %vm914, %v857, 0
        %v3648 = vsel %vm914, %v3633, 0
        %v3650 = vsel %vm914, %v3635, 0
        %v3652 = vsel %vm914, %v3637, 0
        %v3654 = vsel %vm914, %v3639, 0
        %3656 = vmatprep.subr.mxu0 0.0
        %3657 = vmatpush1.xpose.msra.mxu0 0.0
        %3658 = vmatprep.subr.mxu0 0.0
        %3659 = vmatpush1.xpose.msra.mxu0 0.0
        %3660 = vmatprep.subr.mxu0 0.0
        %3661 = vmatpush1.xpose.msra.mxu0 0.0
        %3662 = vmatprep.subr.mxu0 0.0
        %3663 = vmatpush1.xpose.msra.mxu0 0.0
        %3664 = vmatprep.subr.mxu0 0.0
        %3665 = vmatpush1.xpose.msra.mxu0 0.0
        %3666 = vmatprep.subr.mxu0 0.0
        %3667 = vmatpush1.xpose.msra.mxu0 0.0
        %3668 = vmatprep.subr.mxu0 0.0
        %3669 = vmatpush1.xpose.msra.mxu0 0.0
        %3670 = vmatprep.subr.mxu0 0.0
        %3671 = vmatpush1.xpose.msra.mxu0 0.0
        %3672 = vmatprep.subr.mxu0 0.0
        %3673 = vmatpush1.xpose.msra.mxu0 0.0
        %3674 = vmatprep.subr.mxu0 0.0
        %3675 = vmatpush1.xpose.msra.mxu0 0.0
        %3676 = vmatprep.subr.mxu0 0.0
        %3677 = vmatpush1.xpose.msra.mxu0 0.0
        %3678 = vmatprep.subr.mxu0 0.0
        %3679 = vmatpush1.xpose.msra.mxu0 0.0
        %3680 = vmatprep.subr.mxu0 0.0
        %3681 = vmatpush1.xpose.msra.mxu0 %v3654
        %3682 = vmatprep.subr.mxu0 0.0
        %3683 = vmatpush1.xpose.msra.mxu0 %v3652
        %3684 = vmatprep.subr.mxu0 0.0
        %3685 = vmatpush1.xpose.msra.mxu0 %v3650
        %3686 = vmatprep.subr.mxu0 0.0
        %3687 = vmatpush1.xpose.msra.mxu0 %v3648
        %3688 = vmatprep.subr.mxu0 0.0
        %3689 = vmatpush2.xpose.msra.mxu0 0.0
        %3690 = vmatprep.subr.mxu0 0.0
        %3691 = vmatpush2.xpose.msra.mxu0 0.0
        %3692 = vmatprep.subr.mxu0 0.0
        %3693 = vmatpush2.xpose.msra.mxu0 0.0
        %3694 = vmatprep.subr.mxu0 0.0
        %3695 = vmatpush2.xpose.msra.mxu0 0.0
        %3696 = vmatprep.subr.mxu0 0.0
        %3697 = vmatpush2.xpose.msra.mxu0 0.0
        %3698 = vmatprep.subr.mxu0 0.0
        %3699 = vmatpush2.xpose.msra.mxu0 0.0
        %3700 = vmatprep.subr.mxu0 0.0
        %3701 = vmatpush2.xpose.msra.mxu0 0.0
        %3702 = vmatprep.subr.mxu0 0.0
        %3703 = vmatpush2.xpose.msra.mxu0 0.0
        %3704 = vmatprep.subr.mxu0 0.0
        %3705 = vmatpush2.xpose.msra.mxu0 0.0
        %3706 = vmatprep.subr.mxu0 0.0
        %3707 = vmatpush2.xpose.msra.mxu0 0.0
        %3708 = vmatprep.subr.mxu0 0.0
        %3709 = vmatpush2.xpose.msra.mxu0 0.0
        %3710 = vmatprep.subr.mxu0 0.0
        %3711 = vmatpush2.xpose.msra.mxu0 0.0
        %3712 = vmatprep.subr.mxu0 0.0
        %3713 = vmatpush2.xpose.msra.mxu0 0.0
        %3714 = vmatprep.subr.mxu0 0.0
        %3715 = vmatpush2.xpose.msra.mxu0 0.0
        %3716 = vmatprep.subr.mxu0 0.0
        %3717 = vmatpush2.xpose.msra.mxu0 0.0
        %3718 = vmatprep.subr.mxu0 0.0
        %3719 = vmatpush2.xpose.msra.mxu0 0.0
        %3720 = vmatprep.mubr.f32.mxu0 0.0
        %3721 = vmatmul.mubr.f32.gmra.mxu0 %v3640
        %v3722 = vpop.f32.mrf.mxu0
        %v3723 = vadd.f32 0.0, %v3722
        %v3724 = vpop.f32.mrf.mxu0
        %3725 = vmatprep.mubr.f32.mxu0 0.0
        %3726 = vmatmul.mubr.f32.gmra.mxu0 %v3642
        %v3727 = vpop.f32.mrf.mxu0
        %v3728 = vadd.f32 0.0, %v3727
        %v3729 = vpop.f32.mrf.mxu0
        %3730 = vmatprep.mubr.f32.mxu0 0.0
        %3731 = vmatmul.mubr.f32.gmra.mxu0 %v3644
        %v3732 = vpop.f32.mrf.mxu0
        %v3733 = vadd.f32 0.0, %v3732
        %v3734 = vpop.f32.mrf.mxu0
        %3735 = vmatprep.mubr.f32.mxu0 0.0
        %3736 = vmatmul.mubr.f32.gmra.mxu0 %v3646
        %v3737 = vpop.f32.mrf.mxu0
        %v3738 = vadd.f32 0.0, %v3737
        %v3739 = vpop.f32.mrf.mxu0
        %3740 = vdwg.mxu0
        %3741 = vrot.lane.b32.xlu0 %v859, 96
        %v3742 = vpop.permute.xlu0 %3741
        %3743 = vrot.lane.b32.xlu0 %v861, 96
        %v3744 = vpop.permute.xlu0 %3743
        %3745 = vrot.lane.b32.xlu0 %v863, 96
        %v3746 = vpop.permute.xlu0 %3745
        %3747 = vrot.lane.b32.xlu0 %v865, 96
        %v3748 = vpop.permute.xlu0 %3747
        %v3749 = vsel %vm914, %v859, 0
        %v3751 = vsel %vm914, %v861, 0
        %v3753 = vsel %vm914, %v863, 0
        %v3755 = vsel %vm914, %v865, 0
        %v3757 = vsel %vm914, %v3742, 0
        %v3759 = vsel %vm914, %v3744, 0
        %v3761 = vsel %vm914, %v3746, 0
        %v3763 = vsel %vm914, %v3748, 0
        %3765 = vmatprep.subr.mxu0 0.0
        %3766 = vmatpush1.xpose.msra.mxu0 0.0
        %3767 = vmatprep.subr.mxu0 0.0
        %3768 = vmatpush1.xpose.msra.mxu0 0.0
        %3769 = vmatprep.subr.mxu0 0.0
        %3770 = vmatpush1.xpose.msra.mxu0 0.0
        %3771 = vmatprep.subr.mxu0 0.0
        %3772 = vmatpush1.xpose.msra.mxu0 0.0
        %3773 = vmatprep.subr.mxu0 0.0
        %3774 = vmatpush1.xpose.msra.mxu0 0.0
        %3775 = vmatprep.subr.mxu0 0.0
        %3776 = vmatpush1.xpose.msra.mxu0 0.0
        %3777 = vmatprep.subr.mxu0 0.0
        %3778 = vmatpush1.xpose.msra.mxu0 0.0
        %3779 = vmatprep.subr.mxu0 0.0
        %3780 = vmatpush1.xpose.msra.mxu0 0.0
        %3781 = vmatprep.subr.mxu0 0.0
        %3782 = vmatpush1.xpose.msra.mxu0 0.0
        %3783 = vmatprep.subr.mxu0 0.0
        %3784 = vmatpush1.xpose.msra.mxu0 0.0
        %3785 = vmatprep.subr.mxu0 0.0
        %3786 = vmatpush1.xpose.msra.mxu0 0.0
        %3787 = vmatprep.subr.mxu0 0.0
        %3788 = vmatpush1.xpose.msra.mxu0 0.0
        %3789 = vmatprep.subr.mxu0 0.0
        %3790 = vmatpush1.xpose.msra.mxu0 %v3763
        %3791 = vmatprep.subr.mxu0 0.0
        %3792 = vmatpush1.xpose.msra.mxu0 %v3761
        %3793 = vmatprep.subr.mxu0 0.0
        %3794 = vmatpush1.xpose.msra.mxu0 %v3759
        %3795 = vmatprep.subr.mxu0 0.0
        %3796 = vmatpush1.xpose.msra.mxu0 %v3757
        %3797 = vmatprep.subr.mxu0 0.0
        %3798 = vmatpush2.xpose.msra.mxu0 0.0
        %3799 = vmatprep.subr.mxu0 0.0
        %3800 = vmatpush2.xpose.msra.mxu0 0.0
        %3801 = vmatprep.subr.mxu0 0.0
        %3802 = vmatpush2.xpose.msra.mxu0 0.0
        %3803 = vmatprep.subr.mxu0 0.0
        %3804 = vmatpush2.xpose.msra.mxu0 0.0
        %3805 = vmatprep.subr.mxu0 0.0
        %3806 = vmatpush2.xpose.msra.mxu0 0.0
        %3807 = vmatprep.subr.mxu0 0.0
        %3808 = vmatpush2.xpose.msra.mxu0 0.0
        %3809 = vmatprep.subr.mxu0 0.0
        %3810 = vmatpush2.xpose.msra.mxu0 0.0
        %3811 = vmatprep.subr.mxu0 0.0
        %3812 = vmatpush2.xpose.msra.mxu0 0.0
        %3813 = vmatprep.subr.mxu0 0.0
        %3814 = vmatpush2.xpose.msra.mxu0 0.0
        %3815 = vmatprep.subr.mxu0 0.0
        %3816 = vmatpush2.xpose.msra.mxu0 0.0
        %3817 = vmatprep.subr.mxu0 0.0
        %3818 = vmatpush2.xpose.msra.mxu0 0.0
        %3819 = vmatprep.subr.mxu0 0.0
        %3820 = vmatpush2.xpose.msra.mxu0 0.0
        %3821 = vmatprep.subr.mxu0 0.0
        %3822 = vmatpush2.xpose.msra.mxu0 0.0
        %3823 = vmatprep.subr.mxu0 0.0
        %3824 = vmatpush2.xpose.msra.mxu0 0.0
        %3825 = vmatprep.subr.mxu0 0.0
        %3826 = vmatpush2.xpose.msra.mxu0 0.0
        %3827 = vmatprep.subr.mxu0 0.0
        %3828 = vmatpush2.xpose.msra.mxu0 0.0
        %3829 = vmatprep.mubr.f32.mxu0 0.0
        %3830 = vmatmul.mubr.f32.gmra.mxu0 %v3749
        %v3831 = vpop.f32.mrf.mxu0
        %v3832 = vadd.f32 0.0, %v3831
        %v3833 = vpop.f32.mrf.mxu0
        %3834 = vmatprep.mubr.f32.mxu0 0.0
        %3835 = vmatmul.mubr.f32.gmra.mxu0 %v3751
        %v3836 = vpop.f32.mrf.mxu0
        %v3837 = vadd.f32 0.0, %v3836
        %v3838 = vpop.f32.mrf.mxu0
        %3839 = vmatprep.mubr.f32.mxu0 0.0
        %3840 = vmatmul.mubr.f32.gmra.mxu0 %v3753
        %v3841 = vpop.f32.mrf.mxu0
        %v3842 = vadd.f32 0.0, %v3841
        %v3843 = vpop.f32.mrf.mxu0
        %3844 = vmatprep.mubr.f32.mxu0 0.0
        %3845 = vmatmul.mubr.f32.gmra.mxu0 %v3755
        %v3846 = vpop.f32.mrf.mxu0
        %v3847 = vadd.f32 0.0, %v3846
        %v3848 = vpop.f32.mrf.mxu0
        %3849 = vdwg.mxu0
        %3850 = vrot.lane.b32.xlu0 %v867, 96
        %v3851 = vpop.permute.xlu0 %3850
        %3852 = vrot.lane.b32.xlu0 %v869, 96
        %v3853 = vpop.permute.xlu0 %3852
        %3854 = vrot.lane.b32.xlu0 %v871, 96
        %v3855 = vpop.permute.xlu0 %3854
        %3856 = vrot.lane.b32.xlu0 %v873, 96
        %v3857 = vpop.permute.xlu0 %3856
        %v3858 = vsel %vm914, %v867, 0
        %v3860 = vsel %vm914, %v869, 0
        %v3862 = vsel %vm914, %v871, 0
        %v3864 = vsel %vm914, %v873, 0
        %v3866 = vsel %vm914, %v3851, 0
        %v3868 = vsel %vm914, %v3853, 0
        %v3870 = vsel %vm914, %v3855, 0
        %v3872 = vsel %vm914, %v3857, 0
        %3874 = vmatprep.subr.mxu0 0.0
        %3875 = vmatpush1.xpose.msra.mxu0 0.0
        %3876 = vmatprep.subr.mxu0 0.0
        %3877 = vmatpush1.xpose.msra.mxu0 0.0
        %3878 = vmatprep.subr.mxu0 0.0
        %3879 = vmatpush1.xpose.msra.mxu0 0.0
        %3880 = vmatprep.subr.mxu0 0.0
        %3881 = vmatpush1.xpose.msra.mxu0 0.0
        %3882 = vmatprep.subr.mxu0 0.0
        %3883 = vmatpush1.xpose.msra.mxu0 0.0
        %3884 = vmatprep.subr.mxu0 0.0
        %3885 = vmatpush1.xpose.msra.mxu0 0.0
        %3886 = vmatprep.subr.mxu0 0.0
        %3887 = vmatpush1.xpose.msra.mxu0 0.0
        %3888 = vmatprep.subr.mxu0 0.0
        %3889 = vmatpush1.xpose.msra.mxu0 0.0
        %3890 = vmatprep.subr.mxu0 0.0
        %3891 = vmatpush1.xpose.msra.mxu0 0.0
        %3892 = vmatprep.subr.mxu0 0.0
        %3893 = vmatpush1.xpose.msra.mxu0 0.0
        %3894 = vmatprep.subr.mxu0 0.0
        %3895 = vmatpush1.xpose.msra.mxu0 0.0
        %3896 = vmatprep.subr.mxu0 0.0
        %3897 = vmatpush1.xpose.msra.mxu0 0.0
        %3898 = vmatprep.subr.mxu0 0.0
        %3899 = vmatpush1.xpose.msra.mxu0 %v3872
        %3900 = vmatprep.subr.mxu0 0.0
        %3901 = vmatpush1.xpose.msra.mxu0 %v3870
        %3902 = vmatprep.subr.mxu0 0.0
        %3903 = vmatpush1.xpose.msra.mxu0 %v3868
        %3904 = vmatprep.subr.mxu0 0.0
        %3905 = vmatpush1.xpose.msra.mxu0 %v3866
        %3906 = vmatprep.subr.mxu0 0.0
        %3907 = vmatpush2.xpose.msra.mxu0 0.0
        %3908 = vmatprep.subr.mxu0 0.0
        %3909 = vmatpush2.xpose.msra.mxu0 0.0
        %3910 = vmatprep.subr.mxu0 0.0
        %3911 = vmatpush2.xpose.msra.mxu0 0.0
        %3912 = vmatprep.subr.mxu0 0.0
        %3913 = vmatpush2.xpose.msra.mxu0 0.0
        %3914 = vmatprep.subr.mxu0 0.0
        %3915 = vmatpush2.xpose.msra.mxu0 0.0
        %3916 = vmatprep.subr.mxu0 0.0
        %3917 = vmatpush2.xpose.msra.mxu0 0.0
        %3918 = vmatprep.subr.mxu0 0.0
        %3919 = vmatpush2.xpose.msra.mxu0 0.0
        %3920 = vmatprep.subr.mxu0 0.0
        %3921 = vmatpush2.xpose.msra.mxu0 0.0
        %3922 = vmatprep.subr.mxu0 0.0
        %3923 = vmatpush2.xpose.msra.mxu0 0.0
        %3924 = vmatprep.subr.mxu0 0.0
        %3925 = vmatpush2.xpose.msra.mxu0 0.0
        %3926 = vmatprep.subr.mxu0 0.0
        %3927 = vmatpush2.xpose.msra.mxu0 0.0
        %3928 = vmatprep.subr.mxu0 0.0
        %3929 = vmatpush2.xpose.msra.mxu0 0.0
        %3930 = vmatprep.subr.mxu0 0.0
        %3931 = vmatpush2.xpose.msra.mxu0 0.0
        %3932 = vmatprep.subr.mxu0 0.0
        %3933 = vmatpush2.xpose.msra.mxu0 0.0
        %3934 = vmatprep.subr.mxu0 0.0
        %3935 = vmatpush2.xpose.msra.mxu0 0.0
        %3936 = vmatprep.subr.mxu0 0.0
        %3937 = vmatpush2.xpose.msra.mxu0 0.0
        %3938 = vmatprep.mubr.f32.mxu0 0.0
        %3939 = vmatmul.mubr.f32.gmra.mxu0 %v3858
        %v3940 = vpop.f32.mrf.mxu0
        %v3941 = vadd.f32 0.0, %v3940
        %v3942 = vpop.f32.mrf.mxu0
        %3943 = vmatprep.mubr.f32.mxu0 0.0
        %3944 = vmatmul.mubr.f32.gmra.mxu0 %v3860
        %v3945 = vpop.f32.mrf.mxu0
        %v3946 = vadd.f32 0.0, %v3945
        %v3947 = vpop.f32.mrf.mxu0
        %3948 = vmatprep.mubr.f32.mxu0 0.0
        %3949 = vmatmul.mubr.f32.gmra.mxu0 %v3862
        %v3950 = vpop.f32.mrf.mxu0
        %v3951 = vadd.f32 0.0, %v3950
        %v3952 = vpop.f32.mrf.mxu0
        %3953 = vmatprep.mubr.f32.mxu0 0.0
        %3954 = vmatmul.mubr.f32.gmra.mxu0 %v3864
        %v3955 = vpop.f32.mrf.mxu0
        %v3956 = vadd.f32 0.0, %v3955
        %v3957 = vpop.f32.mrf.mxu0
        %3958 = vdwg.mxu0
        %3959 = vrot.lane.b32.xlu0 %v875, 96
        %v3960 = vpop.permute.xlu0 %3959
        %3961 = vrot.lane.b32.xlu0 %v877, 96
        %v3962 = vpop.permute.xlu0 %3961
        %3963 = vrot.lane.b32.xlu0 %v879, 96
        %v3964 = vpop.permute.xlu0 %3963
        %3965 = vrot.lane.b32.xlu0 %v881, 96
        %v3966 = vpop.permute.xlu0 %3965
        %v3967 = vsel %vm914, %v875, 0
        %v3969 = vsel %vm914, %v877, 0
        %v3971 = vsel %vm914, %v879, 0
        %v3973 = vsel %vm914, %v881, 0
        %v3975 = vsel %vm914, %v3960, 0
        %v3977 = vsel %vm914, %v3962, 0
        %v3979 = vsel %vm914, %v3964, 0
        %v3981 = vsel %vm914, %v3966, 0
        %3983 = vmatprep.subr.mxu0 0.0
        %3984 = vmatpush1.xpose.msra.mxu0 0.0
        %3985 = vmatprep.subr.mxu0 0.0
        %3986 = vmatpush1.xpose.msra.mxu0 0.0
        %3987 = vmatprep.subr.mxu0 0.0
        %3988 = vmatpush1.xpose.msra.mxu0 0.0
        %3989 = vmatprep.subr.mxu0 0.0
        %3990 = vmatpush1.xpose.msra.mxu0 0.0
        %3991 = vmatprep.subr.mxu0 0.0
        %3992 = vmatpush1.xpose.msra.mxu0 0.0
        %3993 = vmatprep.subr.mxu0 0.0
        %3994 = vmatpush1.xpose.msra.mxu0 0.0
        %3995 = vmatprep.subr.mxu0 0.0
        %3996 = vmatpush1.xpose.msra.mxu0 0.0
        %3997 = vmatprep.subr.mxu0 0.0
        %3998 = vmatpush1.xpose.msra.mxu0 0.0
        %3999 = vmatprep.subr.mxu0 0.0
        %4000 = vmatpush1.xpose.msra.mxu0 0.0
        %4001 = vmatprep.subr.mxu0 0.0
        %4002 = vmatpush1.xpose.msra.mxu0 0.0
        %4003 = vmatprep.subr.mxu0 0.0
        %4004 = vmatpush1.xpose.msra.mxu0 0.0
        %4005 = vmatprep.subr.mxu0 0.0
        %4006 = vmatpush1.xpose.msra.mxu0 0.0
        %4007 = vmatprep.subr.mxu0 0.0
        %4008 = vmatpush1.xpose.msra.mxu0 %v3981
        %4009 = vmatprep.subr.mxu0 0.0
        %4010 = vmatpush1.xpose.msra.mxu0 %v3979
        %4011 = vmatprep.subr.mxu0 0.0
        %4012 = vmatpush1.xpose.msra.mxu0 %v3977
        %4013 = vmatprep.subr.mxu0 0.0
        %4014 = vmatpush1.xpose.msra.mxu0 %v3975
        %4015 = vmatprep.subr.mxu0 0.0
        %4016 = vmatpush2.xpose.msra.mxu0 0.0
        %4017 = vmatprep.subr.mxu0 0.0
        %4018 = vmatpush2.xpose.msra.mxu0 0.0
        %4019 = vmatprep.subr.mxu0 0.0
        %4020 = vmatpush2.xpose.msra.mxu0 0.0
        %4021 = vmatprep.subr.mxu0 0.0
        %4022 = vmatpush2.xpose.msra.mxu0 0.0
        %4023 = vmatprep.subr.mxu0 0.0
        %4024 = vmatpush2.xpose.msra.mxu0 0.0
        %4025 = vmatprep.subr.mxu0 0.0
        %4026 = vmatpush2.xpose.msra.mxu0 0.0
        %4027 = vmatprep.subr.mxu0 0.0
        %4028 = vmatpush2.xpose.msra.mxu0 0.0
        %4029 = vmatprep.subr.mxu0 0.0
        %4030 = vmatpush2.xpose.msra.mxu0 0.0
        %4031 = vmatprep.subr.mxu0 0.0
        %4032 = vmatpush2.xpose.msra.mxu0 0.0
        %4033 = vmatprep.subr.mxu0 0.0
        %4034 = vmatpush2.xpose.msra.mxu0 0.0
        %4035 = vmatprep.subr.mxu0 0.0
        %4036 = vmatpush2.xpose.msra.mxu0 0.0
        %4037 = vmatprep.subr.mxu0 0.0
        %4038 = vmatpush2.xpose.msra.mxu0 0.0
        %4039 = vmatprep.subr.mxu0 0.0
        %4040 = vmatpush2.xpose.msra.mxu0 0.0
        %4041 = vmatprep.subr.mxu0 0.0
        %4042 = vmatpush2.xpose.msra.mxu0 0.0
        %4043 = vmatprep.subr.mxu0 0.0
        %4044 = vmatpush2.xpose.msra.mxu0 0.0
        %4045 = vmatprep.subr.mxu0 0.0
        %4046 = vmatpush2.xpose.msra.mxu0 0.0
        %4047 = vmatprep.mubr.f32.mxu0 0.0
        %4048 = vmatmul.mubr.f32.gmra.mxu0 %v3967
        %v4049 = vpop.f32.mrf.mxu0
        %v4050 = vadd.f32 0.0, %v4049
        %v4051 = vpop.f32.mrf.mxu0
        %4052 = vmatprep.mubr.f32.mxu0 0.0
        %4053 = vmatmul.mubr.f32.gmra.mxu0 %v3969
        %v4054 = vpop.f32.mrf.mxu0
        %v4055 = vadd.f32 0.0, %v4054
        %v4056 = vpop.f32.mrf.mxu0
        %4057 = vmatprep.mubr.f32.mxu0 0.0
        %4058 = vmatmul.mubr.f32.gmra.mxu0 %v3971
        %v4059 = vpop.f32.mrf.mxu0
        %v4060 = vadd.f32 0.0, %v4059
        %v4061 = vpop.f32.mrf.mxu0
        %4062 = vmatprep.mubr.f32.mxu0 0.0
        %4063 = vmatmul.mubr.f32.gmra.mxu0 %v3973
        %v4064 = vpop.f32.mrf.mxu0
        %v4065 = vadd.f32 0.0, %v4064
        %v4066 = vpop.f32.mrf.mxu0
        %4067 = vdwg.mxu0
        %4068 = vrot.lane.b32.xlu0 %v883, 96
        %v4069 = vpop.permute.xlu0 %4068
        %4070 = vrot.lane.b32.xlu0 %v885, 96
        %v4071 = vpop.permute.xlu0 %4070
        %4072 = vrot.lane.b32.xlu0 %v887, 96
        %v4073 = vpop.permute.xlu0 %4072
        %4074 = vrot.lane.b32.xlu0 %v889, 96
        %v4075 = vpop.permute.xlu0 %4074
        %v4076 = vsel %vm914, %v883, 0
        %v4078 = vsel %vm914, %v885, 0
        %v4080 = vsel %vm914, %v887, 0
        %v4082 = vsel %vm914, %v889, 0
        %v4084 = vsel %vm914, %v4069, 0
        %v4086 = vsel %vm914, %v4071, 0
        %v4088 = vsel %vm914, %v4073, 0
        %v4090 = vsel %vm914, %v4075, 0
        %4092 = vmatprep.subr.mxu0 0.0
        %4093 = vmatpush1.xpose.msra.mxu0 0.0
        %4094 = vmatprep.subr.mxu0 0.0
        %4095 = vmatpush1.xpose.msra.mxu0 0.0
        %4096 = vmatprep.subr.mxu0 0.0
        %4097 = vmatpush1.xpose.msra.mxu0 0.0
        %4098 = vmatprep.subr.mxu0 0.0
        %4099 = vmatpush1.xpose.msra.mxu0 0.0
        %4100 = vmatprep.subr.mxu0 0.0
        %4101 = vmatpush1.xpose.msra.mxu0 0.0
        %4102 = vmatprep.subr.mxu0 0.0
        %4103 = vmatpush1.xpose.msra.mxu0 0.0
        %4104 = vmatprep.subr.mxu0 0.0
        %4105 = vmatpush1.xpose.msra.mxu0 0.0
        %4106 = vmatprep.subr.mxu0 0.0
        %4107 = vmatpush1.xpose.msra.mxu0 0.0
        %4108 = vmatprep.subr.mxu0 0.0
        %4109 = vmatpush1.xpose.msra.mxu0 0.0
        %4110 = vmatprep.subr.mxu0 0.0
        %4111 = vmatpush1.xpose.msra.mxu0 0.0
        %4112 = vmatprep.subr.mxu0 0.0
        %4113 = vmatpush1.xpose.msra.mxu0 0.0
        %4114 = vmatprep.subr.mxu0 0.0
        %4115 = vmatpush1.xpose.msra.mxu0 0.0
        %4116 = vmatprep.subr.mxu0 0.0
        %4117 = vmatpush1.xpose.msra.mxu0 %v4090
        %4118 = vmatprep.subr.mxu0 0.0
        %4119 = vmatpush1.xpose.msra.mxu0 %v4088
        %4120 = vmatprep.subr.mxu0 0.0
        %4121 = vmatpush1.xpose.msra.mxu0 %v4086
        %4122 = vmatprep.subr.mxu0 0.0
        %4123 = vmatpush1.xpose.msra.mxu0 %v4084
        %4124 = vmatprep.subr.mxu0 0.0
        %4125 = vmatpush2.xpose.msra.mxu0 0.0
        %4126 = vmatprep.subr.mxu0 0.0
        %4127 = vmatpush2.xpose.msra.mxu0 0.0
        %4128 = vmatprep.subr.mxu0 0.0
        %4129 = vmatpush2.xpose.msra.mxu0 0.0
        %4130 = vmatprep.subr.mxu0 0.0
        %4131 = vmatpush2.xpose.msra.mxu0 0.0
        %4132 = vmatprep.subr.mxu0 0.0
        %4133 = vmatpush2.xpose.msra.mxu0 0.0
        %4134 = vmatprep.subr.mxu0 0.0
        %4135 = vmatpush2.xpose.msra.mxu0 0.0
        %4136 = vmatprep.subr.mxu0 0.0
        %4137 = vmatpush2.xpose.msra.mxu0 0.0
        %4138 = vmatprep.subr.mxu0 0.0
        %4139 = vmatpush2.xpose.msra.mxu0 0.0
        %4140 = vmatprep.subr.mxu0 0.0
        %4141 = vmatpush2.xpose.msra.mxu0 0.0
        %4142 = vmatprep.subr.mxu0 0.0
        %4143 = vmatpush2.xpose.msra.mxu0 0.0
        %4144 = vmatprep.subr.mxu0 0.0
        %4145 = vmatpush2.xpose.msra.mxu0 0.0
        %4146 = vmatprep.subr.mxu0 0.0
        %4147 = vmatpush2.xpose.msra.mxu0 0.0
        %4148 = vmatprep.subr.mxu0 0.0
        %4149 = vmatpush2.xpose.msra.mxu0 0.0
        %4150 = vmatprep.subr.mxu0 0.0
        %4151 = vmatpush2.xpose.msra.mxu0 0.0
        %4152 = vmatprep.subr.mxu0 0.0
        %4153 = vmatpush2.xpose.msra.mxu0 0.0
        %4154 = vmatprep.subr.mxu0 0.0
        %4155 = vmatpush2.xpose.msra.mxu0 0.0
        %4156 = vmatprep.mubr.f32.mxu0 0.0
        %4157 = vmatmul.mubr.f32.gmra.mxu0 %v4076
        %v4158 = vpop.f32.mrf.mxu0
        %v4159 = vadd.f32 0.0, %v4158
        %v4160 = vpop.f32.mrf.mxu0
        %4161 = vmatprep.mubr.f32.mxu0 0.0
        %4162 = vmatmul.mubr.f32.gmra.mxu0 %v4078
        %v4163 = vpop.f32.mrf.mxu0
        %v4164 = vadd.f32 0.0, %v4163
        %v4165 = vpop.f32.mrf.mxu0
        %4166 = vmatprep.mubr.f32.mxu0 0.0
        %4167 = vmatmul.mubr.f32.gmra.mxu0 %v4080
        %v4168 = vpop.f32.mrf.mxu0
        %v4169 = vadd.f32 0.0, %v4168
        %v4170 = vpop.f32.mrf.mxu0
        %4171 = vmatprep.mubr.f32.mxu0 0.0
        %4172 = vmatmul.mubr.f32.gmra.mxu0 %v4082
        %v4173 = vpop.f32.mrf.mxu0
        %v4174 = vadd.f32 0.0, %v4173
        %v4175 = vpop.f32.mrf.mxu0
        %4176 = vdwg.mxu0
        %4177 = vrot.lane.b32.xlu0 %v891, 96
        %v4178 = vpop.permute.xlu0 %4177
        %4179 = vrot.lane.b32.xlu0 %v893, 96
        %v4180 = vpop.permute.xlu0 %4179
        %4181 = vrot.lane.b32.xlu0 %v895, 96
        %v4182 = vpop.permute.xlu0 %4181
        %4183 = vrot.lane.b32.xlu0 %v897, 96
        %v4184 = vpop.permute.xlu0 %4183
        %v4185 = vsel %vm914, %v891, 0
        %v4187 = vsel %vm914, %v893, 0
        %v4189 = vsel %vm914, %v895, 0
        %v4191 = vsel %vm914, %v897, 0
        %v4193 = vsel %vm914, %v4178, 0
        %v4195 = vsel %vm914, %v4180, 0
        %v4197 = vsel %vm914, %v4182, 0
        %v4199 = vsel %vm914, %v4184, 0
        %4201 = vmatprep.subr.mxu0 0.0
        %4202 = vmatpush1.xpose.msra.mxu0 0.0
        %4203 = vmatprep.subr.mxu0 0.0
        %4204 = vmatpush1.xpose.msra.mxu0 0.0
        %4205 = vmatprep.subr.mxu0 0.0
        %4206 = vmatpush1.xpose.msra.mxu0 0.0
        %4207 = vmatprep.subr.mxu0 0.0
        %4208 = vmatpush1.xpose.msra.mxu0 0.0
        %4209 = vmatprep.subr.mxu0 0.0
        %4210 = vmatpush1.xpose.msra.mxu0 0.0
        %4211 = vmatprep.subr.mxu0 0.0
        %4212 = vmatpush1.xpose.msra.mxu0 0.0
        %4213 = vmatprep.subr.mxu0 0.0
        %4214 = vmatpush1.xpose.msra.mxu0 0.0
        %4215 = vmatprep.subr.mxu0 0.0
        %4216 = vmatpush1.xpose.msra.mxu0 0.0
        %4217 = vmatprep.subr.mxu0 0.0
        %4218 = vmatpush1.xpose.msra.mxu0 0.0
        %4219 = vmatprep.subr.mxu0 0.0
        %4220 = vmatpush1.xpose.msra.mxu0 0.0
        %4221 = vmatprep.subr.mxu0 0.0
        %4222 = vmatpush1.xpose.msra.mxu0 0.0
        %4223 = vmatprep.subr.mxu0 0.0
        %4224 = vmatpush1.xpose.msra.mxu0 0.0
        %4225 = vmatprep.subr.mxu0 0.0
        %4226 = vmatpush1.xpose.msra.mxu0 %v4199
        %4227 = vmatprep.subr.mxu0 0.0
        %4228 = vmatpush1.xpose.msra.mxu0 %v4197
        %4229 = vmatprep.subr.mxu0 0.0
        %4230 = vmatpush1.xpose.msra.mxu0 %v4195
        %4231 = vmatprep.subr.mxu0 0.0
        %4232 = vmatpush1.xpose.msra.mxu0 %v4193
        %4233 = vmatprep.subr.mxu0 0.0
        %4234 = vmatpush2.xpose.msra.mxu0 0.0
        %4235 = vmatprep.subr.mxu0 0.0
        %4236 = vmatpush2.xpose.msra.mxu0 0.0
        %4237 = vmatprep.subr.mxu0 0.0
        %4238 = vmatpush2.xpose.msra.mxu0 0.0
        %4239 = vmatprep.subr.mxu0 0.0
        %4240 = vmatpush2.xpose.msra.mxu0 0.0
        %4241 = vmatprep.subr.mxu0 0.0
        %4242 = vmatpush2.xpose.msra.mxu0 0.0
        %4243 = vmatprep.subr.mxu0 0.0
        %4244 = vmatpush2.xpose.msra.mxu0 0.0
        %4245 = vmatprep.subr.mxu0 0.0
        %4246 = vmatpush2.xpose.msra.mxu0 0.0
        %4247 = vmatprep.subr.mxu0 0.0
        %4248 = vmatpush2.xpose.msra.mxu0 0.0
        %4249 = vmatprep.subr.mxu0 0.0
        %4250 = vmatpush2.xpose.msra.mxu0 0.0
        %4251 = vmatprep.subr.mxu0 0.0
        %4252 = vmatpush2.xpose.msra.mxu0 0.0
        %4253 = vmatprep.subr.mxu0 0.0
        %4254 = vmatpush2.xpose.msra.mxu0 0.0
        %4255 = vmatprep.subr.mxu0 0.0
        %4256 = vmatpush2.xpose.msra.mxu0 0.0
        %4257 = vmatprep.subr.mxu0 0.0
        %4258 = vmatpush2.xpose.msra.mxu0 0.0
        %4259 = vmatprep.subr.mxu0 0.0
        %4260 = vmatpush2.xpose.msra.mxu0 0.0
        %4261 = vmatprep.subr.mxu0 0.0
        %4262 = vmatpush2.xpose.msra.mxu0 0.0
        %4263 = vmatprep.subr.mxu0 0.0
        %4264 = vmatpush2.xpose.msra.mxu0 0.0
        %4265 = vmatprep.mubr.f32.mxu0 0.0
        %4266 = vmatmul.mubr.f32.gmra.mxu0 %v4185
        %v4267 = vpop.f32.mrf.mxu0
        %v4268 = vadd.f32 0.0, %v4267
        %v4269 = vpop.f32.mrf.mxu0
        %4270 = vmatprep.mubr.f32.mxu0 0.0
        %4271 = vmatmul.mubr.f32.gmra.mxu0 %v4187
        %v4272 = vpop.f32.mrf.mxu0
        %v4273 = vadd.f32 0.0, %v4272
        %v4274 = vpop.f32.mrf.mxu0
        %4275 = vmatprep.mubr.f32.mxu0 0.0
        %4276 = vmatmul.mubr.f32.gmra.mxu0 %v4189
        %v4277 = vpop.f32.mrf.mxu0
        %v4278 = vadd.f32 0.0, %v4277
        %v4279 = vpop.f32.mrf.mxu0
        %4280 = vmatprep.mubr.f32.mxu0 0.0
        %4281 = vmatmul.mubr.f32.gmra.mxu0 %v4191
        %v4282 = vpop.f32.mrf.mxu0
        %v4283 = vadd.f32 0.0, %v4282
        %v4284 = vpop.f32.mrf.mxu0
        %4285 = vdwg.mxu0
        %4286 = vrot.lane.b32.xlu0 %v899, 96
        %v4287 = vpop.permute.xlu0 %4286
        %4288 = vrot.lane.b32.xlu0 %v901, 96
        %v4289 = vpop.permute.xlu0 %4288
        %4290 = vrot.lane.b32.xlu0 %v903, 96
        %v4291 = vpop.permute.xlu0 %4290
        %4292 = vrot.lane.b32.xlu0 %v905, 96
        %v4293 = vpop.permute.xlu0 %4292
        %v4294 = vsel %vm914, %v899, 0
        %v4296 = vsel %vm914, %v901, 0
        %v4298 = vsel %vm914, %v903, 0
        %v4300 = vsel %vm914, %v905, 0
        %v4302 = vsel %vm914, %v4287, 0
        %v4304 = vsel %vm914, %v4289, 0
        %v4306 = vsel %vm914, %v4291, 0
        %v4308 = vsel %vm914, %v4293, 0
        %4310 = vmatprep.subr.mxu0 0.0
        %4311 = vmatpush1.xpose.msra.mxu0 0.0
        %4312 = vmatprep.subr.mxu0 0.0
        %4313 = vmatpush1.xpose.msra.mxu0 0.0
        %4314 = vmatprep.subr.mxu0 0.0
        %4315 = vmatpush1.xpose.msra.mxu0 0.0
        %4316 = vmatprep.subr.mxu0 0.0
        %4317 = vmatpush1.xpose.msra.mxu0 0.0
        %4318 = vmatprep.subr.mxu0 0.0
        %4319 = vmatpush1.xpose.msra.mxu0 0.0
        %4320 = vmatprep.subr.mxu0 0.0
        %4321 = vmatpush1.xpose.msra.mxu0 0.0
        %4322 = vmatprep.subr.mxu0 0.0
        %4323 = vmatpush1.xpose.msra.mxu0 0.0
        %4324 = vmatprep.subr.mxu0 0.0
        %4325 = vmatpush1.xpose.msra.mxu0 0.0
        %4326 = vmatprep.subr.mxu0 0.0
        %4327 = vmatpush1.xpose.msra.mxu0 0.0
        %4328 = vmatprep.subr.mxu0 0.0
        %4329 = vmatpush1.xpose.msra.mxu0 0.0
        %4330 = vmatprep.subr.mxu0 0.0
        %4331 = vmatpush1.xpose.msra.mxu0 0.0
        %4332 = vmatprep.subr.mxu0 0.0
        %4333 = vmatpush1.xpose.msra.mxu0 0.0
        %4334 = vmatprep.subr.mxu0 0.0
        %4335 = vmatpush1.xpose.msra.mxu0 %v4308
        %4336 = vmatprep.subr.mxu0 0.0
        %4337 = vmatpush1.xpose.msra.mxu0 %v4306
        %4338 = vmatprep.subr.mxu0 0.0
        %4339 = vmatpush1.xpose.msra.mxu0 %v4304
        %4340 = vmatprep.subr.mxu0 0.0
        %4341 = vmatpush1.xpose.msra.mxu0 %v4302
        %4342 = vmatprep.subr.mxu0 0.0
        %4343 = vmatpush2.xpose.msra.mxu0 0.0
        %4344 = vmatprep.subr.mxu0 0.0
        %4345 = vmatpush2.xpose.msra.mxu0 0.0
        %4346 = vmatprep.subr.mxu0 0.0
        %4347 = vmatpush2.xpose.msra.mxu0 0.0
        %4348 = vmatprep.subr.mxu0 0.0
        %4349 = vmatpush2.xpose.msra.mxu0 0.0
        %4350 = vmatprep.subr.mxu0 0.0
        %4351 = vmatpush2.xpose.msra.mxu0 0.0
        %4352 = vmatprep.subr.mxu0 0.0
        %4353 = vmatpush2.xpose.msra.mxu0 0.0
        %4354 = vmatprep.subr.mxu0 0.0
        %4355 = vmatpush2.xpose.msra.mxu0 0.0
        %4356 = vmatprep.subr.mxu0 0.0
        %4357 = vmatpush2.xpose.msra.mxu0 0.0
        %4358 = vmatprep.subr.mxu0 0.0
        %4359 = vmatpush2.xpose.msra.mxu0 0.0
        %4360 = vmatprep.subr.mxu0 0.0
        %4361 = vmatpush2.xpose.msra.mxu0 0.0
        %4362 = vmatprep.subr.mxu0 0.0
        %4363 = vmatpush2.xpose.msra.mxu0 0.0
        %4364 = vmatprep.subr.mxu0 0.0
        %4365 = vmatpush2.xpose.msra.mxu0 0.0
        %4366 = vmatprep.subr.mxu0 0.0
        %4367 = vmatpush2.xpose.msra.mxu0 0.0
        %4368 = vmatprep.subr.mxu0 0.0
        %4369 = vmatpush2.xpose.msra.mxu0 0.0
        %4370 = vmatprep.subr.mxu0 0.0
        %4371 = vmatpush2.xpose.msra.mxu0 0.0
        %4372 = vmatprep.subr.mxu0 0.0
        %4373 = vmatpush2.xpose.msra.mxu0 0.0
        %4374 = vmatprep.mubr.f32.mxu0 0.0
        %4375 = vmatmul.mubr.f32.gmra.mxu0 %v4294
        %v4376 = vpop.f32.mrf.mxu0
        %v4377 = vadd.f32 0.0, %v4376
        %v4378 = vpop.f32.mrf.mxu0
        %4379 = vmatprep.mubr.f32.mxu0 0.0
        %4380 = vmatmul.mubr.f32.gmra.mxu0 %v4296
        %v4381 = vpop.f32.mrf.mxu0
        %v4382 = vadd.f32 0.0, %v4381
        %v4383 = vpop.f32.mrf.mxu0
        %4384 = vmatprep.mubr.f32.mxu0 0.0
        %4385 = vmatmul.mubr.f32.gmra.mxu0 %v4298
        %v4386 = vpop.f32.mrf.mxu0
        %v4387 = vadd.f32 0.0, %v4386
        %v4388 = vpop.f32.mrf.mxu0
        %4389 = vmatprep.mubr.f32.mxu0 0.0
        %4390 = vmatmul.mubr.f32.gmra.mxu0 %v4300
        %v4391 = vpop.f32.mrf.mxu0
        %v4392 = vadd.f32 0.0, %v4391
        %v4393 = vpop.f32.mrf.mxu0
        %4394 = vdwg.mxu0
        %v4395 = vld [vmem:[#allocation7] sm:$0xff]
        %v4396 = vld [vmem:[#allocation7 + $0x8] sm:$0xff]
        %v4397 = vld [vmem:[#allocation7 + $0x10] sm:$0xff]
        %v4398 = vld [vmem:[#allocation7 + $0x18] sm:$0xff]
        %v4399 = vld [vmem:[#allocation7 + $0x20] sm:$0xff]
        %v4400 = vld [vmem:[#allocation7 + $0x28] sm:$0xff]
        %v4401 = vld [vmem:[#allocation7 + $0x30] sm:$0xff]
        %v4402 = vld [vmem:[#allocation7 + $0x38] sm:$0xff]
        %v4403 = vld [vmem:[#allocation7 + $0x40] sm:$0xff]
        %v4404 = vld [vmem:[#allocation7 + $0x48] sm:$0xff]
        %v4405 = vld [vmem:[#allocation7 + $0x50] sm:$0xff]
        %v4406 = vld [vmem:[#allocation7 + $0x58] sm:$0xff]
        %v4407 = vld [vmem:[#allocation7 + $0x60] sm:$0xff]
        %v4408 = vld [vmem:[#allocation7 + $0x68] sm:$0xff]
        %v4409 = vld [vmem:[#allocation7 + $0x70] sm:$0xff]
        %v4410 = vld [vmem:[#allocation7 + $0x78] sm:$0xff]
        %v4411 = vadd.f32 %v998, %v4395
        %v4412 = vadd.f32 %v1003, %v4396
        %v4413 = vadd.f32 %v1008, %v4397
        %v4414 = vadd.f32 %v1013, %v4398
        %v4415 = vadd.f32 %v1107, %v4395
        %v4416 = vadd.f32 %v1112, %v4396
        %v4417 = vadd.f32 %v1117, %v4397
        %v4418 = vadd.f32 %v1122, %v4398
        %v4419 = vadd.f32 %v1216, %v4395
        %v4420 = vadd.f32 %v1221, %v4396
        %v4421 = vadd.f32 %v1226, %v4397
        %v4422 = vadd.f32 %v1231, %v4398
        %v4423 = vadd.f32 %v1325, %v4395
        %v4424 = vadd.f32 %v1330, %v4396
        %v4425 = vadd.f32 %v1335, %v4397
        %v4426 = vadd.f32 %v1340, %v4398
        %v4427 = vadd.f32 %v1434, %v4395
        %v4428 = vadd.f32 %v1439, %v4396
        %v4429 = vadd.f32 %v1444, %v4397
        %v4430 = vadd.f32 %v1449, %v4398
        %v4431 = vadd.f32 %v1543, %v4395
        %v4432 = vadd.f32 %v1548, %v4396
        %v4433 = vadd.f32 %v1553, %v4397
        %v4434 = vadd.f32 %v1558, %v4398
        %v4435 = vadd.f32 %v1652, %v4395
        %v4436 = vadd.f32 %v1657, %v4396
        %v4437 = vadd.f32 %v1662, %v4397
        %v4438 = vadd.f32 %v1667, %v4398
        %v4439 = vadd.f32 %v1761, %v4395
        %v4440 = vadd.f32 %v1766, %v4396
        %v4441 = vadd.f32 %v1771, %v4397
        %v4442 = vadd.f32 %v1776, %v4398
        %v4443 = vadd.f32 %v1870, %v4399
        %v4444 = vadd.f32 %v1875, %v4400
        %v4445 = vadd.f32 %v1880, %v4401
        %v4446 = vadd.f32 %v1885, %v4402
        %v4447 = vadd.f32 %v1979, %v4399
        %v4448 = vadd.f32 %v1984, %v4400
        %v4449 = vadd.f32 %v1989, %v4401
        %v4450 = vadd.f32 %v1994, %v4402
        %v4451 = vadd.f32 %v2088, %v4399
        %v4452 = vadd.f32 %v2093, %v4400
        %v4453 = vadd.f32 %v2098, %v4401
        %v4454 = vadd.f32 %v2103, %v4402
        %v4455 = vadd.f32 %v2197, %v4399
        %v4456 = vadd.f32 %v2202, %v4400
        %v4457 = vadd.f32 %v2207, %v4401
        %v4458 = vadd.f32 %v2212, %v4402
        %v4459 = vadd.f32 %v2306, %v4399
        %v4460 = vadd.f32 %v2311, %v4400
        %v4461 = vadd.f32 %v2316, %v4401
        %v4462 = vadd.f32 %v2321, %v4402
        %v4463 = vadd.f32 %v2415, %v4399
        %v4464 = vadd.f32 %v2420, %v4400
        %v4465 = vadd.f32 %v2425, %v4401
        %v4466 = vadd.f32 %v2430, %v4402
        %v4467 = vadd.f32 %v2524, %v4399
        %v4468 = vadd.f32 %v2529, %v4400
        %v4469 = vadd.f32 %v2534, %v4401
        %v4470 = vadd.f32 %v2539, %v4402
        %v4471 = vadd.f32 %v2633, %v4399
        %v4472 = vadd.f32 %v2638, %v4400
        %v4473 = vadd.f32 %v2643, %v4401
        %v4474 = vadd.f32 %v2648, %v4402
        %v4475 = vadd.f32 %v2742, %v4403
        %v4476 = vadd.f32 %v2747, %v4404
        %v4477 = vadd.f32 %v2752, %v4405
        %v4478 = vadd.f32 %v2757, %v4406
        %v4479 = vadd.f32 %v2851, %v4403
        %v4480 = vadd.f32 %v2856, %v4404
        %v4481 = vadd.f32 %v2861, %v4405
        %v4482 = vadd.f32 %v2866, %v4406
        %v4483 = vadd.f32 %v2960, %v4403
        %v4484 = vadd.f32 %v2965, %v4404
        %v4485 = vadd.f32 %v2970, %v4405
        %v4486 = vadd.f32 %v2975, %v4406
        %v4487 = vadd.f32 %v3069, %v4403
        %v4488 = vadd.f32 %v3074, %v4404
        %v4489 = vadd.f32 %v3079, %v4405
        %v4490 = vadd.f32 %v3084, %v4406
        %v4491 = vadd.f32 %v3178, %v4403
        %v4492 = vadd.f32 %v3183, %v4404
        %v4493 = vadd.f32 %v3188, %v4405
        %v4494 = vadd.f32 %v3193, %v4406
        %v4495 = vadd.f32 %v3287, %v4403
        %v4496 = vadd.f32 %v3292, %v4404
        %v4497 = vadd.f32 %v3297, %v4405
        %v4498 = vadd.f32 %v3302, %v4406
        %v4499 = vadd.f32 %v3396, %v4403
        %v4500 = vadd.f32 %v3401, %v4404
        %v4501 = vadd.f32 %v3406, %v4405
        %v4502 = vadd.f32 %v3411, %v4406
        %v4503 = vadd.f32 %v3505, %v4403
        %v4504 = vadd.f32 %v3510, %v4404
        %v4505 = vadd.f32 %v3515, %v4405
        %v4506 = vadd.f32 %v3520, %v4406
        %v4507 = vadd.f32 %v3614, %v4407
        %v4508 = vadd.f32 %v3619, %v4408
        %v4509 = vadd.f32 %v3624, %v4409
        %v4510 = vadd.f32 %v3629, %v4410
        %v4511 = vadd.f32 %v3723, %v4407
        %v4512 = vadd.f32 %v3728, %v4408
        %v4513 = vadd.f32 %v3733, %v4409
        %v4514 = vadd.f32 %v3738, %v4410
        %v4515 = vadd.f32 %v3832, %v4407
        %v4516 = vadd.f32 %v3837, %v4408
        %v4517 = vadd.f32 %v3842, %v4409
        %v4518 = vadd.f32 %v3847, %v4410
        %v4519 = vadd.f32 %v3941, %v4407
        %v4520 = vadd.f32 %v3946, %v4408
        %v4521 = vadd.f32 %v3951, %v4409
        %v4522 = vadd.f32 %v3956, %v4410
        %v4523 = vadd.f32 %v4050, %v4407
        %v4524 = vadd.f32 %v4055, %v4408
        %v4525 = vadd.f32 %v4060, %v4409
        %v4526 = vadd.f32 %v4065, %v4410
        %v4527 = vadd.f32 %v4159, %v4407
        %v4528 = vadd.f32 %v4164, %v4408
        %v4529 = vadd.f32 %v4169, %v4409
        %v4530 = vadd.f32 %v4174, %v4410
        %v4531 = vadd.f32 %v4268, %v4407
        %v4532 = vadd.f32 %v4273, %v4408
        %v4533 = vadd.f32 %v4278, %v4409
        %v4534 = vadd.f32 %v4283, %v4410
        %v4535 = vadd.f32 %v4377, %v4407
        %v4536 = vadd.f32 %v4382, %v4408
        %v4537 = vadd.f32 %v4387, %v4409
        %v4538 = vadd.f32 %v4392, %v4410
        %v4539 = vsel %vm360, %v4411, -inf
        %4540 = vmax.xlane.f32.xlu0 %v4539
        %v4541 = vpop.xlane.xlu0 %4540
        %v4542 = vsel %vm360, %v4412, -inf
        %4543 = vmax.xlane.f32.xlu0 %v4542
        %v4544 = vpop.xlane.xlu0 %4543
        %v4545 = vsel %vm360, %v4413, -inf
        %4546 = vmax.xlane.f32.xlu0 %v4545
        %v4547 = vpop.xlane.xlu0 %4546
        %v4548 = vsel %vm360, %v4414, -inf
        %4549 = vmax.xlane.f32.xlu0 %v4548
        %v4550 = vpop.xlane.xlu0 %4549
        %v4551 = vsel %vm360, %v4415, -inf
        %4552 = vmax.xlane.f32.xlu0 %v4551
        %v4553 = vpop.xlane.xlu0 %4552
        %v4554 = vsel %vm360, %v4416, -inf
        %4555 = vmax.xlane.f32.xlu0 %v4554
        %v4556 = vpop.xlane.xlu0 %4555
        %v4557 = vsel %vm360, %v4417, -inf
        %4558 = vmax.xlane.f32.xlu0 %v4557
        %v4559 = vpop.xlane.xlu0 %4558
        %v4560 = vsel %vm360, %v4418, -inf
        %4561 = vmax.xlane.f32.xlu0 %v4560
        %v4562 = vpop.xlane.xlu0 %4561
        %v4563 = vsel %vm360, %v4419, -inf
        %4564 = vmax.xlane.f32.xlu0 %v4563
        %v4565 = vpop.xlane.xlu0 %4564
        %v4566 = vsel %vm360, %v4420, -inf
        %4567 = vmax.xlane.f32.xlu0 %v4566
        %v4568 = vpop.xlane.xlu0 %4567
        %v4569 = vsel %vm360, %v4421, -inf
        %4570 = vmax.xlane.f32.xlu0 %v4569
        %v4571 = vpop.xlane.xlu0 %4570
        %v4572 = vsel %vm360, %v4422, -inf
        %4573 = vmax.xlane.f32.xlu0 %v4572
        %v4574 = vpop.xlane.xlu0 %4573
        %v4575 = vsel %vm360, %v4423, -inf
        %4576 = vmax.xlane.f32.xlu0 %v4575
        %v4577 = vpop.xlane.xlu0 %4576
        %v4578 = vsel %vm360, %v4424, -inf
        %4579 = vmax.xlane.f32.xlu0 %v4578
        %v4580 = vpop.xlane.xlu0 %4579
        %v4581 = vsel %vm360, %v4425, -inf
        %4582 = vmax.xlane.f32.xlu0 %v4581
        %v4583 = vpop.xlane.xlu0 %4582
        %v4584 = vsel %vm360, %v4426, -inf
        %4585 = vmax.xlane.f32.xlu0 %v4584
        %v4586 = vpop.xlane.xlu0 %4585
        %v4587 = vsel %vm360, %v4427, -inf
        %4588 = vmax.xlane.f32.xlu0 %v4587
        %v4589 = vpop.xlane.xlu0 %4588
        %v4590 = vsel %vm360, %v4428, -inf
        %4591 = vmax.xlane.f32.xlu0 %v4590
        %v4592 = vpop.xlane.xlu0 %4591
        %v4593 = vsel %vm360, %v4429, -inf
        %4594 = vmax.xlane.f32.xlu0 %v4593
        %v4595 = vpop.xlane.xlu0 %4594
        %v4596 = vsel %vm360, %v4430, -inf
        %4597 = vmax.xlane.f32.xlu0 %v4596
        %v4598 = vpop.xlane.xlu0 %4597
        %v4599 = vsel %vm360, %v4431, -inf
        %4600 = vmax.xlane.f32.xlu0 %v4599
        %v4601 = vpop.xlane.xlu0 %4600
        %v4602 = vsel %vm360, %v4432, -inf
        %4603 = vmax.xlane.f32.xlu0 %v4602
        %v4604 = vpop.xlane.xlu0 %4603
        %v4605 = vsel %vm360, %v4433, -inf
        %4606 = vmax.xlane.f32.xlu0 %v4605
        %v4607 = vpop.xlane.xlu0 %4606
        %v4608 = vsel %vm360, %v4434, -inf
        %4609 = vmax.xlane.f32.xlu0 %v4608
        %v4610 = vpop.xlane.xlu0 %4609
        %v4611 = vsel %vm360, %v4435, -inf
        %4612 = vmax.xlane.f32.xlu0 %v4611
        %v4613 = vpop.xlane.xlu0 %4612
        %v4614 = vsel %vm360, %v4436, -inf
        %4615 = vmax.xlane.f32.xlu0 %v4614
        %v4616 = vpop.xlane.xlu0 %4615
        %v4617 = vsel %vm360, %v4437, -inf
        %4618 = vmax.xlane.f32.xlu0 %v4617
        %v4619 = vpop.xlane.xlu0 %4618
        %v4620 = vsel %vm360, %v4438, -inf
        %4621 = vmax.xlane.f32.xlu0 %v4620
        %v4622 = vpop.xlane.xlu0 %4621
        %v4623 = vsel %vm360, %v4439, -inf
        %4624 = vmax.xlane.f32.xlu0 %v4623
        %v4625 = vpop.xlane.xlu0 %4624
        %v4626 = vsel %vm360, %v4440, -inf
        %4627 = vmax.xlane.f32.xlu0 %v4626
        %v4628 = vpop.xlane.xlu0 %4627
        %v4629 = vsel %vm360, %v4441, -inf
        %4630 = vmax.xlane.f32.xlu0 %v4629
        %v4631 = vpop.xlane.xlu0 %4630
        %v4632 = vsel %vm360, %v4442, -inf
        %4633 = vmax.xlane.f32.xlu0 %v4632
        %v4634 = vpop.xlane.xlu0 %4633
        %v4635 = vsel %vm360, %v4443, -inf
        %4636 = vmax.xlane.f32.xlu0 %v4635
        %v4637 = vpop.xlane.xlu0 %4636
        %v4638 = vsel %vm360, %v4444, -inf
        %4639 = vmax.xlane.f32.xlu0 %v4638
        %v4640 = vpop.xlane.xlu0 %4639
        %v4641 = vsel %vm360, %v4445, -inf
        %4642 = vmax.xlane.f32.xlu0 %v4641
        %v4643 = vpop.xlane.xlu0 %4642
        %v4644 = vsel %vm360, %v4446, -inf
        %4645 = vmax.xlane.f32.xlu0 %v4644
        %v4646 = vpop.xlane.xlu0 %4645
        %v4647 = vsel %vm360, %v4447, -inf
        %4648 = vmax.xlane.f32.xlu0 %v4647
        %v4649 = vpop.xlane.xlu0 %4648
        %v4650 = vsel %vm360, %v4448, -inf
        %4651 = vmax.xlane.f32.xlu0 %v4650
        %v4652 = vpop.xlane.xlu0 %4651
        %v4653 = vsel %vm360, %v4449, -inf
        %4654 = vmax.xlane.f32.xlu0 %v4653
        %v4655 = vpop.xlane.xlu0 %4654
        %v4656 = vsel %vm360, %v4450, -inf
        %4657 = vmax.xlane.f32.xlu0 %v4656
        %v4658 = vpop.xlane.xlu0 %4657
        %v4659 = vsel %vm360, %v4451, -inf
        %4660 = vmax.xlane.f32.xlu0 %v4659
        %v4661 = vpop.xlane.xlu0 %4660
        %v4662 = vsel %vm360, %v4452, -inf
        %4663 = vmax.xlane.f32.xlu0 %v4662
        %v4664 = vpop.xlane.xlu0 %4663
        %v4665 = vsel %vm360, %v4453, -inf
        %4666 = vmax.xlane.f32.xlu0 %v4665
        %v4667 = vpop.xlane.xlu0 %4666
        %v4668 = vsel %vm360, %v4454, -inf
        %4669 = vmax.xlane.f32.xlu0 %v4668
        %v4670 = vpop.xlane.xlu0 %4669
        %v4671 = vsel %vm360, %v4455, -inf
        %4672 = vmax.xlane.f32.xlu0 %v4671
        %v4673 = vpop.xlane.xlu0 %4672
        %v4674 = vsel %vm360, %v4456, -inf
        %4675 = vmax.xlane.f32.xlu0 %v4674
        %v4676 = vpop.xlane.xlu0 %4675
        %v4677 = vsel %vm360, %v4457, -inf
        %4678 = vmax.xlane.f32.xlu0 %v4677
        %v4679 = vpop.xlane.xlu0 %4678
        %v4680 = vsel %vm360, %v4458, -inf
        %4681 = vmax.xlane.f32.xlu0 %v4680
        %v4682 = vpop.xlane.xlu0 %4681
        %v4683 = vsel %vm360, %v4459, -inf
        %4684 = vmax.xlane.f32.xlu0 %v4683
        %v4685 = vpop.xlane.xlu0 %4684
        %v4686 = vsel %vm360, %v4460, -inf
        %4687 = vmax.xlane.f32.xlu0 %v4686
        %v4688 = vpop.xlane.xlu0 %4687
        %v4689 = vsel %vm360, %v4461, -inf
        %4690 = vmax.xlane.f32.xlu0 %v4689
        %v4691 = vpop.xlane.xlu0 %4690
        %v4692 = vsel %vm360, %v4462, -inf
        %4693 = vmax.xlane.f32.xlu0 %v4692
        %v4694 = vpop.xlane.xlu0 %4693
        %v4695 = vsel %vm360, %v4463, -inf
        %4696 = vmax.xlane.f32.xlu0 %v4695
        %v4697 = vpop.xlane.xlu0 %4696
        %v4698 = vsel %vm360, %v4464, -inf
        %4699 = vmax.xlane.f32.xlu0 %v4698
        %v4700 = vpop.xlane.xlu0 %4699
        %v4701 = vsel %vm360, %v4465, -inf
        %4702 = vmax.xlane.f32.xlu0 %v4701
        %v4703 = vpop.xlane.xlu0 %4702
        %v4704 = vsel %vm360, %v4466, -inf
        %4705 = vmax.xlane.f32.xlu0 %v4704
        %v4706 = vpop.xlane.xlu0 %4705
        %v4707 = vsel %vm360, %v4467, -inf
        %4708 = vmax.xlane.f32.xlu0 %v4707
        %v4709 = vpop.xlane.xlu0 %4708
        %v4710 = vsel %vm360, %v4468, -inf
        %4711 = vmax.xlane.f32.xlu0 %v4710
        %v4712 = vpop.xlane.xlu0 %4711
        %v4713 = vsel %vm360, %v4469, -inf
        %4714 = vmax.xlane.f32.xlu0 %v4713
        %v4715 = vpop.xlane.xlu0 %4714
        %v4716 = vsel %vm360, %v4470, -inf
        %4717 = vmax.xlane.f32.xlu0 %v4716
        %v4718 = vpop.xlane.xlu0 %4717
        %v4719 = vsel %vm360, %v4471, -inf
        %4720 = vmax.xlane.f32.xlu0 %v4719
        %v4721 = vpop.xlane.xlu0 %4720
        %v4722 = vsel %vm360, %v4472, -inf
        %4723 = vmax.xlane.f32.xlu0 %v4722
        %v4724 = vpop.xlane.xlu0 %4723
        %v4725 = vsel %vm360, %v4473, -inf
        %4726 = vmax.xlane.f32.xlu0 %v4725
        %v4727 = vpop.xlane.xlu0 %4726
        %v4728 = vsel %vm360, %v4474, -inf
        %4729 = vmax.xlane.f32.xlu0 %v4728
        %v4730 = vpop.xlane.xlu0 %4729
        %v4731 = vsel %vm360, %v4475, -inf
        %4732 = vmax.xlane.f32.xlu0 %v4731
        %v4733 = vpop.xlane.xlu0 %4732
        %v4734 = vsel %vm360, %v4476, -inf
        %4735 = vmax.xlane.f32.xlu0 %v4734
        %v4736 = vpop.xlane.xlu0 %4735
        %v4737 = vsel %vm360, %v4477, -inf
        %4738 = vmax.xlane.f32.xlu0 %v4737
        %v4739 = vpop.xlane.xlu0 %4738
        %v4740 = vsel %vm360, %v4478, -inf
        %4741 = vmax.xlane.f32.xlu0 %v4740
        %v4742 = vpop.xlane.xlu0 %4741
        %v4743 = vsel %vm360, %v4479, -inf
        %4744 = vmax.xlane.f32.xlu0 %v4743
        %v4745 = vpop.xlane.xlu0 %4744
        %v4746 = vsel %vm360, %v4480, -inf
        %4747 = vmax.xlane.f32.xlu0 %v4746
        %v4748 = vpop.xlane.xlu0 %4747
        %v4749 = vsel %vm360, %v4481, -inf
        %4750 = vmax.xlane.f32.xlu0 %v4749
        %v4751 = vpop.xlane.xlu0 %4750
        %v4752 = vsel %vm360, %v4482, -inf
        %4753 = vmax.xlane.f32.xlu0 %v4752
        %v4754 = vpop.xlane.xlu0 %4753
        %v4755 = vsel %vm360, %v4483, -inf
        %4756 = vmax.xlane.f32.xlu0 %v4755
        %v4757 = vpop.xlane.xlu0 %4756
        %v4758 = vsel %vm360, %v4484, -inf
        %4759 = vmax.xlane.f32.xlu0 %v4758
        %v4760 = vpop.xlane.xlu0 %4759
        %v4761 = vsel %vm360, %v4485, -inf
        %4762 = vmax.xlane.f32.xlu0 %v4761
        %v4763 = vpop.xlane.xlu0 %4762
        %v4764 = vsel %vm360, %v4486, -inf
        %4765 = vmax.xlane.f32.xlu0 %v4764
        %v4766 = vpop.xlane.xlu0 %4765
        %v4767 = vsel %vm360, %v4487, -inf
        %4768 = vmax.xlane.f32.xlu0 %v4767
        %v4769 = vpop.xlane.xlu0 %4768
        %v4770 = vsel %vm360, %v4488, -inf
        %4771 = vmax.xlane.f32.xlu0 %v4770
        %v4772 = vpop.xlane.xlu0 %4771
        %v4773 = vsel %vm360, %v4489, -inf
        %4774 = vmax.xlane.f32.xlu0 %v4773
        %v4775 = vpop.xlane.xlu0 %4774
        %v4776 = vsel %vm360, %v4490, -inf
        %4777 = vmax.xlane.f32.xlu0 %v4776
        %v4778 = vpop.xlane.xlu0 %4777
        %v4779 = vsel %vm360, %v4491, -inf
        %4780 = vmax.xlane.f32.xlu0 %v4779
        %v4781 = vpop.xlane.xlu0 %4780
        %v4782 = vsel %vm360, %v4492, -inf
        %4783 = vmax.xlane.f32.xlu0 %v4782
        %v4784 = vpop.xlane.xlu0 %4783
        %v4785 = vsel %vm360, %v4493, -inf
        %4786 = vmax.xlane.f32.xlu0 %v4785
        %v4787 = vpop.xlane.xlu0 %4786
        %v4788 = vsel %vm360, %v4494, -inf
        %4789 = vmax.xlane.f32.xlu0 %v4788
        %v4790 = vpop.xlane.xlu0 %4789
        %v4791 = vsel %vm360, %v4495, -inf
        %4792 = vmax.xlane.f32.xlu0 %v4791
        %v4793 = vpop.xlane.xlu0 %4792
        %v4794 = vsel %vm360, %v4496, -inf
        %4795 = vmax.xlane.f32.xlu0 %v4794
        %v4796 = vpop.xlane.xlu0 %4795
        %v4797 = vsel %vm360, %v4497, -inf
        %4798 = vmax.xlane.f32.xlu0 %v4797
        %v4799 = vpop.xlane.xlu0 %4798
        %v4800 = vsel %vm360, %v4498, -inf
        %4801 = vmax.xlane.f32.xlu0 %v4800
        %v4802 = vpop.xlane.xlu0 %4801
        %v4803 = vsel %vm360, %v4499, -inf
        %4804 = vmax.xlane.f32.xlu0 %v4803
        %v4805 = vpop.xlane.xlu0 %4804
        %v4806 = vsel %vm360, %v4500, -inf
        %4807 = vmax.xlane.f32.xlu0 %v4806
        %v4808 = vpop.xlane.xlu0 %4807
        %v4809 = vsel %vm360, %v4501, -inf
        %4810 = vmax.xlane.f32.xlu0 %v4809
        %v4811 = vpop.xlane.xlu0 %4810
        %v4812 = vsel %vm360, %v4502, -inf
        %4813 = vmax.xlane.f32.xlu0 %v4812
        %v4814 = vpop.xlane.xlu0 %4813
        %v4815 = vsel %vm360, %v4503, -inf
        %4816 = vmax.xlane.f32.xlu0 %v4815
        %v4817 = vpop.xlane.xlu0 %4816
        %v4818 = vsel %vm360, %v4504, -inf
        %4819 = vmax.xlane.f32.xlu0 %v4818
        %v4820 = vpop.xlane.xlu0 %4819
        %v4821 = vsel %vm360, %v4505, -inf
        %4822 = vmax.xlane.f32.xlu0 %v4821
        %v4823 = vpop.xlane.xlu0 %4822
        %v4824 = vsel %vm360, %v4506, -inf
        %4825 = vmax.xlane.f32.xlu0 %v4824
        %v4826 = vpop.xlane.xlu0 %4825
        %v4827 = vsel %vm360, %v4507, -inf
        %4828 = vmax.xlane.f32.xlu0 %v4827
        %v4829 = vpop.xlane.xlu0 %4828
        %v4830 = vsel %vm360, %v4508, -inf
        %4831 = vmax.xlane.f32.xlu0 %v4830
        %v4832 = vpop.xlane.xlu0 %4831
        %v4833 = vsel %vm360, %v4509, -inf
        %4834 = vmax.xlane.f32.xlu0 %v4833
        %v4835 = vpop.xlane.xlu0 %4834
        %v4836 = vsel %vm360, %v4510, -inf
        %4837 = vmax.xlane.f32.xlu0 %v4836
        %v4838 = vpop.xlane.xlu0 %4837
        %v4839 = vsel %vm360, %v4511, -inf
        %4840 = vmax.xlane.f32.xlu0 %v4839
        %v4841 = vpop.xlane.xlu0 %4840
        %v4842 = vsel %vm360, %v4512, -inf
        %4843 = vmax.xlane.f32.xlu0 %v4842
        %v4844 = vpop.xlane.xlu0 %4843
        %v4845 = vsel %vm360, %v4513, -inf
        %4846 = vmax.xlane.f32.xlu0 %v4845
        %v4847 = vpop.xlane.xlu0 %4846
        %v4848 = vsel %vm360, %v4514, -inf
        %4849 = vmax.xlane.f32.xlu0 %v4848
        %v4850 = vpop.xlane.xlu0 %4849
        %v4851 = vsel %vm360, %v4515, -inf
        %4852 = vmax.xlane.f32.xlu0 %v4851
        %v4853 = vpop.xlane.xlu0 %4852
        %v4854 = vsel %vm360, %v4516, -inf
        %4855 = vmax.xlane.f32.xlu0 %v4854
        %v4856 = vpop.xlane.xlu0 %4855
        %v4857 = vsel %vm360, %v4517, -inf
        %4858 = vmax.xlane.f32.xlu0 %v4857
        %v4859 = vpop.xlane.xlu0 %4858
        %v4860 = vsel %vm360, %v4518, -inf
        %4861 = vmax.xlane.f32.xlu0 %v4860
        %v4862 = vpop.xlane.xlu0 %4861
        %v4863 = vsel %vm360, %v4519, -inf
        %4864 = vmax.xlane.f32.xlu0 %v4863
        %v4865 = vpop.xlane.xlu0 %4864
        %v4866 = vsel %vm360, %v4520, -inf
        %4867 = vmax.xlane.f32.xlu0 %v4866
        %v4868 = vpop.xlane.xlu0 %4867
        %v4869 = vsel %vm360, %v4521, -inf
        %4870 = vmax.xlane.f32.xlu0 %v4869
        %v4871 = vpop.xlane.xlu0 %4870
        %v4872 = vsel %vm360, %v4522, -inf
        %4873 = vmax.xlane.f32.xlu0 %v4872
        %v4874 = vpop.xlane.xlu0 %4873
        %v4875 = vsel %vm360, %v4523, -inf
        %4876 = vmax.xlane.f32.xlu0 %v4875
        %v4877 = vpop.xlane.xlu0 %4876
        %v4878 = vsel %vm360, %v4524, -inf
        %4879 = vmax.xlane.f32.xlu0 %v4878
        %v4880 = vpop.xlane.xlu0 %4879
        %v4881 = vsel %vm360, %v4525, -inf
        %4882 = vmax.xlane.f32.xlu0 %v4881
        %v4883 = vpop.xlane.xlu0 %4882
        %v4884 = vsel %vm360, %v4526, -inf
        %4885 = vmax.xlane.f32.xlu0 %v4884
        %v4886 = vpop.xlane.xlu0 %4885
        %v4887 = vsel %vm360, %v4527, -inf
        %4888 = vmax.xlane.f32.xlu0 %v4887
        %v4889 = vpop.xlane.xlu0 %4888
        %v4890 = vsel %vm360, %v4528, -inf
        %4891 = vmax.xlane.f32.xlu0 %v4890
        %v4892 = vpop.xlane.xlu0 %4891
        %v4893 = vsel %vm360, %v4529, -inf
        %4894 = vmax.xlane.f32.xlu0 %v4893
        %v4895 = vpop.xlane.xlu0 %4894
        %v4896 = vsel %vm360, %v4530, -inf
        %4897 = vmax.xlane.f32.xlu0 %v4896
        %v4898 = vpop.xlane.xlu0 %4897
        %v4899 = vsel %vm360, %v4531, -inf
        %4900 = vmax.xlane.f32.xlu0 %v4899
        %v4901 = vpop.xlane.xlu0 %4900
        %v4902 = vsel %vm360, %v4532, -inf
        %4903 = vmax.xlane.f32.xlu0 %v4902
        %v4904 = vpop.xlane.xlu0 %4903
        %v4905 = vsel %vm360, %v4533, -inf
        %4906 = vmax.xlane.f32.xlu0 %v4905
        %v4907 = vpop.xlane.xlu0 %4906
        %v4908 = vsel %vm360, %v4534, -inf
        %4909 = vmax.xlane.f32.xlu0 %v4908
        %v4910 = vpop.xlane.xlu0 %4909
        %v4911 = vsel %vm360, %v4535, -inf
        %4912 = vmax.xlane.f32.xlu0 %v4911
        %v4913 = vpop.xlane.xlu0 %4912
        %v4914 = vsel %vm360, %v4536, -inf
        %4915 = vmax.xlane.f32.xlu0 %v4914
        %v4916 = vpop.xlane.xlu0 %4915
        %v4917 = vsel %vm360, %v4537, -inf
        %4918 = vmax.xlane.f32.xlu0 %v4917
        %v4919 = vpop.xlane.xlu0 %4918
        %v4920 = vsel %vm360, %v4538, -inf
        %4921 = vmax.xlane.f32.xlu0 %v4920
        %v4922 = vpop.xlane.xlu0 %4921
        %v4923 = vsub.f32 %v4411, %v4541
        %v4924 = vsub.f32 %v4412, %v4544
        %v4925 = vsub.f32 %v4413, %v4547
        %v4926 = vsub.f32 %v4414, %v4550
        %v4927 = vsub.f32 %v4415, %v4553
        %v4928 = vsub.f32 %v4416, %v4556
        %v4929 = vsub.f32 %v4417, %v4559
        %v4930 = vsub.f32 %v4418, %v4562
        %v4931 = vsub.f32 %v4419, %v4565
        %v4932 = vsub.f32 %v4420, %v4568
        %v4933 = vsub.f32 %v4421, %v4571
        %v4934 = vsub.f32 %v4422, %v4574
        %v4935 = vsub.f32 %v4423, %v4577
        %v4936 = vsub.f32 %v4424, %v4580
        %v4937 = vsub.f32 %v4425, %v4583
        %v4938 = vsub.f32 %v4426, %v4586
        %v4939 = vsub.f32 %v4427, %v4589
        %v4940 = vsub.f32 %v4428, %v4592
        %v4941 = vsub.f32 %v4429, %v4595
        %v4942 = vsub.f32 %v4430, %v4598
        %v4943 = vsub.f32 %v4431, %v4601
        %v4944 = vsub.f32 %v4432, %v4604
        %v4945 = vsub.f32 %v4433, %v4607
        %v4946 = vsub.f32 %v4434, %v4610
        %v4947 = vsub.f32 %v4435, %v4613
        %v4948 = vsub.f32 %v4436, %v4616
        %v4949 = vsub.f32 %v4437, %v4619
        %v4950 = vsub.f32 %v4438, %v4622
        %v4951 = vsub.f32 %v4439, %v4625
        %v4952 = vsub.f32 %v4440, %v4628
        %v4953 = vsub.f32 %v4441, %v4631
        %v4954 = vsub.f32 %v4442, %v4634
        %v4955 = vsub.f32 %v4443, %v4637
        %v4956 = vsub.f32 %v4444, %v4640
        %v4957 = vsub.f32 %v4445, %v4643
        %v4958 = vsub.f32 %v4446, %v4646
        %v4959 = vsub.f32 %v4447, %v4649
        %v4960 = vsub.f32 %v4448, %v4652
        %v4961 = vsub.f32 %v4449, %v4655
        %v4962 = vsub.f32 %v4450, %v4658
        %v4963 = vsub.f32 %v4451, %v4661
        %v4964 = vsub.f32 %v4452, %v4664
        %v4965 = vsub.f32 %v4453, %v4667
        %v4966 = vsub.f32 %v4454, %v4670
        %v4967 = vsub.f32 %v4455, %v4673
        %v4968 = vsub.f32 %v4456, %v4676
        %v4969 = vsub.f32 %v4457, %v4679
        %v4970 = vsub.f32 %v4458, %v4682
        %v4971 = vsub.f32 %v4459, %v4685
        %v4972 = vsub.f32 %v4460, %v4688
        %v4973 = vsub.f32 %v4461, %v4691
        %v4974 = vsub.f32 %v4462, %v4694
        %v4975 = vsub.f32 %v4463, %v4697
        %v4976 = vsub.f32 %v4464, %v4700
        %v4977 = vsub.f32 %v4465, %v4703
        %v4978 = vsub.f32 %v4466, %v4706
        %v4979 = vsub.f32 %v4467, %v4709
        %v4980 = vsub.f32 %v4468, %v4712
        %v4981 = vsub.f32 %v4469, %v4715
        %v4982 = vsub.f32 %v4470, %v4718
        %v4983 = vsub.f32 %v4471, %v4721
        %v4984 = vsub.f32 %v4472, %v4724
        %v4985 = vsub.f32 %v4473, %v4727
        %v4986 = vsub.f32 %v4474, %v4730
        %v4987 = vsub.f32 %v4475, %v4733
        %v4988 = vsub.f32 %v4476, %v4736
        %v4989 = vsub.f32 %v4477, %v4739
        %v4990 = vsub.f32 %v4478, %v4742
        %v4991 = vsub.f32 %v4479, %v4745
        %v4992 = vsub.f32 %v4480, %v4748
        %v4993 = vsub.f32 %v4481, %v4751
        %v4994 = vsub.f32 %v4482, %v4754
        %v4995 = vsub.f32 %v4483, %v4757
        %v4996 = vsub.f32 %v4484, %v4760
        %v4997 = vsub.f32 %v4485, %v4763
        %v4998 = vsub.f32 %v4486, %v4766
        %v4999 = vsub.f32 %v4487, %v4769
        %v5000 = vsub.f32 %v4488, %v4772
        %v5001 = vsub.f32 %v4489, %v4775
        %v5002 = vsub.f32 %v4490, %v4778
        %v5003 = vsub.f32 %v4491, %v4781
        %v5004 = vsub.f32 %v4492, %v4784
        %v5005 = vsub.f32 %v4493, %v4787
        %v5006 = vsub.f32 %v4494, %v4790
        %v5007 = vsub.f32 %v4495, %v4793
        %v5008 = vsub.f32 %v4496, %v4796
        %v5009 = vsub.f32 %v4497, %v4799
        %v5010 = vsub.f32 %v4498, %v4802
        %v5011 = vsub.f32 %v4499, %v4805
        %v5012 = vsub.f32 %v4500, %v4808
        %v5013 = vsub.f32 %v4501, %v4811
        %v5014 = vsub.f32 %v4502, %v4814
        %v5015 = vsub.f32 %v4503, %v4817
        %v5016 = vsub.f32 %v4504, %v4820
        %v5017 = vsub.f32 %v4505, %v4823
        %v5018 = vsub.f32 %v4506, %v4826
        %v5019 = vsub.f32 %v4507, %v4829
        %v5020 = vsub.f32 %v4508, %v4832
        %v5021 = vsub.f32 %v4509, %v4835
        %v5022 = vsub.f32 %v4510, %v4838
        %v5023 = vsub.f32 %v4511, %v4841
        %v5024 = vsub.f32 %v4512, %v4844
        %v5025 = vsub.f32 %v4513, %v4847
        %v5026 = vsub.f32 %v4514, %v4850
        %v5027 = vsub.f32 %v4515, %v4853
        %v5028 = vsub.f32 %v4516, %v4856
        %v5029 = vsub.f32 %v4517, %v4859
        %v5030 = vsub.f32 %v4518, %v4862
        %v5031 = vsub.f32 %v4519, %v4865
        %v5032 = vsub.f32 %v4520, %v4868
        %v5033 = vsub.f32 %v4521, %v4871
        %v5034 = vsub.f32 %v4522, %v4874
        %v5035 = vsub.f32 %v4523, %v4877
        %v5036 = vsub.f32 %v4524, %v4880
        %v5037 = vsub.f32 %v4525, %v4883
        %v5038 = vsub.f32 %v4526, %v4886
        %v5039 = vsub.f32 %v4527, %v4889
        %v5040 = vsub.f32 %v4528, %v4892
        %v5041 = vsub.f32 %v4529, %v4895
        %v5042 = vsub.f32 %v4530, %v4898
        %v5043 = vsub.f32 %v4531, %v4901
        %v5044 = vsub.f32 %v4532, %v4904
        %v5045 = vsub.f32 %v4533, %v4907
        %v5046 = vsub.f32 %v4534, %v4910
        %v5047 = vsub.f32 %v4535, %v4913
        %v5048 = vsub.f32 %v4536, %v4916
        %v5049 = vsub.f32 %v4537, %v4919
        %v5050 = vsub.f32 %v4538, %v4922
        %v5051 = vmul.f32 %v4923, 1.442695
        %v5052 = vpow.pop %v5051
        %v5053 = vmul.f32 %v4924, 1.442695
        %v5054 = vpow.pop %v5053
        %v5055 = vmul.f32 %v4925, 1.442695
        %v5056 = vpow.pop %v5055
        %v5057 = vmul.f32 %v4926, 1.442695
        %v5058 = vpow.pop %v5057
        %v5059 = vmul.f32 %v4927, 1.442695
        %v5060 = vpow.pop %v5059
        %v5061 = vmul.f32 %v4928, 1.442695
        %v5062 = vpow.pop %v5061
        %v5063 = vmul.f32 %v4929, 1.442695
        %v5064 = vpow.pop %v5063
        %v5065 = vmul.f32 %v4930, 1.442695
        %v5066 = vpow.pop %v5065
        %v5067 = vmul.f32 %v4931, 1.442695
        %v5068 = vpow.pop %v5067
        %v5069 = vmul.f32 %v4932, 1.442695
        %v5070 = vpow.pop %v5069
        %v5071 = vmul.f32 %v4933, 1.442695
        %v5072 = vpow.pop %v5071
        %v5073 = vmul.f32 %v4934, 1.442695
        %v5074 = vpow.pop %v5073
        %v5075 = vmul.f32 %v4935, 1.442695
        %v5076 = vpow.pop %v5075
        %v5077 = vmul.f32 %v4936, 1.442695
        %v5078 = vpow.pop %v5077
        %v5079 = vmul.f32 %v4937, 1.442695
        %v5080 = vpow.pop %v5079
        %v5081 = vmul.f32 %v4938, 1.442695
        %v5082 = vpow.pop %v5081
        %v5083 = vmul.f32 %v4939, 1.442695
        %v5084 = vpow.pop %v5083
        %v5085 = vmul.f32 %v4940, 1.442695
        %v5086 = vpow.pop %v5085
        %v5087 = vmul.f32 %v4941, 1.442695
        %v5088 = vpow.pop %v5087
        %v5089 = vmul.f32 %v4942, 1.442695
        %v5090 = vpow.pop %v5089
        %v5091 = vmul.f32 %v4943, 1.442695
        %v5092 = vpow.pop %v5091
        %v5093 = vmul.f32 %v4944, 1.442695
        %v5094 = vpow.pop %v5093
        %v5095 = vmul.f32 %v4945, 1.442695
        %v5096 = vpow.pop %v5095
        %v5097 = vmul.f32 %v4946, 1.442695
        %v5098 = vpow.pop %v5097
        %v5099 = vmul.f32 %v4947, 1.442695
        %v5100 = vpow.pop %v5099
        %v5101 = vmul.f32 %v4948, 1.442695
        %v5102 = vpow.pop %v5101
        %v5103 = vmul.f32 %v4949, 1.442695
        %v5104 = vpow.pop %v5103
        %v5105 = vmul.f32 %v4950, 1.442695
        %v5106 = vpow.pop %v5105
        %v5107 = vmul.f32 %v4951, 1.442695
        %v5108 = vpow.pop %v5107
        %v5109 = vmul.f32 %v4952, 1.442695
        %v5110 = vpow.pop %v5109
        %v5111 = vmul.f32 %v4953, 1.442695
        %v5112 = vpow.pop %v5111
        %v5113 = vmul.f32 %v4954, 1.442695
        %v5114 = vpow.pop %v5113
        %v5115 = vmul.f32 %v4955, 1.442695
        %v5116 = vpow.pop %v5115
        %v5117 = vmul.f32 %v4956, 1.442695
        %v5118 = vpow.pop %v5117
        %v5119 = vmul.f32 %v4957, 1.442695
        %v5120 = vpow.pop %v5119
        %v5121 = vmul.f32 %v4958, 1.442695
        %v5122 = vpow.pop %v5121
        %v5123 = vmul.f32 %v4959, 1.442695
        %v5124 = vpow.pop %v5123
        %v5125 = vmul.f32 %v4960, 1.442695
        %v5126 = vpow.pop %v5125
        %v5127 = vmul.f32 %v4961, 1.442695
        %v5128 = vpow.pop %v5127
        %v5129 = vmul.f32 %v4962, 1.442695
        %v5130 = vpow.pop %v5129
        %v5131 = vmul.f32 %v4963, 1.442695
        %v5132 = vpow.pop %v5131
        %v5133 = vmul.f32 %v4964, 1.442695
        %v5134 = vpow.pop %v5133
        %v5135 = vmul.f32 %v4965, 1.442695
        %v5136 = vpow.pop %v5135
        %v5137 = vmul.f32 %v4966, 1.442695
        %v5138 = vpow.pop %v5137
        %v5139 = vmul.f32 %v4967, 1.442695
        %v5140 = vpow.pop %v5139
        %v5141 = vmul.f32 %v4968, 1.442695
        %v5142 = vpow.pop %v5141
        %v5143 = vmul.f32 %v4969, 1.442695
        %v5144 = vpow.pop %v5143
        %v5145 = vmul.f32 %v4970, 1.442695
        %v5146 = vpow.pop %v5145
        %v5147 = vmul.f32 %v4971, 1.442695
        %v5148 = vpow.pop %v5147
        %v5149 = vmul.f32 %v4972, 1.442695
        %v5150 = vpow.pop %v5149
        %v5151 = vmul.f32 %v4973, 1.442695
        %v5152 = vpow.pop %v5151
        %v5153 = vmul.f32 %v4974, 1.442695
        %v5154 = vpow.pop %v5153
        %v5155 = vmul.f32 %v4975, 1.442695
        %v5156 = vpow.pop %v5155
        %v5157 = vmul.f32 %v4976, 1.442695
        %v5158 = vpow.pop %v5157
        %v5159 = vmul.f32 %v4977, 1.442695
        %v5160 = vpow.pop %v5159
        %v5161 = vmul.f32 %v4978, 1.442695
        %v5162 = vpow.pop %v5161
        %v5163 = vmul.f32 %v4979, 1.442695
        %v5164 = vpow.pop %v5163
        %v5165 = vmul.f32 %v4980, 1.442695
        %v5166 = vpow.pop %v5165
        %v5167 = vmul.f32 %v4981, 1.442695
        %v5168 = vpow.pop %v5167
        %v5169 = vmul.f32 %v4982, 1.442695
        %v5170 = vpow.pop %v5169
        %v5171 = vmul.f32 %v4983, 1.442695
        %v5172 = vpow.pop %v5171
        %v5173 = vmul.f32 %v4984, 1.442695
        %v5174 = vpow.pop %v5173
        %v5175 = vmul.f32 %v4985, 1.442695
        %v5176 = vpow.pop %v5175
        %v5177 = vmul.f32 %v4986, 1.442695
        %v5178 = vpow.pop %v5177
        %v5179 = vmul.f32 %v4987, 1.442695
        %v5180 = vpow.pop %v5179
        %v5181 = vmul.f32 %v4988, 1.442695
        %v5182 = vpow.pop %v5181
        %v5183 = vmul.f32 %v4989, 1.442695
        %v5184 = vpow.pop %v5183
        %v5185 = vmul.f32 %v4990, 1.442695
        %v5186 = vpow.pop %v5185
        %v5187 = vmul.f32 %v4991, 1.442695
        %v5188 = vpow.pop %v5187
        %v5189 = vmul.f32 %v4992, 1.442695
        %v5190 = vpow.pop %v5189
        %v5191 = vmul.f32 %v4993, 1.442695
        %v5192 = vpow.pop %v5191
        %v5193 = vmul.f32 %v4994, 1.442695
        %v5194 = vpow.pop %v5193
        %v5195 = vmul.f32 %v4995, 1.442695
        %v5196 = vpow.pop %v5195
        %v5197 = vmul.f32 %v4996, 1.442695
        %v5198 = vpow.pop %v5197
        %v5199 = vmul.f32 %v4997, 1.442695
        %v5200 = vpow.pop %v5199
        %v5201 = vmul.f32 %v4998, 1.442695
        %v5202 = vpow.pop %v5201
        %v5203 = vmul.f32 %v4999, 1.442695
        %v5204 = vpow.pop %v5203
        %v5205 = vmul.f32 %v5000, 1.442695
        %v5206 = vpow.pop %v5205
        %v5207 = vmul.f32 %v5001, 1.442695
        %v5208 = vpow.pop %v5207
        %v5209 = vmul.f32 %v5002, 1.442695
        %v5210 = vpow.pop %v5209
        %v5211 = vmul.f32 %v5003, 1.442695
        %v5212 = vpow.pop %v5211
        %v5213 = vmul.f32 %v5004, 1.442695
        %v5214 = vpow.pop %v5213
        %v5215 = vmul.f32 %v5005, 1.442695
        %v5216 = vpow.pop %v5215
        %v5217 = vmul.f32 %v5006, 1.442695
        %v5218 = vpow.pop %v5217
        %v5219 = vmul.f32 %v5007, 1.442695
        %v5220 = vpow.pop %v5219
        %v5221 = vmul.f32 %v5008, 1.442695
        %v5222 = vpow.pop %v5221
        %v5223 = vmul.f32 %v5009, 1.442695
        %v5224 = vpow.pop %v5223
        %v5225 = vmul.f32 %v5010, 1.442695
        %v5226 = vpow.pop %v5225
        %v5227 = vmul.f32 %v5011, 1.442695
        %v5228 = vpow.pop %v5227
        %v5229 = vmul.f32 %v5012, 1.442695
        %v5230 = vpow.pop %v5229
        %v5231 = vmul.f32 %v5013, 1.442695
        %v5232 = vpow.pop %v5231
        %v5233 = vmul.f32 %v5014, 1.442695
        %v5234 = vpow.pop %v5233
        %v5235 = vmul.f32 %v5015, 1.442695
        %v5236 = vpow.pop %v5235
        %v5237 = vmul.f32 %v5016, 1.442695
        %v5238 = vpow.pop %v5237
        %v5239 = vmul.f32 %v5017, 1.442695
        %v5240 = vpow.pop %v5239
        %v5241 = vmul.f32 %v5018, 1.442695
        %v5242 = vpow.pop %v5241
        %v5243 = vmul.f32 %v5019, 1.442695
        %v5244 = vpow.pop %v5243
        %v5245 = vmul.f32 %v5020, 1.442695
        %v5246 = vpow.pop %v5245
        %v5247 = vmul.f32 %v5021, 1.442695
        %v5248 = vpow.pop %v5247
        %v5249 = vmul.f32 %v5022, 1.442695
        %v5250 = vpow.pop %v5249
        %v5251 = vmul.f32 %v5023, 1.442695
        %v5252 = vpow.pop %v5251
        %v5253 = vmul.f32 %v5024, 1.442695
        %v5254 = vpow.pop %v5253
        %v5255 = vmul.f32 %v5025, 1.442695
        %v5256 = vpow.pop %v5255
        %v5257 = vmul.f32 %v5026, 1.442695
        %v5258 = vpow.pop %v5257
        %v5259 = vmul.f32 %v5027, 1.442695
        %v5260 = vpow.pop %v5259
        %v5261 = vmul.f32 %v5028, 1.442695
        %v5262 = vpow.pop %v5261
        %v5263 = vmul.f32 %v5029, 1.442695
        %v5264 = vpow.pop %v5263
        %v5265 = vmul.f32 %v5030, 1.442695
        %v5266 = vpow.pop %v5265
        %v5267 = vmul.f32 %v5031, 1.442695
        %v5268 = vpow.pop %v5267
        %v5269 = vmul.f32 %v5032, 1.442695
        %v5270 = vpow.pop %v5269
        %v5271 = vmul.f32 %v5033, 1.442695
        %v5272 = vpow.pop %v5271
        %v5273 = vmul.f32 %v5034, 1.442695
        %v5274 = vpow.pop %v5273
        %v5275 = vmul.f32 %v5035, 1.442695
        %v5276 = vpow.pop %v5275
        %v5277 = vmul.f32 %v5036, 1.442695
        %v5278 = vpow.pop %v5277
        %v5279 = vmul.f32 %v5037, 1.442695
        %v5280 = vpow.pop %v5279
        %v5281 = vmul.f32 %v5038, 1.442695
        %v5282 = vpow.pop %v5281
        %v5283 = vmul.f32 %v5039, 1.442695
        %v5284 = vpow.pop %v5283
        %v5285 = vmul.f32 %v5040, 1.442695
        %v5286 = vpow.pop %v5285
        %v5287 = vmul.f32 %v5041, 1.442695
        %v5288 = vpow.pop %v5287
        %v5289 = vmul.f32 %v5042, 1.442695
        %v5290 = vpow.pop %v5289
        %v5291 = vmul.f32 %v5043, 1.442695
        %v5292 = vpow.pop %v5291
        %v5293 = vmul.f32 %v5044, 1.442695
        %v5294 = vpow.pop %v5293
        %v5295 = vmul.f32 %v5045, 1.442695
        %v5296 = vpow.pop %v5295
        %v5297 = vmul.f32 %v5046, 1.442695
        %v5298 = vpow.pop %v5297
        %v5299 = vmul.f32 %v5047, 1.442695
        %v5300 = vpow.pop %v5299
        %v5301 = vmul.f32 %v5048, 1.442695
        %v5302 = vpow.pop %v5301
        %v5303 = vmul.f32 %v5049, 1.442695
        %v5304 = vpow.pop %v5303
        %v5305 = vmul.f32 %v5050, 1.442695
        %v5306 = vpow.pop %v5305
        %v5307 = vsel %vm360, %v5052, 0.0
        %5308 = vadd.xlane.f32.xlu0 %v5307
        %v5309 = vpop.xlane.xlu0 %5308
        %v5310 = vsel %vm360, %v5054, 0.0
        %5311 = vadd.xlane.f32.xlu0 %v5310
        %v5312 = vpop.xlane.xlu0 %5311
        %v5313 = vsel %vm360, %v5056, 0.0
        %5314 = vadd.xlane.f32.xlu0 %v5313
        %v5315 = vpop.xlane.xlu0 %5314
        %v5316 = vsel %vm360, %v5058, 0.0
        %5317 = vadd.xlane.f32.xlu0 %v5316
        %v5318 = vpop.xlane.xlu0 %5317
        %v5319 = vsel %vm360, %v5060, 0.0
        %5320 = vadd.xlane.f32.xlu0 %v5319
        %v5321 = vpop.xlane.xlu0 %5320
        %v5322 = vsel %vm360, %v5062, 0.0
        %5323 = vadd.xlane.f32.xlu0 %v5322
        %v5324 = vpop.xlane.xlu0 %5323
        %v5325 = vsel %vm360, %v5064, 0.0
        %5326 = vadd.xlane.f32.xlu0 %v5325
        %v5327 = vpop.xlane.xlu0 %5326
        %v5328 = vsel %vm360, %v5066, 0.0
        %5329 = vadd.xlane.f32.xlu0 %v5328
        %v5330 = vpop.xlane.xlu0 %5329
        %v5331 = vsel %vm360, %v5068, 0.0
        %5332 = vadd.xlane.f32.xlu0 %v5331
        %v5333 = vpop.xlane.xlu0 %5332
        %v5334 = vsel %vm360, %v5070, 0.0
        %5335 = vadd.xlane.f32.xlu0 %v5334
        %v5336 = vpop.xlane.xlu0 %5335
        %v5337 = vsel %vm360, %v5072, 0.0
        %5338 = vadd.xlane.f32.xlu0 %v5337
        %v5339 = vpop.xlane.xlu0 %5338
        %v5340 = vsel %vm360, %v5074, 0.0
        %5341 = vadd.xlane.f32.xlu0 %v5340
        %v5342 = vpop.xlane.xlu0 %5341
        %v5343 = vsel %vm360, %v5076, 0.0
        %5344 = vadd.xlane.f32.xlu0 %v5343
        %v5345 = vpop.xlane.xlu0 %5344
        %v5346 = vsel %vm360, %v5078, 0.0
        %5347 = vadd.xlane.f32.xlu0 %v5346
        %v5348 = vpop.xlane.xlu0 %5347
        %v5349 = vsel %vm360, %v5080, 0.0
        %5350 = vadd.xlane.f32.xlu0 %v5349
        %v5351 = vpop.xlane.xlu0 %5350
        %v5352 = vsel %vm360, %v5082, 0.0
        %5353 = vadd.xlane.f32.xlu0 %v5352
        %v5354 = vpop.xlane.xlu0 %5353
        %v5355 = vsel %vm360, %v5084, 0.0
        %5356 = vadd.xlane.f32.xlu0 %v5355
        %v5357 = vpop.xlane.xlu0 %5356
        %v5358 = vsel %vm360, %v5086, 0.0
        %5359 = vadd.xlane.f32.xlu0 %v5358
        %v5360 = vpop.xlane.xlu0 %5359
        %v5361 = vsel %vm360, %v5088, 0.0
        %5362 = vadd.xlane.f32.xlu0 %v5361
        %v5363 = vpop.xlane.xlu0 %5362
        %v5364 = vsel %vm360, %v5090, 0.0
        %5365 = vadd.xlane.f32.xlu0 %v5364
        %v5366 = vpop.xlane.xlu0 %5365
        %v5367 = vsel %vm360, %v5092, 0.0
        %5368 = vadd.xlane.f32.xlu0 %v5367
        %v5369 = vpop.xlane.xlu0 %5368
        %v5370 = vsel %vm360, %v5094, 0.0
        %5371 = vadd.xlane.f32.xlu0 %v5370
        %v5372 = vpop.xlane.xlu0 %5371
        %v5373 = vsel %vm360, %v5096, 0.0
        %5374 = vadd.xlane.f32.xlu0 %v5373
        %v5375 = vpop.xlane.xlu0 %5374
        %v5376 = vsel %vm360, %v5098, 0.0
        %5377 = vadd.xlane.f32.xlu0 %v5376
        %v5378 = vpop.xlane.xlu0 %5377
        %v5379 = vsel %vm360, %v5100, 0.0
        %5380 = vadd.xlane.f32.xlu0 %v5379
        %v5381 = vpop.xlane.xlu0 %5380
        %v5382 = vsel %vm360, %v5102, 0.0
        %5383 = vadd.xlane.f32.xlu0 %v5382
        %v5384 = vpop.xlane.xlu0 %5383
        %v5385 = vsel %vm360, %v5104, 0.0
        %5386 = vadd.xlane.f32.xlu0 %v5385
        %v5387 = vpop.xlane.xlu0 %5386
        %v5388 = vsel %vm360, %v5106, 0.0
        %5389 = vadd.xlane.f32.xlu0 %v5388
        %v5390 = vpop.xlane.xlu0 %5389
        %v5391 = vsel %vm360, %v5108, 0.0
        %5392 = vadd.xlane.f32.xlu0 %v5391
        %v5393 = vpop.xlane.xlu0 %5392
        %v5394 = vsel %vm360, %v5110, 0.0
        %5395 = vadd.xlane.f32.xlu0 %v5394
        %v5396 = vpop.xlane.xlu0 %5395
        %v5397 = vsel %vm360, %v5112, 0.0
        %5398 = vadd.xlane.f32.xlu0 %v5397
        %v5399 = vpop.xlane.xlu0 %5398
        %v5400 = vsel %vm360, %v5114, 0.0
        %5401 = vadd.xlane.f32.xlu0 %v5400
        %v5402 = vpop.xlane.xlu0 %5401
        %v5403 = vsel %vm360, %v5116, 0.0
        %5404 = vadd.xlane.f32.xlu0 %v5403
        %v5405 = vpop.xlane.xlu0 %5404
        %v5406 = vsel %vm360, %v5118, 0.0
        %5407 = vadd.xlane.f32.xlu0 %v5406
        %v5408 = vpop.xlane.xlu0 %5407
        %v5409 = vsel %vm360, %v5120, 0.0
        %5410 = vadd.xlane.f32.xlu0 %v5409
        %v5411 = vpop.xlane.xlu0 %5410
        %v5412 = vsel %vm360, %v5122, 0.0
        %5413 = vadd.xlane.f32.xlu0 %v5412
        %v5414 = vpop.xlane.xlu0 %5413
        %v5415 = vsel %vm360, %v5124, 0.0
        %5416 = vadd.xlane.f32.xlu0 %v5415
        %v5417 = vpop.xlane.xlu0 %5416
        %v5418 = vsel %vm360, %v5126, 0.0
        %5419 = vadd.xlane.f32.xlu0 %v5418
        %v5420 = vpop.xlane.xlu0 %5419
        %v5421 = vsel %vm360, %v5128, 0.0
        %5422 = vadd.xlane.f32.xlu0 %v5421
        %v5423 = vpop.xlane.xlu0 %5422
        %v5424 = vsel %vm360, %v5130, 0.0
        %5425 = vadd.xlane.f32.xlu0 %v5424
        %v5426 = vpop.xlane.xlu0 %5425
        %v5427 = vsel %vm360, %v5132, 0.0
        %5428 = vadd.xlane.f32.xlu0 %v5427
        %v5429 = vpop.xlane.xlu0 %5428
        %v5430 = vsel %vm360, %v5134, 0.0
        %5431 = vadd.xlane.f32.xlu0 %v5430
        %v5432 = vpop.xlane.xlu0 %5431
        %v5433 = vsel %vm360, %v5136, 0.0
        %5434 = vadd.xlane.f32.xlu0 %v5433
        %v5435 = vpop.xlane.xlu0 %5434
        %v5436 = vsel %vm360, %v5138, 0.0
        %5437 = vadd.xlane.f32.xlu0 %v5436
        %v5438 = vpop.xlane.xlu0 %5437
        %v5439 = vsel %vm360, %v5140, 0.0
        %5440 = vadd.xlane.f32.xlu0 %v5439
        %v5441 = vpop.xlane.xlu0 %5440
        %v5442 = vsel %vm360, %v5142, 0.0
        %5443 = vadd.xlane.f32.xlu0 %v5442
        %v5444 = vpop.xlane.xlu0 %5443
        %v5445 = vsel %vm360, %v5144, 0.0
        %5446 = vadd.xlane.f32.xlu0 %v5445
        %v5447 = vpop.xlane.xlu0 %5446
        %v5448 = vsel %vm360, %v5146, 0.0
        %5449 = vadd.xlane.f32.xlu0 %v5448
        %v5450 = vpop.xlane.xlu0 %5449
        %v5451 = vsel %vm360, %v5148, 0.0
        %5452 = vadd.xlane.f32.xlu0 %v5451
        %v5453 = vpop.xlane.xlu0 %5452
        %v5454 = vsel %vm360, %v5150, 0.0
        %5455 = vadd.xlane.f32.xlu0 %v5454
        %v5456 = vpop.xlane.xlu0 %5455
        %v5457 = vsel %vm360, %v5152, 0.0
        %5458 = vadd.xlane.f32.xlu0 %v5457
        %v5459 = vpop.xlane.xlu0 %5458
        %v5460 = vsel %vm360, %v5154, 0.0
        %5461 = vadd.xlane.f32.xlu0 %v5460
        %v5462 = vpop.xlane.xlu0 %5461
        %v5463 = vsel %vm360, %v5156, 0.0
        %5464 = vadd.xlane.f32.xlu0 %v5463
        %v5465 = vpop.xlane.xlu0 %5464
        %v5466 = vsel %vm360, %v5158, 0.0
        %5467 = vadd.xlane.f32.xlu0 %v5466
        %v5468 = vpop.xlane.xlu0 %5467
        %v5469 = vsel %vm360, %v5160, 0.0
        %5470 = vadd.xlane.f32.xlu0 %v5469
        %v5471 = vpop.xlane.xlu0 %5470
        %v5472 = vsel %vm360, %v5162, 0.0
        %5473 = vadd.xlane.f32.xlu0 %v5472
        %v5474 = vpop.xlane.xlu0 %5473
        %v5475 = vsel %vm360, %v5164, 0.0
        %5476 = vadd.xlane.f32.xlu0 %v5475
        %v5477 = vpop.xlane.xlu0 %5476
        %v5478 = vsel %vm360, %v5166, 0.0
        %5479 = vadd.xlane.f32.xlu0 %v5478
        %v5480 = vpop.xlane.xlu0 %5479
        %v5481 = vsel %vm360, %v5168, 0.0
        %5482 = vadd.xlane.f32.xlu0 %v5481
        %v5483 = vpop.xlane.xlu0 %5482
        %v5484 = vsel %vm360, %v5170, 0.0
        %5485 = vadd.xlane.f32.xlu0 %v5484
        %v5486 = vpop.xlane.xlu0 %5485
        %v5487 = vsel %vm360, %v5172, 0.0
        %5488 = vadd.xlane.f32.xlu0 %v5487
        %v5489 = vpop.xlane.xlu0 %5488
        %v5490 = vsel %vm360, %v5174, 0.0
        %5491 = vadd.xlane.f32.xlu0 %v5490
        %v5492 = vpop.xlane.xlu0 %5491
        %v5493 = vsel %vm360, %v5176, 0.0
        %5494 = vadd.xlane.f32.xlu0 %v5493
        %v5495 = vpop.xlane.xlu0 %5494
        %v5496 = vsel %vm360, %v5178, 0.0
        %5497 = vadd.xlane.f32.xlu0 %v5496
        %v5498 = vpop.xlane.xlu0 %5497
        %v5499 = vsel %vm360, %v5180, 0.0
        %5500 = vadd.xlane.f32.xlu0 %v5499
        %v5501 = vpop.xlane.xlu0 %5500
        %v5502 = vsel %vm360, %v5182, 0.0
        %5503 = vadd.xlane.f32.xlu0 %v5502
        %v5504 = vpop.xlane.xlu0 %5503
        %v5505 = vsel %vm360, %v5184, 0.0
        %5506 = vadd.xlane.f32.xlu0 %v5505
        %v5507 = vpop.xlane.xlu0 %5506
        %v5508 = vsel %vm360, %v5186, 0.0
        %5509 = vadd.xlane.f32.xlu0 %v5508
        %v5510 = vpop.xlane.xlu0 %5509
        %v5511 = vsel %vm360, %v5188, 0.0
        %5512 = vadd.xlane.f32.xlu0 %v5511
        %v5513 = vpop.xlane.xlu0 %5512
        %v5514 = vsel %vm360, %v5190, 0.0
        %5515 = vadd.xlane.f32.xlu0 %v5514
        %v5516 = vpop.xlane.xlu0 %5515
        %v5517 = vsel %vm360, %v5192, 0.0
        %5518 = vadd.xlane.f32.xlu0 %v5517
        %v5519 = vpop.xlane.xlu0 %5518
        %v5520 = vsel %vm360, %v5194, 0.0
        %5521 = vadd.xlane.f32.xlu0 %v5520
        %v5522 = vpop.xlane.xlu0 %5521
        %v5523 = vsel %vm360, %v5196, 0.0
        %5524 = vadd.xlane.f32.xlu0 %v5523
        %v5525 = vpop.xlane.xlu0 %5524
        %v5526 = vsel %vm360, %v5198, 0.0
        %5527 = vadd.xlane.f32.xlu0 %v5526
        %v5528 = vpop.xlane.xlu0 %5527
        %v5529 = vsel %vm360, %v5200, 0.0
        %5530 = vadd.xlane.f32.xlu0 %v5529
        %v5531 = vpop.xlane.xlu0 %5530
        %v5532 = vsel %vm360, %v5202, 0.0
        %5533 = vadd.xlane.f32.xlu0 %v5532
        %v5534 = vpop.xlane.xlu0 %5533
        %v5535 = vsel %vm360, %v5204, 0.0
        %5536 = vadd.xlane.f32.xlu0 %v5535
        %v5537 = vpop.xlane.xlu0 %5536
        %v5538 = vsel %vm360, %v5206, 0.0
        %5539 = vadd.xlane.f32.xlu0 %v5538
        %v5540 = vpop.xlane.xlu0 %5539
        %v5541 = vsel %vm360, %v5208, 0.0
        %5542 = vadd.xlane.f32.xlu0 %v5541
        %v5543 = vpop.xlane.xlu0 %5542
        %v5544 = vsel %vm360, %v5210, 0.0
        %5545 = vadd.xlane.f32.xlu0 %v5544
        %v5546 = vpop.xlane.xlu0 %5545
        %v5547 = vsel %vm360, %v5212, 0.0
        %5548 = vadd.xlane.f32.xlu0 %v5547
        %v5549 = vpop.xlane.xlu0 %5548
        %v5550 = vsel %vm360, %v5214, 0.0
        %5551 = vadd.xlane.f32.xlu0 %v5550
        %v5552 = vpop.xlane.xlu0 %5551
        %v5553 = vsel %vm360, %v5216, 0.0
        %5554 = vadd.xlane.f32.xlu0 %v5553
        %v5555 = vpop.xlane.xlu0 %5554
        %v5556 = vsel %vm360, %v5218, 0.0
        %5557 = vadd.xlane.f32.xlu0 %v5556
        %v5558 = vpop.xlane.xlu0 %5557
        %v5559 = vsel %vm360, %v5220, 0.0
        %5560 = vadd.xlane.f32.xlu0 %v5559
        %v5561 = vpop.xlane.xlu0 %5560
        %v5562 = vsel %vm360, %v5222, 0.0
        %5563 = vadd.xlane.f32.xlu0 %v5562
        %v5564 = vpop.xlane.xlu0 %5563
        %v5565 = vsel %vm360, %v5224, 0.0
        %5566 = vadd.xlane.f32.xlu0 %v5565
        %v5567 = vpop.xlane.xlu0 %5566
        %v5568 = vsel %vm360, %v5226, 0.0
        %5569 = vadd.xlane.f32.xlu0 %v5568
        %v5570 = vpop.xlane.xlu0 %5569
        %v5571 = vsel %vm360, %v5228, 0.0
        %5572 = vadd.xlane.f32.xlu0 %v5571
        %v5573 = vpop.xlane.xlu0 %5572
        %v5574 = vsel %vm360, %v5230, 0.0
        %5575 = vadd.xlane.f32.xlu0 %v5574
        %v5576 = vpop.xlane.xlu0 %5575
        %v5577 = vsel %vm360, %v5232, 0.0
        %5578 = vadd.xlane.f32.xlu0 %v5577
        %v5579 = vpop.xlane.xlu0 %5578
        %v5580 = vsel %vm360, %v5234, 0.0
        %5581 = vadd.xlane.f32.xlu0 %v5580
        %v5582 = vpop.xlane.xlu0 %5581
        %v5583 = vsel %vm360, %v5236, 0.0
        %5584 = vadd.xlane.f32.xlu0 %v5583
        %v5585 = vpop.xlane.xlu0 %5584
        %v5586 = vsel %vm360, %v5238, 0.0
        %5587 = vadd.xlane.f32.xlu0 %v5586
        %v5588 = vpop.xlane.xlu0 %5587
        %v5589 = vsel %vm360, %v5240, 0.0
        %5590 = vadd.xlane.f32.xlu0 %v5589
        %v5591 = vpop.xlane.xlu0 %5590
        %v5592 = vsel %vm360, %v5242, 0.0
        %5593 = vadd.xlane.f32.xlu0 %v5592
        %v5594 = vpop.xlane.xlu0 %5593
        %v5595 = vsel %vm360, %v5244, 0.0
        %5596 = vadd.xlane.f32.xlu0 %v5595
        %v5597 = vpop.xlane.xlu0 %5596
        %v5598 = vsel %vm360, %v5246, 0.0
        %5599 = vadd.xlane.f32.xlu0 %v5598
        %v5600 = vpop.xlane.xlu0 %5599
        %v5601 = vsel %vm360, %v5248, 0.0
        %5602 = vadd.xlane.f32.xlu0 %v5601
        %v5603 = vpop.xlane.xlu0 %5602
        %v5604 = vsel %vm360, %v5250, 0.0
        %5605 = vadd.xlane.f32.xlu0 %v5604
        %v5606 = vpop.xlane.xlu0 %5605
        %v5607 = vsel %vm360, %v5252, 0.0
        %5608 = vadd.xlane.f32.xlu0 %v5607
        %v5609 = vpop.xlane.xlu0 %5608
        %v5610 = vsel %vm360, %v5254, 0.0
        %5611 = vadd.xlane.f32.xlu0 %v5610
        %v5612 = vpop.xlane.xlu0 %5611
        %v5613 = vsel %vm360, %v5256, 0.0
        %5614 = vadd.xlane.f32.xlu0 %v5613
        %v5615 = vpop.xlane.xlu0 %5614
        %v5616 = vsel %vm360, %v5258, 0.0
        %5617 = vadd.xlane.f32.xlu0 %v5616
        %v5618 = vpop.xlane.xlu0 %5617
        %v5619 = vsel %vm360, %v5260, 0.0
        %5620 = vadd.xlane.f32.xlu0 %v5619
        %v5621 = vpop.xlane.xlu0 %5620
        %v5622 = vsel %vm360, %v5262, 0.0
        %5623 = vadd.xlane.f32.xlu0 %v5622
        %v5624 = vpop.xlane.xlu0 %5623
        %v5625 = vsel %vm360, %v5264, 0.0
        %5626 = vadd.xlane.f32.xlu0 %v5625
        %v5627 = vpop.xlane.xlu0 %5626
        %v5628 = vsel %vm360, %v5266, 0.0
        %5629 = vadd.xlane.f32.xlu0 %v5628
        %v5630 = vpop.xlane.xlu0 %5629
        %v5631 = vsel %vm360, %v5268, 0.0
        %5632 = vadd.xlane.f32.xlu0 %v5631
        %v5633 = vpop.xlane.xlu0 %5632
        %v5634 = vsel %vm360, %v5270, 0.0
        %5635 = vadd.xlane.f32.xlu0 %v5634
        %v5636 = vpop.xlane.xlu0 %5635
        %v5637 = vsel %vm360, %v5272, 0.0
        %5638 = vadd.xlane.f32.xlu0 %v5637
        %v5639 = vpop.xlane.xlu0 %5638
        %v5640 = vsel %vm360, %v5274, 0.0
        %5641 = vadd.xlane.f32.xlu0 %v5640
        %v5642 = vpop.xlane.xlu0 %5641
        %v5643 = vsel %vm360, %v5276, 0.0
        %5644 = vadd.xlane.f32.xlu0 %v5643
        %v5645 = vpop.xlane.xlu0 %5644
        %v5646 = vsel %vm360, %v5278, 0.0
        %5647 = vadd.xlane.f32.xlu0 %v5646
        %v5648 = vpop.xlane.xlu0 %5647
        %v5649 = vsel %vm360, %v5280, 0.0
        %5650 = vadd.xlane.f32.xlu0 %v5649
        %v5651 = vpop.xlane.xlu0 %5650
        %v5652 = vsel %vm360, %v5282, 0.0
        %5653 = vadd.xlane.f32.xlu0 %v5652
        %v5654 = vpop.xlane.xlu0 %5653
        %v5655 = vsel %vm360, %v5284, 0.0
        %5656 = vadd.xlane.f32.xlu0 %v5655
        %v5657 = vpop.xlane.xlu0 %5656
        %v5658 = vsel %vm360, %v5286, 0.0
        %5659 = vadd.xlane.f32.xlu0 %v5658
        %v5660 = vpop.xlane.xlu0 %5659
        %v5661 = vsel %vm360, %v5288, 0.0
        %5662 = vadd.xlane.f32.xlu0 %v5661
        %v5663 = vpop.xlane.xlu0 %5662
        %v5664 = vsel %vm360, %v5290, 0.0
        %5665 = vadd.xlane.f32.xlu0 %v5664
        %v5666 = vpop.xlane.xlu0 %5665
        %v5667 = vsel %vm360, %v5292, 0.0
        %5668 = vadd.xlane.f32.xlu0 %v5667
        %v5669 = vpop.xlane.xlu0 %5668
        %v5670 = vsel %vm360, %v5294, 0.0
        %5671 = vadd.xlane.f32.xlu0 %v5670
        %v5672 = vpop.xlane.xlu0 %5671
        %v5673 = vsel %vm360, %v5296, 0.0
        %5674 = vadd.xlane.f32.xlu0 %v5673
        %v5675 = vpop.xlane.xlu0 %5674
        %v5676 = vsel %vm360, %v5298, 0.0
        %5677 = vadd.xlane.f32.xlu0 %v5676
        %v5678 = vpop.xlane.xlu0 %5677
        %v5679 = vsel %vm360, %v5300, 0.0
        %5680 = vadd.xlane.f32.xlu0 %v5679
        %v5681 = vpop.xlane.xlu0 %5680
        %v5682 = vsel %vm360, %v5302, 0.0
        %5683 = vadd.xlane.f32.xlu0 %v5682
        %v5684 = vpop.xlane.xlu0 %5683
        %v5685 = vsel %vm360, %v5304, 0.0
        %5686 = vadd.xlane.f32.xlu0 %v5685
        %v5687 = vpop.xlane.xlu0 %5686
        %v5688 = vsel %vm360, %v5306, 0.0
        %5689 = vadd.xlane.f32.xlu0 %v5688
        %v5690 = vpop.xlane.xlu0 %5689
        %v5691 = vrcp.pop %v5309
        %v5692 = vrcp.pop %v5312
        %v5693 = vrcp.pop %v5315
        %v5694 = vrcp.pop %v5318
        %v5695 = vrcp.pop %v5321
        %v5696 = vrcp.pop %v5324
        %v5697 = vrcp.pop %v5327
        %v5698 = vrcp.pop %v5330
        %v5699 = vrcp.pop %v5333
        %v5700 = vrcp.pop %v5336
        %v5701 = vrcp.pop %v5339
        %v5702 = vrcp.pop %v5342
        %v5703 = vrcp.pop %v5345
        %v5704 = vrcp.pop %v5348
        %v5705 = vrcp.pop %v5351
        %v5706 = vrcp.pop %v5354
        %v5707 = vrcp.pop %v5357
        %v5708 = vrcp.pop %v5360
        %v5709 = vrcp.pop %v5363
        %v5710 = vrcp.pop %v5366
        %v5711 = vrcp.pop %v5369
        %v5712 = vrcp.pop %v5372
        %v5713 = vrcp.pop %v5375
        %v5714 = vrcp.pop %v5378
        %v5715 = vrcp.pop %v5381
        %v5716 = vrcp.pop %v5384
        %v5717 = vrcp.pop %v5387
        %v5718 = vrcp.pop %v5390
        %v5719 = vrcp.pop %v5393
        %v5720 = vrcp.pop %v5396
        %v5721 = vrcp.pop %v5399
        %v5722 = vrcp.pop %v5402
        %v5723 = vrcp.pop %v5405
        %v5724 = vrcp.pop %v5408
        %v5725 = vrcp.pop %v5411
        %v5726 = vrcp.pop %v5414
        %v5727 = vrcp.pop %v5417
        %v5728 = vrcp.pop %v5420
        %v5729 = vrcp.pop %v5423
        %v5730 = vrcp.pop %v5426
        %v5731 = vrcp.pop %v5429
        %v5732 = vrcp.pop %v5432
        %v5733 = vrcp.pop %v5435
        %v5734 = vrcp.pop %v5438
        %v5735 = vrcp.pop %v5441
        %v5736 = vrcp.pop %v5444
        %v5737 = vrcp.pop %v5447
        %v5738 = vrcp.pop %v5450
        %v5739 = vrcp.pop %v5453
        %v5740 = vrcp.pop %v5456
        %v5741 = vrcp.pop %v5459
        %v5742 = vrcp.pop %v5462
        %v5743 = vrcp.pop %v5465
        %v5744 = vrcp.pop %v5468
        %v5745 = vrcp.pop %v5471
        %v5746 = vrcp.pop %v5474
        %v5747 = vrcp.pop %v5477
        %v5748 = vrcp.pop %v5480
        %v5749 = vrcp.pop %v5483
        %v5750 = vrcp.pop %v5486
        %v5751 = vrcp.pop %v5489
        %v5752 = vrcp.pop %v5492
        %v5753 = vrcp.pop %v5495
        %v5754 = vrcp.pop %v5498
        %v5755 = vrcp.pop %v5501
        %v5756 = vrcp.pop %v5504
        %v5757 = vrcp.pop %v5507
        %v5758 = vrcp.pop %v5510
        %v5759 = vrcp.pop %v5513
        %v5760 = vrcp.pop %v5516
        %v5761 = vrcp.pop %v5519
        %v5762 = vrcp.pop %v5522
        %v5763 = vrcp.pop %v5525
        %v5764 = vrcp.pop %v5528
        %v5765 = vrcp.pop %v5531
        %v5766 = vrcp.pop %v5534
        %v5767 = vrcp.pop %v5537
        %v5768 = vrcp.pop %v5540
        %v5769 = vrcp.pop %v5543
        %v5770 = vrcp.pop %v5546
        %v5771 = vrcp.pop %v5549
        %v5772 = vrcp.pop %v5552
        %v5773 = vrcp.pop %v5555
        %v5774 = vrcp.pop %v5558
        %v5775 = vrcp.pop %v5561
        %v5776 = vrcp.pop %v5564
        %v5777 = vrcp.pop %v5567
        %v5778 = vrcp.pop %v5570
        %v5779 = vrcp.pop %v5573
        %v5780 = vrcp.pop %v5576
        %v5781 = vrcp.pop %v5579
        %v5782 = vrcp.pop %v5582
        %v5783 = vrcp.pop %v5585
        %v5784 = vrcp.pop %v5588
        %v5785 = vrcp.pop %v5591
        %v5786 = vrcp.pop %v5594
        %v5787 = vrcp.pop %v5597
        %v5788 = vrcp.pop %v5600
        %v5789 = vrcp.pop %v5603
        %v5790 = vrcp.pop %v5606
        %v5791 = vrcp.pop %v5609
        %v5792 = vrcp.pop %v5612
        %v5793 = vrcp.pop %v5615
        %v5794 = vrcp.pop %v5618
        %v5795 = vrcp.pop %v5621
        %v5796 = vrcp.pop %v5624
        %v5797 = vrcp.pop %v5627
        %v5798 = vrcp.pop %v5630
        %v5799 = vrcp.pop %v5633
        %v5800 = vrcp.pop %v5636
        %v5801 = vrcp.pop %v5639
        %v5802 = vrcp.pop %v5642
        %v5803 = vrcp.pop %v5645
        %v5804 = vrcp.pop %v5648
        %v5805 = vrcp.pop %v5651
        %v5806 = vrcp.pop %v5654
        %v5807 = vrcp.pop %v5657
        %v5808 = vrcp.pop %v5660
        %v5809 = vrcp.pop %v5663
        %v5810 = vrcp.pop %v5666
        %v5811 = vrcp.pop %v5669
        %v5812 = vrcp.pop %v5672
        %v5813 = vrcp.pop %v5675
        %v5814 = vrcp.pop %v5678
        %v5815 = vrcp.pop %v5681
        %v5816 = vrcp.pop %v5684
        %v5817 = vrcp.pop %v5687
        %v5818 = vrcp.pop %v5690
        %v5819 = vmul.f32 %v5052, %v5691
        %v5820 = vmul.f32 %v5054, %v5692
        %v5821 = vmul.f32 %v5056, %v5693
        %v5822 = vmul.f32 %v5058, %v5694
        %v5823 = vmul.f32 %v5060, %v5695
        %v5824 = vmul.f32 %v5062, %v5696
        %v5825 = vmul.f32 %v5064, %v5697
        %v5826 = vmul.f32 %v5066, %v5698
        %v5827 = vmul.f32 %v5068, %v5699
        %v5828 = vmul.f32 %v5070, %v5700
        %v5829 = vmul.f32 %v5072, %v5701
        %v5830 = vmul.f32 %v5074, %v5702
        %v5831 = vmul.f32 %v5076, %v5703
        %v5832 = vmul.f32 %v5078, %v5704
        %v5833 = vmul.f32 %v5080, %v5705
        %v5834 = vmul.f32 %v5082, %v5706
        %v5835 = vmul.f32 %v5084, %v5707
        %v5836 = vmul.f32 %v5086, %v5708
        %v5837 = vmul.f32 %v5088, %v5709
        %v5838 = vmul.f32 %v5090, %v5710
        %v5839 = vmul.f32 %v5092, %v5711
        %v5840 = vmul.f32 %v5094, %v5712
        %v5841 = vmul.f32 %v5096, %v5713
        %v5842 = vmul.f32 %v5098, %v5714
        %v5843 = vmul.f32 %v5100, %v5715
        %v5844 = vmul.f32 %v5102, %v5716
        %v5845 = vmul.f32 %v5104, %v5717
        %v5846 = vmul.f32 %v5106, %v5718
        %v5847 = vmul.f32 %v5108, %v5719
        %v5848 = vmul.f32 %v5110, %v5720
        %v5849 = vmul.f32 %v5112, %v5721
        %v5850 = vmul.f32 %v5114, %v5722
        %v5851 = vmul.f32 %v5116, %v5723
        %v5852 = vmul.f32 %v5118, %v5724
        %v5853 = vmul.f32 %v5120, %v5725
        %v5854 = vmul.f32 %v5122, %v5726
        %v5855 = vmul.f32 %v5124, %v5727
        %v5856 = vmul.f32 %v5126, %v5728
        %v5857 = vmul.f32 %v5128, %v5729
        %v5858 = vmul.f32 %v5130, %v5730
        %v5859 = vmul.f32 %v5132, %v5731
        %v5860 = vmul.f32 %v5134, %v5732
        %v5861 = vmul.f32 %v5136, %v5733
        %v5862 = vmul.f32 %v5138, %v5734
        %v5863 = vmul.f32 %v5140, %v5735
        %v5864 = vmul.f32 %v5142, %v5736
        %v5865 = vmul.f32 %v5144, %v5737
        %v5866 = vmul.f32 %v5146, %v5738
        %v5867 = vmul.f32 %v5148, %v5739
        %v5868 = vmul.f32 %v5150, %v5740
        %v5869 = vmul.f32 %v5152, %v5741
        %v5870 = vmul.f32 %v5154, %v5742
        %v5871 = vmul.f32 %v5156, %v5743
        %v5872 = vmul.f32 %v5158, %v5744
        %v5873 = vmul.f32 %v5160, %v5745
        %v5874 = vmul.f32 %v5162, %v5746
        %v5875 = vmul.f32 %v5164, %v5747
        %v5876 = vmul.f32 %v5166, %v5748
        %v5877 = vmul.f32 %v5168, %v5749
        %v5878 = vmul.f32 %v5170, %v5750
        %v5879 = vmul.f32 %v5172, %v5751
        %v5880 = vmul.f32 %v5174, %v5752
        %v5881 = vmul.f32 %v5176, %v5753
        %v5882 = vmul.f32 %v5178, %v5754
        %v5883 = vmul.f32 %v5180, %v5755
        %v5884 = vmul.f32 %v5182, %v5756
        %v5885 = vmul.f32 %v5184, %v5757
        %v5886 = vmul.f32 %v5186, %v5758
        %v5887 = vmul.f32 %v5188, %v5759
        %v5888 = vmul.f32 %v5190, %v5760
        %v5889 = vmul.f32 %v5192, %v5761
        %v5890 = vmul.f32 %v5194, %v5762
        %v5891 = vmul.f32 %v5196, %v5763
        %v5892 = vmul.f32 %v5198, %v5764
        %v5893 = vmul.f32 %v5200, %v5765
        %v5894 = vmul.f32 %v5202, %v5766
        %v5895 = vmul.f32 %v5204, %v5767
        %v5896 = vmul.f32 %v5206, %v5768
        %v5897 = vmul.f32 %v5208, %v5769
        %v5898 = vmul.f32 %v5210, %v5770
        %v5899 = vmul.f32 %v5212, %v5771
        %v5900 = vmul.f32 %v5214, %v5772
        %v5901 = vmul.f32 %v5216, %v5773
        %v5902 = vmul.f32 %v5218, %v5774
        %v5903 = vmul.f32 %v5220, %v5775
        %v5904 = vmul.f32 %v5222, %v5776
        %v5905 = vmul.f32 %v5224, %v5777
        %v5906 = vmul.f32 %v5226, %v5778
        %v5907 = vmul.f32 %v5228, %v5779
        %v5908 = vmul.f32 %v5230, %v5780
        %v5909 = vmul.f32 %v5232, %v5781
        %v5910 = vmul.f32 %v5234, %v5782
        %v5911 = vmul.f32 %v5236, %v5783
        %v5912 = vmul.f32 %v5238, %v5784
        %v5913 = vmul.f32 %v5240, %v5785
        %v5914 = vmul.f32 %v5242, %v5786
        %v5915 = vmul.f32 %v5244, %v5787
        %v5916 = vmul.f32 %v5246, %v5788
        %v5917 = vmul.f32 %v5248, %v5789
        %v5918 = vmul.f32 %v5250, %v5790
        %v5919 = vmul.f32 %v5252, %v5791
        %v5920 = vmul.f32 %v5254, %v5792
        %v5921 = vmul.f32 %v5256, %v5793
        %v5922 = vmul.f32 %v5258, %v5794
        %v5923 = vmul.f32 %v5260, %v5795
        %v5924 = vmul.f32 %v5262, %v5796
        %v5925 = vmul.f32 %v5264, %v5797
        %v5926 = vmul.f32 %v5266, %v5798
        %v5927 = vmul.f32 %v5268, %v5799
        %v5928 = vmul.f32 %v5270, %v5800
        %v5929 = vmul.f32 %v5272, %v5801
        %v5930 = vmul.f32 %v5274, %v5802
        %v5931 = vmul.f32 %v5276, %v5803
        %v5932 = vmul.f32 %v5278, %v5804
        %v5933 = vmul.f32 %v5280, %v5805
        %v5934 = vmul.f32 %v5282, %v5806
        %v5935 = vmul.f32 %v5284, %v5807
        %v5936 = vmul.f32 %v5286, %v5808
        %v5937 = vmul.f32 %v5288, %v5809
        %v5938 = vmul.f32 %v5290, %v5810
        %v5939 = vmul.f32 %v5292, %v5811
        %v5940 = vmul.f32 %v5294, %v5812
        %v5941 = vmul.f32 %v5296, %v5813
        %v5942 = vmul.f32 %v5298, %v5814
        %v5943 = vmul.f32 %v5300, %v5815
        %v5944 = vmul.f32 %v5302, %v5816
        %v5945 = vmul.f32 %v5304, %v5817
        %v5946 = vmul.f32 %v5306, %v5818
        %5947 = vrot.lane.b32.xlu0 %v524, 64
        %v5948 = vpop.permute.xlu0 %5947
        %5949 = vrot.lane.b32.xlu0 %v529, 64
        %v5950 = vpop.permute.xlu0 %5949
        %5951 = vrot.lane.b32.xlu0 %v534, 64
        %v5952 = vpop.permute.xlu0 %5951
        %5953 = vrot.lane.b32.xlu0 %v539, 64
        %v5954 = vpop.permute.xlu0 %5953
        %v5960 = vsel %vm360, %v5819, 0
        %v5963 = vsel %vm360, %v5820, 0
        %v5966 = vsel %vm360, %v5821, 0
        %v5969 = vsel %vm360, %v5822, 0
        %5971 = vmatprep.subr.mxu0 0.0
        %5972 = vmatpush1.msra.mxu0 0.0
        %5973 = vmatprep.subr.mxu0 0.0
        %5974 = vmatpush1.msra.mxu0 0.0
        %5975 = vmatprep.subr.mxu0 0.0
        %5976 = vmatpush1.msra.mxu0 0.0
        %5977 = vmatprep.subr.mxu0 0.0
        %5978 = vmatpush1.msra.mxu0 0.0
        %5979 = vmatprep.subr.mxu0 0.0
        %5980 = vmatpush1.msra.mxu0 0.0
        %5981 = vmatprep.subr.mxu0 0.0
        %5982 = vmatpush1.msra.mxu0 0.0
        %5983 = vmatprep.subr.mxu0 0.0
        %5984 = vmatpush1.msra.mxu0 0.0
        %5985 = vmatprep.subr.mxu0 0.0
        %5986 = vmatpush1.msra.mxu0 0.0
        %5987 = vmatprep.subr.mxu0 0.0
        %5988 = vmatpush1.msra.mxu0 0.0
        %5989 = vmatprep.subr.mxu0 0.0
        %5990 = vmatpush1.msra.mxu0 0.0
        %5991 = vmatprep.subr.mxu0 0.0
        %5992 = vmatpush1.msra.mxu0 0.0
        %5993 = vmatprep.subr.mxu0 0.0
        %5994 = vmatpush1.msra.mxu0 0.0
        %5995 = vmatprep.subr.mxu0 0.0
        %5996 = vmatpush1.msra.mxu0 %v5954
        %5997 = vmatprep.subr.mxu0 0.0
        %5998 = vmatpush1.msra.mxu0 %v5952
        %5999 = vmatprep.subr.mxu0 0.0
        %6000 = vmatpush1.msra.mxu0 %v5950
        %6001 = vmatprep.subr.mxu0 0.0
        %6002 = vmatpush1.msra.mxu0 %v5948
        %6003 = vmatprep.subr.mxu0 0.0
        %6004 = vmatpush2.msra.mxu0 0.0
        %6005 = vmatprep.subr.mxu0 0.0
        %6006 = vmatpush2.msra.mxu0 0.0
        %6007 = vmatprep.subr.mxu0 0.0
        %6008 = vmatpush2.msra.mxu0 0.0
        %6009 = vmatprep.subr.mxu0 0.0
        %6010 = vmatpush2.msra.mxu0 0.0
        %6011 = vmatprep.subr.mxu0 0.0
        %6012 = vmatpush2.msra.mxu0 0.0
        %6013 = vmatprep.subr.mxu0 0.0
        %6014 = vmatpush2.msra.mxu0 0.0
        %6015 = vmatprep.subr.mxu0 0.0
        %6016 = vmatpush2.msra.mxu0 0.0
        %6017 = vmatprep.subr.mxu0 0.0
        %6018 = vmatpush2.msra.mxu0 0.0
        %6019 = vmatprep.subr.mxu0 0.0
        %6020 = vmatpush2.msra.mxu0 0.0
        %6021 = vmatprep.subr.mxu0 0.0
        %6022 = vmatpush2.msra.mxu0 0.0
        %6023 = vmatprep.subr.mxu0 0.0
        %6024 = vmatpush2.msra.mxu0 0.0
        %6025 = vmatprep.subr.mxu0 0.0
        %6026 = vmatpush2.msra.mxu0 0.0
        %6027 = vmatprep.subr.mxu0 0.0
        %6028 = vmatpush2.msra.mxu0 0.0
        %6029 = vmatprep.subr.mxu0 0.0
        %6030 = vmatpush2.msra.mxu0 0.0
        %6031 = vmatprep.subr.mxu0 0.0
        %6032 = vmatpush2.msra.mxu0 0.0
        %6033 = vmatprep.subr.mxu0 0.0
        %6034 = vmatpush2.msra.mxu0 0.0
        %6035 = vmatprep.mubr.f32.mxu0 0.0
        %6036 = vmatmul.mubr.f32.gmra.mxu0 %v5960
        %v6037 = vpop.f32.mrf.mxu0
        %v6038 = vadd.f32 0.0, %v6037
        %v6039 = vpop.f32.mrf.mxu0
        %6040 = vmatprep.mubr.f32.mxu0 0.0
        %6041 = vmatmul.mubr.f32.gmra.mxu0 %v5963
        %v6042 = vpop.f32.mrf.mxu0
        %v6043 = vadd.f32 0.0, %v6042
        %v6044 = vpop.f32.mrf.mxu0
        %6045 = vmatprep.mubr.f32.mxu0 0.0
        %6046 = vmatmul.mubr.f32.gmra.mxu0 %v5966
        %v6047 = vpop.f32.mrf.mxu0
        %v6048 = vadd.f32 0.0, %v6047
        %v6049 = vpop.f32.mrf.mxu0
        %6050 = vmatprep.mubr.f32.mxu0 0.0
        %6051 = vmatmul.mubr.f32.gmra.mxu0 %v5969
        %v6052 = vpop.f32.mrf.mxu0
        %v6053 = vadd.f32 0.0, %v6052
        %v6054 = vpop.f32.mrf.mxu0
        %6055 = vdwg.mxu0
        %6056 = vrot.lane.b32.xlu0 %v544, 64
        %v6057 = vpop.permute.xlu0 %6056
        %6058 = vrot.lane.b32.xlu0 %v549, 64
        %v6059 = vpop.permute.xlu0 %6058
        %6060 = vrot.lane.b32.xlu0 %v554, 64
        %v6061 = vpop.permute.xlu0 %6060
        %6062 = vrot.lane.b32.xlu0 %v559, 64
        %v6063 = vpop.permute.xlu0 %6062
        %v6069 = vsel %vm360, %v5823, 0
        %v6072 = vsel %vm360, %v5824, 0
        %v6075 = vsel %vm360, %v5825, 0
        %v6078 = vsel %vm360, %v5826, 0
        %6080 = vmatprep.subr.mxu0 0.0
        %6081 = vmatpush1.msra.mxu0 0.0
        %6082 = vmatprep.subr.mxu0 0.0
        %6083 = vmatpush1.msra.mxu0 0.0
        %6084 = vmatprep.subr.mxu0 0.0
        %6085 = vmatpush1.msra.mxu0 0.0
        %6086 = vmatprep.subr.mxu0 0.0
        %6087 = vmatpush1.msra.mxu0 0.0
        %6088 = vmatprep.subr.mxu0 0.0
        %6089 = vmatpush1.msra.mxu0 0.0
        %6090 = vmatprep.subr.mxu0 0.0
        %6091 = vmatpush1.msra.mxu0 0.0
        %6092 = vmatprep.subr.mxu0 0.0
        %6093 = vmatpush1.msra.mxu0 0.0
        %6094 = vmatprep.subr.mxu0 0.0
        %6095 = vmatpush1.msra.mxu0 0.0
        %6096 = vmatprep.subr.mxu0 0.0
        %6097 = vmatpush1.msra.mxu0 0.0
        %6098 = vmatprep.subr.mxu0 0.0
        %6099 = vmatpush1.msra.mxu0 0.0
        %6100 = vmatprep.subr.mxu0 0.0
        %6101 = vmatpush1.msra.mxu0 0.0
        %6102 = vmatprep.subr.mxu0 0.0
        %6103 = vmatpush1.msra.mxu0 0.0
        %6104 = vmatprep.subr.mxu0 0.0
        %6105 = vmatpush1.msra.mxu0 %v6063
        %6106 = vmatprep.subr.mxu0 0.0
        %6107 = vmatpush1.msra.mxu0 %v6061
        %6108 = vmatprep.subr.mxu0 0.0
        %6109 = vmatpush1.msra.mxu0 %v6059
        %6110 = vmatprep.subr.mxu0 0.0
        %6111 = vmatpush1.msra.mxu0 %v6057
        %6112 = vmatprep.subr.mxu0 0.0
        %6113 = vmatpush2.msra.mxu0 0.0
        %6114 = vmatprep.subr.mxu0 0.0
        %6115 = vmatpush2.msra.mxu0 0.0
        %6116 = vmatprep.subr.mxu0 0.0
        %6117 = vmatpush2.msra.mxu0 0.0
        %6118 = vmatprep.subr.mxu0 0.0
        %6119 = vmatpush2.msra.mxu0 0.0
        %6120 = vmatprep.subr.mxu0 0.0
        %6121 = vmatpush2.msra.mxu0 0.0
        %6122 = vmatprep.subr.mxu0 0.0
        %6123 = vmatpush2.msra.mxu0 0.0
        %6124 = vmatprep.subr.mxu0 0.0
        %6125 = vmatpush2.msra.mxu0 0.0
        %6126 = vmatprep.subr.mxu0 0.0
        %6127 = vmatpush2.msra.mxu0 0.0
        %6128 = vmatprep.subr.mxu0 0.0
        %6129 = vmatpush2.msra.mxu0 0.0
        %6130 = vmatprep.subr.mxu0 0.0
        %6131 = vmatpush2.msra.mxu0 0.0
        %6132 = vmatprep.subr.mxu0 0.0
        %6133 = vmatpush2.msra.mxu0 0.0
        %6134 = vmatprep.subr.mxu0 0.0
        %6135 = vmatpush2.msra.mxu0 0.0
        %6136 = vmatprep.subr.mxu0 0.0
        %6137 = vmatpush2.msra.mxu0 0.0
        %6138 = vmatprep.subr.mxu0 0.0
        %6139 = vmatpush2.msra.mxu0 0.0
        %6140 = vmatprep.subr.mxu0 0.0
        %6141 = vmatpush2.msra.mxu0 0.0
        %6142 = vmatprep.subr.mxu0 0.0
        %6143 = vmatpush2.msra.mxu0 0.0
        %6144 = vmatprep.mubr.f32.mxu0 0.0
        %6145 = vmatmul.mubr.f32.gmra.mxu0 %v6069
        %v6146 = vpop.f32.mrf.mxu0
        %v6147 = vadd.f32 0.0, %v6146
        %v6148 = vpop.f32.mrf.mxu0
        %6149 = vmatprep.mubr.f32.mxu0 0.0
        %6150 = vmatmul.mubr.f32.gmra.mxu0 %v6072
        %v6151 = vpop.f32.mrf.mxu0
        %v6152 = vadd.f32 0.0, %v6151
        %v6153 = vpop.f32.mrf.mxu0
        %6154 = vmatprep.mubr.f32.mxu0 0.0
        %6155 = vmatmul.mubr.f32.gmra.mxu0 %v6075
        %v6156 = vpop.f32.mrf.mxu0
        %v6157 = vadd.f32 0.0, %v6156
        %v6158 = vpop.f32.mrf.mxu0
        %6159 = vmatprep.mubr.f32.mxu0 0.0
        %6160 = vmatmul.mubr.f32.gmra.mxu0 %v6078
        %v6161 = vpop.f32.mrf.mxu0
        %v6162 = vadd.f32 0.0, %v6161
        %v6163 = vpop.f32.mrf.mxu0
        %6164 = vdwg.mxu0
        %6165 = vrot.lane.b32.xlu0 %v564, 64
        %v6166 = vpop.permute.xlu0 %6165
        %6167 = vrot.lane.b32.xlu0 %v569, 64
        %v6168 = vpop.permute.xlu0 %6167
        %6169 = vrot.lane.b32.xlu0 %v574, 64
        %v6170 = vpop.permute.xlu0 %6169
        %6171 = vrot.lane.b32.xlu0 %v579, 64
        %v6172 = vpop.permute.xlu0 %6171
        %v6178 = vsel %vm360, %v5827, 0
        %v6181 = vsel %vm360, %v5828, 0
        %v6184 = vsel %vm360, %v5829, 0
        %v6187 = vsel %vm360, %v5830, 0
        %6189 = vmatprep.subr.mxu0 0.0
        %6190 = vmatpush1.msra.mxu0 0.0
        %6191 = vmatprep.subr.mxu0 0.0
        %6192 = vmatpush1.msra.mxu0 0.0
        %6193 = vmatprep.subr.mxu0 0.0
        %6194 = vmatpush1.msra.mxu0 0.0
        %6195 = vmatprep.subr.mxu0 0.0
        %6196 = vmatpush1.msra.mxu0 0.0
        %6197 = vmatprep.subr.mxu0 0.0
        %6198 = vmatpush1.msra.mxu0 0.0
        %6199 = vmatprep.subr.mxu0 0.0
        %6200 = vmatpush1.msra.mxu0 0.0
        %6201 = vmatprep.subr.mxu0 0.0
        %6202 = vmatpush1.msra.mxu0 0.0
        %6203 = vmatprep.subr.mxu0 0.0
        %6204 = vmatpush1.msra.mxu0 0.0
        %6205 = vmatprep.subr.mxu0 0.0
        %6206 = vmatpush1.msra.mxu0 0.0
        %6207 = vmatprep.subr.mxu0 0.0
        %6208 = vmatpush1.msra.mxu0 0.0
        %6209 = vmatprep.subr.mxu0 0.0
        %6210 = vmatpush1.msra.mxu0 0.0
        %6211 = vmatprep.subr.mxu0 0.0
        %6212 = vmatpush1.msra.mxu0 0.0
        %6213 = vmatprep.subr.mxu0 0.0
        %6214 = vmatpush1.msra.mxu0 %v6172
        %6215 = vmatprep.subr.mxu0 0.0
        %6216 = vmatpush1.msra.mxu0 %v6170
        %6217 = vmatprep.subr.mxu0 0.0
        %6218 = vmatpush1.msra.mxu0 %v6168
        %6219 = vmatprep.subr.mxu0 0.0
        %6220 = vmatpush1.msra.mxu0 %v6166
        %6221 = vmatprep.subr.mxu0 0.0
        %6222 = vmatpush2.msra.mxu0 0.0
        %6223 = vmatprep.subr.mxu0 0.0
        %6224 = vmatpush2.msra.mxu0 0.0
        %6225 = vmatprep.subr.mxu0 0.0
        %6226 = vmatpush2.msra.mxu0 0.0
        %6227 = vmatprep.subr.mxu0 0.0
        %6228 = vmatpush2.msra.mxu0 0.0
        %6229 = vmatprep.subr.mxu0 0.0
        %6230 = vmatpush2.msra.mxu0 0.0
        %6231 = vmatprep.subr.mxu0 0.0
        %6232 = vmatpush2.msra.mxu0 0.0
        %6233 = vmatprep.subr.mxu0 0.0
        %6234 = vmatpush2.msra.mxu0 0.0
        %6235 = vmatprep.subr.mxu0 0.0
        %6236 = vmatpush2.msra.mxu0 0.0
        %6237 = vmatprep.subr.mxu0 0.0
        %6238 = vmatpush2.msra.mxu0 0.0
        %6239 = vmatprep.subr.mxu0 0.0
        %6240 = vmatpush2.msra.mxu0 0.0
        %6241 = vmatprep.subr.mxu0 0.0
        %6242 = vmatpush2.msra.mxu0 0.0
        %6243 = vmatprep.subr.mxu0 0.0
        %6244 = vmatpush2.msra.mxu0 0.0
        %6245 = vmatprep.subr.mxu0 0.0
        %6246 = vmatpush2.msra.mxu0 0.0
        %6247 = vmatprep.subr.mxu0 0.0
        %6248 = vmatpush2.msra.mxu0 0.0
        %6249 = vmatprep.subr.mxu0 0.0
        %6250 = vmatpush2.msra.mxu0 0.0
        %6251 = vmatprep.subr.mxu0 0.0
        %6252 = vmatpush2.msra.mxu0 0.0
        %6253 = vmatprep.mubr.f32.mxu0 0.0
        %6254 = vmatmul.mubr.f32.gmra.mxu0 %v6178
        %v6255 = vpop.f32.mrf.mxu0
        %v6256 = vadd.f32 0.0, %v6255
        %v6257 = vpop.f32.mrf.mxu0
        %6258 = vmatprep.mubr.f32.mxu0 0.0
        %6259 = vmatmul.mubr.f32.gmra.mxu0 %v6181
        %v6260 = vpop.f32.mrf.mxu0
        %v6261 = vadd.f32 0.0, %v6260
        %v6262 = vpop.f32.mrf.mxu0
        %6263 = vmatprep.mubr.f32.mxu0 0.0
        %6264 = vmatmul.mubr.f32.gmra.mxu0 %v6184
        %v6265 = vpop.f32.mrf.mxu0
        %v6266 = vadd.f32 0.0, %v6265
        %v6267 = vpop.f32.mrf.mxu0
        %6268 = vmatprep.mubr.f32.mxu0 0.0
        %6269 = vmatmul.mubr.f32.gmra.mxu0 %v6187
        %v6270 = vpop.f32.mrf.mxu0
        %v6271 = vadd.f32 0.0, %v6270
        %v6272 = vpop.f32.mrf.mxu0
        %6273 = vdwg.mxu0
        %6274 = vrot.lane.b32.xlu0 %v584, 64
        %v6275 = vpop.permute.xlu0 %6274
        %6276 = vrot.lane.b32.xlu0 %v589, 64
        %v6277 = vpop.permute.xlu0 %6276
        %6278 = vrot.lane.b32.xlu0 %v594, 64
        %v6279 = vpop.permute.xlu0 %6278
        %6280 = vrot.lane.b32.xlu0 %v599, 64
        %v6281 = vpop.permute.xlu0 %6280
        %v6287 = vsel %vm360, %v5831, 0
        %v6290 = vsel %vm360, %v5832, 0
        %v6293 = vsel %vm360, %v5833, 0
        %v6296 = vsel %vm360, %v5834, 0
        %6298 = vmatprep.subr.mxu0 0.0
        %6299 = vmatpush1.msra.mxu0 0.0
        %6300 = vmatprep.subr.mxu0 0.0
        %6301 = vmatpush1.msra.mxu0 0.0
        %6302 = vmatprep.subr.mxu0 0.0
        %6303 = vmatpush1.msra.mxu0 0.0
        %6304 = vmatprep.subr.mxu0 0.0
        %6305 = vmatpush1.msra.mxu0 0.0
        %6306 = vmatprep.subr.mxu0 0.0
        %6307 = vmatpush1.msra.mxu0 0.0
        %6308 = vmatprep.subr.mxu0 0.0
        %6309 = vmatpush1.msra.mxu0 0.0
        %6310 = vmatprep.subr.mxu0 0.0
        %6311 = vmatpush1.msra.mxu0 0.0
        %6312 = vmatprep.subr.mxu0 0.0
        %6313 = vmatpush1.msra.mxu0 0.0
        %6314 = vmatprep.subr.mxu0 0.0
        %6315 = vmatpush1.msra.mxu0 0.0
        %6316 = vmatprep.subr.mxu0 0.0
        %6317 = vmatpush1.msra.mxu0 0.0
        %6318 = vmatprep.subr.mxu0 0.0
        %6319 = vmatpush1.msra.mxu0 0.0
        %6320 = vmatprep.subr.mxu0 0.0
        %6321 = vmatpush1.msra.mxu0 0.0
        %6322 = vmatprep.subr.mxu0 0.0
        %6323 = vmatpush1.msra.mxu0 %v6281
        %6324 = vmatprep.subr.mxu0 0.0
        %6325 = vmatpush1.msra.mxu0 %v6279
        %6326 = vmatprep.subr.mxu0 0.0
        %6327 = vmatpush1.msra.mxu0 %v6277
        %6328 = vmatprep.subr.mxu0 0.0
        %6329 = vmatpush1.msra.mxu0 %v6275
        %6330 = vmatprep.subr.mxu0 0.0
        %6331 = vmatpush2.msra.mxu0 0.0
        %6332 = vmatprep.subr.mxu0 0.0
        %6333 = vmatpush2.msra.mxu0 0.0
        %6334 = vmatprep.subr.mxu0 0.0
        %6335 = vmatpush2.msra.mxu0 0.0
        %6336 = vmatprep.subr.mxu0 0.0
        %6337 = vmatpush2.msra.mxu0 0.0
        %6338 = vmatprep.subr.mxu0 0.0
        %6339 = vmatpush2.msra.mxu0 0.0
        %6340 = vmatprep.subr.mxu0 0.0
        %6341 = vmatpush2.msra.mxu0 0.0
        %6342 = vmatprep.subr.mxu0 0.0
        %6343 = vmatpush2.msra.mxu0 0.0
        %6344 = vmatprep.subr.mxu0 0.0
        %6345 = vmatpush2.msra.mxu0 0.0
        %6346 = vmatprep.subr.mxu0 0.0
        %6347 = vmatpush2.msra.mxu0 0.0
        %6348 = vmatprep.subr.mxu0 0.0
        %6349 = vmatpush2.msra.mxu0 0.0
        %6350 = vmatprep.subr.mxu0 0.0
        %6351 = vmatpush2.msra.mxu0 0.0
        %6352 = vmatprep.subr.mxu0 0.0
        %6353 = vmatpush2.msra.mxu0 0.0
        %6354 = vmatprep.subr.mxu0 0.0
        %6355 = vmatpush2.msra.mxu0 0.0
        %6356 = vmatprep.subr.mxu0 0.0
        %6357 = vmatpush2.msra.mxu0 0.0
        %6358 = vmatprep.subr.mxu0 0.0
        %6359 = vmatpush2.msra.mxu0 0.0
        %6360 = vmatprep.subr.mxu0 0.0
        %6361 = vmatpush2.msra.mxu0 0.0
        %6362 = vmatprep.mubr.f32.mxu0 0.0
        %6363 = vmatmul.mubr.f32.gmra.mxu0 %v6287
        %v6364 = vpop.f32.mrf.mxu0
        %v6365 = vadd.f32 0.0, %v6364
        %v6366 = vpop.f32.mrf.mxu0
        %6367 = vmatprep.mubr.f32.mxu0 0.0
        %6368 = vmatmul.mubr.f32.gmra.mxu0 %v6290
        %v6369 = vpop.f32.mrf.mxu0
        %v6370 = vadd.f32 0.0, %v6369
        %v6371 = vpop.f32.mrf.mxu0
        %6372 = vmatprep.mubr.f32.mxu0 0.0
        %6373 = vmatmul.mubr.f32.gmra.mxu0 %v6293
        %v6374 = vpop.f32.mrf.mxu0
        %v6375 = vadd.f32 0.0, %v6374
        %v6376 = vpop.f32.mrf.mxu0
        %6377 = vmatprep.mubr.f32.mxu0 0.0
        %6378 = vmatmul.mubr.f32.gmra.mxu0 %v6296
        %v6379 = vpop.f32.mrf.mxu0
        %v6380 = vadd.f32 0.0, %v6379
        %v6381 = vpop.f32.mrf.mxu0
        %6382 = vdwg.mxu0
        %6383 = vrot.lane.b32.xlu0 %v604, 64
        %v6384 = vpop.permute.xlu0 %6383
        %6385 = vrot.lane.b32.xlu0 %v609, 64
        %v6386 = vpop.permute.xlu0 %6385
        %6387 = vrot.lane.b32.xlu0 %v614, 64
        %v6388 = vpop.permute.xlu0 %6387
        %6389 = vrot.lane.b32.xlu0 %v619, 64
        %v6390 = vpop.permute.xlu0 %6389
        %v6396 = vsel %vm360, %v5835, 0
        %v6399 = vsel %vm360, %v5836, 0
        %v6402 = vsel %vm360, %v5837, 0
        %v6405 = vsel %vm360, %v5838, 0
        %6407 = vmatprep.subr.mxu0 0.0
        %6408 = vmatpush1.msra.mxu0 0.0
        %6409 = vmatprep.subr.mxu0 0.0
        %6410 = vmatpush1.msra.mxu0 0.0
        %6411 = vmatprep.subr.mxu0 0.0
        %6412 = vmatpush1.msra.mxu0 0.0
        %6413 = vmatprep.subr.mxu0 0.0
        %6414 = vmatpush1.msra.mxu0 0.0
        %6415 = vmatprep.subr.mxu0 0.0
        %6416 = vmatpush1.msra.mxu0 0.0
        %6417 = vmatprep.subr.mxu0 0.0
        %6418 = vmatpush1.msra.mxu0 0.0
        %6419 = vmatprep.subr.mxu0 0.0
        %6420 = vmatpush1.msra.mxu0 0.0
        %6421 = vmatprep.subr.mxu0 0.0
        %6422 = vmatpush1.msra.mxu0 0.0
        %6423 = vmatprep.subr.mxu0 0.0
        %6424 = vmatpush1.msra.mxu0 0.0
        %6425 = vmatprep.subr.mxu0 0.0
        %6426 = vmatpush1.msra.mxu0 0.0
        %6427 = vmatprep.subr.mxu0 0.0
        %6428 = vmatpush1.msra.mxu0 0.0
        %6429 = vmatprep.subr.mxu0 0.0
        %6430 = vmatpush1.msra.mxu0 0.0
        %6431 = vmatprep.subr.mxu0 0.0
        %6432 = vmatpush1.msra.mxu0 %v6390
        %6433 = vmatprep.subr.mxu0 0.0
        %6434 = vmatpush1.msra.mxu0 %v6388
        %6435 = vmatprep.subr.mxu0 0.0
        %6436 = vmatpush1.msra.mxu0 %v6386
        %6437 = vmatprep.subr.mxu0 0.0
        %6438 = vmatpush1.msra.mxu0 %v6384
        %6439 = vmatprep.subr.mxu0 0.0
        %6440 = vmatpush2.msra.mxu0 0.0
        %6441 = vmatprep.subr.mxu0 0.0
        %6442 = vmatpush2.msra.mxu0 0.0
        %6443 = vmatprep.subr.mxu0 0.0
        %6444 = vmatpush2.msra.mxu0 0.0
        %6445 = vmatprep.subr.mxu0 0.0
        %6446 = vmatpush2.msra.mxu0 0.0
        %6447 = vmatprep.subr.mxu0 0.0
        %6448 = vmatpush2.msra.mxu0 0.0
        %6449 = vmatprep.subr.mxu0 0.0
        %6450 = vmatpush2.msra.mxu0 0.0
        %6451 = vmatprep.subr.mxu0 0.0
        %6452 = vmatpush2.msra.mxu0 0.0
        %6453 = vmatprep.subr.mxu0 0.0
        %6454 = vmatpush2.msra.mxu0 0.0
        %6455 = vmatprep.subr.mxu0 0.0
        %6456 = vmatpush2.msra.mxu0 0.0
        %6457 = vmatprep.subr.mxu0 0.0
        %6458 = vmatpush2.msra.mxu0 0.0
        %6459 = vmatprep.subr.mxu0 0.0
        %6460 = vmatpush2.msra.mxu0 0.0
        %6461 = vmatprep.subr.mxu0 0.0
        %6462 = vmatpush2.msra.mxu0 0.0
        %6463 = vmatprep.subr.mxu0 0.0
        %6464 = vmatpush2.msra.mxu0 0.0
        %6465 = vmatprep.subr.mxu0 0.0
        %6466 = vmatpush2.msra.mxu0 0.0
        %6467 = vmatprep.subr.mxu0 0.0
        %6468 = vmatpush2.msra.mxu0 0.0
        %6469 = vmatprep.subr.mxu0 0.0
        %6470 = vmatpush2.msra.mxu0 0.0
        %6471 = vmatprep.mubr.f32.mxu0 0.0
        %6472 = vmatmul.mubr.f32.gmra.mxu0 %v6396
        %v6473 = vpop.f32.mrf.mxu0
        %v6474 = vadd.f32 0.0, %v6473
        %v6475 = vpop.f32.mrf.mxu0
        %6476 = vmatprep.mubr.f32.mxu0 0.0
        %6477 = vmatmul.mubr.f32.gmra.mxu0 %v6399
        %v6478 = vpop.f32.mrf.mxu0
        %v6479 = vadd.f32 0.0, %v6478
        %v6480 = vpop.f32.mrf.mxu0
        %6481 = vmatprep.mubr.f32.mxu0 0.0
        %6482 = vmatmul.mubr.f32.gmra.mxu0 %v6402
        %v6483 = vpop.f32.mrf.mxu0
        %v6484 = vadd.f32 0.0, %v6483
        %v6485 = vpop.f32.mrf.mxu0
        %6486 = vmatprep.mubr.f32.mxu0 0.0
        %6487 = vmatmul.mubr.f32.gmra.mxu0 %v6405
        %v6488 = vpop.f32.mrf.mxu0
        %v6489 = vadd.f32 0.0, %v6488
        %v6490 = vpop.f32.mrf.mxu0
        %6491 = vdwg.mxu0
        %6492 = vrot.lane.b32.xlu0 %v624, 64
        %v6493 = vpop.permute.xlu0 %6492
        %6494 = vrot.lane.b32.xlu0 %v629, 64
        %v6495 = vpop.permute.xlu0 %6494
        %6496 = vrot.lane.b32.xlu0 %v634, 64
        %v6497 = vpop.permute.xlu0 %6496
        %6498 = vrot.lane.b32.xlu0 %v639, 64
        %v6499 = vpop.permute.xlu0 %6498
        %v6505 = vsel %vm360, %v5839, 0
        %v6508 = vsel %vm360, %v5840, 0
        %v6511 = vsel %vm360, %v5841, 0
        %v6514 = vsel %vm360, %v5842, 0
        %6516 = vmatprep.subr.mxu0 0.0
        %6517 = vmatpush1.msra.mxu0 0.0
        %6518 = vmatprep.subr.mxu0 0.0
        %6519 = vmatpush1.msra.mxu0 0.0
        %6520 = vmatprep.subr.mxu0 0.0
        %6521 = vmatpush1.msra.mxu0 0.0
        %6522 = vmatprep.subr.mxu0 0.0
        %6523 = vmatpush1.msra.mxu0 0.0
        %6524 = vmatprep.subr.mxu0 0.0
        %6525 = vmatpush1.msra.mxu0 0.0
        %6526 = vmatprep.subr.mxu0 0.0
        %6527 = vmatpush1.msra.mxu0 0.0
        %6528 = vmatprep.subr.mxu0 0.0
        %6529 = vmatpush1.msra.mxu0 0.0
        %6530 = vmatprep.subr.mxu0 0.0
        %6531 = vmatpush1.msra.mxu0 0.0
        %6532 = vmatprep.subr.mxu0 0.0
        %6533 = vmatpush1.msra.mxu0 0.0
        %6534 = vmatprep.subr.mxu0 0.0
        %6535 = vmatpush1.msra.mxu0 0.0
        %6536 = vmatprep.subr.mxu0 0.0
        %6537 = vmatpush1.msra.mxu0 0.0
        %6538 = vmatprep.subr.mxu0 0.0
        %6539 = vmatpush1.msra.mxu0 0.0
        %6540 = vmatprep.subr.mxu0 0.0
        %6541 = vmatpush1.msra.mxu0 %v6499
        %6542 = vmatprep.subr.mxu0 0.0
        %6543 = vmatpush1.msra.mxu0 %v6497
        %6544 = vmatprep.subr.mxu0 0.0
        %6545 = vmatpush1.msra.mxu0 %v6495
        %6546 = vmatprep.subr.mxu0 0.0
        %6547 = vmatpush1.msra.mxu0 %v6493
        %6548 = vmatprep.subr.mxu0 0.0
        %6549 = vmatpush2.msra.mxu0 0.0
        %6550 = vmatprep.subr.mxu0 0.0
        %6551 = vmatpush2.msra.mxu0 0.0
        %6552 = vmatprep.subr.mxu0 0.0
        %6553 = vmatpush2.msra.mxu0 0.0
        %6554 = vmatprep.subr.mxu0 0.0
        %6555 = vmatpush2.msra.mxu0 0.0
        %6556 = vmatprep.subr.mxu0 0.0
        %6557 = vmatpush2.msra.mxu0 0.0
        %6558 = vmatprep.subr.mxu0 0.0
        %6559 = vmatpush2.msra.mxu0 0.0
        %6560 = vmatprep.subr.mxu0 0.0
        %6561 = vmatpush2.msra.mxu0 0.0
        %6562 = vmatprep.subr.mxu0 0.0
        %6563 = vmatpush2.msra.mxu0 0.0
        %6564 = vmatprep.subr.mxu0 0.0
        %6565 = vmatpush2.msra.mxu0 0.0
        %6566 = vmatprep.subr.mxu0 0.0
        %6567 = vmatpush2.msra.mxu0 0.0
        %6568 = vmatprep.subr.mxu0 0.0
        %6569 = vmatpush2.msra.mxu0 0.0
        %6570 = vmatprep.subr.mxu0 0.0
        %6571 = vmatpush2.msra.mxu0 0.0
        %6572 = vmatprep.subr.mxu0 0.0
        %6573 = vmatpush2.msra.mxu0 0.0
        %6574 = vmatprep.subr.mxu0 0.0
        %6575 = vmatpush2.msra.mxu0 0.0
        %6576 = vmatprep.subr.mxu0 0.0
        %6577 = vmatpush2.msra.mxu0 0.0
        %6578 = vmatprep.subr.mxu0 0.0
        %6579 = vmatpush2.msra.mxu0 0.0
        %6580 = vmatprep.mubr.f32.mxu0 0.0
        %6581 = vmatmul.mubr.f32.gmra.mxu0 %v6505
        %v6582 = vpop.f32.mrf.mxu0
        %v6583 = vadd.f32 0.0, %v6582
        %v6584 = vpop.f32.mrf.mxu0
        %6585 = vmatprep.mubr.f32.mxu0 0.0
        %6586 = vmatmul.mubr.f32.gmra.mxu0 %v6508
        %v6587 = vpop.f32.mrf.mxu0
        %v6588 = vadd.f32 0.0, %v6587
        %v6589 = vpop.f32.mrf.mxu0
        %6590 = vmatprep.mubr.f32.mxu0 0.0
        %6591 = vmatmul.mubr.f32.gmra.mxu0 %v6511
        %v6592 = vpop.f32.mrf.mxu0
        %v6593 = vadd.f32 0.0, %v6592
        %v6594 = vpop.f32.mrf.mxu0
        %6595 = vmatprep.mubr.f32.mxu0 0.0
        %6596 = vmatmul.mubr.f32.gmra.mxu0 %v6514
        %v6597 = vpop.f32.mrf.mxu0
        %v6598 = vadd.f32 0.0, %v6597
        %v6599 = vpop.f32.mrf.mxu0
        %6600 = vdwg.mxu0
        %6601 = vrot.lane.b32.xlu0 %v644, 64
        %v6602 = vpop.permute.xlu0 %6601
        %6603 = vrot.lane.b32.xlu0 %v649, 64
        %v6604 = vpop.permute.xlu0 %6603
        %6605 = vrot.lane.b32.xlu0 %v654, 64
        %v6606 = vpop.permute.xlu0 %6605
        %6607 = vrot.lane.b32.xlu0 %v659, 64
        %v6608 = vpop.permute.xlu0 %6607
        %v6614 = vsel %vm360, %v5843, 0
        %v6617 = vsel %vm360, %v5844, 0
        %v6620 = vsel %vm360, %v5845, 0
        %v6623 = vsel %vm360, %v5846, 0
        %6625 = vmatprep.subr.mxu0 0.0
        %6626 = vmatpush1.msra.mxu0 0.0
        %6627 = vmatprep.subr.mxu0 0.0
        %6628 = vmatpush1.msra.mxu0 0.0
        %6629 = vmatprep.subr.mxu0 0.0
        %6630 = vmatpush1.msra.mxu0 0.0
        %6631 = vmatprep.subr.mxu0 0.0
        %6632 = vmatpush1.msra.mxu0 0.0
        %6633 = vmatprep.subr.mxu0 0.0
        %6634 = vmatpush1.msra.mxu0 0.0
        %6635 = vmatprep.subr.mxu0 0.0
        %6636 = vmatpush1.msra.mxu0 0.0
        %6637 = vmatprep.subr.mxu0 0.0
        %6638 = vmatpush1.msra.mxu0 0.0
        %6639 = vmatprep.subr.mxu0 0.0
        %6640 = vmatpush1.msra.mxu0 0.0
        %6641 = vmatprep.subr.mxu0 0.0
        %6642 = vmatpush1.msra.mxu0 0.0
        %6643 = vmatprep.subr.mxu0 0.0
        %6644 = vmatpush1.msra.mxu0 0.0
        %6645 = vmatprep.subr.mxu0 0.0
        %6646 = vmatpush1.msra.mxu0 0.0
        %6647 = vmatprep.subr.mxu0 0.0
        %6648 = vmatpush1.msra.mxu0 0.0
        %6649 = vmatprep.subr.mxu0 0.0
        %6650 = vmatpush1.msra.mxu0 %v6608
        %6651 = vmatprep.subr.mxu0 0.0
        %6652 = vmatpush1.msra.mxu0 %v6606
        %6653 = vmatprep.subr.mxu0 0.0
        %6654 = vmatpush1.msra.mxu0 %v6604
        %6655 = vmatprep.subr.mxu0 0.0
        %6656 = vmatpush1.msra.mxu0 %v6602
        %6657 = vmatprep.subr.mxu0 0.0
        %6658 = vmatpush2.msra.mxu0 0.0
        %6659 = vmatprep.subr.mxu0 0.0
        %6660 = vmatpush2.msra.mxu0 0.0
        %6661 = vmatprep.subr.mxu0 0.0
        %6662 = vmatpush2.msra.mxu0 0.0
        %6663 = vmatprep.subr.mxu0 0.0
        %6664 = vmatpush2.msra.mxu0 0.0
        %6665 = vmatprep.subr.mxu0 0.0
        %6666 = vmatpush2.msra.mxu0 0.0
        %6667 = vmatprep.subr.mxu0 0.0
        %6668 = vmatpush2.msra.mxu0 0.0
        %6669 = vmatprep.subr.mxu0 0.0
        %6670 = vmatpush2.msra.mxu0 0.0
        %6671 = vmatprep.subr.mxu0 0.0
        %6672 = vmatpush2.msra.mxu0 0.0
        %6673 = vmatprep.subr.mxu0 0.0
        %6674 = vmatpush2.msra.mxu0 0.0
        %6675 = vmatprep.subr.mxu0 0.0
        %6676 = vmatpush2.msra.mxu0 0.0
        %6677 = vmatprep.subr.mxu0 0.0
        %6678 = vmatpush2.msra.mxu0 0.0
        %6679 = vmatprep.subr.mxu0 0.0
        %6680 = vmatpush2.msra.mxu0 0.0
        %6681 = vmatprep.subr.mxu0 0.0
        %6682 = vmatpush2.msra.mxu0 0.0
        %6683 = vmatprep.subr.mxu0 0.0
        %6684 = vmatpush2.msra.mxu0 0.0
        %6685 = vmatprep.subr.mxu0 0.0
        %6686 = vmatpush2.msra.mxu0 0.0
        %6687 = vmatprep.subr.mxu0 0.0
        %6688 = vmatpush2.msra.mxu0 0.0
        %6689 = vmatprep.mubr.f32.mxu0 0.0
        %6690 = vmatmul.mubr.f32.gmra.mxu0 %v6614
        %v6691 = vpop.f32.mrf.mxu0
        %v6692 = vadd.f32 0.0, %v6691
        %v6693 = vpop.f32.mrf.mxu0
        %6694 = vmatprep.mubr.f32.mxu0 0.0
        %6695 = vmatmul.mubr.f32.gmra.mxu0 %v6617
        %v6696 = vpop.f32.mrf.mxu0
        %v6697 = vadd.f32 0.0, %v6696
        %v6698 = vpop.f32.mrf.mxu0
        %6699 = vmatprep.mubr.f32.mxu0 0.0
        %6700 = vmatmul.mubr.f32.gmra.mxu0 %v6620
        %v6701 = vpop.f32.mrf.mxu0
        %v6702 = vadd.f32 0.0, %v6701
        %v6703 = vpop.f32.mrf.mxu0
        %6704 = vmatprep.mubr.f32.mxu0 0.0
        %6705 = vmatmul.mubr.f32.gmra.mxu0 %v6623
        %v6706 = vpop.f32.mrf.mxu0
        %v6707 = vadd.f32 0.0, %v6706
        %v6708 = vpop.f32.mrf.mxu0
        %6709 = vdwg.mxu0
        %6710 = vrot.lane.b32.xlu0 %v664, 64
        %v6711 = vpop.permute.xlu0 %6710
        %6712 = vrot.lane.b32.xlu0 %v669, 64
        %v6713 = vpop.permute.xlu0 %6712
        %6714 = vrot.lane.b32.xlu0 %v674, 64
        %v6715 = vpop.permute.xlu0 %6714
        %6716 = vrot.lane.b32.xlu0 %v679, 64
        %v6717 = vpop.permute.xlu0 %6716
        %v6723 = vsel %vm360, %v5847, 0
        %v6726 = vsel %vm360, %v5848, 0
        %v6729 = vsel %vm360, %v5849, 0
        %v6732 = vsel %vm360, %v5850, 0
        %6734 = vmatprep.subr.mxu0 0.0
        %6735 = vmatpush1.msra.mxu0 0.0
        %6736 = vmatprep.subr.mxu0 0.0
        %6737 = vmatpush1.msra.mxu0 0.0
        %6738 = vmatprep.subr.mxu0 0.0
        %6739 = vmatpush1.msra.mxu0 0.0
        %6740 = vmatprep.subr.mxu0 0.0
        %6741 = vmatpush1.msra.mxu0 0.0
        %6742 = vmatprep.subr.mxu0 0.0
        %6743 = vmatpush1.msra.mxu0 0.0
        %6744 = vmatprep.subr.mxu0 0.0
        %6745 = vmatpush1.msra.mxu0 0.0
        %6746 = vmatprep.subr.mxu0 0.0
        %6747 = vmatpush1.msra.mxu0 0.0
        %6748 = vmatprep.subr.mxu0 0.0
        %6749 = vmatpush1.msra.mxu0 0.0
        %6750 = vmatprep.subr.mxu0 0.0
        %6751 = vmatpush1.msra.mxu0 0.0
        %6752 = vmatprep.subr.mxu0 0.0
        %6753 = vmatpush1.msra.mxu0 0.0
        %6754 = vmatprep.subr.mxu0 0.0
        %6755 = vmatpush1.msra.mxu0 0.0
        %6756 = vmatprep.subr.mxu0 0.0
        %6757 = vmatpush1.msra.mxu0 0.0
        %6758 = vmatprep.subr.mxu0 0.0
        %6759 = vmatpush1.msra.mxu0 %v6717
        %6760 = vmatprep.subr.mxu0 0.0
        %6761 = vmatpush1.msra.mxu0 %v6715
        %6762 = vmatprep.subr.mxu0 0.0
        %6763 = vmatpush1.msra.mxu0 %v6713
        %6764 = vmatprep.subr.mxu0 0.0
        %6765 = vmatpush1.msra.mxu0 %v6711
        %6766 = vmatprep.subr.mxu0 0.0
        %6767 = vmatpush2.msra.mxu0 0.0
        %6768 = vmatprep.subr.mxu0 0.0
        %6769 = vmatpush2.msra.mxu0 0.0
        %6770 = vmatprep.subr.mxu0 0.0
        %6771 = vmatpush2.msra.mxu0 0.0
        %6772 = vmatprep.subr.mxu0 0.0
        %6773 = vmatpush2.msra.mxu0 0.0
        %6774 = vmatprep.subr.mxu0 0.0
        %6775 = vmatpush2.msra.mxu0 0.0
        %6776 = vmatprep.subr.mxu0 0.0
        %6777 = vmatpush2.msra.mxu0 0.0
        %6778 = vmatprep.subr.mxu0 0.0
        %6779 = vmatpush2.msra.mxu0 0.0
        %6780 = vmatprep.subr.mxu0 0.0
        %6781 = vmatpush2.msra.mxu0 0.0
        %6782 = vmatprep.subr.mxu0 0.0
        %6783 = vmatpush2.msra.mxu0 0.0
        %6784 = vmatprep.subr.mxu0 0.0
        %6785 = vmatpush2.msra.mxu0 0.0
        %6786 = vmatprep.subr.mxu0 0.0
        %6787 = vmatpush2.msra.mxu0 0.0
        %6788 = vmatprep.subr.mxu0 0.0
        %6789 = vmatpush2.msra.mxu0 0.0
        %6790 = vmatprep.subr.mxu0 0.0
        %6791 = vmatpush2.msra.mxu0 0.0
        %6792 = vmatprep.subr.mxu0 0.0
        %6793 = vmatpush2.msra.mxu0 0.0
        %6794 = vmatprep.subr.mxu0 0.0
        %6795 = vmatpush2.msra.mxu0 0.0
        %6796 = vmatprep.subr.mxu0 0.0
        %6797 = vmatpush2.msra.mxu0 0.0
        %6798 = vmatprep.mubr.f32.mxu0 0.0
        %6799 = vmatmul.mubr.f32.gmra.mxu0 %v6723
        %v6800 = vpop.f32.mrf.mxu0
        %v6801 = vadd.f32 0.0, %v6800
        %v6802 = vpop.f32.mrf.mxu0
        %6803 = vmatprep.mubr.f32.mxu0 0.0
        %6804 = vmatmul.mubr.f32.gmra.mxu0 %v6726
        %v6805 = vpop.f32.mrf.mxu0
        %v6806 = vadd.f32 0.0, %v6805
        %v6807 = vpop.f32.mrf.mxu0
        %6808 = vmatprep.mubr.f32.mxu0 0.0
        %6809 = vmatmul.mubr.f32.gmra.mxu0 %v6729
        %v6810 = vpop.f32.mrf.mxu0
        %v6811 = vadd.f32 0.0, %v6810
        %v6812 = vpop.f32.mrf.mxu0
        %6813 = vmatprep.mubr.f32.mxu0 0.0
        %6814 = vmatmul.mubr.f32.gmra.mxu0 %v6732
        %v6815 = vpop.f32.mrf.mxu0
        %v6816 = vadd.f32 0.0, %v6815
        %v6817 = vpop.f32.mrf.mxu0
        %6818 = vdwg.mxu0
        %6819 = vrot.lane.b32.xlu0 %v715, 64
        %v6820 = vpop.permute.xlu0 %6819
        %6821 = vrot.lane.b32.xlu0 %v717, 64
        %v6822 = vpop.permute.xlu0 %6821
        %6823 = vrot.lane.b32.xlu0 %v719, 64
        %v6824 = vpop.permute.xlu0 %6823
        %6825 = vrot.lane.b32.xlu0 %v721, 64
        %v6826 = vpop.permute.xlu0 %6825
        %v6832 = vsel %vm360, %v5851, 0
        %v6835 = vsel %vm360, %v5852, 0
        %v6838 = vsel %vm360, %v5853, 0
        %v6841 = vsel %vm360, %v5854, 0
        %6843 = vmatprep.subr.mxu0 0.0
        %6844 = vmatpush1.msra.mxu0 0.0
        %6845 = vmatprep.subr.mxu0 0.0
        %6846 = vmatpush1.msra.mxu0 0.0
        %6847 = vmatprep.subr.mxu0 0.0
        %6848 = vmatpush1.msra.mxu0 0.0
        %6849 = vmatprep.subr.mxu0 0.0
        %6850 = vmatpush1.msra.mxu0 0.0
        %6851 = vmatprep.subr.mxu0 0.0
        %6852 = vmatpush1.msra.mxu0 0.0
        %6853 = vmatprep.subr.mxu0 0.0
        %6854 = vmatpush1.msra.mxu0 0.0
        %6855 = vmatprep.subr.mxu0 0.0
        %6856 = vmatpush1.msra.mxu0 0.0
        %6857 = vmatprep.subr.mxu0 0.0
        %6858 = vmatpush1.msra.mxu0 0.0
        %6859 = vmatprep.subr.mxu0 0.0
        %6860 = vmatpush1.msra.mxu0 0.0
        %6861 = vmatprep.subr.mxu0 0.0
        %6862 = vmatpush1.msra.mxu0 0.0
        %6863 = vmatprep.subr.mxu0 0.0
        %6864 = vmatpush1.msra.mxu0 0.0
        %6865 = vmatprep.subr.mxu0 0.0
        %6866 = vmatpush1.msra.mxu0 0.0
        %6867 = vmatprep.subr.mxu0 0.0
        %6868 = vmatpush1.msra.mxu0 %v6826
        %6869 = vmatprep.subr.mxu0 0.0
        %6870 = vmatpush1.msra.mxu0 %v6824
        %6871 = vmatprep.subr.mxu0 0.0
        %6872 = vmatpush1.msra.mxu0 %v6822
        %6873 = vmatprep.subr.mxu0 0.0
        %6874 = vmatpush1.msra.mxu0 %v6820
        %6875 = vmatprep.subr.mxu0 0.0
        %6876 = vmatpush2.msra.mxu0 0.0
        %6877 = vmatprep.subr.mxu0 0.0
        %6878 = vmatpush2.msra.mxu0 0.0
        %6879 = vmatprep.subr.mxu0 0.0
        %6880 = vmatpush2.msra.mxu0 0.0
        %6881 = vmatprep.subr.mxu0 0.0
        %6882 = vmatpush2.msra.mxu0 0.0
        %6883 = vmatprep.subr.mxu0 0.0
        %6884 = vmatpush2.msra.mxu0 0.0
        %6885 = vmatprep.subr.mxu0 0.0
        %6886 = vmatpush2.msra.mxu0 0.0
        %6887 = vmatprep.subr.mxu0 0.0
        %6888 = vmatpush2.msra.mxu0 0.0
        %6889 = vmatprep.subr.mxu0 0.0
        %6890 = vmatpush2.msra.mxu0 0.0
        %6891 = vmatprep.subr.mxu0 0.0
        %6892 = vmatpush2.msra.mxu0 0.0
        %6893 = vmatprep.subr.mxu0 0.0
        %6894 = vmatpush2.msra.mxu0 0.0
        %6895 = vmatprep.subr.mxu0 0.0
        %6896 = vmatpush2.msra.mxu0 0.0
        %6897 = vmatprep.subr.mxu0 0.0
        %6898 = vmatpush2.msra.mxu0 0.0
        %6899 = vmatprep.subr.mxu0 0.0
        %6900 = vmatpush2.msra.mxu0 0.0
        %6901 = vmatprep.subr.mxu0 0.0
        %6902 = vmatpush2.msra.mxu0 0.0
        %6903 = vmatprep.subr.mxu0 0.0
        %6904 = vmatpush2.msra.mxu0 0.0
        %6905 = vmatprep.subr.mxu0 0.0
        %6906 = vmatpush2.msra.mxu0 0.0
        %6907 = vmatprep.mubr.f32.mxu0 0.0
        %6908 = vmatmul.mubr.f32.gmra.mxu0 %v6832
        %v6909 = vpop.f32.mrf.mxu0
        %v6910 = vadd.f32 0.0, %v6909
        %v6911 = vpop.f32.mrf.mxu0
        %6912 = vmatprep.mubr.f32.mxu0 0.0
        %6913 = vmatmul.mubr.f32.gmra.mxu0 %v6835
        %v6914 = vpop.f32.mrf.mxu0
        %v6915 = vadd.f32 0.0, %v6914
        %v6916 = vpop.f32.mrf.mxu0
        %6917 = vmatprep.mubr.f32.mxu0 0.0
        %6918 = vmatmul.mubr.f32.gmra.mxu0 %v6838
        %v6919 = vpop.f32.mrf.mxu0
        %v6920 = vadd.f32 0.0, %v6919
        %v6921 = vpop.f32.mrf.mxu0
        %6922 = vmatprep.mubr.f32.mxu0 0.0
        %6923 = vmatmul.mubr.f32.gmra.mxu0 %v6841
        %v6924 = vpop.f32.mrf.mxu0
        %v6925 = vadd.f32 0.0, %v6924
        %v6926 = vpop.f32.mrf.mxu0
        %6927 = vdwg.mxu0
        %6928 = vrot.lane.b32.xlu0 %v723, 64
        %v6929 = vpop.permute.xlu0 %6928
        %6930 = vrot.lane.b32.xlu0 %v725, 64
        %v6931 = vpop.permute.xlu0 %6930
        %6932 = vrot.lane.b32.xlu0 %v727, 64
        %v6933 = vpop.permute.xlu0 %6932
        %6934 = vrot.lane.b32.xlu0 %v729, 64
        %v6935 = vpop.permute.xlu0 %6934
        %v6941 = vsel %vm360, %v5855, 0
        %v6944 = vsel %vm360, %v5856, 0
        %v6947 = vsel %vm360, %v5857, 0
        %v6950 = vsel %vm360, %v5858, 0
        %6952 = vmatprep.subr.mxu0 0.0
        %6953 = vmatpush1.msra.mxu0 0.0
        %6954 = vmatprep.subr.mxu0 0.0
        %6955 = vmatpush1.msra.mxu0 0.0
        %6956 = vmatprep.subr.mxu0 0.0
        %6957 = vmatpush1.msra.mxu0 0.0
        %6958 = vmatprep.subr.mxu0 0.0
        %6959 = vmatpush1.msra.mxu0 0.0
        %6960 = vmatprep.subr.mxu0 0.0
        %6961 = vmatpush1.msra.mxu0 0.0
        %6962 = vmatprep.subr.mxu0 0.0
        %6963 = vmatpush1.msra.mxu0 0.0
        %6964 = vmatprep.subr.mxu0 0.0
        %6965 = vmatpush1.msra.mxu0 0.0
        %6966 = vmatprep.subr.mxu0 0.0
        %6967 = vmatpush1.msra.mxu0 0.0
        %6968 = vmatprep.subr.mxu0 0.0
        %6969 = vmatpush1.msra.mxu0 0.0
        %6970 = vmatprep.subr.mxu0 0.0
        %6971 = vmatpush1.msra.mxu0 0.0
        %6972 = vmatprep.subr.mxu0 0.0
        %6973 = vmatpush1.msra.mxu0 0.0
        %6974 = vmatprep.subr.mxu0 0.0
        %6975 = vmatpush1.msra.mxu0 0.0
        %6976 = vmatprep.subr.mxu0 0.0
        %6977 = vmatpush1.msra.mxu0 %v6935
        %6978 = vmatprep.subr.mxu0 0.0
        %6979 = vmatpush1.msra.mxu0 %v6933
        %6980 = vmatprep.subr.mxu0 0.0
        %6981 = vmatpush1.msra.mxu0 %v6931
        %6982 = vmatprep.subr.mxu0 0.0
        %6983 = vmatpush1.msra.mxu0 %v6929
        %6984 = vmatprep.subr.mxu0 0.0
        %6985 = vmatpush2.msra.mxu0 0.0
        %6986 = vmatprep.subr.mxu0 0.0
        %6987 = vmatpush2.msra.mxu0 0.0
        %6988 = vmatprep.subr.mxu0 0.0
        %6989 = vmatpush2.msra.mxu0 0.0
        %6990 = vmatprep.subr.mxu0 0.0
        %6991 = vmatpush2.msra.mxu0 0.0
        %6992 = vmatprep.subr.mxu0 0.0
        %6993 = vmatpush2.msra.mxu0 0.0
        %6994 = vmatprep.subr.mxu0 0.0
        %6995 = vmatpush2.msra.mxu0 0.0
        %6996 = vmatprep.subr.mxu0 0.0
        %6997 = vmatpush2.msra.mxu0 0.0
        %6998 = vmatprep.subr.mxu0 0.0
        %6999 = vmatpush2.msra.mxu0 0.0
        %7000 = vmatprep.subr.mxu0 0.0
        %7001 = vmatpush2.msra.mxu0 0.0
        %7002 = vmatprep.subr.mxu0 0.0
        %7003 = vmatpush2.msra.mxu0 0.0
        %7004 = vmatprep.subr.mxu0 0.0
        %7005 = vmatpush2.msra.mxu0 0.0
        %7006 = vmatprep.subr.mxu0 0.0
        %7007 = vmatpush2.msra.mxu0 0.0
        %7008 = vmatprep.subr.mxu0 0.0
        %7009 = vmatpush2.msra.mxu0 0.0
        %7010 = vmatprep.subr.mxu0 0.0
        %7011 = vmatpush2.msra.mxu0 0.0
        %7012 = vmatprep.subr.mxu0 0.0
        %7013 = vmatpush2.msra.mxu0 0.0
        %7014 = vmatprep.subr.mxu0 0.0
        %7015 = vmatpush2.msra.mxu0 0.0
        %7016 = vmatprep.mubr.f32.mxu0 0.0
        %7017 = vmatmul.mubr.f32.gmra.mxu0 %v6941
        %v7018 = vpop.f32.mrf.mxu0
        %v7019 = vadd.f32 0.0, %v7018
        %v7020 = vpop.f32.mrf.mxu0
        %7021 = vmatprep.mubr.f32.mxu0 0.0
        %7022 = vmatmul.mubr.f32.gmra.mxu0 %v6944
        %v7023 = vpop.f32.mrf.mxu0
        %v7024 = vadd.f32 0.0, %v7023
        %v7025 = vpop.f32.mrf.mxu0
        %7026 = vmatprep.mubr.f32.mxu0 0.0
        %7027 = vmatmul.mubr.f32.gmra.mxu0 %v6947
        %v7028 = vpop.f32.mrf.mxu0
        %v7029 = vadd.f32 0.0, %v7028
        %v7030 = vpop.f32.mrf.mxu0
        %7031 = vmatprep.mubr.f32.mxu0 0.0
        %7032 = vmatmul.mubr.f32.gmra.mxu0 %v6950
        %v7033 = vpop.f32.mrf.mxu0
        %v7034 = vadd.f32 0.0, %v7033
        %v7035 = vpop.f32.mrf.mxu0
        %7036 = vdwg.mxu0
        %7037 = vrot.lane.b32.xlu0 %v731, 64
        %v7038 = vpop.permute.xlu0 %7037
        %7039 = vrot.lane.b32.xlu0 %v733, 64
        %v7040 = vpop.permute.xlu0 %7039
        %7041 = vrot.lane.b32.xlu0 %v735, 64
        %v7042 = vpop.permute.xlu0 %7041
        %7043 = vrot.lane.b32.xlu0 %v737, 64
        %v7044 = vpop.permute.xlu0 %7043
        %v7050 = vsel %vm360, %v5859, 0
        %v7053 = vsel %vm360, %v5860, 0
        %v7056 = vsel %vm360, %v5861, 0
        %v7059 = vsel %vm360, %v5862, 0
        %7061 = vmatprep.subr.mxu0 0.0
        %7062 = vmatpush1.msra.mxu0 0.0
        %7063 = vmatprep.subr.mxu0 0.0
        %7064 = vmatpush1.msra.mxu0 0.0
        %7065 = vmatprep.subr.mxu0 0.0
        %7066 = vmatpush1.msra.mxu0 0.0
        %7067 = vmatprep.subr.mxu0 0.0
        %7068 = vmatpush1.msra.mxu0 0.0
        %7069 = vmatprep.subr.mxu0 0.0
        %7070 = vmatpush1.msra.mxu0 0.0
        %7071 = vmatprep.subr.mxu0 0.0
        %7072 = vmatpush1.msra.mxu0 0.0
        %7073 = vmatprep.subr.mxu0 0.0
        %7074 = vmatpush1.msra.mxu0 0.0
        %7075 = vmatprep.subr.mxu0 0.0
        %7076 = vmatpush1.msra.mxu0 0.0
        %7077 = vmatprep.subr.mxu0 0.0
        %7078 = vmatpush1.msra.mxu0 0.0
        %7079 = vmatprep.subr.mxu0 0.0
        %7080 = vmatpush1.msra.mxu0 0.0
        %7081 = vmatprep.subr.mxu0 0.0
        %7082 = vmatpush1.msra.mxu0 0.0
        %7083 = vmatprep.subr.mxu0 0.0
        %7084 = vmatpush1.msra.mxu0 0.0
        %7085 = vmatprep.subr.mxu0 0.0
        %7086 = vmatpush1.msra.mxu0 %v7044
        %7087 = vmatprep.subr.mxu0 0.0
        %7088 = vmatpush1.msra.mxu0 %v7042
        %7089 = vmatprep.subr.mxu0 0.0
        %7090 = vmatpush1.msra.mxu0 %v7040
        %7091 = vmatprep.subr.mxu0 0.0
        %7092 = vmatpush1.msra.mxu0 %v7038
        %7093 = vmatprep.subr.mxu0 0.0
        %7094 = vmatpush2.msra.mxu0 0.0
        %7095 = vmatprep.subr.mxu0 0.0
        %7096 = vmatpush2.msra.mxu0 0.0
        %7097 = vmatprep.subr.mxu0 0.0
        %7098 = vmatpush2.msra.mxu0 0.0
        %7099 = vmatprep.subr.mxu0 0.0
        %7100 = vmatpush2.msra.mxu0 0.0
        %7101 = vmatprep.subr.mxu0 0.0
        %7102 = vmatpush2.msra.mxu0 0.0
        %7103 = vmatprep.subr.mxu0 0.0
        %7104 = vmatpush2.msra.mxu0 0.0
        %7105 = vmatprep.subr.mxu0 0.0
        %7106 = vmatpush2.msra.mxu0 0.0
        %7107 = vmatprep.subr.mxu0 0.0
        %7108 = vmatpush2.msra.mxu0 0.0
        %7109 = vmatprep.subr.mxu0 0.0
        %7110 = vmatpush2.msra.mxu0 0.0
        %7111 = vmatprep.subr.mxu0 0.0
        %7112 = vmatpush2.msra.mxu0 0.0
        %7113 = vmatprep.subr.mxu0 0.0
        %7114 = vmatpush2.msra.mxu0 0.0
        %7115 = vmatprep.subr.mxu0 0.0
        %7116 = vmatpush2.msra.mxu0 0.0
        %7117 = vmatprep.subr.mxu0 0.0
        %7118 = vmatpush2.msra.mxu0 0.0
        %7119 = vmatprep.subr.mxu0 0.0
        %7120 = vmatpush2.msra.mxu0 0.0
        %7121 = vmatprep.subr.mxu0 0.0
        %7122 = vmatpush2.msra.mxu0 0.0
        %7123 = vmatprep.subr.mxu0 0.0
        %7124 = vmatpush2.msra.mxu0 0.0
        %7125 = vmatprep.mubr.f32.mxu0 0.0
        %7126 = vmatmul.mubr.f32.gmra.mxu0 %v7050
        %v7127 = vpop.f32.mrf.mxu0
        %v7128 = vadd.f32 0.0, %v7127
        %v7129 = vpop.f32.mrf.mxu0
        %7130 = vmatprep.mubr.f32.mxu0 0.0
        %7131 = vmatmul.mubr.f32.gmra.mxu0 %v7053
        %v7132 = vpop.f32.mrf.mxu0
        %v7133 = vadd.f32 0.0, %v7132
        %v7134 = vpop.f32.mrf.mxu0
        %7135 = vmatprep.mubr.f32.mxu0 0.0
        %7136 = vmatmul.mubr.f32.gmra.mxu0 %v7056
        %v7137 = vpop.f32.mrf.mxu0
        %v7138 = vadd.f32 0.0, %v7137
        %v7139 = vpop.f32.mrf.mxu0
        %7140 = vmatprep.mubr.f32.mxu0 0.0
        %7141 = vmatmul.mubr.f32.gmra.mxu0 %v7059
        %v7142 = vpop.f32.mrf.mxu0
        %v7143 = vadd.f32 0.0, %v7142
        %v7144 = vpop.f32.mrf.mxu0
        %7145 = vdwg.mxu0
        %7146 = vrot.lane.b32.xlu0 %v739, 64
        %v7147 = vpop.permute.xlu0 %7146
        %7148 = vrot.lane.b32.xlu0 %v741, 64
        %v7149 = vpop.permute.xlu0 %7148
        %7150 = vrot.lane.b32.xlu0 %v743, 64
        %v7151 = vpop.permute.xlu0 %7150
        %7152 = vrot.lane.b32.xlu0 %v745, 64
        %v7153 = vpop.permute.xlu0 %7152
        %v7159 = vsel %vm360, %v5863, 0
        %v7162 = vsel %vm360, %v5864, 0
        %v7165 = vsel %vm360, %v5865, 0
        %v7168 = vsel %vm360, %v5866, 0
        %7170 = vmatprep.subr.mxu0 0.0
        %7171 = vmatpush1.msra.mxu0 0.0
        %7172 = vmatprep.subr.mxu0 0.0
        %7173 = vmatpush1.msra.mxu0 0.0
        %7174 = vmatprep.subr.mxu0 0.0
        %7175 = vmatpush1.msra.mxu0 0.0
        %7176 = vmatprep.subr.mxu0 0.0
        %7177 = vmatpush1.msra.mxu0 0.0
        %7178 = vmatprep.subr.mxu0 0.0
        %7179 = vmatpush1.msra.mxu0 0.0
        %7180 = vmatprep.subr.mxu0 0.0
        %7181 = vmatpush1.msra.mxu0 0.0
        %7182 = vmatprep.subr.mxu0 0.0
        %7183 = vmatpush1.msra.mxu0 0.0
        %7184 = vmatprep.subr.mxu0 0.0
        %7185 = vmatpush1.msra.mxu0 0.0
        %7186 = vmatprep.subr.mxu0 0.0
        %7187 = vmatpush1.msra.mxu0 0.0
        %7188 = vmatprep.subr.mxu0 0.0
        %7189 = vmatpush1.msra.mxu0 0.0
        %7190 = vmatprep.subr.mxu0 0.0
        %7191 = vmatpush1.msra.mxu0 0.0
        %7192 = vmatprep.subr.mxu0 0.0
        %7193 = vmatpush1.msra.mxu0 0.0
        %7194 = vmatprep.subr.mxu0 0.0
        %7195 = vmatpush1.msra.mxu0 %v7153
        %7196 = vmatprep.subr.mxu0 0.0
        %7197 = vmatpush1.msra.mxu0 %v7151
        %7198 = vmatprep.subr.mxu0 0.0
        %7199 = vmatpush1.msra.mxu0 %v7149
        %7200 = vmatprep.subr.mxu0 0.0
        %7201 = vmatpush1.msra.mxu0 %v7147
        %7202 = vmatprep.subr.mxu0 0.0
        %7203 = vmatpush2.msra.mxu0 0.0
        %7204 = vmatprep.subr.mxu0 0.0
        %7205 = vmatpush2.msra.mxu0 0.0
        %7206 = vmatprep.subr.mxu0 0.0
        %7207 = vmatpush2.msra.mxu0 0.0
        %7208 = vmatprep.subr.mxu0 0.0
        %7209 = vmatpush2.msra.mxu0 0.0
        %7210 = vmatprep.subr.mxu0 0.0
        %7211 = vmatpush2.msra.mxu0 0.0
        %7212 = vmatprep.subr.mxu0 0.0
        %7213 = vmatpush2.msra.mxu0 0.0
        %7214 = vmatprep.subr.mxu0 0.0
        %7215 = vmatpush2.msra.mxu0 0.0
        %7216 = vmatprep.subr.mxu0 0.0
        %7217 = vmatpush2.msra.mxu0 0.0
        %7218 = vmatprep.subr.mxu0 0.0
        %7219 = vmatpush2.msra.mxu0 0.0
        %7220 = vmatprep.subr.mxu0 0.0
        %7221 = vmatpush2.msra.mxu0 0.0
        %7222 = vmatprep.subr.mxu0 0.0
        %7223 = vmatpush2.msra.mxu0 0.0
        %7224 = vmatprep.subr.mxu0 0.0
        %7225 = vmatpush2.msra.mxu0 0.0
        %7226 = vmatprep.subr.mxu0 0.0
        %7227 = vmatpush2.msra.mxu0 0.0
        %7228 = vmatprep.subr.mxu0 0.0
        %7229 = vmatpush2.msra.mxu0 0.0
        %7230 = vmatprep.subr.mxu0 0.0
        %7231 = vmatpush2.msra.mxu0 0.0
        %7232 = vmatprep.subr.mxu0 0.0
        %7233 = vmatpush2.msra.mxu0 0.0
        %7234 = vmatprep.mubr.f32.mxu0 0.0
        %7235 = vmatmul.mubr.f32.gmra.mxu0 %v7159
        %v7236 = vpop.f32.mrf.mxu0
        %v7237 = vadd.f32 0.0, %v7236
        %v7238 = vpop.f32.mrf.mxu0
        %7239 = vmatprep.mubr.f32.mxu0 0.0
        %7240 = vmatmul.mubr.f32.gmra.mxu0 %v7162
        %v7241 = vpop.f32.mrf.mxu0
        %v7242 = vadd.f32 0.0, %v7241
        %v7243 = vpop.f32.mrf.mxu0
        %7244 = vmatprep.mubr.f32.mxu0 0.0
        %7245 = vmatmul.mubr.f32.gmra.mxu0 %v7165
        %v7246 = vpop.f32.mrf.mxu0
        %v7247 = vadd.f32 0.0, %v7246
        %v7248 = vpop.f32.mrf.mxu0
        %7249 = vmatprep.mubr.f32.mxu0 0.0
        %7250 = vmatmul.mubr.f32.gmra.mxu0 %v7168
        %v7251 = vpop.f32.mrf.mxu0
        %v7252 = vadd.f32 0.0, %v7251
        %v7253 = vpop.f32.mrf.mxu0
        %7254 = vdwg.mxu0
        %7255 = vrot.lane.b32.xlu0 %v747, 64
        %v7256 = vpop.permute.xlu0 %7255
        %7257 = vrot.lane.b32.xlu0 %v749, 64
        %v7258 = vpop.permute.xlu0 %7257
        %7259 = vrot.lane.b32.xlu0 %v751, 64
        %v7260 = vpop.permute.xlu0 %7259
        %7261 = vrot.lane.b32.xlu0 %v753, 64
        %v7262 = vpop.permute.xlu0 %7261
        %v7268 = vsel %vm360, %v5867, 0
        %v7271 = vsel %vm360, %v5868, 0
        %v7274 = vsel %vm360, %v5869, 0
        %v7277 = vsel %vm360, %v5870, 0
        %7279 = vmatprep.subr.mxu0 0.0
        %7280 = vmatpush1.msra.mxu0 0.0
        %7281 = vmatprep.subr.mxu0 0.0
        %7282 = vmatpush1.msra.mxu0 0.0
        %7283 = vmatprep.subr.mxu0 0.0
        %7284 = vmatpush1.msra.mxu0 0.0
        %7285 = vmatprep.subr.mxu0 0.0
        %7286 = vmatpush1.msra.mxu0 0.0
        %7287 = vmatprep.subr.mxu0 0.0
        %7288 = vmatpush1.msra.mxu0 0.0
        %7289 = vmatprep.subr.mxu0 0.0
        %7290 = vmatpush1.msra.mxu0 0.0
        %7291 = vmatprep.subr.mxu0 0.0
        %7292 = vmatpush1.msra.mxu0 0.0
        %7293 = vmatprep.subr.mxu0 0.0
        %7294 = vmatpush1.msra.mxu0 0.0
        %7295 = vmatprep.subr.mxu0 0.0
        %7296 = vmatpush1.msra.mxu0 0.0
        %7297 = vmatprep.subr.mxu0 0.0
        %7298 = vmatpush1.msra.mxu0 0.0
        %7299 = vmatprep.subr.mxu0 0.0
        %7300 = vmatpush1.msra.mxu0 0.0
        %7301 = vmatprep.subr.mxu0 0.0
        %7302 = vmatpush1.msra.mxu0 0.0
        %7303 = vmatprep.subr.mxu0 0.0
        %7304 = vmatpush1.msra.mxu0 %v7262
        %7305 = vmatprep.subr.mxu0 0.0
        %7306 = vmatpush1.msra.mxu0 %v7260
        %7307 = vmatprep.subr.mxu0 0.0
        %7308 = vmatpush1.msra.mxu0 %v7258
        %7309 = vmatprep.subr.mxu0 0.0
        %7310 = vmatpush1.msra.mxu0 %v7256
        %7311 = vmatprep.subr.mxu0 0.0
        %7312 = vmatpush2.msra.mxu0 0.0
        %7313 = vmatprep.subr.mxu0 0.0
        %7314 = vmatpush2.msra.mxu0 0.0
        %7315 = vmatprep.subr.mxu0 0.0
        %7316 = vmatpush2.msra.mxu0 0.0
        %7317 = vmatprep.subr.mxu0 0.0
        %7318 = vmatpush2.msra.mxu0 0.0
        %7319 = vmatprep.subr.mxu0 0.0
        %7320 = vmatpush2.msra.mxu0 0.0
        %7321 = vmatprep.subr.mxu0 0.0
        %7322 = vmatpush2.msra.mxu0 0.0
        %7323 = vmatprep.subr.mxu0 0.0
        %7324 = vmatpush2.msra.mxu0 0.0
        %7325 = vmatprep.subr.mxu0 0.0
        %7326 = vmatpush2.msra.mxu0 0.0
        %7327 = vmatprep.subr.mxu0 0.0
        %7328 = vmatpush2.msra.mxu0 0.0
        %7329 = vmatprep.subr.mxu0 0.0
        %7330 = vmatpush2.msra.mxu0 0.0
        %7331 = vmatprep.subr.mxu0 0.0
        %7332 = vmatpush2.msra.mxu0 0.0
        %7333 = vmatprep.subr.mxu0 0.0
        %7334 = vmatpush2.msra.mxu0 0.0
        %7335 = vmatprep.subr.mxu0 0.0
        %7336 = vmatpush2.msra.mxu0 0.0
        %7337 = vmatprep.subr.mxu0 0.0
        %7338 = vmatpush2.msra.mxu0 0.0
        %7339 = vmatprep.subr.mxu0 0.0
        %7340 = vmatpush2.msra.mxu0 0.0
        %7341 = vmatprep.subr.mxu0 0.0
        %7342 = vmatpush2.msra.mxu0 0.0
        %7343 = vmatprep.mubr.f32.mxu0 0.0
        %7344 = vmatmul.mubr.f32.gmra.mxu0 %v7268
        %v7345 = vpop.f32.mrf.mxu0
        %v7346 = vadd.f32 0.0, %v7345
        %v7347 = vpop.f32.mrf.mxu0
        %7348 = vmatprep.mubr.f32.mxu0 0.0
        %7349 = vmatmul.mubr.f32.gmra.mxu0 %v7271
        %v7350 = vpop.f32.mrf.mxu0
        %v7351 = vadd.f32 0.0, %v7350
        %v7352 = vpop.f32.mrf.mxu0
        %7353 = vmatprep.mubr.f32.mxu0 0.0
        %7354 = vmatmul.mubr.f32.gmra.mxu0 %v7274
        %v7355 = vpop.f32.mrf.mxu0
        %v7356 = vadd.f32 0.0, %v7355
        %v7357 = vpop.f32.mrf.mxu0
        %7358 = vmatprep.mubr.f32.mxu0 0.0
        %7359 = vmatmul.mubr.f32.gmra.mxu0 %v7277
        %v7360 = vpop.f32.mrf.mxu0
        %v7361 = vadd.f32 0.0, %v7360
        %v7362 = vpop.f32.mrf.mxu0
        %7363 = vdwg.mxu0
        %7364 = vrot.lane.b32.xlu0 %v755, 64
        %v7365 = vpop.permute.xlu0 %7364
        %7366 = vrot.lane.b32.xlu0 %v757, 64
        %v7367 = vpop.permute.xlu0 %7366
        %7368 = vrot.lane.b32.xlu0 %v759, 64
        %v7369 = vpop.permute.xlu0 %7368
        %7370 = vrot.lane.b32.xlu0 %v761, 64
        %v7371 = vpop.permute.xlu0 %7370
        %v7377 = vsel %vm360, %v5871, 0
        %v7380 = vsel %vm360, %v5872, 0
        %v7383 = vsel %vm360, %v5873, 0
        %v7386 = vsel %vm360, %v5874, 0
        %7388 = vmatprep.subr.mxu0 0.0
        %7389 = vmatpush1.msra.mxu0 0.0
        %7390 = vmatprep.subr.mxu0 0.0
        %7391 = vmatpush1.msra.mxu0 0.0
        %7392 = vmatprep.subr.mxu0 0.0
        %7393 = vmatpush1.msra.mxu0 0.0
        %7394 = vmatprep.subr.mxu0 0.0
        %7395 = vmatpush1.msra.mxu0 0.0
        %7396 = vmatprep.subr.mxu0 0.0
        %7397 = vmatpush1.msra.mxu0 0.0
        %7398 = vmatprep.subr.mxu0 0.0
        %7399 = vmatpush1.msra.mxu0 0.0
        %7400 = vmatprep.subr.mxu0 0.0
        %7401 = vmatpush1.msra.mxu0 0.0
        %7402 = vmatprep.subr.mxu0 0.0
        %7403 = vmatpush1.msra.mxu0 0.0
        %7404 = vmatprep.subr.mxu0 0.0
        %7405 = vmatpush1.msra.mxu0 0.0
        %7406 = vmatprep.subr.mxu0 0.0
        %7407 = vmatpush1.msra.mxu0 0.0
        %7408 = vmatprep.subr.mxu0 0.0
        %7409 = vmatpush1.msra.mxu0 0.0
        %7410 = vmatprep.subr.mxu0 0.0
        %7411 = vmatpush1.msra.mxu0 0.0
        %7412 = vmatprep.subr.mxu0 0.0
        %7413 = vmatpush1.msra.mxu0 %v7371
        %7414 = vmatprep.subr.mxu0 0.0
        %7415 = vmatpush1.msra.mxu0 %v7369
        %7416 = vmatprep.subr.mxu0 0.0
        %7417 = vmatpush1.msra.mxu0 %v7367
        %7418 = vmatprep.subr.mxu0 0.0
        %7419 = vmatpush1.msra.mxu0 %v7365
        %7420 = vmatprep.subr.mxu0 0.0
        %7421 = vmatpush2.msra.mxu0 0.0
        %7422 = vmatprep.subr.mxu0 0.0
        %7423 = vmatpush2.msra.mxu0 0.0
        %7424 = vmatprep.subr.mxu0 0.0
        %7425 = vmatpush2.msra.mxu0 0.0
        %7426 = vmatprep.subr.mxu0 0.0
        %7427 = vmatpush2.msra.mxu0 0.0
        %7428 = vmatprep.subr.mxu0 0.0
        %7429 = vmatpush2.msra.mxu0 0.0
        %7430 = vmatprep.subr.mxu0 0.0
        %7431 = vmatpush2.msra.mxu0 0.0
        %7432 = vmatprep.subr.mxu0 0.0
        %7433 = vmatpush2.msra.mxu0 0.0
        %7434 = vmatprep.subr.mxu0 0.0
        %7435 = vmatpush2.msra.mxu0 0.0
        %7436 = vmatprep.subr.mxu0 0.0
        %7437 = vmatpush2.msra.mxu0 0.0
        %7438 = vmatprep.subr.mxu0 0.0
        %7439 = vmatpush2.msra.mxu0 0.0
        %7440 = vmatprep.subr.mxu0 0.0
        %7441 = vmatpush2.msra.mxu0 0.0
        %7442 = vmatprep.subr.mxu0 0.0
        %7443 = vmatpush2.msra.mxu0 0.0
        %7444 = vmatprep.subr.mxu0 0.0
        %7445 = vmatpush2.msra.mxu0 0.0
        %7446 = vmatprep.subr.mxu0 0.0
        %7447 = vmatpush2.msra.mxu0 0.0
        %7448 = vmatprep.subr.mxu0 0.0
        %7449 = vmatpush2.msra.mxu0 0.0
        %7450 = vmatprep.subr.mxu0 0.0
        %7451 = vmatpush2.msra.mxu0 0.0
        %7452 = vmatprep.mubr.f32.mxu0 0.0
        %7453 = vmatmul.mubr.f32.gmra.mxu0 %v7377
        %v7454 = vpop.f32.mrf.mxu0
        %v7455 = vadd.f32 0.0, %v7454
        %v7456 = vpop.f32.mrf.mxu0
        %7457 = vmatprep.mubr.f32.mxu0 0.0
        %7458 = vmatmul.mubr.f32.gmra.mxu0 %v7380
        %v7459 = vpop.f32.mrf.mxu0
        %v7460 = vadd.f32 0.0, %v7459
        %v7461 = vpop.f32.mrf.mxu0
        %7462 = vmatprep.mubr.f32.mxu0 0.0
        %7463 = vmatmul.mubr.f32.gmra.mxu0 %v7383
        %v7464 = vpop.f32.mrf.mxu0
        %v7465 = vadd.f32 0.0, %v7464
        %v7466 = vpop.f32.mrf.mxu0
        %7467 = vmatprep.mubr.f32.mxu0 0.0
        %7468 = vmatmul.mubr.f32.gmra.mxu0 %v7386
        %v7469 = vpop.f32.mrf.mxu0
        %v7470 = vadd.f32 0.0, %v7469
        %v7471 = vpop.f32.mrf.mxu0
        %7472 = vdwg.mxu0
        %7473 = vrot.lane.b32.xlu0 %v763, 64
        %v7474 = vpop.permute.xlu0 %7473
        %7475 = vrot.lane.b32.xlu0 %v765, 64
        %v7476 = vpop.permute.xlu0 %7475
        %7477 = vrot.lane.b32.xlu0 %v767, 64
        %v7478 = vpop.permute.xlu0 %7477
        %7479 = vrot.lane.b32.xlu0 %v769, 64
        %v7480 = vpop.permute.xlu0 %7479
        %v7486 = vsel %vm360, %v5875, 0
        %v7489 = vsel %vm360, %v5876, 0
        %v7492 = vsel %vm360, %v5877, 0
        %v7495 = vsel %vm360, %v5878, 0
        %7497 = vmatprep.subr.mxu0 0.0
        %7498 = vmatpush1.msra.mxu0 0.0
        %7499 = vmatprep.subr.mxu0 0.0
        %7500 = vmatpush1.msra.mxu0 0.0
        %7501 = vmatprep.subr.mxu0 0.0
        %7502 = vmatpush1.msra.mxu0 0.0
        %7503 = vmatprep.subr.mxu0 0.0
        %7504 = vmatpush1.msra.mxu0 0.0
        %7505 = vmatprep.subr.mxu0 0.0
        %7506 = vmatpush1.msra.mxu0 0.0
        %7507 = vmatprep.subr.mxu0 0.0
        %7508 = vmatpush1.msra.mxu0 0.0
        %7509 = vmatprep.subr.mxu0 0.0
        %7510 = vmatpush1.msra.mxu0 0.0
        %7511 = vmatprep.subr.mxu0 0.0
        %7512 = vmatpush1.msra.mxu0 0.0
        %7513 = vmatprep.subr.mxu0 0.0
        %7514 = vmatpush1.msra.mxu0 0.0
        %7515 = vmatprep.subr.mxu0 0.0
        %7516 = vmatpush1.msra.mxu0 0.0
        %7517 = vmatprep.subr.mxu0 0.0
        %7518 = vmatpush1.msra.mxu0 0.0
        %7519 = vmatprep.subr.mxu0 0.0
        %7520 = vmatpush1.msra.mxu0 0.0
        %7521 = vmatprep.subr.mxu0 0.0
        %7522 = vmatpush1.msra.mxu0 %v7480
        %7523 = vmatprep.subr.mxu0 0.0
        %7524 = vmatpush1.msra.mxu0 %v7478
        %7525 = vmatprep.subr.mxu0 0.0
        %7526 = vmatpush1.msra.mxu0 %v7476
        %7527 = vmatprep.subr.mxu0 0.0
        %7528 = vmatpush1.msra.mxu0 %v7474
        %7529 = vmatprep.subr.mxu0 0.0
        %7530 = vmatpush2.msra.mxu0 0.0
        %7531 = vmatprep.subr.mxu0 0.0
        %7532 = vmatpush2.msra.mxu0 0.0
        %7533 = vmatprep.subr.mxu0 0.0
        %7534 = vmatpush2.msra.mxu0 0.0
        %7535 = vmatprep.subr.mxu0 0.0
        %7536 = vmatpush2.msra.mxu0 0.0
        %7537 = vmatprep.subr.mxu0 0.0
        %7538 = vmatpush2.msra.mxu0 0.0
        %7539 = vmatprep.subr.mxu0 0.0
        %7540 = vmatpush2.msra.mxu0 0.0
        %7541 = vmatprep.subr.mxu0 0.0
        %7542 = vmatpush2.msra.mxu0 0.0
        %7543 = vmatprep.subr.mxu0 0.0
        %7544 = vmatpush2.msra.mxu0 0.0
        %7545 = vmatprep.subr.mxu0 0.0
        %7546 = vmatpush2.msra.mxu0 0.0
        %7547 = vmatprep.subr.mxu0 0.0
        %7548 = vmatpush2.msra.mxu0 0.0
        %7549 = vmatprep.subr.mxu0 0.0
        %7550 = vmatpush2.msra.mxu0 0.0
        %7551 = vmatprep.subr.mxu0 0.0
        %7552 = vmatpush2.msra.mxu0 0.0
        %7553 = vmatprep.subr.mxu0 0.0
        %7554 = vmatpush2.msra.mxu0 0.0
        %7555 = vmatprep.subr.mxu0 0.0
        %7556 = vmatpush2.msra.mxu0 0.0
        %7557 = vmatprep.subr.mxu0 0.0
        %7558 = vmatpush2.msra.mxu0 0.0
        %7559 = vmatprep.subr.mxu0 0.0
        %7560 = vmatpush2.msra.mxu0 0.0
        %7561 = vmatprep.mubr.f32.mxu0 0.0
        %7562 = vmatmul.mubr.f32.gmra.mxu0 %v7486
        %v7563 = vpop.f32.mrf.mxu0
        %v7564 = vadd.f32 0.0, %v7563
        %v7565 = vpop.f32.mrf.mxu0
        %7566 = vmatprep.mubr.f32.mxu0 0.0
        %7567 = vmatmul.mubr.f32.gmra.mxu0 %v7489
        %v7568 = vpop.f32.mrf.mxu0
        %v7569 = vadd.f32 0.0, %v7568
        %v7570 = vpop.f32.mrf.mxu0
        %7571 = vmatprep.mubr.f32.mxu0 0.0
        %7572 = vmatmul.mubr.f32.gmra.mxu0 %v7492
        %v7573 = vpop.f32.mrf.mxu0
        %v7574 = vadd.f32 0.0, %v7573
        %v7575 = vpop.f32.mrf.mxu0
        %7576 = vmatprep.mubr.f32.mxu0 0.0
        %7577 = vmatmul.mubr.f32.gmra.mxu0 %v7495
        %v7578 = vpop.f32.mrf.mxu0
        %v7579 = vadd.f32 0.0, %v7578
        %v7580 = vpop.f32.mrf.mxu0
        %7581 = vdwg.mxu0
        %7582 = vrot.lane.b32.xlu0 %v771, 64
        %v7583 = vpop.permute.xlu0 %7582
        %7584 = vrot.lane.b32.xlu0 %v773, 64
        %v7585 = vpop.permute.xlu0 %7584
        %7586 = vrot.lane.b32.xlu0 %v775, 64
        %v7587 = vpop.permute.xlu0 %7586
        %7588 = vrot.lane.b32.xlu0 %v777, 64
        %v7589 = vpop.permute.xlu0 %7588
        %v7595 = vsel %vm360, %v5879, 0
        %v7598 = vsel %vm360, %v5880, 0
        %v7601 = vsel %vm360, %v5881, 0
        %v7604 = vsel %vm360, %v5882, 0
        %7606 = vmatprep.subr.mxu0 0.0
        %7607 = vmatpush1.msra.mxu0 0.0
        %7608 = vmatprep.subr.mxu0 0.0
        %7609 = vmatpush1.msra.mxu0 0.0
        %7610 = vmatprep.subr.mxu0 0.0
        %7611 = vmatpush1.msra.mxu0 0.0
        %7612 = vmatprep.subr.mxu0 0.0
        %7613 = vmatpush1.msra.mxu0 0.0
        %7614 = vmatprep.subr.mxu0 0.0
        %7615 = vmatpush1.msra.mxu0 0.0
        %7616 = vmatprep.subr.mxu0 0.0
        %7617 = vmatpush1.msra.mxu0 0.0
        %7618 = vmatprep.subr.mxu0 0.0
        %7619 = vmatpush1.msra.mxu0 0.0
        %7620 = vmatprep.subr.mxu0 0.0
        %7621 = vmatpush1.msra.mxu0 0.0
        %7622 = vmatprep.subr.mxu0 0.0
        %7623 = vmatpush1.msra.mxu0 0.0
        %7624 = vmatprep.subr.mxu0 0.0
        %7625 = vmatpush1.msra.mxu0 0.0
        %7626 = vmatprep.subr.mxu0 0.0
        %7627 = vmatpush1.msra.mxu0 0.0
        %7628 = vmatprep.subr.mxu0 0.0
        %7629 = vmatpush1.msra.mxu0 0.0
        %7630 = vmatprep.subr.mxu0 0.0
        %7631 = vmatpush1.msra.mxu0 %v7589
        %7632 = vmatprep.subr.mxu0 0.0
        %7633 = vmatpush1.msra.mxu0 %v7587
        %7634 = vmatprep.subr.mxu0 0.0
        %7635 = vmatpush1.msra.mxu0 %v7585
        %7636 = vmatprep.subr.mxu0 0.0
        %7637 = vmatpush1.msra.mxu0 %v7583
        %7638 = vmatprep.subr.mxu0 0.0
        %7639 = vmatpush2.msra.mxu0 0.0
        %7640 = vmatprep.subr.mxu0 0.0
        %7641 = vmatpush2.msra.mxu0 0.0
        %7642 = vmatprep.subr.mxu0 0.0
        %7643 = vmatpush2.msra.mxu0 0.0
        %7644 = vmatprep.subr.mxu0 0.0
        %7645 = vmatpush2.msra.mxu0 0.0
        %7646 = vmatprep.subr.mxu0 0.0
        %7647 = vmatpush2.msra.mxu0 0.0
        %7648 = vmatprep.subr.mxu0 0.0
        %7649 = vmatpush2.msra.mxu0 0.0
        %7650 = vmatprep.subr.mxu0 0.0
        %7651 = vmatpush2.msra.mxu0 0.0
        %7652 = vmatprep.subr.mxu0 0.0
        %7653 = vmatpush2.msra.mxu0 0.0
        %7654 = vmatprep.subr.mxu0 0.0
        %7655 = vmatpush2.msra.mxu0 0.0
        %7656 = vmatprep.subr.mxu0 0.0
        %7657 = vmatpush2.msra.mxu0 0.0
        %7658 = vmatprep.subr.mxu0 0.0
        %7659 = vmatpush2.msra.mxu0 0.0
        %7660 = vmatprep.subr.mxu0 0.0
        %7661 = vmatpush2.msra.mxu0 0.0
        %7662 = vmatprep.subr.mxu0 0.0
        %7663 = vmatpush2.msra.mxu0 0.0
        %7664 = vmatprep.subr.mxu0 0.0
        %7665 = vmatpush2.msra.mxu0 0.0
        %7666 = vmatprep.subr.mxu0 0.0
        %7667 = vmatpush2.msra.mxu0 0.0
        %7668 = vmatprep.subr.mxu0 0.0
        %7669 = vmatpush2.msra.mxu0 0.0
        %7670 = vmatprep.mubr.f32.mxu0 0.0
        %7671 = vmatmul.mubr.f32.gmra.mxu0 %v7595
        %v7672 = vpop.f32.mrf.mxu0
        %v7673 = vadd.f32 0.0, %v7672
        %v7674 = vpop.f32.mrf.mxu0
        %7675 = vmatprep.mubr.f32.mxu0 0.0
        %7676 = vmatmul.mubr.f32.gmra.mxu0 %v7598
        %v7677 = vpop.f32.mrf.mxu0
        %v7678 = vadd.f32 0.0, %v7677
        %v7679 = vpop.f32.mrf.mxu0
        %7680 = vmatprep.mubr.f32.mxu0 0.0
        %7681 = vmatmul.mubr.f32.gmra.mxu0 %v7601
        %v7682 = vpop.f32.mrf.mxu0
        %v7683 = vadd.f32 0.0, %v7682
        %v7684 = vpop.f32.mrf.mxu0
        %7685 = vmatprep.mubr.f32.mxu0 0.0
        %7686 = vmatmul.mubr.f32.gmra.mxu0 %v7604
        %v7687 = vpop.f32.mrf.mxu0
        %v7688 = vadd.f32 0.0, %v7687
        %v7689 = vpop.f32.mrf.mxu0
        %7690 = vdwg.mxu0
        %7691 = vrot.lane.b32.xlu0 %v779, 64
        %v7692 = vpop.permute.xlu0 %7691
        %7693 = vrot.lane.b32.xlu0 %v781, 64
        %v7694 = vpop.permute.xlu0 %7693
        %7695 = vrot.lane.b32.xlu0 %v783, 64
        %v7696 = vpop.permute.xlu0 %7695
        %7697 = vrot.lane.b32.xlu0 %v785, 64
        %v7698 = vpop.permute.xlu0 %7697
        %v7704 = vsel %vm360, %v5883, 0
        %v7707 = vsel %vm360, %v5884, 0
        %v7710 = vsel %vm360, %v5885, 0
        %v7713 = vsel %vm360, %v5886, 0
        %7715 = vmatprep.subr.mxu0 0.0
        %7716 = vmatpush1.msra.mxu0 0.0
        %7717 = vmatprep.subr.mxu0 0.0
        %7718 = vmatpush1.msra.mxu0 0.0
        %7719 = vmatprep.subr.mxu0 0.0
        %7720 = vmatpush1.msra.mxu0 0.0
        %7721 = vmatprep.subr.mxu0 0.0
        %7722 = vmatpush1.msra.mxu0 0.0
        %7723 = vmatprep.subr.mxu0 0.0
        %7724 = vmatpush1.msra.mxu0 0.0
        %7725 = vmatprep.subr.mxu0 0.0
        %7726 = vmatpush1.msra.mxu0 0.0
        %7727 = vmatprep.subr.mxu0 0.0
        %7728 = vmatpush1.msra.mxu0 0.0
        %7729 = vmatprep.subr.mxu0 0.0
        %7730 = vmatpush1.msra.mxu0 0.0
        %7731 = vmatprep.subr.mxu0 0.0
        %7732 = vmatpush1.msra.mxu0 0.0
        %7733 = vmatprep.subr.mxu0 0.0
        %7734 = vmatpush1.msra.mxu0 0.0
        %7735 = vmatprep.subr.mxu0 0.0
        %7736 = vmatpush1.msra.mxu0 0.0
        %7737 = vmatprep.subr.mxu0 0.0
        %7738 = vmatpush1.msra.mxu0 0.0
        %7739 = vmatprep.subr.mxu0 0.0
        %7740 = vmatpush1.msra.mxu0 %v7698
        %7741 = vmatprep.subr.mxu0 0.0
        %7742 = vmatpush1.msra.mxu0 %v7696
        %7743 = vmatprep.subr.mxu0 0.0
        %7744 = vmatpush1.msra.mxu0 %v7694
        %7745 = vmatprep.subr.mxu0 0.0
        %7746 = vmatpush1.msra.mxu0 %v7692
        %7747 = vmatprep.subr.mxu0 0.0
        %7748 = vmatpush2.msra.mxu0 0.0
        %7749 = vmatprep.subr.mxu0 0.0
        %7750 = vmatpush2.msra.mxu0 0.0
        %7751 = vmatprep.subr.mxu0 0.0
        %7752 = vmatpush2.msra.mxu0 0.0
        %7753 = vmatprep.subr.mxu0 0.0
        %7754 = vmatpush2.msra.mxu0 0.0
        %7755 = vmatprep.subr.mxu0 0.0
        %7756 = vmatpush2.msra.mxu0 0.0
        %7757 = vmatprep.subr.mxu0 0.0
        %7758 = vmatpush2.msra.mxu0 0.0
        %7759 = vmatprep.subr.mxu0 0.0
        %7760 = vmatpush2.msra.mxu0 0.0
        %7761 = vmatprep.subr.mxu0 0.0
        %7762 = vmatpush2.msra.mxu0 0.0
        %7763 = vmatprep.subr.mxu0 0.0
        %7764 = vmatpush2.msra.mxu0 0.0
        %7765 = vmatprep.subr.mxu0 0.0
        %7766 = vmatpush2.msra.mxu0 0.0
        %7767 = vmatprep.subr.mxu0 0.0
        %7768 = vmatpush2.msra.mxu0 0.0
        %7769 = vmatprep.subr.mxu0 0.0
        %7770 = vmatpush2.msra.mxu0 0.0
        %7771 = vmatprep.subr.mxu0 0.0
        %7772 = vmatpush2.msra.mxu0 0.0
        %7773 = vmatprep.subr.mxu0 0.0
        %7774 = vmatpush2.msra.mxu0 0.0
        %7775 = vmatprep.subr.mxu0 0.0
        %7776 = vmatpush2.msra.mxu0 0.0
        %7777 = vmatprep.subr.mxu0 0.0
        %7778 = vmatpush2.msra.mxu0 0.0
        %7779 = vmatprep.mubr.f32.mxu0 0.0
        %7780 = vmatmul.mubr.f32.gmra.mxu0 %v7704
        %v7781 = vpop.f32.mrf.mxu0
        %v7782 = vadd.f32 0.0, %v7781
        %v7783 = vpop.f32.mrf.mxu0
        %7784 = vmatprep.mubr.f32.mxu0 0.0
        %7785 = vmatmul.mubr.f32.gmra.mxu0 %v7707
        %v7786 = vpop.f32.mrf.mxu0
        %v7787 = vadd.f32 0.0, %v7786
        %v7788 = vpop.f32.mrf.mxu0
        %7789 = vmatprep.mubr.f32.mxu0 0.0
        %7790 = vmatmul.mubr.f32.gmra.mxu0 %v7710
        %v7791 = vpop.f32.mrf.mxu0
        %v7792 = vadd.f32 0.0, %v7791
        %v7793 = vpop.f32.mrf.mxu0
        %7794 = vmatprep.mubr.f32.mxu0 0.0
        %7795 = vmatmul.mubr.f32.gmra.mxu0 %v7713
        %v7796 = vpop.f32.mrf.mxu0
        %v7797 = vadd.f32 0.0, %v7796
        %v7798 = vpop.f32.mrf.mxu0
        %7799 = vdwg.mxu0
        %7800 = vrot.lane.b32.xlu0 %v787, 64
        %v7801 = vpop.permute.xlu0 %7800
        %7802 = vrot.lane.b32.xlu0 %v789, 64
        %v7803 = vpop.permute.xlu0 %7802
        %7804 = vrot.lane.b32.xlu0 %v791, 64
        %v7805 = vpop.permute.xlu0 %7804
        %7806 = vrot.lane.b32.xlu0 %v793, 64
        %v7807 = vpop.permute.xlu0 %7806
        %v7813 = vsel %vm360, %v5887, 0
        %v7816 = vsel %vm360, %v5888, 0
        %v7819 = vsel %vm360, %v5889, 0
        %v7822 = vsel %vm360, %v5890, 0
        %7824 = vmatprep.subr.mxu0 0.0
        %7825 = vmatpush1.msra.mxu0 0.0
        %7826 = vmatprep.subr.mxu0 0.0
        %7827 = vmatpush1.msra.mxu0 0.0
        %7828 = vmatprep.subr.mxu0 0.0
        %7829 = vmatpush1.msra.mxu0 0.0
        %7830 = vmatprep.subr.mxu0 0.0
        %7831 = vmatpush1.msra.mxu0 0.0
        %7832 = vmatprep.subr.mxu0 0.0
        %7833 = vmatpush1.msra.mxu0 0.0
        %7834 = vmatprep.subr.mxu0 0.0
        %7835 = vmatpush1.msra.mxu0 0.0
        %7836 = vmatprep.subr.mxu0 0.0
        %7837 = vmatpush1.msra.mxu0 0.0
        %7838 = vmatprep.subr.mxu0 0.0
        %7839 = vmatpush1.msra.mxu0 0.0
        %7840 = vmatprep.subr.mxu0 0.0
        %7841 = vmatpush1.msra.mxu0 0.0
        %7842 = vmatprep.subr.mxu0 0.0
        %7843 = vmatpush1.msra.mxu0 0.0
        %7844 = vmatprep.subr.mxu0 0.0
        %7845 = vmatpush1.msra.mxu0 0.0
        %7846 = vmatprep.subr.mxu0 0.0
        %7847 = vmatpush1.msra.mxu0 0.0
        %7848 = vmatprep.subr.mxu0 0.0
        %7849 = vmatpush1.msra.mxu0 %v7807
        %7850 = vmatprep.subr.mxu0 0.0
        %7851 = vmatpush1.msra.mxu0 %v7805
        %7852 = vmatprep.subr.mxu0 0.0
        %7853 = vmatpush1.msra.mxu0 %v7803
        %7854 = vmatprep.subr.mxu0 0.0
        %7855 = vmatpush1.msra.mxu0 %v7801
        %7856 = vmatprep.subr.mxu0 0.0
        %7857 = vmatpush2.msra.mxu0 0.0
        %7858 = vmatprep.subr.mxu0 0.0
        %7859 = vmatpush2.msra.mxu0 0.0
        %7860 = vmatprep.subr.mxu0 0.0
        %7861 = vmatpush2.msra.mxu0 0.0
        %7862 = vmatprep.subr.mxu0 0.0
        %7863 = vmatpush2.msra.mxu0 0.0
        %7864 = vmatprep.subr.mxu0 0.0
        %7865 = vmatpush2.msra.mxu0 0.0
        %7866 = vmatprep.subr.mxu0 0.0
        %7867 = vmatpush2.msra.mxu0 0.0
        %7868 = vmatprep.subr.mxu0 0.0
        %7869 = vmatpush2.msra.mxu0 0.0
        %7870 = vmatprep.subr.mxu0 0.0
        %7871 = vmatpush2.msra.mxu0 0.0
        %7872 = vmatprep.subr.mxu0 0.0
        %7873 = vmatpush2.msra.mxu0 0.0
        %7874 = vmatprep.subr.mxu0 0.0
        %7875 = vmatpush2.msra.mxu0 0.0
        %7876 = vmatprep.subr.mxu0 0.0
        %7877 = vmatpush2.msra.mxu0 0.0
        %7878 = vmatprep.subr.mxu0 0.0
        %7879 = vmatpush2.msra.mxu0 0.0
        %7880 = vmatprep.subr.mxu0 0.0
        %7881 = vmatpush2.msra.mxu0 0.0
        %7882 = vmatprep.subr.mxu0 0.0
        %7883 = vmatpush2.msra.mxu0 0.0
        %7884 = vmatprep.subr.mxu0 0.0
        %7885 = vmatpush2.msra.mxu0 0.0
        %7886 = vmatprep.subr.mxu0 0.0
        %7887 = vmatpush2.msra.mxu0 0.0
        %7888 = vmatprep.mubr.f32.mxu0 0.0
        %7889 = vmatmul.mubr.f32.gmra.mxu0 %v7813
        %v7890 = vpop.f32.mrf.mxu0
        %v7891 = vadd.f32 0.0, %v7890
        %v7892 = vpop.f32.mrf.mxu0
        %7893 = vmatprep.mubr.f32.mxu0 0.0
        %7894 = vmatmul.mubr.f32.gmra.mxu0 %v7816
        %v7895 = vpop.f32.mrf.mxu0
        %v7896 = vadd.f32 0.0, %v7895
        %v7897 = vpop.f32.mrf.mxu0
        %7898 = vmatprep.mubr.f32.mxu0 0.0
        %7899 = vmatmul.mubr.f32.gmra.mxu0 %v7819
        %v7900 = vpop.f32.mrf.mxu0
        %v7901 = vadd.f32 0.0, %v7900
        %v7902 = vpop.f32.mrf.mxu0
        %7903 = vmatprep.mubr.f32.mxu0 0.0
        %7904 = vmatmul.mubr.f32.gmra.mxu0 %v7822
        %v7905 = vpop.f32.mrf.mxu0
        %v7906 = vadd.f32 0.0, %v7905
        %v7907 = vpop.f32.mrf.mxu0
        %7908 = vdwg.mxu0
        %7909 = vrot.lane.b32.xlu0 %v795, 64
        %v7910 = vpop.permute.xlu0 %7909
        %7911 = vrot.lane.b32.xlu0 %v797, 64
        %v7912 = vpop.permute.xlu0 %7911
        %7913 = vrot.lane.b32.xlu0 %v799, 64
        %v7914 = vpop.permute.xlu0 %7913
        %7915 = vrot.lane.b32.xlu0 %v801, 64
        %v7916 = vpop.permute.xlu0 %7915
        %v7922 = vsel %vm360, %v5891, 0
        %v7925 = vsel %vm360, %v5892, 0
        %v7928 = vsel %vm360, %v5893, 0
        %v7931 = vsel %vm360, %v5894, 0
        %7933 = vmatprep.subr.mxu0 0.0
        %7934 = vmatpush1.msra.mxu0 0.0
        %7935 = vmatprep.subr.mxu0 0.0
        %7936 = vmatpush1.msra.mxu0 0.0
        %7937 = vmatprep.subr.mxu0 0.0
        %7938 = vmatpush1.msra.mxu0 0.0
        %7939 = vmatprep.subr.mxu0 0.0
        %7940 = vmatpush1.msra.mxu0 0.0
        %7941 = vmatprep.subr.mxu0 0.0
        %7942 = vmatpush1.msra.mxu0 0.0
        %7943 = vmatprep.subr.mxu0 0.0
        %7944 = vmatpush1.msra.mxu0 0.0
        %7945 = vmatprep.subr.mxu0 0.0
        %7946 = vmatpush1.msra.mxu0 0.0
        %7947 = vmatprep.subr.mxu0 0.0
        %7948 = vmatpush1.msra.mxu0 0.0
        %7949 = vmatprep.subr.mxu0 0.0
        %7950 = vmatpush1.msra.mxu0 0.0
        %7951 = vmatprep.subr.mxu0 0.0
        %7952 = vmatpush1.msra.mxu0 0.0
        %7953 = vmatprep.subr.mxu0 0.0
        %7954 = vmatpush1.msra.mxu0 0.0
        %7955 = vmatprep.subr.mxu0 0.0
        %7956 = vmatpush1.msra.mxu0 0.0
        %7957 = vmatprep.subr.mxu0 0.0
        %7958 = vmatpush1.msra.mxu0 %v7916
        %7959 = vmatprep.subr.mxu0 0.0
        %7960 = vmatpush1.msra.mxu0 %v7914
        %7961 = vmatprep.subr.mxu0 0.0
        %7962 = vmatpush1.msra.mxu0 %v7912
        %7963 = vmatprep.subr.mxu0 0.0
        %7964 = vmatpush1.msra.mxu0 %v7910
        %7965 = vmatprep.subr.mxu0 0.0
        %7966 = vmatpush2.msra.mxu0 0.0
        %7967 = vmatprep.subr.mxu0 0.0
        %7968 = vmatpush2.msra.mxu0 0.0
        %7969 = vmatprep.subr.mxu0 0.0
        %7970 = vmatpush2.msra.mxu0 0.0
        %7971 = vmatprep.subr.mxu0 0.0
        %7972 = vmatpush2.msra.mxu0 0.0
        %7973 = vmatprep.subr.mxu0 0.0
        %7974 = vmatpush2.msra.mxu0 0.0
        %7975 = vmatprep.subr.mxu0 0.0
        %7976 = vmatpush2.msra.mxu0 0.0
        %7977 = vmatprep.subr.mxu0 0.0
        %7978 = vmatpush2.msra.mxu0 0.0
        %7979 = vmatprep.subr.mxu0 0.0
        %7980 = vmatpush2.msra.mxu0 0.0
        %7981 = vmatprep.subr.mxu0 0.0
        %7982 = vmatpush2.msra.mxu0 0.0
        %7983 = vmatprep.subr.mxu0 0.0
        %7984 = vmatpush2.msra.mxu0 0.0
        %7985 = vmatprep.subr.mxu0 0.0
        %7986 = vmatpush2.msra.mxu0 0.0
        %7987 = vmatprep.subr.mxu0 0.0
        %7988 = vmatpush2.msra.mxu0 0.0
        %7989 = vmatprep.subr.mxu0 0.0
        %7990 = vmatpush2.msra.mxu0 0.0
        %7991 = vmatprep.subr.mxu0 0.0
        %7992 = vmatpush2.msra.mxu0 0.0
        %7993 = vmatprep.subr.mxu0 0.0
        %7994 = vmatpush2.msra.mxu0 0.0
        %7995 = vmatprep.subr.mxu0 0.0
        %7996 = vmatpush2.msra.mxu0 0.0
        %7997 = vmatprep.mubr.f32.mxu0 0.0
        %7998 = vmatmul.mubr.f32.gmra.mxu0 %v7922
        %v7999 = vpop.f32.mrf.mxu0
        %v8000 = vadd.f32 0.0, %v7999
        %v8001 = vpop.f32.mrf.mxu0
        %8002 = vmatprep.mubr.f32.mxu0 0.0
        %8003 = vmatmul.mubr.f32.gmra.mxu0 %v7925
        %v8004 = vpop.f32.mrf.mxu0
        %v8005 = vadd.f32 0.0, %v8004
        %v8006 = vpop.f32.mrf.mxu0
        %8007 = vmatprep.mubr.f32.mxu0 0.0
        %8008 = vmatmul.mubr.f32.gmra.mxu0 %v7928
        %v8009 = vpop.f32.mrf.mxu0
        %v8010 = vadd.f32 0.0, %v8009
        %v8011 = vpop.f32.mrf.mxu0
        %8012 = vmatprep.mubr.f32.mxu0 0.0
        %8013 = vmatmul.mubr.f32.gmra.mxu0 %v7931
        %v8014 = vpop.f32.mrf.mxu0
        %v8015 = vadd.f32 0.0, %v8014
        %v8016 = vpop.f32.mrf.mxu0
        %8017 = vdwg.mxu0
        %8018 = vrot.lane.b32.xlu0 %v803, 64
        %v8019 = vpop.permute.xlu0 %8018
        %8020 = vrot.lane.b32.xlu0 %v805, 64
        %v8021 = vpop.permute.xlu0 %8020
        %8022 = vrot.lane.b32.xlu0 %v807, 64
        %v8023 = vpop.permute.xlu0 %8022
        %8024 = vrot.lane.b32.xlu0 %v809, 64
        %v8025 = vpop.permute.xlu0 %8024
        %v8031 = vsel %vm360, %v5895, 0
        %v8034 = vsel %vm360, %v5896, 0
        %v8037 = vsel %vm360, %v5897, 0
        %v8040 = vsel %vm360, %v5898, 0
        %8042 = vmatprep.subr.mxu0 0.0
        %8043 = vmatpush1.msra.mxu0 0.0
        %8044 = vmatprep.subr.mxu0 0.0
        %8045 = vmatpush1.msra.mxu0 0.0
        %8046 = vmatprep.subr.mxu0 0.0
        %8047 = vmatpush1.msra.mxu0 0.0
        %8048 = vmatprep.subr.mxu0 0.0
        %8049 = vmatpush1.msra.mxu0 0.0
        %8050 = vmatprep.subr.mxu0 0.0
        %8051 = vmatpush1.msra.mxu0 0.0
        %8052 = vmatprep.subr.mxu0 0.0
        %8053 = vmatpush1.msra.mxu0 0.0
        %8054 = vmatprep.subr.mxu0 0.0
        %8055 = vmatpush1.msra.mxu0 0.0
        %8056 = vmatprep.subr.mxu0 0.0
        %8057 = vmatpush1.msra.mxu0 0.0
        %8058 = vmatprep.subr.mxu0 0.0
        %8059 = vmatpush1.msra.mxu0 0.0
        %8060 = vmatprep.subr.mxu0 0.0
        %8061 = vmatpush1.msra.mxu0 0.0
        %8062 = vmatprep.subr.mxu0 0.0
        %8063 = vmatpush1.msra.mxu0 0.0
        %8064 = vmatprep.subr.mxu0 0.0
        %8065 = vmatpush1.msra.mxu0 0.0
        %8066 = vmatprep.subr.mxu0 0.0
        %8067 = vmatpush1.msra.mxu0 %v8025
        %8068 = vmatprep.subr.mxu0 0.0
        %8069 = vmatpush1.msra.mxu0 %v8023
        %8070 = vmatprep.subr.mxu0 0.0
        %8071 = vmatpush1.msra.mxu0 %v8021
        %8072 = vmatprep.subr.mxu0 0.0
        %8073 = vmatpush1.msra.mxu0 %v8019
        %8074 = vmatprep.subr.mxu0 0.0
        %8075 = vmatpush2.msra.mxu0 0.0
        %8076 = vmatprep.subr.mxu0 0.0
        %8077 = vmatpush2.msra.mxu0 0.0
        %8078 = vmatprep.subr.mxu0 0.0
        %8079 = vmatpush2.msra.mxu0 0.0
        %8080 = vmatprep.subr.mxu0 0.0
        %8081 = vmatpush2.msra.mxu0 0.0
        %8082 = vmatprep.subr.mxu0 0.0
        %8083 = vmatpush2.msra.mxu0 0.0
        %8084 = vmatprep.subr.mxu0 0.0
        %8085 = vmatpush2.msra.mxu0 0.0
        %8086 = vmatprep.subr.mxu0 0.0
        %8087 = vmatpush2.msra.mxu0 0.0
        %8088 = vmatprep.subr.mxu0 0.0
        %8089 = vmatpush2.msra.mxu0 0.0
        %8090 = vmatprep.subr.mxu0 0.0
        %8091 = vmatpush2.msra.mxu0 0.0
        %8092 = vmatprep.subr.mxu0 0.0
        %8093 = vmatpush2.msra.mxu0 0.0
        %8094 = vmatprep.subr.mxu0 0.0
        %8095 = vmatpush2.msra.mxu0 0.0
        %8096 = vmatprep.subr.mxu0 0.0
        %8097 = vmatpush2.msra.mxu0 0.0
        %8098 = vmatprep.subr.mxu0 0.0
        %8099 = vmatpush2.msra.mxu0 0.0
        %8100 = vmatprep.subr.mxu0 0.0
        %8101 = vmatpush2.msra.mxu0 0.0
        %8102 = vmatprep.subr.mxu0 0.0
        %8103 = vmatpush2.msra.mxu0 0.0
        %8104 = vmatprep.subr.mxu0 0.0
        %8105 = vmatpush2.msra.mxu0 0.0
        %8106 = vmatprep.mubr.f32.mxu0 0.0
        %8107 = vmatmul.mubr.f32.gmra.mxu0 %v8031
        %v8108 = vpop.f32.mrf.mxu0
        %v8109 = vadd.f32 0.0, %v8108
        %v8110 = vpop.f32.mrf.mxu0
        %8111 = vmatprep.mubr.f32.mxu0 0.0
        %8112 = vmatmul.mubr.f32.gmra.mxu0 %v8034
        %v8113 = vpop.f32.mrf.mxu0
        %v8114 = vadd.f32 0.0, %v8113
        %v8115 = vpop.f32.mrf.mxu0
        %8116 = vmatprep.mubr.f32.mxu0 0.0
        %8117 = vmatmul.mubr.f32.gmra.mxu0 %v8037
        %v8118 = vpop.f32.mrf.mxu0
        %v8119 = vadd.f32 0.0, %v8118
        %v8120 = vpop.f32.mrf.mxu0
        %8121 = vmatprep.mubr.f32.mxu0 0.0
        %8122 = vmatmul.mubr.f32.gmra.mxu0 %v8040
        %v8123 = vpop.f32.mrf.mxu0
        %v8124 = vadd.f32 0.0, %v8123
        %v8125 = vpop.f32.mrf.mxu0
        %8126 = vdwg.mxu0
        %8127 = vrot.lane.b32.xlu0 %v811, 64
        %v8128 = vpop.permute.xlu0 %8127
        %8129 = vrot.lane.b32.xlu0 %v813, 64
        %v8130 = vpop.permute.xlu0 %8129
        %8131 = vrot.lane.b32.xlu0 %v815, 64
        %v8132 = vpop.permute.xlu0 %8131
        %8133 = vrot.lane.b32.xlu0 %v817, 64
        %v8134 = vpop.permute.xlu0 %8133
        %v8140 = vsel %vm360, %v5899, 0
        %v8143 = vsel %vm360, %v5900, 0
        %v8146 = vsel %vm360, %v5901, 0
        %v8149 = vsel %vm360, %v5902, 0
        %8151 = vmatprep.subr.mxu0 0.0
        %8152 = vmatpush1.msra.mxu0 0.0
        %8153 = vmatprep.subr.mxu0 0.0
        %8154 = vmatpush1.msra.mxu0 0.0
        %8155 = vmatprep.subr.mxu0 0.0
        %8156 = vmatpush1.msra.mxu0 0.0
        %8157 = vmatprep.subr.mxu0 0.0
        %8158 = vmatpush1.msra.mxu0 0.0
        %8159 = vmatprep.subr.mxu0 0.0
        %8160 = vmatpush1.msra.mxu0 0.0
        %8161 = vmatprep.subr.mxu0 0.0
        %8162 = vmatpush1.msra.mxu0 0.0
        %8163 = vmatprep.subr.mxu0 0.0
        %8164 = vmatpush1.msra.mxu0 0.0
        %8165 = vmatprep.subr.mxu0 0.0
        %8166 = vmatpush1.msra.mxu0 0.0
        %8167 = vmatprep.subr.mxu0 0.0
        %8168 = vmatpush1.msra.mxu0 0.0
        %8169 = vmatprep.subr.mxu0 0.0
        %8170 = vmatpush1.msra.mxu0 0.0
        %8171 = vmatprep.subr.mxu0 0.0
        %8172 = vmatpush1.msra.mxu0 0.0
        %8173 = vmatprep.subr.mxu0 0.0
        %8174 = vmatpush1.msra.mxu0 0.0
        %8175 = vmatprep.subr.mxu0 0.0
        %8176 = vmatpush1.msra.mxu0 %v8134
        %8177 = vmatprep.subr.mxu0 0.0
        %8178 = vmatpush1.msra.mxu0 %v8132
        %8179 = vmatprep.subr.mxu0 0.0
        %8180 = vmatpush1.msra.mxu0 %v8130
        %8181 = vmatprep.subr.mxu0 0.0
        %8182 = vmatpush1.msra.mxu0 %v8128
        %8183 = vmatprep.subr.mxu0 0.0
        %8184 = vmatpush2.msra.mxu0 0.0
        %8185 = vmatprep.subr.mxu0 0.0
        %8186 = vmatpush2.msra.mxu0 0.0
        %8187 = vmatprep.subr.mxu0 0.0
        %8188 = vmatpush2.msra.mxu0 0.0
        %8189 = vmatprep.subr.mxu0 0.0
        %8190 = vmatpush2.msra.mxu0 0.0
        %8191 = vmatprep.subr.mxu0 0.0
        %8192 = vmatpush2.msra.mxu0 0.0
        %8193 = vmatprep.subr.mxu0 0.0
        %8194 = vmatpush2.msra.mxu0 0.0
        %8195 = vmatprep.subr.mxu0 0.0
        %8196 = vmatpush2.msra.mxu0 0.0
        %8197 = vmatprep.subr.mxu0 0.0
        %8198 = vmatpush2.msra.mxu0 0.0
        %8199 = vmatprep.subr.mxu0 0.0
        %8200 = vmatpush2.msra.mxu0 0.0
        %8201 = vmatprep.subr.mxu0 0.0
        %8202 = vmatpush2.msra.mxu0 0.0
        %8203 = vmatprep.subr.mxu0 0.0
        %8204 = vmatpush2.msra.mxu0 0.0
        %8205 = vmatprep.subr.mxu0 0.0
        %8206 = vmatpush2.msra.mxu0 0.0
        %8207 = vmatprep.subr.mxu0 0.0
        %8208 = vmatpush2.msra.mxu0 0.0
        %8209 = vmatprep.subr.mxu0 0.0
        %8210 = vmatpush2.msra.mxu0 0.0
        %8211 = vmatprep.subr.mxu0 0.0
        %8212 = vmatpush2.msra.mxu0 0.0
        %8213 = vmatprep.subr.mxu0 0.0
        %8214 = vmatpush2.msra.mxu0 0.0
        %8215 = vmatprep.mubr.f32.mxu0 0.0
        %8216 = vmatmul.mubr.f32.gmra.mxu0 %v8140
        %v8217 = vpop.f32.mrf.mxu0
        %v8218 = vadd.f32 0.0, %v8217
        %v8219 = vpop.f32.mrf.mxu0
        %8220 = vmatprep.mubr.f32.mxu0 0.0
        %8221 = vmatmul.mubr.f32.gmra.mxu0 %v8143
        %v8222 = vpop.f32.mrf.mxu0
        %v8223 = vadd.f32 0.0, %v8222
        %v8224 = vpop.f32.mrf.mxu0
        %8225 = vmatprep.mubr.f32.mxu0 0.0
        %8226 = vmatmul.mubr.f32.gmra.mxu0 %v8146
        %v8227 = vpop.f32.mrf.mxu0
        %v8228 = vadd.f32 0.0, %v8227
        %v8229 = vpop.f32.mrf.mxu0
        %8230 = vmatprep.mubr.f32.mxu0 0.0
        %8231 = vmatmul.mubr.f32.gmra.mxu0 %v8149
        %v8232 = vpop.f32.mrf.mxu0
        %v8233 = vadd.f32 0.0, %v8232
        %v8234 = vpop.f32.mrf.mxu0
        %8235 = vdwg.mxu0
        %8236 = vrot.lane.b32.xlu0 %v819, 64
        %v8237 = vpop.permute.xlu0 %8236
        %8238 = vrot.lane.b32.xlu0 %v821, 64
        %v8239 = vpop.permute.xlu0 %8238
        %8240 = vrot.lane.b32.xlu0 %v823, 64
        %v8241 = vpop.permute.xlu0 %8240
        %8242 = vrot.lane.b32.xlu0 %v825, 64
        %v8243 = vpop.permute.xlu0 %8242
        %v8249 = vsel %vm360, %v5903, 0
        %v8252 = vsel %vm360, %v5904, 0
        %v8255 = vsel %vm360, %v5905, 0
        %v8258 = vsel %vm360, %v5906, 0
        %8260 = vmatprep.subr.mxu0 0.0
        %8261 = vmatpush1.msra.mxu0 0.0
        %8262 = vmatprep.subr.mxu0 0.0
        %8263 = vmatpush1.msra.mxu0 0.0
        %8264 = vmatprep.subr.mxu0 0.0
        %8265 = vmatpush1.msra.mxu0 0.0
        %8266 = vmatprep.subr.mxu0 0.0
        %8267 = vmatpush1.msra.mxu0 0.0
        %8268 = vmatprep.subr.mxu0 0.0
        %8269 = vmatpush1.msra.mxu0 0.0
        %8270 = vmatprep.subr.mxu0 0.0
        %8271 = vmatpush1.msra.mxu0 0.0
        %8272 = vmatprep.subr.mxu0 0.0
        %8273 = vmatpush1.msra.mxu0 0.0
        %8274 = vmatprep.subr.mxu0 0.0
        %8275 = vmatpush1.msra.mxu0 0.0
        %8276 = vmatprep.subr.mxu0 0.0
        %8277 = vmatpush1.msra.mxu0 0.0
        %8278 = vmatprep.subr.mxu0 0.0
        %8279 = vmatpush1.msra.mxu0 0.0
        %8280 = vmatprep.subr.mxu0 0.0
        %8281 = vmatpush1.msra.mxu0 0.0
        %8282 = vmatprep.subr.mxu0 0.0
        %8283 = vmatpush1.msra.mxu0 0.0
        %8284 = vmatprep.subr.mxu0 0.0
        %8285 = vmatpush1.msra.mxu0 %v8243
        %8286 = vmatprep.subr.mxu0 0.0
        %8287 = vmatpush1.msra.mxu0 %v8241
        %8288 = vmatprep.subr.mxu0 0.0
        %8289 = vmatpush1.msra.mxu0 %v8239
        %8290 = vmatprep.subr.mxu0 0.0
        %8291 = vmatpush1.msra.mxu0 %v8237
        %8292 = vmatprep.subr.mxu0 0.0
        %8293 = vmatpush2.msra.mxu0 0.0
        %8294 = vmatprep.subr.mxu0 0.0
        %8295 = vmatpush2.msra.mxu0 0.0
        %8296 = vmatprep.subr.mxu0 0.0
        %8297 = vmatpush2.msra.mxu0 0.0
        %8298 = vmatprep.subr.mxu0 0.0
        %8299 = vmatpush2.msra.mxu0 0.0
        %8300 = vmatprep.subr.mxu0 0.0
        %8301 = vmatpush2.msra.mxu0 0.0
        %8302 = vmatprep.subr.mxu0 0.0
        %8303 = vmatpush2.msra.mxu0 0.0
        %8304 = vmatprep.subr.mxu0 0.0
        %8305 = vmatpush2.msra.mxu0 0.0
        %8306 = vmatprep.subr.mxu0 0.0
        %8307 = vmatpush2.msra.mxu0 0.0
        %8308 = vmatprep.subr.mxu0 0.0
        %8309 = vmatpush2.msra.mxu0 0.0
        %8310 = vmatprep.subr.mxu0 0.0
        %8311 = vmatpush2.msra.mxu0 0.0
        %8312 = vmatprep.subr.mxu0 0.0
        %8313 = vmatpush2.msra.mxu0 0.0
        %8314 = vmatprep.subr.mxu0 0.0
        %8315 = vmatpush2.msra.mxu0 0.0
        %8316 = vmatprep.subr.mxu0 0.0
        %8317 = vmatpush2.msra.mxu0 0.0
        %8318 = vmatprep.subr.mxu0 0.0
        %8319 = vmatpush2.msra.mxu0 0.0
        %8320 = vmatprep.subr.mxu0 0.0
        %8321 = vmatpush2.msra.mxu0 0.0
        %8322 = vmatprep.subr.mxu0 0.0
        %8323 = vmatpush2.msra.mxu0 0.0
        %8324 = vmatprep.mubr.f32.mxu0 0.0
        %8325 = vmatmul.mubr.f32.gmra.mxu0 %v8249
        %v8326 = vpop.f32.mrf.mxu0
        %v8327 = vadd.f32 0.0, %v8326
        %v8328 = vpop.f32.mrf.mxu0
        %8329 = vmatprep.mubr.f32.mxu0 0.0
        %8330 = vmatmul.mubr.f32.gmra.mxu0 %v8252
        %v8331 = vpop.f32.mrf.mxu0
        %v8332 = vadd.f32 0.0, %v8331
        %v8333 = vpop.f32.mrf.mxu0
        %8334 = vmatprep.mubr.f32.mxu0 0.0
        %8335 = vmatmul.mubr.f32.gmra.mxu0 %v8255
        %v8336 = vpop.f32.mrf.mxu0
        %v8337 = vadd.f32 0.0, %v8336
        %v8338 = vpop.f32.mrf.mxu0
        %8339 = vmatprep.mubr.f32.mxu0 0.0
        %8340 = vmatmul.mubr.f32.gmra.mxu0 %v8258
        %v8341 = vpop.f32.mrf.mxu0
        %v8342 = vadd.f32 0.0, %v8341
        %v8343 = vpop.f32.mrf.mxu0
        %8344 = vdwg.mxu0
        %8345 = vrot.lane.b32.xlu0 %v827, 64
        %v8346 = vpop.permute.xlu0 %8345
        %8347 = vrot.lane.b32.xlu0 %v829, 64
        %v8348 = vpop.permute.xlu0 %8347
        %8349 = vrot.lane.b32.xlu0 %v831, 64
        %v8350 = vpop.permute.xlu0 %8349
        %8351 = vrot.lane.b32.xlu0 %v833, 64
        %v8352 = vpop.permute.xlu0 %8351
        %v8358 = vsel %vm360, %v5907, 0
        %v8361 = vsel %vm360, %v5908, 0
        %v8364 = vsel %vm360, %v5909, 0
        %v8367 = vsel %vm360, %v5910, 0
        %8369 = vmatprep.subr.mxu0 0.0
        %8370 = vmatpush1.msra.mxu0 0.0
        %8371 = vmatprep.subr.mxu0 0.0
        %8372 = vmatpush1.msra.mxu0 0.0
        %8373 = vmatprep.subr.mxu0 0.0
        %8374 = vmatpush1.msra.mxu0 0.0
        %8375 = vmatprep.subr.mxu0 0.0
        %8376 = vmatpush1.msra.mxu0 0.0
        %8377 = vmatprep.subr.mxu0 0.0
        %8378 = vmatpush1.msra.mxu0 0.0
        %8379 = vmatprep.subr.mxu0 0.0
        %8380 = vmatpush1.msra.mxu0 0.0
        %8381 = vmatprep.subr.mxu0 0.0
        %8382 = vmatpush1.msra.mxu0 0.0
        %8383 = vmatprep.subr.mxu0 0.0
        %8384 = vmatpush1.msra.mxu0 0.0
        %8385 = vmatprep.subr.mxu0 0.0
        %8386 = vmatpush1.msra.mxu0 0.0
        %8387 = vmatprep.subr.mxu0 0.0
        %8388 = vmatpush1.msra.mxu0 0.0
        %8389 = vmatprep.subr.mxu0 0.0
        %8390 = vmatpush1.msra.mxu0 0.0
        %8391 = vmatprep.subr.mxu0 0.0
        %8392 = vmatpush1.msra.mxu0 0.0
        %8393 = vmatprep.subr.mxu0 0.0
        %8394 = vmatpush1.msra.mxu0 %v8352
        %8395 = vmatprep.subr.mxu0 0.0
        %8396 = vmatpush1.msra.mxu0 %v8350
        %8397 = vmatprep.subr.mxu0 0.0
        %8398 = vmatpush1.msra.mxu0 %v8348
        %8399 = vmatprep.subr.mxu0 0.0
        %8400 = vmatpush1.msra.mxu0 %v8346
        %8401 = vmatprep.subr.mxu0 0.0
        %8402 = vmatpush2.msra.mxu0 0.0
        %8403 = vmatprep.subr.mxu0 0.0
        %8404 = vmatpush2.msra.mxu0 0.0
        %8405 = vmatprep.subr.mxu0 0.0
        %8406 = vmatpush2.msra.mxu0 0.0
        %8407 = vmatprep.subr.mxu0 0.0
        %8408 = vmatpush2.msra.mxu0 0.0
        %8409 = vmatprep.subr.mxu0 0.0
        %8410 = vmatpush2.msra.mxu0 0.0
        %8411 = vmatprep.subr.mxu0 0.0
        %8412 = vmatpush2.msra.mxu0 0.0
        %8413 = vmatprep.subr.mxu0 0.0
        %8414 = vmatpush2.msra.mxu0 0.0
        %8415 = vmatprep.subr.mxu0 0.0
        %8416 = vmatpush2.msra.mxu0 0.0
        %8417 = vmatprep.subr.mxu0 0.0
        %8418 = vmatpush2.msra.mxu0 0.0
        %8419 = vmatprep.subr.mxu0 0.0
        %8420 = vmatpush2.msra.mxu0 0.0
        %8421 = vmatprep.subr.mxu0 0.0
        %8422 = vmatpush2.msra.mxu0 0.0
        %8423 = vmatprep.subr.mxu0 0.0
        %8424 = vmatpush2.msra.mxu0 0.0
        %8425 = vmatprep.subr.mxu0 0.0
        %8426 = vmatpush2.msra.mxu0 0.0
        %8427 = vmatprep.subr.mxu0 0.0
        %8428 = vmatpush2.msra.mxu0 0.0
        %8429 = vmatprep.subr.mxu0 0.0
        %8430 = vmatpush2.msra.mxu0 0.0
        %8431 = vmatprep.subr.mxu0 0.0
        %8432 = vmatpush2.msra.mxu0 0.0
        %8433 = vmatprep.mubr.f32.mxu0 0.0
        %8434 = vmatmul.mubr.f32.gmra.mxu0 %v8358
        %v8435 = vpop.f32.mrf.mxu0
        %v8436 = vadd.f32 0.0, %v8435
        %v8437 = vpop.f32.mrf.mxu0
        %8438 = vmatprep.mubr.f32.mxu0 0.0
        %8439 = vmatmul.mubr.f32.gmra.mxu0 %v8361
        %v8440 = vpop.f32.mrf.mxu0
        %v8441 = vadd.f32 0.0, %v8440
        %v8442 = vpop.f32.mrf.mxu0
        %8443 = vmatprep.mubr.f32.mxu0 0.0
        %8444 = vmatmul.mubr.f32.gmra.mxu0 %v8364
        %v8445 = vpop.f32.mrf.mxu0
        %v8446 = vadd.f32 0.0, %v8445
        %v8447 = vpop.f32.mrf.mxu0
        %8448 = vmatprep.mubr.f32.mxu0 0.0
        %8449 = vmatmul.mubr.f32.gmra.mxu0 %v8367
        %v8450 = vpop.f32.mrf.mxu0
        %v8451 = vadd.f32 0.0, %v8450
        %v8452 = vpop.f32.mrf.mxu0
        %8453 = vdwg.mxu0
        %8454 = vrot.lane.b32.xlu0 %v835, 64
        %v8455 = vpop.permute.xlu0 %8454
        %8456 = vrot.lane.b32.xlu0 %v837, 64
        %v8457 = vpop.permute.xlu0 %8456
        %8458 = vrot.lane.b32.xlu0 %v839, 64
        %v8459 = vpop.permute.xlu0 %8458
        %8460 = vrot.lane.b32.xlu0 %v841, 64
        %v8461 = vpop.permute.xlu0 %8460
        %v8467 = vsel %vm360, %v5911, 0
        %v8470 = vsel %vm360, %v5912, 0
        %v8473 = vsel %vm360, %v5913, 0
        %v8476 = vsel %vm360, %v5914, 0
        %8478 = vmatprep.subr.mxu0 0.0
        %8479 = vmatpush1.msra.mxu0 0.0
        %8480 = vmatprep.subr.mxu0 0.0
        %8481 = vmatpush1.msra.mxu0 0.0
        %8482 = vmatprep.subr.mxu0 0.0
        %8483 = vmatpush1.msra.mxu0 0.0
        %8484 = vmatprep.subr.mxu0 0.0
        %8485 = vmatpush1.msra.mxu0 0.0
        %8486 = vmatprep.subr.mxu0 0.0
        %8487 = vmatpush1.msra.mxu0 0.0
        %8488 = vmatprep.subr.mxu0 0.0
        %8489 = vmatpush1.msra.mxu0 0.0
        %8490 = vmatprep.subr.mxu0 0.0
        %8491 = vmatpush1.msra.mxu0 0.0
        %8492 = vmatprep.subr.mxu0 0.0
        %8493 = vmatpush1.msra.mxu0 0.0
        %8494 = vmatprep.subr.mxu0 0.0
        %8495 = vmatpush1.msra.mxu0 0.0
        %8496 = vmatprep.subr.mxu0 0.0
        %8497 = vmatpush1.msra.mxu0 0.0
        %8498 = vmatprep.subr.mxu0 0.0
        %8499 = vmatpush1.msra.mxu0 0.0
        %8500 = vmatprep.subr.mxu0 0.0
        %8501 = vmatpush1.msra.mxu0 0.0
        %8502 = vmatprep.subr.mxu0 0.0
        %8503 = vmatpush1.msra.mxu0 %v8461
        %8504 = vmatprep.subr.mxu0 0.0
        %8505 = vmatpush1.msra.mxu0 %v8459
        %8506 = vmatprep.subr.mxu0 0.0
        %8507 = vmatpush1.msra.mxu0 %v8457
        %8508 = vmatprep.subr.mxu0 0.0
        %8509 = vmatpush1.msra.mxu0 %v8455
        %8510 = vmatprep.subr.mxu0 0.0
        %8511 = vmatpush2.msra.mxu0 0.0
        %8512 = vmatprep.subr.mxu0 0.0
        %8513 = vmatpush2.msra.mxu0 0.0
        %8514 = vmatprep.subr.mxu0 0.0
        %8515 = vmatpush2.msra.mxu0 0.0
        %8516 = vmatprep.subr.mxu0 0.0
        %8517 = vmatpush2.msra.mxu0 0.0
        %8518 = vmatprep.subr.mxu0 0.0
        %8519 = vmatpush2.msra.mxu0 0.0
        %8520 = vmatprep.subr.mxu0 0.0
        %8521 = vmatpush2.msra.mxu0 0.0
        %8522 = vmatprep.subr.mxu0 0.0
        %8523 = vmatpush2.msra.mxu0 0.0
        %8524 = vmatprep.subr.mxu0 0.0
        %8525 = vmatpush2.msra.mxu0 0.0
        %8526 = vmatprep.subr.mxu0 0.0
        %8527 = vmatpush2.msra.mxu0 0.0
        %8528 = vmatprep.subr.mxu0 0.0
        %8529 = vmatpush2.msra.mxu0 0.0
        %8530 = vmatprep.subr.mxu0 0.0
        %8531 = vmatpush2.msra.mxu0 0.0
        %8532 = vmatprep.subr.mxu0 0.0
        %8533 = vmatpush2.msra.mxu0 0.0
        %8534 = vmatprep.subr.mxu0 0.0
        %8535 = vmatpush2.msra.mxu0 0.0
        %8536 = vmatprep.subr.mxu0 0.0
        %8537 = vmatpush2.msra.mxu0 0.0
        %8538 = vmatprep.subr.mxu0 0.0
        %8539 = vmatpush2.msra.mxu0 0.0
        %8540 = vmatprep.subr.mxu0 0.0
        %8541 = vmatpush2.msra.mxu0 0.0
        %8542 = vmatprep.mubr.f32.mxu0 0.0
        %8543 = vmatmul.mubr.f32.gmra.mxu0 %v8467
        %v8544 = vpop.f32.mrf.mxu0
        %v8545 = vadd.f32 0.0, %v8544
        %v8546 = vpop.f32.mrf.mxu0
        %8547 = vmatprep.mubr.f32.mxu0 0.0
        %8548 = vmatmul.mubr.f32.gmra.mxu0 %v8470
        %v8549 = vpop.f32.mrf.mxu0
        %v8550 = vadd.f32 0.0, %v8549
        %v8551 = vpop.f32.mrf.mxu0
        %8552 = vmatprep.mubr.f32.mxu0 0.0
        %8553 = vmatmul.mubr.f32.gmra.mxu0 %v8473
        %v8554 = vpop.f32.mrf.mxu0
        %v8555 = vadd.f32 0.0, %v8554
        %v8556 = vpop.f32.mrf.mxu0
        %8557 = vmatprep.mubr.f32.mxu0 0.0
        %8558 = vmatmul.mubr.f32.gmra.mxu0 %v8476
        %v8559 = vpop.f32.mrf.mxu0
        %v8560 = vadd.f32 0.0, %v8559
        %v8561 = vpop.f32.mrf.mxu0
        %8562 = vdwg.mxu0
        %8563 = vrot.lane.b32.xlu0 %v843, 64
        %v8564 = vpop.permute.xlu0 %8563
        %8565 = vrot.lane.b32.xlu0 %v845, 64
        %v8566 = vpop.permute.xlu0 %8565
        %8567 = vrot.lane.b32.xlu0 %v847, 64
        %v8568 = vpop.permute.xlu0 %8567
        %8569 = vrot.lane.b32.xlu0 %v849, 64
        %v8570 = vpop.permute.xlu0 %8569
        %v8576 = vsel %vm360, %v5915, 0
        %v8579 = vsel %vm360, %v5916, 0
        %v8582 = vsel %vm360, %v5917, 0
        %v8585 = vsel %vm360, %v5918, 0
        %8587 = vmatprep.subr.mxu0 0.0
        %8588 = vmatpush1.msra.mxu0 0.0
        %8589 = vmatprep.subr.mxu0 0.0
        %8590 = vmatpush1.msra.mxu0 0.0
        %8591 = vmatprep.subr.mxu0 0.0
        %8592 = vmatpush1.msra.mxu0 0.0
        %8593 = vmatprep.subr.mxu0 0.0
        %8594 = vmatpush1.msra.mxu0 0.0
        %8595 = vmatprep.subr.mxu0 0.0
        %8596 = vmatpush1.msra.mxu0 0.0
        %8597 = vmatprep.subr.mxu0 0.0
        %8598 = vmatpush1.msra.mxu0 0.0
        %8599 = vmatprep.subr.mxu0 0.0
        %8600 = vmatpush1.msra.mxu0 0.0
        %8601 = vmatprep.subr.mxu0 0.0
        %8602 = vmatpush1.msra.mxu0 0.0
        %8603 = vmatprep.subr.mxu0 0.0
        %8604 = vmatpush1.msra.mxu0 0.0
        %8605 = vmatprep.subr.mxu0 0.0
        %8606 = vmatpush1.msra.mxu0 0.0
        %8607 = vmatprep.subr.mxu0 0.0
        %8608 = vmatpush1.msra.mxu0 0.0
        %8609 = vmatprep.subr.mxu0 0.0
        %8610 = vmatpush1.msra.mxu0 0.0
        %8611 = vmatprep.subr.mxu0 0.0
        %8612 = vmatpush1.msra.mxu0 %v8570
        %8613 = vmatprep.subr.mxu0 0.0
        %8614 = vmatpush1.msra.mxu0 %v8568
        %8615 = vmatprep.subr.mxu0 0.0
        %8616 = vmatpush1.msra.mxu0 %v8566
        %8617 = vmatprep.subr.mxu0 0.0
        %8618 = vmatpush1.msra.mxu0 %v8564
        %8619 = vmatprep.subr.mxu0 0.0
        %8620 = vmatpush2.msra.mxu0 0.0
        %8621 = vmatprep.subr.mxu0 0.0
        %8622 = vmatpush2.msra.mxu0 0.0
        %8623 = vmatprep.subr.mxu0 0.0
        %8624 = vmatpush2.msra.mxu0 0.0
        %8625 = vmatprep.subr.mxu0 0.0
        %8626 = vmatpush2.msra.mxu0 0.0
        %8627 = vmatprep.subr.mxu0 0.0
        %8628 = vmatpush2.msra.mxu0 0.0
        %8629 = vmatprep.subr.mxu0 0.0
        %8630 = vmatpush2.msra.mxu0 0.0
        %8631 = vmatprep.subr.mxu0 0.0
        %8632 = vmatpush2.msra.mxu0 0.0
        %8633 = vmatprep.subr.mxu0 0.0
        %8634 = vmatpush2.msra.mxu0 0.0
        %8635 = vmatprep.subr.mxu0 0.0
        %8636 = vmatpush2.msra.mxu0 0.0
        %8637 = vmatprep.subr.mxu0 0.0
        %8638 = vmatpush2.msra.mxu0 0.0
        %8639 = vmatprep.subr.mxu0 0.0
        %8640 = vmatpush2.msra.mxu0 0.0
        %8641 = vmatprep.subr.mxu0 0.0
        %8642 = vmatpush2.msra.mxu0 0.0
        %8643 = vmatprep.subr.mxu0 0.0
        %8644 = vmatpush2.msra.mxu0 0.0
        %8645 = vmatprep.subr.mxu0 0.0
        %8646 = vmatpush2.msra.mxu0 0.0
        %8647 = vmatprep.subr.mxu0 0.0
        %8648 = vmatpush2.msra.mxu0 0.0
        %8649 = vmatprep.subr.mxu0 0.0
        %8650 = vmatpush2.msra.mxu0 0.0
        %8651 = vmatprep.mubr.f32.mxu0 0.0
        %8652 = vmatmul.mubr.f32.gmra.mxu0 %v8576
        %v8653 = vpop.f32.mrf.mxu0
        %v8654 = vadd.f32 0.0, %v8653
        %v8655 = vpop.f32.mrf.mxu0
        %8656 = vmatprep.mubr.f32.mxu0 0.0
        %8657 = vmatmul.mubr.f32.gmra.mxu0 %v8579
        %v8658 = vpop.f32.mrf.mxu0
        %v8659 = vadd.f32 0.0, %v8658
        %v8660 = vpop.f32.mrf.mxu0
        %8661 = vmatprep.mubr.f32.mxu0 0.0
        %8662 = vmatmul.mubr.f32.gmra.mxu0 %v8582
        %v8663 = vpop.f32.mrf.mxu0
        %v8664 = vadd.f32 0.0, %v8663
        %v8665 = vpop.f32.mrf.mxu0
        %8666 = vmatprep.mubr.f32.mxu0 0.0
        %8667 = vmatmul.mubr.f32.gmra.mxu0 %v8585
        %v8668 = vpop.f32.mrf.mxu0
        %v8669 = vadd.f32 0.0, %v8668
        %v8670 = vpop.f32.mrf.mxu0
        %8671 = vdwg.mxu0
        %8672 = vrot.lane.b32.xlu0 %v851, 64
        %v8673 = vpop.permute.xlu0 %8672
        %8674 = vrot.lane.b32.xlu0 %v853, 64
        %v8675 = vpop.permute.xlu0 %8674
        %8676 = vrot.lane.b32.xlu0 %v855, 64
        %v8677 = vpop.permute.xlu0 %8676
        %8678 = vrot.lane.b32.xlu0 %v857, 64
        %v8679 = vpop.permute.xlu0 %8678
        %v8685 = vsel %vm360, %v5919, 0
        %v8688 = vsel %vm360, %v5920, 0
        %v8691 = vsel %vm360, %v5921, 0
        %v8694 = vsel %vm360, %v5922, 0
        %8696 = vmatprep.subr.mxu0 0.0
        %8697 = vmatpush1.msra.mxu0 0.0
        %8698 = vmatprep.subr.mxu0 0.0
        %8699 = vmatpush1.msra.mxu0 0.0
        %8700 = vmatprep.subr.mxu0 0.0
        %8701 = vmatpush1.msra.mxu0 0.0
        %8702 = vmatprep.subr.mxu0 0.0
        %8703 = vmatpush1.msra.mxu0 0.0
        %8704 = vmatprep.subr.mxu0 0.0
        %8705 = vmatpush1.msra.mxu0 0.0
        %8706 = vmatprep.subr.mxu0 0.0
        %8707 = vmatpush1.msra.mxu0 0.0
        %8708 = vmatprep.subr.mxu0 0.0
        %8709 = vmatpush1.msra.mxu0 0.0
        %8710 = vmatprep.subr.mxu0 0.0
        %8711 = vmatpush1.msra.mxu0 0.0
        %8712 = vmatprep.subr.mxu0 0.0
        %8713 = vmatpush1.msra.mxu0 0.0
        %8714 = vmatprep.subr.mxu0 0.0
        %8715 = vmatpush1.msra.mxu0 0.0
        %8716 = vmatprep.subr.mxu0 0.0
        %8717 = vmatpush1.msra.mxu0 0.0
        %8718 = vmatprep.subr.mxu0 0.0
        %8719 = vmatpush1.msra.mxu0 0.0
        %8720 = vmatprep.subr.mxu0 0.0
        %8721 = vmatpush1.msra.mxu0 %v8679
        %8722 = vmatprep.subr.mxu0 0.0
        %8723 = vmatpush1.msra.mxu0 %v8677
        %8724 = vmatprep.subr.mxu0 0.0
        %8725 = vmatpush1.msra.mxu0 %v8675
        %8726 = vmatprep.subr.mxu0 0.0
        %8727 = vmatpush1.msra.mxu0 %v8673
        %8728 = vmatprep.subr.mxu0 0.0
        %8729 = vmatpush2.msra.mxu0 0.0
        %8730 = vmatprep.subr.mxu0 0.0
        %8731 = vmatpush2.msra.mxu0 0.0
        %8732 = vmatprep.subr.mxu0 0.0
        %8733 = vmatpush2.msra.mxu0 0.0
        %8734 = vmatprep.subr.mxu0 0.0
        %8735 = vmatpush2.msra.mxu0 0.0
        %8736 = vmatprep.subr.mxu0 0.0
        %8737 = vmatpush2.msra.mxu0 0.0
        %8738 = vmatprep.subr.mxu0 0.0
        %8739 = vmatpush2.msra.mxu0 0.0
        %8740 = vmatprep.subr.mxu0 0.0
        %8741 = vmatpush2.msra.mxu0 0.0
        %8742 = vmatprep.subr.mxu0 0.0
        %8743 = vmatpush2.msra.mxu0 0.0
        %8744 = vmatprep.subr.mxu0 0.0
        %8745 = vmatpush2.msra.mxu0 0.0
        %8746 = vmatprep.subr.mxu0 0.0
        %8747 = vmatpush2.msra.mxu0 0.0
        %8748 = vmatprep.subr.mxu0 0.0
        %8749 = vmatpush2.msra.mxu0 0.0
        %8750 = vmatprep.subr.mxu0 0.0
        %8751 = vmatpush2.msra.mxu0 0.0
        %8752 = vmatprep.subr.mxu0 0.0
        %8753 = vmatpush2.msra.mxu0 0.0
        %8754 = vmatprep.subr.mxu0 0.0
        %8755 = vmatpush2.msra.mxu0 0.0
        %8756 = vmatprep.subr.mxu0 0.0
        %8757 = vmatpush2.msra.mxu0 0.0
        %8758 = vmatprep.subr.mxu0 0.0
        %8759 = vmatpush2.msra.mxu0 0.0
        %8760 = vmatprep.mubr.f32.mxu0 0.0
        %8761 = vmatmul.mubr.f32.gmra.mxu0 %v8685
        %v8762 = vpop.f32.mrf.mxu0
        %v8763 = vadd.f32 0.0, %v8762
        %v8764 = vpop.f32.mrf.mxu0
        %8765 = vmatprep.mubr.f32.mxu0 0.0
        %8766 = vmatmul.mubr.f32.gmra.mxu0 %v8688
        %v8767 = vpop.f32.mrf.mxu0
        %v8768 = vadd.f32 0.0, %v8767
        %v8769 = vpop.f32.mrf.mxu0
        %8770 = vmatprep.mubr.f32.mxu0 0.0
        %8771 = vmatmul.mubr.f32.gmra.mxu0 %v8691
        %v8772 = vpop.f32.mrf.mxu0
        %v8773 = vadd.f32 0.0, %v8772
        %v8774 = vpop.f32.mrf.mxu0
        %8775 = vmatprep.mubr.f32.mxu0 0.0
        %8776 = vmatmul.mubr.f32.gmra.mxu0 %v8694
        %v8777 = vpop.f32.mrf.mxu0
        %v8778 = vadd.f32 0.0, %v8777
        %v8779 = vpop.f32.mrf.mxu0
        %8780 = vdwg.mxu0
        %8781 = vrot.lane.b32.xlu0 %v859, 64
        %v8782 = vpop.permute.xlu0 %8781
        %8783 = vrot.lane.b32.xlu0 %v861, 64
        %v8784 = vpop.permute.xlu0 %8783
        %8785 = vrot.lane.b32.xlu0 %v863, 64
        %v8786 = vpop.permute.xlu0 %8785
        %8787 = vrot.lane.b32.xlu0 %v865, 64
        %v8788 = vpop.permute.xlu0 %8787
        %v8794 = vsel %vm360, %v5923, 0
        %v8797 = vsel %vm360, %v5924, 0
        %v8800 = vsel %vm360, %v5925, 0
        %v8803 = vsel %vm360, %v5926, 0
        %8805 = vmatprep.subr.mxu0 0.0
        %8806 = vmatpush1.msra.mxu0 0.0
        %8807 = vmatprep.subr.mxu0 0.0
        %8808 = vmatpush1.msra.mxu0 0.0
        %8809 = vmatprep.subr.mxu0 0.0
        %8810 = vmatpush1.msra.mxu0 0.0
        %8811 = vmatprep.subr.mxu0 0.0
        %8812 = vmatpush1.msra.mxu0 0.0
        %8813 = vmatprep.subr.mxu0 0.0
        %8814 = vmatpush1.msra.mxu0 0.0
        %8815 = vmatprep.subr.mxu0 0.0
        %8816 = vmatpush1.msra.mxu0 0.0
        %8817 = vmatprep.subr.mxu0 0.0
        %8818 = vmatpush1.msra.mxu0 0.0
        %8819 = vmatprep.subr.mxu0 0.0
        %8820 = vmatpush1.msra.mxu0 0.0
        %8821 = vmatprep.subr.mxu0 0.0
        %8822 = vmatpush1.msra.mxu0 0.0
        %8823 = vmatprep.subr.mxu0 0.0
        %8824 = vmatpush1.msra.mxu0 0.0
        %8825 = vmatprep.subr.mxu0 0.0
        %8826 = vmatpush1.msra.mxu0 0.0
        %8827 = vmatprep.subr.mxu0 0.0
        %8828 = vmatpush1.msra.mxu0 0.0
        %8829 = vmatprep.subr.mxu0 0.0
        %8830 = vmatpush1.msra.mxu0 %v8788
        %8831 = vmatprep.subr.mxu0 0.0
        %8832 = vmatpush1.msra.mxu0 %v8786
        %8833 = vmatprep.subr.mxu0 0.0
        %8834 = vmatpush1.msra.mxu0 %v8784
        %8835 = vmatprep.subr.mxu0 0.0
        %8836 = vmatpush1.msra.mxu0 %v8782
        %8837 = vmatprep.subr.mxu0 0.0
        %8838 = vmatpush2.msra.mxu0 0.0
        %8839 = vmatprep.subr.mxu0 0.0
        %8840 = vmatpush2.msra.mxu0 0.0
        %8841 = vmatprep.subr.mxu0 0.0
        %8842 = vmatpush2.msra.mxu0 0.0
        %8843 = vmatprep.subr.mxu0 0.0
        %8844 = vmatpush2.msra.mxu0 0.0
        %8845 = vmatprep.subr.mxu0 0.0
        %8846 = vmatpush2.msra.mxu0 0.0
        %8847 = vmatprep.subr.mxu0 0.0
        %8848 = vmatpush2.msra.mxu0 0.0
        %8849 = vmatprep.subr.mxu0 0.0
        %8850 = vmatpush2.msra.mxu0 0.0
        %8851 = vmatprep.subr.mxu0 0.0
        %8852 = vmatpush2.msra.mxu0 0.0
        %8853 = vmatprep.subr.mxu0 0.0
        %8854 = vmatpush2.msra.mxu0 0.0
        %8855 = vmatprep.subr.mxu0 0.0
        %8856 = vmatpush2.msra.mxu0 0.0
        %8857 = vmatprep.subr.mxu0 0.0
        %8858 = vmatpush2.msra.mxu0 0.0
        %8859 = vmatprep.subr.mxu0 0.0
        %8860 = vmatpush2.msra.mxu0 0.0
        %8861 = vmatprep.subr.mxu0 0.0
        %8862 = vmatpush2.msra.mxu0 0.0
        %8863 = vmatprep.subr.mxu0 0.0
        %8864 = vmatpush2.msra.mxu0 0.0
        %8865 = vmatprep.subr.mxu0 0.0
        %8866 = vmatpush2.msra.mxu0 0.0
        %8867 = vmatprep.subr.mxu0 0.0
        %8868 = vmatpush2.msra.mxu0 0.0
        %8869 = vmatprep.mubr.f32.mxu0 0.0
        %8870 = vmatmul.mubr.f32.gmra.mxu0 %v8794
        %v8871 = vpop.f32.mrf.mxu0
        %v8872 = vadd.f32 0.0, %v8871
        %v8873 = vpop.f32.mrf.mxu0
        %8874 = vmatprep.mubr.f32.mxu0 0.0
        %8875 = vmatmul.mubr.f32.gmra.mxu0 %v8797
        %v8876 = vpop.f32.mrf.mxu0
        %v8877 = vadd.f32 0.0, %v8876
        %v8878 = vpop.f32.mrf.mxu0
        %8879 = vmatprep.mubr.f32.mxu0 0.0
        %8880 = vmatmul.mubr.f32.gmra.mxu0 %v8800
        %v8881 = vpop.f32.mrf.mxu0
        %v8882 = vadd.f32 0.0, %v8881
        %v8883 = vpop.f32.mrf.mxu0
        %8884 = vmatprep.mubr.f32.mxu0 0.0
        %8885 = vmatmul.mubr.f32.gmra.mxu0 %v8803
        %v8886 = vpop.f32.mrf.mxu0
        %v8887 = vadd.f32 0.0, %v8886
        %v8888 = vpop.f32.mrf.mxu0
        %8889 = vdwg.mxu0
        %8890 = vrot.lane.b32.xlu0 %v867, 64
        %v8891 = vpop.permute.xlu0 %8890
        %8892 = vrot.lane.b32.xlu0 %v869, 64
        %v8893 = vpop.permute.xlu0 %8892
        %8894 = vrot.lane.b32.xlu0 %v871, 64
        %v8895 = vpop.permute.xlu0 %8894
        %8896 = vrot.lane.b32.xlu0 %v873, 64
        %v8897 = vpop.permute.xlu0 %8896
        %v8903 = vsel %vm360, %v5927, 0
        %v8906 = vsel %vm360, %v5928, 0
        %v8909 = vsel %vm360, %v5929, 0
        %v8912 = vsel %vm360, %v5930, 0
        %8914 = vmatprep.subr.mxu0 0.0
        %8915 = vmatpush1.msra.mxu0 0.0
        %8916 = vmatprep.subr.mxu0 0.0
        %8917 = vmatpush1.msra.mxu0 0.0
        %8918 = vmatprep.subr.mxu0 0.0
        %8919 = vmatpush1.msra.mxu0 0.0
        %8920 = vmatprep.subr.mxu0 0.0
        %8921 = vmatpush1.msra.mxu0 0.0
        %8922 = vmatprep.subr.mxu0 0.0
        %8923 = vmatpush1.msra.mxu0 0.0
        %8924 = vmatprep.subr.mxu0 0.0
        %8925 = vmatpush1.msra.mxu0 0.0
        %8926 = vmatprep.subr.mxu0 0.0
        %8927 = vmatpush1.msra.mxu0 0.0
        %8928 = vmatprep.subr.mxu0 0.0
        %8929 = vmatpush1.msra.mxu0 0.0
        %8930 = vmatprep.subr.mxu0 0.0
        %8931 = vmatpush1.msra.mxu0 0.0
        %8932 = vmatprep.subr.mxu0 0.0
        %8933 = vmatpush1.msra.mxu0 0.0
        %8934 = vmatprep.subr.mxu0 0.0
        %8935 = vmatpush1.msra.mxu0 0.0
        %8936 = vmatprep.subr.mxu0 0.0
        %8937 = vmatpush1.msra.mxu0 0.0
        %8938 = vmatprep.subr.mxu0 0.0
        %8939 = vmatpush1.msra.mxu0 %v8897
        %8940 = vmatprep.subr.mxu0 0.0
        %8941 = vmatpush1.msra.mxu0 %v8895
        %8942 = vmatprep.subr.mxu0 0.0
        %8943 = vmatpush1.msra.mxu0 %v8893
        %8944 = vmatprep.subr.mxu0 0.0
        %8945 = vmatpush1.msra.mxu0 %v8891
        %8946 = vmatprep.subr.mxu0 0.0
        %8947 = vmatpush2.msra.mxu0 0.0
        %8948 = vmatprep.subr.mxu0 0.0
        %8949 = vmatpush2.msra.mxu0 0.0
        %8950 = vmatprep.subr.mxu0 0.0
        %8951 = vmatpush2.msra.mxu0 0.0
        %8952 = vmatprep.subr.mxu0 0.0
        %8953 = vmatpush2.msra.mxu0 0.0
        %8954 = vmatprep.subr.mxu0 0.0
        %8955 = vmatpush2.msra.mxu0 0.0
        %8956 = vmatprep.subr.mxu0 0.0
        %8957 = vmatpush2.msra.mxu0 0.0
        %8958 = vmatprep.subr.mxu0 0.0
        %8959 = vmatpush2.msra.mxu0 0.0
        %8960 = vmatprep.subr.mxu0 0.0
        %8961 = vmatpush2.msra.mxu0 0.0
        %8962 = vmatprep.subr.mxu0 0.0
        %8963 = vmatpush2.msra.mxu0 0.0
        %8964 = vmatprep.subr.mxu0 0.0
        %8965 = vmatpush2.msra.mxu0 0.0
        %8966 = vmatprep.subr.mxu0 0.0
        %8967 = vmatpush2.msra.mxu0 0.0
        %8968 = vmatprep.subr.mxu0 0.0
        %8969 = vmatpush2.msra.mxu0 0.0
        %8970 = vmatprep.subr.mxu0 0.0
        %8971 = vmatpush2.msra.mxu0 0.0
        %8972 = vmatprep.subr.mxu0 0.0
        %8973 = vmatpush2.msra.mxu0 0.0
        %8974 = vmatprep.subr.mxu0 0.0
        %8975 = vmatpush2.msra.mxu0 0.0
        %8976 = vmatprep.subr.mxu0 0.0
        %8977 = vmatpush2.msra.mxu0 0.0
        %8978 = vmatprep.mubr.f32.mxu0 0.0
        %8979 = vmatmul.mubr.f32.gmra.mxu0 %v8903
        %v8980 = vpop.f32.mrf.mxu0
        %v8981 = vadd.f32 0.0, %v8980
        %v8982 = vpop.f32.mrf.mxu0
        %8983 = vmatprep.mubr.f32.mxu0 0.0
        %8984 = vmatmul.mubr.f32.gmra.mxu0 %v8906
        %v8985 = vpop.f32.mrf.mxu0
        %v8986 = vadd.f32 0.0, %v8985
        %v8987 = vpop.f32.mrf.mxu0
        %8988 = vmatprep.mubr.f32.mxu0 0.0
        %8989 = vmatmul.mubr.f32.gmra.mxu0 %v8909
        %v8990 = vpop.f32.mrf.mxu0
        %v8991 = vadd.f32 0.0, %v8990
        %v8992 = vpop.f32.mrf.mxu0
        %8993 = vmatprep.mubr.f32.mxu0 0.0
        %8994 = vmatmul.mubr.f32.gmra.mxu0 %v8912
        %v8995 = vpop.f32.mrf.mxu0
        %v8996 = vadd.f32 0.0, %v8995
        %v8997 = vpop.f32.mrf.mxu0
        %8998 = vdwg.mxu0
        %8999 = vrot.lane.b32.xlu0 %v875, 64
        %v9000 = vpop.permute.xlu0 %8999
        %9001 = vrot.lane.b32.xlu0 %v877, 64
        %v9002 = vpop.permute.xlu0 %9001
        %9003 = vrot.lane.b32.xlu0 %v879, 64
        %v9004 = vpop.permute.xlu0 %9003
        %9005 = vrot.lane.b32.xlu0 %v881, 64
        %v9006 = vpop.permute.xlu0 %9005
        %v9012 = vsel %vm360, %v5931, 0
        %v9015 = vsel %vm360, %v5932, 0
        %v9018 = vsel %vm360, %v5933, 0
        %v9021 = vsel %vm360, %v5934, 0
        %9023 = vmatprep.subr.mxu0 0.0
        %9024 = vmatpush1.msra.mxu0 0.0
        %9025 = vmatprep.subr.mxu0 0.0
        %9026 = vmatpush1.msra.mxu0 0.0
        %9027 = vmatprep.subr.mxu0 0.0
        %9028 = vmatpush1.msra.mxu0 0.0
        %9029 = vmatprep.subr.mxu0 0.0
        %9030 = vmatpush1.msra.mxu0 0.0
        %9031 = vmatprep.subr.mxu0 0.0
        %9032 = vmatpush1.msra.mxu0 0.0
        %9033 = vmatprep.subr.mxu0 0.0
        %9034 = vmatpush1.msra.mxu0 0.0
        %9035 = vmatprep.subr.mxu0 0.0
        %9036 = vmatpush1.msra.mxu0 0.0
        %9037 = vmatprep.subr.mxu0 0.0
        %9038 = vmatpush1.msra.mxu0 0.0
        %9039 = vmatprep.subr.mxu0 0.0
        %9040 = vmatpush1.msra.mxu0 0.0
        %9041 = vmatprep.subr.mxu0 0.0
        %9042 = vmatpush1.msra.mxu0 0.0
        %9043 = vmatprep.subr.mxu0 0.0
        %9044 = vmatpush1.msra.mxu0 0.0
        %9045 = vmatprep.subr.mxu0 0.0
        %9046 = vmatpush1.msra.mxu0 0.0
        %9047 = vmatprep.subr.mxu0 0.0
        %9048 = vmatpush1.msra.mxu0 %v9006
        %9049 = vmatprep.subr.mxu0 0.0
        %9050 = vmatpush1.msra.mxu0 %v9004
        %9051 = vmatprep.subr.mxu0 0.0
        %9052 = vmatpush1.msra.mxu0 %v9002
        %9053 = vmatprep.subr.mxu0 0.0
        %9054 = vmatpush1.msra.mxu0 %v9000
        %9055 = vmatprep.subr.mxu0 0.0
        %9056 = vmatpush2.msra.mxu0 0.0
        %9057 = vmatprep.subr.mxu0 0.0
        %9058 = vmatpush2.msra.mxu0 0.0
        %9059 = vmatprep.subr.mxu0 0.0
        %9060 = vmatpush2.msra.mxu0 0.0
        %9061 = vmatprep.subr.mxu0 0.0
        %9062 = vmatpush2.msra.mxu0 0.0
        %9063 = vmatprep.subr.mxu0 0.0
        %9064 = vmatpush2.msra.mxu0 0.0
        %9065 = vmatprep.subr.mxu0 0.0
        %9066 = vmatpush2.msra.mxu0 0.0
        %9067 = vmatprep.subr.mxu0 0.0
        %9068 = vmatpush2.msra.mxu0 0.0
        %9069 = vmatprep.subr.mxu0 0.0
        %9070 = vmatpush2.msra.mxu0 0.0
        %9071 = vmatprep.subr.mxu0 0.0
        %9072 = vmatpush2.msra.mxu0 0.0
        %9073 = vmatprep.subr.mxu0 0.0
        %9074 = vmatpush2.msra.mxu0 0.0
        %9075 = vmatprep.subr.mxu0 0.0
        %9076 = vmatpush2.msra.mxu0 0.0
        %9077 = vmatprep.subr.mxu0 0.0
        %9078 = vmatpush2.msra.mxu0 0.0
        %9079 = vmatprep.subr.mxu0 0.0
        %9080 = vmatpush2.msra.mxu0 0.0
        %9081 = vmatprep.subr.mxu0 0.0
        %9082 = vmatpush2.msra.mxu0 0.0
        %9083 = vmatprep.subr.mxu0 0.0
        %9084 = vmatpush2.msra.mxu0 0.0
        %9085 = vmatprep.subr.mxu0 0.0
        %9086 = vmatpush2.msra.mxu0 0.0
        %9087 = vmatprep.mubr.f32.mxu0 0.0
        %9088 = vmatmul.mubr.f32.gmra.mxu0 %v9012
        %v9089 = vpop.f32.mrf.mxu0
        %v9090 = vadd.f32 0.0, %v9089
        %v9091 = vpop.f32.mrf.mxu0
        %9092 = vmatprep.mubr.f32.mxu0 0.0
        %9093 = vmatmul.mubr.f32.gmra.mxu0 %v9015
        %v9094 = vpop.f32.mrf.mxu0
        %v9095 = vadd.f32 0.0, %v9094
        %v9096 = vpop.f32.mrf.mxu0
        %9097 = vmatprep.mubr.f32.mxu0 0.0
        %9098 = vmatmul.mubr.f32.gmra.mxu0 %v9018
        %v9099 = vpop.f32.mrf.mxu0
        %v9100 = vadd.f32 0.0, %v9099
        %v9101 = vpop.f32.mrf.mxu0
        %9102 = vmatprep.mubr.f32.mxu0 0.0
        %9103 = vmatmul.mubr.f32.gmra.mxu0 %v9021
        %v9104 = vpop.f32.mrf.mxu0
        %v9105 = vadd.f32 0.0, %v9104
        %v9106 = vpop.f32.mrf.mxu0
        %9107 = vdwg.mxu0
        %9108 = vrot.lane.b32.xlu0 %v883, 64
        %v9109 = vpop.permute.xlu0 %9108
        %9110 = vrot.lane.b32.xlu0 %v885, 64
        %v9111 = vpop.permute.xlu0 %9110
        %9112 = vrot.lane.b32.xlu0 %v887, 64
        %v9113 = vpop.permute.xlu0 %9112
        %9114 = vrot.lane.b32.xlu0 %v889, 64
        %v9115 = vpop.permute.xlu0 %9114
        %v9121 = vsel %vm360, %v5935, 0
        %v9124 = vsel %vm360, %v5936, 0
        %v9127 = vsel %vm360, %v5937, 0
        %v9130 = vsel %vm360, %v5938, 0
        %9132 = vmatprep.subr.mxu0 0.0
        %9133 = vmatpush1.msra.mxu0 0.0
        %9134 = vmatprep.subr.mxu0 0.0
        %9135 = vmatpush1.msra.mxu0 0.0
        %9136 = vmatprep.subr.mxu0 0.0
        %9137 = vmatpush1.msra.mxu0 0.0
        %9138 = vmatprep.subr.mxu0 0.0
        %9139 = vmatpush1.msra.mxu0 0.0
        %9140 = vmatprep.subr.mxu0 0.0
        %9141 = vmatpush1.msra.mxu0 0.0
        %9142 = vmatprep.subr.mxu0 0.0
        %9143 = vmatpush1.msra.mxu0 0.0
        %9144 = vmatprep.subr.mxu0 0.0
        %9145 = vmatpush1.msra.mxu0 0.0
        %9146 = vmatprep.subr.mxu0 0.0
        %9147 = vmatpush1.msra.mxu0 0.0
        %9148 = vmatprep.subr.mxu0 0.0
        %9149 = vmatpush1.msra.mxu0 0.0
        %9150 = vmatprep.subr.mxu0 0.0
        %9151 = vmatpush1.msra.mxu0 0.0
        %9152 = vmatprep.subr.mxu0 0.0
        %9153 = vmatpush1.msra.mxu0 0.0
        %9154 = vmatprep.subr.mxu0 0.0
        %9155 = vmatpush1.msra.mxu0 0.0
        %9156 = vmatprep.subr.mxu0 0.0
        %9157 = vmatpush1.msra.mxu0 %v9115
        %9158 = vmatprep.subr.mxu0 0.0
        %9159 = vmatpush1.msra.mxu0 %v9113
        %9160 = vmatprep.subr.mxu0 0.0
        %9161 = vmatpush1.msra.mxu0 %v9111
        %9162 = vmatprep.subr.mxu0 0.0
        %9163 = vmatpush1.msra.mxu0 %v9109
        %9164 = vmatprep.subr.mxu0 0.0
        %9165 = vmatpush2.msra.mxu0 0.0
        %9166 = vmatprep.subr.mxu0 0.0
        %9167 = vmatpush2.msra.mxu0 0.0
        %9168 = vmatprep.subr.mxu0 0.0
        %9169 = vmatpush2.msra.mxu0 0.0
        %9170 = vmatprep.subr.mxu0 0.0
        %9171 = vmatpush2.msra.mxu0 0.0
        %9172 = vmatprep.subr.mxu0 0.0
        %9173 = vmatpush2.msra.mxu0 0.0
        %9174 = vmatprep.subr.mxu0 0.0
        %9175 = vmatpush2.msra.mxu0 0.0
        %9176 = vmatprep.subr.mxu0 0.0
        %9177 = vmatpush2.msra.mxu0 0.0
        %9178 = vmatprep.subr.mxu0 0.0
        %9179 = vmatpush2.msra.mxu0 0.0
        %9180 = vmatprep.subr.mxu0 0.0
        %9181 = vmatpush2.msra.mxu0 0.0
        %9182 = vmatprep.subr.mxu0 0.0
        %9183 = vmatpush2.msra.mxu0 0.0
        %9184 = vmatprep.subr.mxu0 0.0
        %9185 = vmatpush2.msra.mxu0 0.0
        %9186 = vmatprep.subr.mxu0 0.0
        %9187 = vmatpush2.msra.mxu0 0.0
        %9188 = vmatprep.subr.mxu0 0.0
        %9189 = vmatpush2.msra.mxu0 0.0
        %9190 = vmatprep.subr.mxu0 0.0
        %9191 = vmatpush2.msra.mxu0 0.0
        %9192 = vmatprep.subr.mxu0 0.0
        %9193 = vmatpush2.msra.mxu0 0.0
        %9194 = vmatprep.subr.mxu0 0.0
        %9195 = vmatpush2.msra.mxu0 0.0
        %9196 = vmatprep.mubr.f32.mxu0 0.0
        %9197 = vmatmul.mubr.f32.gmra.mxu0 %v9121
        %v9198 = vpop.f32.mrf.mxu0
        %v9199 = vadd.f32 0.0, %v9198
        %v9200 = vpop.f32.mrf.mxu0
        %9201 = vmatprep.mubr.f32.mxu0 0.0
        %9202 = vmatmul.mubr.f32.gmra.mxu0 %v9124
        %v9203 = vpop.f32.mrf.mxu0
        %v9204 = vadd.f32 0.0, %v9203
        %v9205 = vpop.f32.mrf.mxu0
        %9206 = vmatprep.mubr.f32.mxu0 0.0
        %9207 = vmatmul.mubr.f32.gmra.mxu0 %v9127
        %v9208 = vpop.f32.mrf.mxu0
        %v9209 = vadd.f32 0.0, %v9208
        %v9210 = vpop.f32.mrf.mxu0
        %9211 = vmatprep.mubr.f32.mxu0 0.0
        %9212 = vmatmul.mubr.f32.gmra.mxu0 %v9130
        %v9213 = vpop.f32.mrf.mxu0
        %v9214 = vadd.f32 0.0, %v9213
        %v9215 = vpop.f32.mrf.mxu0
        %9216 = vdwg.mxu0
        %9217 = vrot.lane.b32.xlu0 %v891, 64
        %v9218 = vpop.permute.xlu0 %9217
        %9219 = vrot.lane.b32.xlu0 %v893, 64
        %v9220 = vpop.permute.xlu0 %9219
        %9221 = vrot.lane.b32.xlu0 %v895, 64
        %v9222 = vpop.permute.xlu0 %9221
        %9223 = vrot.lane.b32.xlu0 %v897, 64
        %v9224 = vpop.permute.xlu0 %9223
        %v9230 = vsel %vm360, %v5939, 0
        %v9233 = vsel %vm360, %v5940, 0
        %v9236 = vsel %vm360, %v5941, 0
        %v9239 = vsel %vm360, %v5942, 0
        %9241 = vmatprep.subr.mxu0 0.0
        %9242 = vmatpush1.msra.mxu0 0.0
        %9243 = vmatprep.subr.mxu0 0.0
        %9244 = vmatpush1.msra.mxu0 0.0
        %9245 = vmatprep.subr.mxu0 0.0
        %9246 = vmatpush1.msra.mxu0 0.0
        %9247 = vmatprep.subr.mxu0 0.0
        %9248 = vmatpush1.msra.mxu0 0.0
        %9249 = vmatprep.subr.mxu0 0.0
        %9250 = vmatpush1.msra.mxu0 0.0
        %9251 = vmatprep.subr.mxu0 0.0
        %9252 = vmatpush1.msra.mxu0 0.0
        %9253 = vmatprep.subr.mxu0 0.0
        %9254 = vmatpush1.msra.mxu0 0.0
        %9255 = vmatprep.subr.mxu0 0.0
        %9256 = vmatpush1.msra.mxu0 0.0
        %9257 = vmatprep.subr.mxu0 0.0
        %9258 = vmatpush1.msra.mxu0 0.0
        %9259 = vmatprep.subr.mxu0 0.0
        %9260 = vmatpush1.msra.mxu0 0.0
        %9261 = vmatprep.subr.mxu0 0.0
        %9262 = vmatpush1.msra.mxu0 0.0
        %9263 = vmatprep.subr.mxu0 0.0
        %9264 = vmatpush1.msra.mxu0 0.0
        %9265 = vmatprep.subr.mxu0 0.0
        %9266 = vmatpush1.msra.mxu0 %v9224
        %9267 = vmatprep.subr.mxu0 0.0
        %9268 = vmatpush1.msra.mxu0 %v9222
        %9269 = vmatprep.subr.mxu0 0.0
        %9270 = vmatpush1.msra.mxu0 %v9220
        %9271 = vmatprep.subr.mxu0 0.0
        %9272 = vmatpush1.msra.mxu0 %v9218
        %9273 = vmatprep.subr.mxu0 0.0
        %9274 = vmatpush2.msra.mxu0 0.0
        %9275 = vmatprep.subr.mxu0 0.0
        %9276 = vmatpush2.msra.mxu0 0.0
        %9277 = vmatprep.subr.mxu0 0.0
        %9278 = vmatpush2.msra.mxu0 0.0
        %9279 = vmatprep.subr.mxu0 0.0
        %9280 = vmatpush2.msra.mxu0 0.0
        %9281 = vmatprep.subr.mxu0 0.0
        %9282 = vmatpush2.msra.mxu0 0.0
        %9283 = vmatprep.subr.mxu0 0.0
        %9284 = vmatpush2.msra.mxu0 0.0
        %9285 = vmatprep.subr.mxu0 0.0
        %9286 = vmatpush2.msra.mxu0 0.0
        %9287 = vmatprep.subr.mxu0 0.0
        %9288 = vmatpush2.msra.mxu0 0.0
        %9289 = vmatprep.subr.mxu0 0.0
        %9290 = vmatpush2.msra.mxu0 0.0
        %9291 = vmatprep.subr.mxu0 0.0
        %9292 = vmatpush2.msra.mxu0 0.0
        %9293 = vmatprep.subr.mxu0 0.0
        %9294 = vmatpush2.msra.mxu0 0.0
        %9295 = vmatprep.subr.mxu0 0.0
        %9296 = vmatpush2.msra.mxu0 0.0
        %9297 = vmatprep.subr.mxu0 0.0
        %9298 = vmatpush2.msra.mxu0 0.0
        %9299 = vmatprep.subr.mxu0 0.0
        %9300 = vmatpush2.msra.mxu0 0.0
        %9301 = vmatprep.subr.mxu0 0.0
        %9302 = vmatpush2.msra.mxu0 0.0
        %9303 = vmatprep.subr.mxu0 0.0
        %9304 = vmatpush2.msra.mxu0 0.0
        %9305 = vmatprep.mubr.f32.mxu0 0.0
        %9306 = vmatmul.mubr.f32.gmra.mxu0 %v9230
        %v9307 = vpop.f32.mrf.mxu0
        %v9308 = vadd.f32 0.0, %v9307
        %v9309 = vpop.f32.mrf.mxu0
        %9310 = vmatprep.mubr.f32.mxu0 0.0
        %9311 = vmatmul.mubr.f32.gmra.mxu0 %v9233
        %v9312 = vpop.f32.mrf.mxu0
        %v9313 = vadd.f32 0.0, %v9312
        %v9314 = vpop.f32.mrf.mxu0
        %9315 = vmatprep.mubr.f32.mxu0 0.0
        %9316 = vmatmul.mubr.f32.gmra.mxu0 %v9236
        %v9317 = vpop.f32.mrf.mxu0
        %v9318 = vadd.f32 0.0, %v9317
        %v9319 = vpop.f32.mrf.mxu0
        %9320 = vmatprep.mubr.f32.mxu0 0.0
        %9321 = vmatmul.mubr.f32.gmra.mxu0 %v9239
        %v9322 = vpop.f32.mrf.mxu0
        %v9323 = vadd.f32 0.0, %v9322
        %v9324 = vpop.f32.mrf.mxu0
        %9325 = vdwg.mxu0
        %9326 = vrot.lane.b32.xlu0 %v899, 64
        %v9327 = vpop.permute.xlu0 %9326
        %9328 = vrot.lane.b32.xlu0 %v901, 64
        %v9329 = vpop.permute.xlu0 %9328
        %9330 = vrot.lane.b32.xlu0 %v903, 64
        %v9331 = vpop.permute.xlu0 %9330
        %9332 = vrot.lane.b32.xlu0 %v905, 64
        %v9333 = vpop.permute.xlu0 %9332
        %v9339 = vsel %vm360, %v5943, 0
        %v9342 = vsel %vm360, %v5944, 0
        %v9345 = vsel %vm360, %v5945, 0
        %v9348 = vsel %vm360, %v5946, 0
        %9350 = vmatprep.subr.mxu0 0.0
        %9351 = vmatpush1.msra.mxu0 0.0
        %9352 = vmatprep.subr.mxu0 0.0
        %9353 = vmatpush1.msra.mxu0 0.0
        %9354 = vmatprep.subr.mxu0 0.0
        %9355 = vmatpush1.msra.mxu0 0.0
        %9356 = vmatprep.subr.mxu0 0.0
        %9357 = vmatpush1.msra.mxu0 0.0
        %9358 = vmatprep.subr.mxu0 0.0
        %9359 = vmatpush1.msra.mxu0 0.0
        %9360 = vmatprep.subr.mxu0 0.0
        %9361 = vmatpush1.msra.mxu0 0.0
        %9362 = vmatprep.subr.mxu0 0.0
        %9363 = vmatpush1.msra.mxu0 0.0
        %9364 = vmatprep.subr.mxu0 0.0
        %9365 = vmatpush1.msra.mxu0 0.0
        %9366 = vmatprep.subr.mxu0 0.0
        %9367 = vmatpush1.msra.mxu0 0.0
        %9368 = vmatprep.subr.mxu0 0.0
        %9369 = vmatpush1.msra.mxu0 0.0
        %9370 = vmatprep.subr.mxu0 0.0
        %9371 = vmatpush1.msra.mxu0 0.0
        %9372 = vmatprep.subr.mxu0 0.0
        %9373 = vmatpush1.msra.mxu0 0.0
        %9374 = vmatprep.subr.mxu0 0.0
        %9375 = vmatpush1.msra.mxu0 %v9333
        %9376 = vmatprep.subr.mxu0 0.0
        %9377 = vmatpush1.msra.mxu0 %v9331
        %9378 = vmatprep.subr.mxu0 0.0
        %9379 = vmatpush1.msra.mxu0 %v9329
        %9380 = vmatprep.subr.mxu0 0.0
        %9381 = vmatpush1.msra.mxu0 %v9327
        %9382 = vmatprep.subr.mxu0 0.0
        %9383 = vmatpush2.msra.mxu0 0.0
        %9384 = vmatprep.subr.mxu0 0.0
        %9385 = vmatpush2.msra.mxu0 0.0
        %9386 = vmatprep.subr.mxu0 0.0
        %9387 = vmatpush2.msra.mxu0 0.0
        %9388 = vmatprep.subr.mxu0 0.0
        %9389 = vmatpush2.msra.mxu0 0.0
        %9390 = vmatprep.subr.mxu0 0.0
        %9391 = vmatpush2.msra.mxu0 0.0
        %9392 = vmatprep.subr.mxu0 0.0
        %9393 = vmatpush2.msra.mxu0 0.0
        %9394 = vmatprep.subr.mxu0 0.0
        %9395 = vmatpush2.msra.mxu0 0.0
        %9396 = vmatprep.subr.mxu0 0.0
        %9397 = vmatpush2.msra.mxu0 0.0
        %9398 = vmatprep.subr.mxu0 0.0
        %9399 = vmatpush2.msra.mxu0 0.0
        %9400 = vmatprep.subr.mxu0 0.0
        %9401 = vmatpush2.msra.mxu0 0.0
        %9402 = vmatprep.subr.mxu0 0.0
        %9403 = vmatpush2.msra.mxu0 0.0
        %9404 = vmatprep.subr.mxu0 0.0
        %9405 = vmatpush2.msra.mxu0 0.0
        %9406 = vmatprep.subr.mxu0 0.0
        %9407 = vmatpush2.msra.mxu0 0.0
        %9408 = vmatprep.subr.mxu0 0.0
        %9409 = vmatpush2.msra.mxu0 0.0
        %9410 = vmatprep.subr.mxu0 0.0
        %9411 = vmatpush2.msra.mxu0 0.0
        %9412 = vmatprep.subr.mxu0 0.0
        %9413 = vmatpush2.msra.mxu0 0.0
        %9414 = vmatprep.mubr.f32.mxu0 0.0
        %9415 = vmatmul.mubr.f32.gmra.mxu0 %v9339
        %v9416 = vpop.f32.mrf.mxu0
        %v9417 = vadd.f32 0.0, %v9416
        %v9418 = vpop.f32.mrf.mxu0
        %9419 = vmatprep.mubr.f32.mxu0 0.0
        %9420 = vmatmul.mubr.f32.gmra.mxu0 %v9342
        %v9421 = vpop.f32.mrf.mxu0
        %v9422 = vadd.f32 0.0, %v9421
        %v9423 = vpop.f32.mrf.mxu0
        %9424 = vmatprep.mubr.f32.mxu0 0.0
        %9425 = vmatmul.mubr.f32.gmra.mxu0 %v9345
        %v9426 = vpop.f32.mrf.mxu0
        %v9427 = vadd.f32 0.0, %v9426
        %v9428 = vpop.f32.mrf.mxu0
        %9429 = vmatprep.mubr.f32.mxu0 0.0
        %9430 = vmatmul.mubr.f32.gmra.mxu0 %v9348
        %v9431 = vpop.f32.mrf.mxu0
        %v9432 = vadd.f32 0.0, %v9431
        %v9433 = vpop.f32.mrf.mxu0
        %9434 = vdwg.mxu0
        %9467 = vrot.lane.b32.xlu0 %v6910, 8
        %v9468 = vpop.permute.xlu0 %9467
        %9469 = vrot.lane.b32.xlu0 %v6915, 8
        %v9470 = vpop.permute.xlu0 %9469
        %9471 = vrot.lane.b32.xlu0 %v6920, 8
        %v9472 = vpop.permute.xlu0 %9471
        %9473 = vrot.lane.b32.xlu0 %v6925, 8
        %v9474 = vpop.permute.xlu0 %9473
        %9475 = vrot.lane.b32.xlu0 %v7019, 8
        %v9476 = vpop.permute.xlu0 %9475
        %9477 = vrot.lane.b32.xlu0 %v7024, 8
        %v9478 = vpop.permute.xlu0 %9477
        %9479 = vrot.lane.b32.xlu0 %v7029, 8
        %v9480 = vpop.permute.xlu0 %9479
        %9481 = vrot.lane.b32.xlu0 %v7034, 8
        %v9482 = vpop.permute.xlu0 %9481
        %9483 = vrot.lane.b32.xlu0 %v7128, 8
        %v9484 = vpop.permute.xlu0 %9483
        %9485 = vrot.lane.b32.xlu0 %v7133, 8
        %v9486 = vpop.permute.xlu0 %9485
        %9487 = vrot.lane.b32.xlu0 %v7138, 8
        %v9488 = vpop.permute.xlu0 %9487
        %9489 = vrot.lane.b32.xlu0 %v7143, 8
        %v9490 = vpop.permute.xlu0 %9489
        %9491 = vrot.lane.b32.xlu0 %v7237, 8
        %v9492 = vpop.permute.xlu0 %9491
        %9493 = vrot.lane.b32.xlu0 %v7242, 8
        %v9494 = vpop.permute.xlu0 %9493
        %9495 = vrot.lane.b32.xlu0 %v7247, 8
        %v9496 = vpop.permute.xlu0 %9495
        %9497 = vrot.lane.b32.xlu0 %v7252, 8
        %v9498 = vpop.permute.xlu0 %9497
        %9499 = vrot.lane.b32.xlu0 %v7346, 8
        %v9500 = vpop.permute.xlu0 %9499
        %9501 = vrot.lane.b32.xlu0 %v7351, 8
        %v9502 = vpop.permute.xlu0 %9501
        %9503 = vrot.lane.b32.xlu0 %v7356, 8
        %v9504 = vpop.permute.xlu0 %9503
        %9505 = vrot.lane.b32.xlu0 %v7361, 8
        %v9506 = vpop.permute.xlu0 %9505
        %9507 = vrot.lane.b32.xlu0 %v7455, 8
        %v9508 = vpop.permute.xlu0 %9507
        %9509 = vrot.lane.b32.xlu0 %v7460, 8
        %v9510 = vpop.permute.xlu0 %9509
        %9511 = vrot.lane.b32.xlu0 %v7465, 8
        %v9512 = vpop.permute.xlu0 %9511
        %9513 = vrot.lane.b32.xlu0 %v7470, 8
        %v9514 = vpop.permute.xlu0 %9513
        %9515 = vrot.lane.b32.xlu0 %v7564, 8
        %v9516 = vpop.permute.xlu0 %9515
        %9517 = vrot.lane.b32.xlu0 %v7569, 8
        %v9518 = vpop.permute.xlu0 %9517
        %9519 = vrot.lane.b32.xlu0 %v7574, 8
        %v9520 = vpop.permute.xlu0 %9519
        %9521 = vrot.lane.b32.xlu0 %v7579, 8
        %v9522 = vpop.permute.xlu0 %9521
        %9523 = vrot.lane.b32.xlu0 %v7673, 8
        %v9524 = vpop.permute.xlu0 %9523
        %9525 = vrot.lane.b32.xlu0 %v7678, 8
        %v9526 = vpop.permute.xlu0 %9525
        %9527 = vrot.lane.b32.xlu0 %v7683, 8
        %v9528 = vpop.permute.xlu0 %9527
        %9529 = vrot.lane.b32.xlu0 %v7688, 8
        %v9530 = vpop.permute.xlu0 %9529
        %9595 = vrot.lane.b32.xlu0 %v7782, 16
        %v9596 = vpop.permute.xlu0 %9595
        %9597 = vrot.lane.b32.xlu0 %v7787, 16
        %v9598 = vpop.permute.xlu0 %9597
        %9599 = vrot.lane.b32.xlu0 %v7792, 16
        %v9600 = vpop.permute.xlu0 %9599
        %9601 = vrot.lane.b32.xlu0 %v7797, 16
        %v9602 = vpop.permute.xlu0 %9601
        %9603 = vrot.lane.b32.xlu0 %v7891, 16
        %v9604 = vpop.permute.xlu0 %9603
        %9605 = vrot.lane.b32.xlu0 %v7896, 16
        %v9606 = vpop.permute.xlu0 %9605
        %9607 = vrot.lane.b32.xlu0 %v7901, 16
        %v9608 = vpop.permute.xlu0 %9607
        %9609 = vrot.lane.b32.xlu0 %v7906, 16
        %v9610 = vpop.permute.xlu0 %9609
        %9611 = vrot.lane.b32.xlu0 %v8000, 16
        %v9612 = vpop.permute.xlu0 %9611
        %9613 = vrot.lane.b32.xlu0 %v8005, 16
        %v9614 = vpop.permute.xlu0 %9613
        %9615 = vrot.lane.b32.xlu0 %v8010, 16
        %v9616 = vpop.permute.xlu0 %9615
        %9617 = vrot.lane.b32.xlu0 %v8015, 16
        %v9618 = vpop.permute.xlu0 %9617
        %9619 = vrot.lane.b32.xlu0 %v8109, 16
        %v9620 = vpop.permute.xlu0 %9619
        %9621 = vrot.lane.b32.xlu0 %v8114, 16
        %v9622 = vpop.permute.xlu0 %9621
        %9623 = vrot.lane.b32.xlu0 %v8119, 16
        %v9624 = vpop.permute.xlu0 %9623
        %9625 = vrot.lane.b32.xlu0 %v8124, 16
        %v9626 = vpop.permute.xlu0 %9625
        %9627 = vrot.lane.b32.xlu0 %v8218, 16
        %v9628 = vpop.permute.xlu0 %9627
        %9629 = vrot.lane.b32.xlu0 %v8223, 16
        %v9630 = vpop.permute.xlu0 %9629
        %9631 = vrot.lane.b32.xlu0 %v8228, 16
        %v9632 = vpop.permute.xlu0 %9631
        %9633 = vrot.lane.b32.xlu0 %v8233, 16
        %v9634 = vpop.permute.xlu0 %9633
        %9635 = vrot.lane.b32.xlu0 %v8327, 16
        %v9636 = vpop.permute.xlu0 %9635
        %9637 = vrot.lane.b32.xlu0 %v8332, 16
        %v9638 = vpop.permute.xlu0 %9637
        %9639 = vrot.lane.b32.xlu0 %v8337, 16
        %v9640 = vpop.permute.xlu0 %9639
        %9641 = vrot.lane.b32.xlu0 %v8342, 16
        %v9642 = vpop.permute.xlu0 %9641
        %9643 = vrot.lane.b32.xlu0 %v8436, 16
        %v9644 = vpop.permute.xlu0 %9643
        %9645 = vrot.lane.b32.xlu0 %v8441, 16
        %v9646 = vpop.permute.xlu0 %9645
        %9647 = vrot.lane.b32.xlu0 %v8446, 16
        %v9648 = vpop.permute.xlu0 %9647
        %9649 = vrot.lane.b32.xlu0 %v8451, 16
        %v9650 = vpop.permute.xlu0 %9649
        %9651 = vrot.lane.b32.xlu0 %v8545, 16
        %v9652 = vpop.permute.xlu0 %9651
        %9653 = vrot.lane.b32.xlu0 %v8550, 16
        %v9654 = vpop.permute.xlu0 %9653
        %9655 = vrot.lane.b32.xlu0 %v8555, 16
        %v9656 = vpop.permute.xlu0 %9655
        %9657 = vrot.lane.b32.xlu0 %v8560, 16
        %v9658 = vpop.permute.xlu0 %9657
        %9723 = vrot.lane.b32.xlu0 %v8654, 24
        %v9724 = vpop.permute.xlu0 %9723
        %9725 = vrot.lane.b32.xlu0 %v8659, 24
        %v9726 = vpop.permute.xlu0 %9725
        %9727 = vrot.lane.b32.xlu0 %v8664, 24
        %v9728 = vpop.permute.xlu0 %9727
        %9729 = vrot.lane.b32.xlu0 %v8669, 24
        %v9730 = vpop.permute.xlu0 %9729
        %9731 = vrot.lane.b32.xlu0 %v8763, 24
        %v9732 = vpop.permute.xlu0 %9731
        %9733 = vrot.lane.b32.xlu0 %v8768, 24
        %v9734 = vpop.permute.xlu0 %9733
        %9735 = vrot.lane.b32.xlu0 %v8773, 24
        %v9736 = vpop.permute.xlu0 %9735
        %9737 = vrot.lane.b32.xlu0 %v8778, 24
        %v9738 = vpop.permute.xlu0 %9737
        %9739 = vrot.lane.b32.xlu0 %v8872, 24
        %v9740 = vpop.permute.xlu0 %9739
        %9741 = vrot.lane.b32.xlu0 %v8877, 24
        %v9742 = vpop.permute.xlu0 %9741
        %9743 = vrot.lane.b32.xlu0 %v8882, 24
        %v9744 = vpop.permute.xlu0 %9743
        %9745 = vrot.lane.b32.xlu0 %v8887, 24
        %v9746 = vpop.permute.xlu0 %9745
        %9747 = vrot.lane.b32.xlu0 %v8981, 24
        %v9748 = vpop.permute.xlu0 %9747
        %9749 = vrot.lane.b32.xlu0 %v8986, 24
        %v9750 = vpop.permute.xlu0 %9749
        %9751 = vrot.lane.b32.xlu0 %v8991, 24
        %v9752 = vpop.permute.xlu0 %9751
        %9753 = vrot.lane.b32.xlu0 %v8996, 24
        %v9754 = vpop.permute.xlu0 %9753
        %9755 = vrot.lane.b32.xlu0 %v9090, 24
        %v9756 = vpop.permute.xlu0 %9755
        %9757 = vrot.lane.b32.xlu0 %v9095, 24
        %v9758 = vpop.permute.xlu0 %9757
        %9759 = vrot.lane.b32.xlu0 %v9100, 24
        %v9760 = vpop.permute.xlu0 %9759
        %9761 = vrot.lane.b32.xlu0 %v9105, 24
        %v9762 = vpop.permute.xlu0 %9761
        %9763 = vrot.lane.b32.xlu0 %v9199, 24
        %v9764 = vpop.permute.xlu0 %9763
        %9765 = vrot.lane.b32.xlu0 %v9204, 24
        %v9766 = vpop.permute.xlu0 %9765
        %9767 = vrot.lane.b32.xlu0 %v9209, 24
        %v9768 = vpop.permute.xlu0 %9767
        %9769 = vrot.lane.b32.xlu0 %v9214, 24
        %v9770 = vpop.permute.xlu0 %9769
        %9771 = vrot.lane.b32.xlu0 %v9308, 24
        %v9772 = vpop.permute.xlu0 %9771
        %9773 = vrot.lane.b32.xlu0 %v9313, 24
        %v9774 = vpop.permute.xlu0 %9773
        %9775 = vrot.lane.b32.xlu0 %v9318, 24
        %v9776 = vpop.permute.xlu0 %9775
        %9777 = vrot.lane.b32.xlu0 %v9323, 24
        %v9778 = vpop.permute.xlu0 %9777
        %9779 = vrot.lane.b32.xlu0 %v9417, 24
        %v9780 = vpop.permute.xlu0 %9779
        %9781 = vrot.lane.b32.xlu0 %v9422, 24
        %v9782 = vpop.permute.xlu0 %9781
        %9783 = vrot.lane.b32.xlu0 %v9427, 24
        %v9784 = vpop.permute.xlu0 %9783
        %9785 = vrot.lane.b32.xlu0 %v9432, 24
        %v9786 = vpop.permute.xlu0 %9785
        %v9819 = vsel %vm914, %v6038, %v9468
        %v9820 = vsel %vm914, %v6043, %v9470
        %v9821 = vsel %vm914, %v6048, %v9472
        %v9822 = vsel %vm914, %v6053, %v9474
        %v9823 = vsel %vm914, %v6147, %v9476
        %v9824 = vsel %vm914, %v6152, %v9478
        %v9825 = vsel %vm914, %v6157, %v9480
        %v9826 = vsel %vm914, %v6162, %v9482
        %v9827 = vsel %vm914, %v6256, %v9484
        %v9828 = vsel %vm914, %v6261, %v9486
        %v9829 = vsel %vm914, %v6266, %v9488
        %v9830 = vsel %vm914, %v6271, %v9490
        %v9831 = vsel %vm914, %v6365, %v9492
        %v9832 = vsel %vm914, %v6370, %v9494
        %v9833 = vsel %vm914, %v6375, %v9496
        %v9834 = vsel %vm914, %v6380, %v9498
        %v9835 = vsel %vm914, %v6474, %v9500
        %v9836 = vsel %vm914, %v6479, %v9502
        %v9837 = vsel %vm914, %v6484, %v9504
        %v9838 = vsel %vm914, %v6489, %v9506
        %v9839 = vsel %vm914, %v6583, %v9508
        %v9840 = vsel %vm914, %v6588, %v9510
        %v9841 = vsel %vm914, %v6593, %v9512
        %v9842 = vsel %vm914, %v6598, %v9514
        %v9843 = vsel %vm914, %v6692, %v9516
        %v9844 = vsel %vm914, %v6697, %v9518
        %v9845 = vsel %vm914, %v6702, %v9520
        %v9846 = vsel %vm914, %v6707, %v9522
        %v9847 = vsel %vm914, %v6801, %v9524
        %v9848 = vsel %vm914, %v6806, %v9526
        %v9849 = vsel %vm914, %v6811, %v9528
        %v9850 = vsel %vm914, %v6816, %v9530
        %vm9851 = vcmask 130048
        %v9852 = vsel %vm9851, %v9819, %v9596
        %v9853 = vsel %vm9851, %v9820, %v9598
        %v9854 = vsel %vm9851, %v9821, %v9600
        %v9855 = vsel %vm9851, %v9822, %v9602
        %v9856 = vsel %vm9851, %v9823, %v9604
        %v9857 = vsel %vm9851, %v9824, %v9606
        %v9858 = vsel %vm9851, %v9825, %v9608
        %v9859 = vsel %vm9851, %v9826, %v9610
        %v9860 = vsel %vm9851, %v9827, %v9612
        %v9861 = vsel %vm9851, %v9828, %v9614
        %v9862 = vsel %vm9851, %v9829, %v9616
        %v9863 = vsel %vm9851, %v9830, %v9618
        %v9864 = vsel %vm9851, %v9831, %v9620
        %v9865 = vsel %vm9851, %v9832, %v9622
        %v9866 = vsel %vm9851, %v9833, %v9624
        %v9867 = vsel %vm9851, %v9834, %v9626
        %v9868 = vsel %vm9851, %v9835, %v9628
        %v9869 = vsel %vm9851, %v9836, %v9630
        %v9870 = vsel %vm9851, %v9837, %v9632
        %v9871 = vsel %vm9851, %v9838, %v9634
        %v9872 = vsel %vm9851, %v9839, %v9636
        %v9873 = vsel %vm9851, %v9840, %v9638
        %v9874 = vsel %vm9851, %v9841, %v9640
        %v9875 = vsel %vm9851, %v9842, %v9642
        %v9876 = vsel %vm9851, %v9843, %v9644
        %v9877 = vsel %vm9851, %v9844, %v9646
        %v9878 = vsel %vm9851, %v9845, %v9648
        %v9879 = vsel %vm9851, %v9846, %v9650
        %v9880 = vsel %vm9851, %v9847, %v9652
        %v9881 = vsel %vm9851, %v9848, %v9654
        %v9882 = vsel %vm9851, %v9849, %v9656
        %v9883 = vsel %vm9851, %v9850, %v9658
        %vm9884 = vcmask 195584
        %v9885 = vsel %vm9884, %v9852, %v9724
        %v9886 = vsel %vm9884, %v9853, %v9726
        %v9887 = vsel %vm9884, %v9854, %v9728
        %v9888 = vsel %vm9884, %v9855, %v9730
        %v9889 = vsel %vm9884, %v9856, %v9732
        %v9890 = vsel %vm9884, %v9857, %v9734
        %v9891 = vsel %vm9884, %v9858, %v9736
        %v9892 = vsel %vm9884, %v9859, %v9738
        %v9893 = vsel %vm9884, %v9860, %v9740
        %v9894 = vsel %vm9884, %v9861, %v9742
        %v9895 = vsel %vm9884, %v9862, %v9744
        %v9896 = vsel %vm9884, %v9863, %v9746
        %v9897 = vsel %vm9884, %v9864, %v9748
        %v9898 = vsel %vm9884, %v9865, %v9750
        %v9899 = vsel %vm9884, %v9866, %v9752
        %v9900 = vsel %vm9884, %v9867, %v9754
        %v9901 = vsel %vm9884, %v9868, %v9756
        %v9902 = vsel %vm9884, %v9869, %v9758
        %v9903 = vsel %vm9884, %v9870, %v9760
        %v9904 = vsel %vm9884, %v9871, %v9762
        %v9905 = vsel %vm9884, %v9872, %v9764
        %v9906 = vsel %vm9884, %v9873, %v9766
        %v9907 = vsel %vm9884, %v9874, %v9768
        %v9908 = vsel %vm9884, %v9875, %v9770
        %v9909 = vsel %vm9884, %v9876, %v9772
        %v9910 = vsel %vm9884, %v9877, %v9774
        %v9911 = vsel %vm9884, %v9878, %v9776
        %v9912 = vsel %vm9884, %v9879, %v9778
        %v9913 = vsel %vm9884, %v9880, %v9780
        %v9914 = vsel %vm9884, %v9881, %v9782
        %v9915 = vsel %vm9884, %v9882, %v9784
        %v9916 = vsel %vm9884, %v9883, %v9786
        %v9917 = vld [vmem:[#allocation8] sm:$0xff]
        %v9918 = vld [vmem:[#allocation8 + $0x8] sm:$0xff]
        %v9919 = vld [vmem:[#allocation8 + $0x10] sm:$0xff]
        %v9920 = vld [vmem:[#allocation8 + $0x18] sm:$0xff]
        %v9921 = vld [vmem:[%s5] sm:$0x1]
        %v9923 = vlaneseq
        %v9924 = vshrl.u32 %v9923, 7
        %v9925 = vsub.s32 0, %v9924
        %v9926 = vrot.slane %v9921, %v9925
        %v9929 = vsel %vm360, %v9885, 0
        %v9932 = vsel %vm360, %v9886, 0
        %v9935 = vsel %vm360, %v9887, 0
        %v9938 = vsel %vm360, %v9888, 0
        %v9941 = vsel %vm360, %v9889, 0
        %v9944 = vsel %vm360, %v9890, 0
        %v9947 = vsel %vm360, %v9891, 0
        %v9950 = vsel %vm360, %v9892, 0
        %v9953 = vsel %vm360, %v9893, 0
        %v9956 = vsel %vm360, %v9894, 0
        %v9959 = vsel %vm360, %v9895, 0
        %v9962 = vsel %vm360, %v9896, 0
        %v9965 = vsel %vm360, %v9897, 0
        %v9968 = vsel %vm360, %v9898, 0
        %v9971 = vsel %vm360, %v9899, 0
        %v9974 = vsel %vm360, %v9900, 0
        %v9977 = vsel %vm360, %v9901, 0
        %v9980 = vsel %vm360, %v9902, 0
        %v9983 = vsel %vm360, %v9903, 0
        %v9986 = vsel %vm360, %v9904, 0
        %v9989 = vsel %vm360, %v9905, 0
        %v9992 = vsel %vm360, %v9906, 0
        %v9995 = vsel %vm360, %v9907, 0
        %v9998 = vsel %vm360, %v9908, 0
        %v10001 = vsel %vm360, %v9909, 0
        %v10004 = vsel %vm360, %v9910, 0
        %v10007 = vsel %vm360, %v9911, 0
        %v10010 = vsel %vm360, %v9912, 0
        %v10013 = vsel %vm360, %v9913, 0
        %v10016 = vsel %vm360, %v9914, 0
        %v10019 = vsel %vm360, %v9915, 0
        %v10022 = vsel %vm360, %v9916, 0
        %10024 = vmatprep.subr.mxu0 0.0
        %10025 = vmatpush1.msra.mxu0 0.0
        %10026 = vmatprep.subr.mxu0 0.0
        %10027 = vmatpush1.msra.mxu0 0.0
        %10028 = vmatprep.subr.mxu0 0.0
        %10029 = vmatpush1.msra.mxu0 0.0
        %10030 = vmatprep.subr.mxu0 0.0
        %10031 = vmatpush1.msra.mxu0 0.0
        %10032 = vmatprep.subr.mxu0 0.0
        %10033 = vmatpush1.msra.mxu0 0.0
        %10034 = vmatprep.subr.mxu0 0.0
        %10035 = vmatpush1.msra.mxu0 0.0
        %10036 = vmatprep.subr.mxu0 0.0
        %10037 = vmatpush1.msra.mxu0 0.0
        %10038 = vmatprep.subr.mxu0 0.0
        %10039 = vmatpush1.msra.mxu0 0.0
        %10040 = vmatprep.subr.mxu0 0.0
        %10041 = vmatpush1.msra.mxu0 0.0
        %10042 = vmatprep.subr.mxu0 0.0
        %10043 = vmatpush1.msra.mxu0 0.0
        %10044 = vmatprep.subr.mxu0 0.0
        %10045 = vmatpush1.msra.mxu0 0.0
        %10046 = vmatprep.subr.mxu0 0.0
        %10047 = vmatpush1.msra.mxu0 0.0
        %10048 = vmatprep.subr.mxu0 0.0
        %10049 = vmatpush1.msra.mxu0 %v9920
        %10050 = vmatprep.subr.mxu0 0.0
        %10051 = vmatpush1.msra.mxu0 %v9919
        %10052 = vmatprep.subr.mxu0 0.0
        %10053 = vmatpush1.msra.mxu0 %v9918
        %10054 = vmatprep.subr.mxu0 0.0
        %10055 = vmatpush1.msra.mxu0 %v9917
        %10056 = vmatprep.subr.mxu0 0.0
        %10057 = vmatpush2.msra.mxu0 0.0
        %10058 = vmatprep.subr.mxu0 0.0
        %10059 = vmatpush2.msra.mxu0 0.0
        %10060 = vmatprep.subr.mxu0 0.0
        %10061 = vmatpush2.msra.mxu0 0.0
        %10062 = vmatprep.subr.mxu0 0.0
        %10063 = vmatpush2.msra.mxu0 0.0
        %10064 = vmatprep.subr.mxu0 0.0
        %10065 = vmatpush2.msra.mxu0 0.0
        %10066 = vmatprep.subr.mxu0 0.0
        %10067 = vmatpush2.msra.mxu0 0.0
        %10068 = vmatprep.subr.mxu0 0.0
        %10069 = vmatpush2.msra.mxu0 0.0
        %10070 = vmatprep.subr.mxu0 0.0
        %10071 = vmatpush2.msra.mxu0 0.0
        %10072 = vmatprep.subr.mxu0 0.0
        %10073 = vmatpush2.msra.mxu0 0.0
        %10074 = vmatprep.subr.mxu0 0.0
        %10075 = vmatpush2.msra.mxu0 0.0
        %10076 = vmatprep.subr.mxu0 0.0
        %10077 = vmatpush2.msra.mxu0 0.0
        %10078 = vmatprep.subr.mxu0 0.0
        %10079 = vmatpush2.msra.mxu0 0.0
        %10080 = vmatprep.subr.mxu0 0.0
        %10081 = vmatpush2.msra.mxu0 0.0
        %10082 = vmatprep.subr.mxu0 0.0
        %10083 = vmatpush2.msra.mxu0 0.0
        %10084 = vmatprep.subr.mxu0 0.0
        %10085 = vmatpush2.msra.mxu0 0.0
        %10086 = vmatprep.subr.mxu0 0.0
        %10087 = vmatpush2.msra.mxu0 0.0
        %10088 = vmatprep.mubr.f32.mxu0 0.0
        %10089 = vmatmul.mubr.f32.gmra.mxu0 %v9929
        %v10090 = vpop.f32.mrf.mxu0
        %v10091 = vadd.f32 %v9926, %v10090
        %v10092 = vpop.f32.mrf.mxu0
        %10093 = vmatprep.mubr.f32.mxu0 0.0
        %10094 = vmatmul.mubr.f32.gmra.mxu0 %v9932
        %v10095 = vpop.f32.mrf.mxu0
        %v10096 = vadd.f32 %v9926, %v10095
        %v10097 = vpop.f32.mrf.mxu0
        %10098 = vmatprep.mubr.f32.mxu0 0.0
        %10099 = vmatmul.mubr.f32.gmra.mxu0 %v9935
        %v10100 = vpop.f32.mrf.mxu0
        %v10101 = vadd.f32 %v9926, %v10100
        %v10102 = vpop.f32.mrf.mxu0
        %10103 = vmatprep.mubr.f32.mxu0 0.0
        %10104 = vmatmul.mubr.f32.gmra.mxu0 %v9938
        %v10105 = vpop.f32.mrf.mxu0
        %v10106 = vadd.f32 %v9926, %v10105
        %v10107 = vpop.f32.mrf.mxu0
        %10108 = vmatprep.mubr.f32.mxu0 0.0
        %10109 = vmatmul.mubr.f32.gmra.mxu0 %v9941
        %v10110 = vpop.f32.mrf.mxu0
        %v10111 = vadd.f32 %v9926, %v10110
        %v10112 = vpop.f32.mrf.mxu0
        %10113 = vmatprep.mubr.f32.mxu0 0.0
        %10114 = vmatmul.mubr.f32.gmra.mxu0 %v9944
        %v10115 = vpop.f32.mrf.mxu0
        %v10116 = vadd.f32 %v9926, %v10115
        %v10117 = vpop.f32.mrf.mxu0
        %10118 = vmatprep.mubr.f32.mxu0 0.0
        %10119 = vmatmul.mubr.f32.gmra.mxu0 %v9947
        %v10120 = vpop.f32.mrf.mxu0
        %v10121 = vadd.f32 %v9926, %v10120
        %v10122 = vpop.f32.mrf.mxu0
        %10123 = vmatprep.mubr.f32.mxu0 0.0
        %10124 = vmatmul.mubr.f32.gmra.mxu0 %v9950
        %v10125 = vpop.f32.mrf.mxu0
        %v10126 = vadd.f32 %v9926, %v10125
        %v10127 = vpop.f32.mrf.mxu0
        %10128 = vmatprep.mubr.f32.mxu0 0.0
        %10129 = vmatmul.mubr.f32.gmra.mxu0 %v9953
        %v10130 = vpop.f32.mrf.mxu0
        %v10131 = vadd.f32 %v9926, %v10130
        %v10132 = vpop.f32.mrf.mxu0
        %10133 = vmatprep.mubr.f32.mxu0 0.0
        %10134 = vmatmul.mubr.f32.gmra.mxu0 %v9956
        %v10135 = vpop.f32.mrf.mxu0
        %v10136 = vadd.f32 %v9926, %v10135
        %v10137 = vpop.f32.mrf.mxu0
        %10138 = vmatprep.mubr.f32.mxu0 0.0
        %10139 = vmatmul.mubr.f32.gmra.mxu0 %v9959
        %v10140 = vpop.f32.mrf.mxu0
        %v10141 = vadd.f32 %v9926, %v10140
        %v10142 = vpop.f32.mrf.mxu0
        %10143 = vmatprep.mubr.f32.mxu0 0.0
        %10144 = vmatmul.mubr.f32.gmra.mxu0 %v9962
        %v10145 = vpop.f32.mrf.mxu0
        %v10146 = vadd.f32 %v9926, %v10145
        %v10147 = vpop.f32.mrf.mxu0
        %10148 = vmatprep.mubr.f32.mxu0 0.0
        %10149 = vmatmul.mubr.f32.gmra.mxu0 %v9965
        %v10150 = vpop.f32.mrf.mxu0
        %v10151 = vadd.f32 %v9926, %v10150
        %v10152 = vpop.f32.mrf.mxu0
        %10153 = vmatprep.mubr.f32.mxu0 0.0
        %10154 = vmatmul.mubr.f32.gmra.mxu0 %v9968
        %v10155 = vpop.f32.mrf.mxu0
        %v10156 = vadd.f32 %v9926, %v10155
        %v10157 = vpop.f32.mrf.mxu0
        %10158 = vmatprep.mubr.f32.mxu0 0.0
        %10159 = vmatmul.mubr.f32.gmra.mxu0 %v9971
        %v10160 = vpop.f32.mrf.mxu0
        %v10161 = vadd.f32 %v9926, %v10160
        %v10162 = vpop.f32.mrf.mxu0
        %10163 = vmatprep.mubr.f32.mxu0 0.0
        %10164 = vmatmul.mubr.f32.gmra.mxu0 %v9974
        %v10165 = vpop.f32.mrf.mxu0
        %v10166 = vadd.f32 %v9926, %v10165
        %v10167 = vpop.f32.mrf.mxu0
        %10168 = vmatprep.mubr.f32.mxu0 0.0
        %10169 = vmatmul.mubr.f32.gmra.mxu0 %v9977
        %v10170 = vpop.f32.mrf.mxu0
        %v10171 = vadd.f32 %v9926, %v10170
        %v10172 = vpop.f32.mrf.mxu0
        %10173 = vmatprep.mubr.f32.mxu0 0.0
        %10174 = vmatmul.mubr.f32.gmra.mxu0 %v9980
        %v10175 = vpop.f32.mrf.mxu0
        %v10176 = vadd.f32 %v9926, %v10175
        %v10177 = vpop.f32.mrf.mxu0
        %10178 = vmatprep.mubr.f32.mxu0 0.0
        %10179 = vmatmul.mubr.f32.gmra.mxu0 %v9983
        %v10180 = vpop.f32.mrf.mxu0
        %v10181 = vadd.f32 %v9926, %v10180
        %v10182 = vpop.f32.mrf.mxu0
        %10183 = vmatprep.mubr.f32.mxu0 0.0
        %10184 = vmatmul.mubr.f32.gmra.mxu0 %v9986
        %v10185 = vpop.f32.mrf.mxu0
        %v10186 = vadd.f32 %v9926, %v10185
        %v10187 = vpop.f32.mrf.mxu0
        %10188 = vmatprep.mubr.f32.mxu0 0.0
        %10189 = vmatmul.mubr.f32.gmra.mxu0 %v9989
        %v10190 = vpop.f32.mrf.mxu0
        %v10191 = vadd.f32 %v9926, %v10190
        %v10192 = vpop.f32.mrf.mxu0
        %10193 = vmatprep.mubr.f32.mxu0 0.0
        %10194 = vmatmul.mubr.f32.gmra.mxu0 %v9992
        %v10195 = vpop.f32.mrf.mxu0
        %v10196 = vadd.f32 %v9926, %v10195
        %v10197 = vpop.f32.mrf.mxu0
        %10198 = vmatprep.mubr.f32.mxu0 0.0
        %10199 = vmatmul.mubr.f32.gmra.mxu0 %v9995
        %v10200 = vpop.f32.mrf.mxu0
        %v10201 = vadd.f32 %v9926, %v10200
        %v10202 = vpop.f32.mrf.mxu0
        %10203 = vmatprep.mubr.f32.mxu0 0.0
        %10204 = vmatmul.mubr.f32.gmra.mxu0 %v9998
        %v10205 = vpop.f32.mrf.mxu0
        %v10206 = vadd.f32 %v9926, %v10205
        %v10207 = vpop.f32.mrf.mxu0
        %10208 = vmatprep.mubr.f32.mxu0 0.0
        %10209 = vmatmul.mubr.f32.gmra.mxu0 %v10001
        %v10210 = vpop.f32.mrf.mxu0
        %v10211 = vadd.f32 %v9926, %v10210
        %v10212 = vpop.f32.mrf.mxu0
        %10213 = vmatprep.mubr.f32.mxu0 0.0
        %10214 = vmatmul.mubr.f32.gmra.mxu0 %v10004
        %v10215 = vpop.f32.mrf.mxu0
        %v10216 = vadd.f32 %v9926, %v10215
        %v10217 = vpop.f32.mrf.mxu0
        %10218 = vmatprep.mubr.f32.mxu0 0.0
        %10219 = vmatmul.mubr.f32.gmra.mxu0 %v10007
        %v10220 = vpop.f32.mrf.mxu0
        %v10221 = vadd.f32 %v9926, %v10220
        %v10222 = vpop.f32.mrf.mxu0
        %10223 = vmatprep.mubr.f32.mxu0 0.0
        %10224 = vmatmul.mubr.f32.gmra.mxu0 %v10010
        %v10225 = vpop.f32.mrf.mxu0
        %v10226 = vadd.f32 %v9926, %v10225
        %v10227 = vpop.f32.mrf.mxu0
        %10228 = vmatprep.mubr.f32.mxu0 0.0
        %10229 = vmatmul.mubr.f32.gmra.mxu0 %v10013
        %v10230 = vpop.f32.mrf.mxu0
        %v10231 = vadd.f32 %v9926, %v10230
        %v10232 = vpop.f32.mrf.mxu0
        %10233 = vmatprep.mubr.f32.mxu0 0.0
        %10234 = vmatmul.mubr.f32.gmra.mxu0 %v10016
        %v10235 = vpop.f32.mrf.mxu0
        %v10236 = vadd.f32 %v9926, %v10235
        %v10237 = vpop.f32.mrf.mxu0
        %10238 = vmatprep.mubr.f32.mxu0 0.0
        %10239 = vmatmul.mubr.f32.gmra.mxu0 %v10019
        %v10240 = vpop.f32.mrf.mxu0
        %v10241 = vadd.f32 %v9926, %v10240
        %v10242 = vpop.f32.mrf.mxu0
        %10243 = vmatprep.mubr.f32.mxu0 0.0
        %10244 = vmatmul.mubr.f32.gmra.mxu0 %v10022
        %v10245 = vpop.f32.mrf.mxu0
        %v10246 = vadd.f32 %v9926, %v10245
        %v10247 = vpop.f32.mrf.mxu0
        %10248 = vdwg.mxu0
        %10249 = vst.msk [vmem:[%s314] sm:$0xff] %vm360, %v10091
        %10250 = vst.msk [vmem:[%s314 + $0x8] sm:$0xff] %vm360, %v10096
        %10251 = vst.msk [vmem:[%s314 + $0x10] sm:$0xff] %vm360, %v10101
        %10252 = vst.msk [vmem:[%s314 + $0x18] sm:$0xff] %vm360, %v10106
        %10253 = vst.msk [vmem:[%s314 + $0x20] sm:$0xff] %vm360, %v10111
        %10254 = vst.msk [vmem:[%s314 + $0x28] sm:$0xff] %vm360, %v10116
        %10255 = vst.msk [vmem:[%s314 + $0x30] sm:$0xff] %vm360, %v10121
        %10256 = vst.msk [vmem:[%s314 + $0x38] sm:$0xff] %vm360, %v10126
        %10257 = vst.msk [vmem:[%s314 + $0x40] sm:$0xff] %vm360, %v10131
        %10258 = vst.msk [vmem:[%s314 + $0x48] sm:$0xff] %vm360, %v10136
        %10259 = vst.msk [vmem:[%s314 + $0x50] sm:$0xff] %vm360, %v10141
        %10260 = vst.msk [vmem:[%s314 + $0x58] sm:$0xff] %vm360, %v10146
        %10261 = vst.msk [vmem:[%s314 + $0x60] sm:$0xff] %vm360, %v10151
        %10262 = vst.msk [vmem:[%s314 + $0x68] sm:$0xff] %vm360, %v10156
        %10263 = vst.msk [vmem:[%s314 + $0x70] sm:$0xff] %vm360, %v10161
        %10264 = vst.msk [vmem:[%s314 + $0x78] sm:$0xff] %vm360, %v10166
        %10265 = vst.msk [vmem:[%s314 + $0x80] sm:$0xff] %vm360, %v10171
        %10266 = vst.msk [vmem:[%s314 + $0x88] sm:$0xff] %vm360, %v10176
        %10267 = vst.msk [vmem:[%s314 + $0x90] sm:$0xff] %vm360, %v10181
        %10268 = vst.msk [vmem:[%s314 + $0x98] sm:$0xff] %vm360, %v10186
        %10269 = vst.msk [vmem:[%s314 + $0xa0] sm:$0xff] %vm360, %v10191
        %10270 = vst.msk [vmem:[%s314 + $0xa8] sm:$0xff] %vm360, %v10196
        %10271 = vst.msk [vmem:[%s314 + $0xb0] sm:$0xff] %vm360, %v10201
        %10272 = vst.msk [vmem:[%s314 + $0xb8] sm:$0xff] %vm360, %v10206
        %10273 = vst.msk [vmem:[%s314 + $0xc0] sm:$0xff] %vm360, %v10211
        %10274 = vst.msk [vmem:[%s314 + $0xc8] sm:$0xff] %vm360, %v10216
        %10275 = vst.msk [vmem:[%s314 + $0xd0] sm:$0xff] %vm360, %v10221
        %10276 = vst.msk [vmem:[%s314 + $0xd8] sm:$0xff] %vm360, %v10226
        %10277 = vst.msk [vmem:[%s314 + $0xe0] sm:$0xff] %vm360, %v10231
        %10278 = vst.msk [vmem:[%s314 + $0xe8] sm:$0xff] %vm360, %v10236
        %10279 = vst.msk [vmem:[%s314 + $0xf0] sm:$0xff] %vm360, %v10241
        %10280 = vst.msk [vmem:[%s314 + $0xf8] sm:$0xff] %vm360, %v10246
        %s10281 = sand.u32 %s164, 1
        %s10282 = scalar_lea.sflag [#allocation4], %s10281
        %s10283 = sand.u32 %s164, 1
        %s10284 = smul.addr %s10283, 256
        %s10285 = scalar_lea.vmem [#allocation10], %s10284
        // Predicated region
        $region61: #{tpu_custom_call.1} parent=43 // pred_check
          %p10286 = pneg %p174
        $region62: #{tpu_custom_call.1} parent=43 // pred_check_branch
          %10288 = sbr.rel (%p10286) target = $region64
        $region63: #{tpu_custom_call.1} parent=43 // pred_region
          %s10289 = smul.u32 8, %s25
          %s10291 = ssub.s32 4096, 4096
          %10292 = vsyncadd %s10282, %s10291
          %s10293 = smul.addr %s10289, 4
          %s10294 = smul.addr %s10293, 128
          %s10295 = scalar_lea.hbm %s6, %s10294
          %s10296 = sshll.u32 %s10285, 4
          %s10297 = int_to_ptr.vmem [resolvable:$true] %s10296
          %10302 = dma.vmem_to_hbm [thread:$0]  %s10297, 4096, %s10295, %s10282, 128, 128, 8
        $region64: #{tpu_custom_call.1} parent=43 // pred_fallthru
          _
      $region44: #{tpu_custom_call.1} parent=5 // pred_fallthru
        _
      %p10303 = scmp.le.s32.totalorder 2, %s20
      // Predicated region
      $region65: #{tpu_custom_call.1} parent=5 // pred_check
        %p10304 = pneg %p10303
      $region66: #{tpu_custom_call.1} parent=5 // pred_check_branch
        %10306 = sbr.rel (%p10304) target = $region68
      $region67: #{tpu_custom_call.1} parent=5 // pred_region
        %s10307 = ssub.s32 %s20, 2
        // Predicated region
        $region69: #{tpu_custom_call.1} parent=67 // pred_check
          %p10308 = pneg %p180
        $region70: #{tpu_custom_call.1} parent=67 // pred_check_branch
          %10310 = sbr.rel (%p10308) target = $region72
        $region71: #{tpu_custom_call.1} parent=67 // pred_region
          %s10311 = sand.u32 %s165, 1
          %s10312 = scalar_lea.sflag [#allocation4], %s10311
          %s10313 = sand.u32 %s165, 1
          %s10314 = smul.addr %s10313, 256
          %s10315 = scalar_lea.vmem [#allocation10], %s10314
          %10316 = dma.done %s10312, 4096
        $region72: #{tpu_custom_call.1} parent=67 // pred_fallthru
          _
      $region68: #{tpu_custom_call.1} parent=5 // pred_fallthru
        _
    $region6: #{tpu_custom_call.1} parent=1 // loop_footer
      %s24 = sadd.s32 1, %s20
    $region7: #{tpu_custom_call.1} parent=1 // loop_footer_branch
      %19 = sbr.rel target = $region3
    $region8: #{tpu_custom_call.1} parent=1 // loop_exit
      _
    %10317 = vsyncpa [#allocation3], 1
    %s10318 = scalar_lea.sflag [#allocation3], 1
    %10319 = vsyncpa %s10318, 1
    %10320 = vsyncpa [#allocation6], 1
    %10321 = vsyncpa [#allocation9], 1
    %10322 = vsyncpa [#allocation4], 1
    %s10323 = scalar_lea.sflag [#allocation4], 1
    %10324 = vsyncpa %s10323, 1

</llo_original>
